<compile_context>
chip_gen: v6e
topology: v6e:2x2x1
jax: 0.10.0
libtpu: 0.0.40
codegen_flags: <defaults>
</compile_context>

<pallas_src>
import jax
import jax.numpy as jnp
from jax import lax
from jax.experimental import pallas as pl
from jax.experimental.pallas import tpu as pltpu

BN_EPS = 1e-3
SOFTPLUS_THRESH = 20.0
PADL = 128  # aligned lane end-padding of the conv scratch (>= K//2 * (W + 1))


# ----------------------------------------------------------------------------
# Pallas kernel: whole T-step recurrence, activations in (C, N*H*W) layout
# ----------------------------------------------------------------------------
def make_convgru_kernel(N, H, W, Cip, Ch, K):
  NHW = N * H * W
  HP = K // 2

  def kernel(x_ref, state0_ref, wxe_ref, wg_ref, winh_ref, wexc_ref,
             par_ref, msk_ref, out_ref, state_scr, vpad_ref, col_ref):
    t = pl.program_id(0)

    @pl.when(t == 0)
    def _init():
      # state_scr layout: rows [0:Ch) excitation, [Ch:2Ch) inhibition
      state_scr[...] = state0_ref[...]
      # zero only the two aligned 128-lane end pads of the conv scratch once;
      # the interior is fully overwritten before every read and the pads keep
      # the masked tap reads finite.
      zpad = jnp.zeros((Ch, PADL), jnp.float32)
      vpad_ref[:, 0:PADL] = zpad
      vpad_ref[:, PADL + NHW:PADL + NHW + PADL] = zpad

    exc = state_scr[0:Ch, :]                        # (Ch, NHW) f32
    inh = state_scr[Ch:2 * Ch, :]
    x = x_ref[...]                                  # (Cip, NHW) f32 (zero-padded chans)

    def pcol(i):                                    # (Ch, 1) per-channel params
      return par_ref[:, i:i + 1]

    a_b, ff_b, iw_b, ew_b = pcol(0), pcol(1), pcol(2), pcol(3)
    alpha, mu, kappa, gamma = pcol(4), pcol(5), pcol(6), pcol(7)
    bn0_w, bn0_b, bn1_w, bn1_b = pcol(8), pcol(9), pcol(10), pcol(11)

    def sigmoid(v):
      # exact identity; one EUP tanh + two cheap VPU ops (review item).
      return 0.5 * (jnp.tanh(0.5 * v) + 1.0)

    def softplus(v):                                # matches F.softplus
      safe = jnp.minimum(v, SOFTPLUS_THRESH)
      return jnp.where(v > SOFTPLUS_THRESH, v, jnp.log(1.0 + jnp.exp(safe)))

    inv_nhw = 1.0 / float(NHW)

    def batchnorm(v, w, b):
      # two-pass batch statistics on the XLU (lane reductions); avoids both
      # the f32 MXU matmul and the E[x^2]-mean^2 cancellation of v2.
      mean = jnp.sum(v, axis=1, keepdims=True) * inv_nhw
      c = v - mean
      var = jnp.sum(c * c, axis=1, keepdims=True) * inv_nhw
      return c * (lax.rsqrt(var + BN_EPS) * w) + b

    def spatial_conv(v, w_ref):
      # v: (Ch, NHW) f32; w_ref: (Ch, K*K*Ch) bf16  ->  (Ch, NHW) f32
      # transposed im2col: one aligned interior store, then per tap a
      # lane-shifted read * precomputed validity mask written as a full
      # 512-lane row block of the slab; one deep MXU contraction at the end.
      vpad_ref[:, PADL:PADL + NHW] = v
      for tap in range(K * K):
        di = tap // K - HP
        dj = tap % K - HP
        s = di * W + dj
        shifted = vpad_ref[:, PADL + s:PADL + s + NHW]          # (Ch, NHW)
        col_ref[tap * Ch:(tap + 1) * Ch, :] = (
            shifted * msk_ref[tap:tap + 1, :]).astype(jnp.bfloat16)
      return jnp.dot(w_ref[...], col_ref[...],
                     preferred_element_type=jnp.float32)

    # ---- fused 1x1 convs: [a_wu_x|a_wu_h], ff, i_w_x in one 512-lane dot ----
    xe = jnp.concatenate([x, exc], axis=0).astype(jnp.bfloat16)  # (Cip+Ch, NHW)
    xw = jnp.dot(wxe_ref[...], xe, preferred_element_type=jnp.float32)

    # ---- attention gate ----
    att = sigmoid(xw[0:Ch, :] + a_b)
    gated_exc = att * exc
    gated_inh = att

    # ---- inhibition update ----
    inh_intx = batchnorm(spatial_conv(gated_exc, winh_ref), bn0_w, bn0_b)
    ff = softplus(xw[Ch:2 * Ch, :] + ff_b)
    inhibition_hat = softplus(
        ff - softplus(inh_intx * (alpha * gated_inh + mu)))

    # fused [i_w_h | e_w_i | e_w_e] block matmul on [gated_inh ; gated_exc]
    gig = jnp.concatenate([gated_inh, gated_exc], axis=0).astype(jnp.bfloat16)
    g2 = jnp.dot(wg_ref[...], gig, preferred_element_type=jnp.float32)

    inh_gate = sigmoid(xw[2 * Ch:3 * Ch, :] + g2[0:Ch, :] + iw_b)
    inhibition = (1.0 - inh_gate) * inh + inh_gate * inhibition_hat

    # ---- excitation update ----
    exc_gate = sigmoid(g2[Ch:2 * Ch, :] + ew_b)
    exc_intx = batchnorm(spatial_conv(inhibition, wexc_ref), bn1_w, bn1_b)
    excitation_hat = softplus(exc_intx * (kappa * inhibition + gamma))
    excitation = (1.0 - exc_gate) * exc + exc_gate * excitation_hat

    # carry the state in VMEM scratch; write the output (lane-dense, 512 wide)
    # directly — no concat temp.
    state_scr[0:Ch, :] = excitation
    state_scr[Ch:2 * Ch, :] = inhibition
    out_ref[0:Ch, :] = excitation
    out_ref[Ch:2 * Ch, :] = inhibition

  return kernel


# ----------------------------------------------------------------------------
# Wrapper helpers: weight packing, tap masks, layout glue (all hoisted out of
# the recurrence — done once per sequence, not per timestep)
# ----------------------------------------------------------------------------
def prepare_params(params, Ci, K):
  Ch = params['w_inh'].shape[0]
  Cip = max(8, ((Ci + 7) // 8) * 8)        # pad x channels for aligned concat
  f32, bf = jnp.float32, jnp.bfloat16

  def m1x1(w):                              # (Co, Cin, 1, 1) -> (Co, Cin)
    return w[:, :, 0, 0].astype(f32)

  A = m1x1(params['a_w'])
  Wa_x, Wa_h = A[:, :Ci], A[:, Ci:]
  Wff = m1x1(params['ff_w'])
  I = m1x1(params['iw_w'])
  Wi_x, Wi_h = I[:, :Ci], I[:, Ci:]
  E = m1x1(params['ew_w'])
  We_e, We_i = E[:, :Ch], E[:, Ch:]

  # fused [a_wu | ff | i_w_x] weight acting on [x_pad ; exc]  -> (3Ch, Cip+Ch)
  wxe = jnp.zeros((3 * Ch, Cip + Ch), f32)
  wxe = wxe.at[0:Ch, 0:Ci].set(Wa_x).at[0:Ch, Cip:].set(Wa_h)
  wxe = wxe.at[Ch:2 * Ch, 0:Ci].set(Wff)
  wxe = wxe.at[2 * Ch:3 * Ch, 0:Ci].set(Wi_x)

  # fused block weight acting on [gated_inh ; gated_exc] -> (2Ch, 2Ch)
  wg = jnp.zeros((2 * Ch, 2 * Ch), f32)
  wg = wg.at[0:Ch, 0:Ch].set(Wi_h)
  wg = wg.at[Ch:2 * Ch, 0:Ch].set(We_i).at[Ch:2 * Ch, Ch:2 * Ch].set(We_e)

  def conv_rows(w):      # (Co, Cin, K, K) -> (Co, K*K*Cin), tap-major
    return jnp.transpose(w, (0, 2, 3, 1)).reshape(Ch, K * K * Ch)

  pmat = jnp.stack([params['a_b'], params['ff_b'], params['iw_b'],
                    params['ew_b'], params['alpha'], params['mu'],
                    params['kappa'], params['gamma'],
                    params['bn0_w'], params['bn0_b'],
                    params['bn1_w'], params['bn1_b']],
                   axis=1).astype(f32)                      # (Ch, 12)

  return dict(wxe=wxe.astype(bf), wg=wg.astype(bf),
              winh=conv_rows(params['w_inh']).astype(bf),
              wexc=conv_rows(params['w_exc']).astype(bf),
              pmat=pmat, Ch=Ch, Cip=Cip)


def tap_masks(N, H, W, K):
  """(K*K, N*H*W) f32 validity masks (zero-padding conv), built once."""
  HP = K // 2
  idx = jnp.arange(N * H * W, dtype=jnp.int32)
  hh = (idx // W) % H
  ww = idx % W
  rows = []
  for tap in range(K * K):
    di, dj = tap // K - HP, tap % K - HP
    ok = ((hh + di >= 0) & (hh + di < H) & (ww + dj >= 0) & (ww + dj < W))
    rows.append(ok)
  return jnp.stack(rows, axis=0).astype(jnp.float32)


def _nchw_to_cflat(a):                       # (N, C, H, W) -> (C, N*H*W)
  N, C, H, W = a.shape
  return jnp.transpose(a, (1, 0, 2, 3)).reshape(C, N * H * W)


def _cflat_to_nchw(a, N, H, W):
  C = a.shape[0]
  return jnp.transpose(a.reshape(C, N, H, W), (1, 0, 2, 3))


# ----------------------------------------------------------------------------
# pallas_call wrapper: one call for the whole T-step recurrence
# ----------------------------------------------------------------------------
def convgru_scan_pallas(params, x_seq_nchw, inh0_nchw, exc0_nchw, K):
  """Runs T applications of the cell; returns final (excitation, inhibition)
  in NCHW.  T == 1 reproduces the module's forward exactly."""
  T, N, Ci, H, W = x_seq_nchw.shape
  Ch = params['w_inh'].shape[0]
  NHW = N * H * W

  prep = prepare_params(params, Ci, K)
  Cip = prep['Cip']

  xT = jnp.transpose(x_seq_nchw, (0, 2, 1, 3, 4)).reshape(T, Ci, NHW)
  xT = jnp.pad(xT, ((0, 0), (0, Cip - Ci), (0, 0)))          # (T, Cip, NHW)
  state0 = jnp.concatenate(
      [_nchw_to_cflat(exc0_nchw), _nchw_to_cflat(inh0_nchw)], axis=0)
  masks = tap_masks(N, H, W, K)

  kernel = make_convgru_kernel(N, H, W, Cip, Ch, K)

  # VMEM budget from the true footprint (+4x headroom); a few MiB at these
  # shapes, comfortably below v7x's 64 MiB per-TensorCore VMEM.
  est = (2 * Cip * NHW * 4 +                         # double-buffered x block
         2 * (2 * Ch) * NHW * 4 +                    # state0 + out
         2 * (prep['wxe'].size + prep['wg'].size +
              prep['winh'].size + prep['wexc'].size) +
         prep['pmat'].size * 4 + masks.size * 4 +
         (2 * Ch) * NHW * 4 +                        # state scratch
         Ch * (NHW + 2 * PADL) * 4 +                 # lane-padded conv scratch
         K * K * Ch * NHW * 2 +                      # im2col^T slab (bf16)
         24 * Ch * NHW * 4)                          # live f32 temporaries
  vmem_limit = int(min(max(4 * est, 10 << 20), 32 << 20))

  cmap = lambda t: (0, 0)
  out = pl.pallas_call(
      kernel,
      out_shape=jax.ShapeDtypeStruct((2 * Ch, NHW), jnp.float32),
      grid_spec=pltpu.PrefetchScalarGridSpec(
          num_scalar_prefetch=0,
          grid=(T,),
          in_specs=[
              pl.BlockSpec((None, Cip, NHW), lambda t: (t, 0, 0)),  # x_t
              pl.BlockSpec((2 * Ch, NHW), cmap),                    # state0
              pl.BlockSpec((3 * Ch, Cip + Ch), cmap),               # wxe
              pl.BlockSpec((2 * Ch, 2 * Ch), cmap),                 # wg
              pl.BlockSpec((Ch, K * K * Ch), cmap),                 # winh^T
              pl.BlockSpec((Ch, K * K * Ch), cmap),                 # wexc^T
              pl.BlockSpec((Ch, 12), cmap),                         # params
              pl.BlockSpec((K * K, NHW), cmap),                     # tap masks
          ],
          out_specs=pl.BlockSpec((2 * Ch, NHW), cmap),
          scratch_shapes=[
              pltpu.VMEM((2 * Ch, NHW), jnp.float32),               # state
              pltpu.VMEM((Ch, NHW + 2 * PADL), jnp.float32),        # conv pad
              pltpu.VMEM((K * K * Ch, NHW), jnp.bfloat16),          # im2col^T
          ]),
      compiler_params=pltpu.CompilerParams(
          dimension_semantics=("arbitrary",),      # state carried across T
          vmem_limit_bytes=vmem_limit),
  )(xT, state0, prep['wxe'], prep['wg'], prep['winh'], prep['wexc'],
    prep['pmat'], masks)

  exc = _cflat_to_nchw(out[:Ch], N, H, W)
  inh = _cflat_to_nchw(out[Ch:], N, H, W)
  return exc, inh


def convgru_cell_pallas(params, x_nchw, inh_nchw, exc_nchw, K):
  """Single-step convenience wrapper matching the PyTorch forward signature."""
  return convgru_scan_pallas(params, x_nchw[None], inh_nchw, exc_nchw, K)


# ----------------------------------------------------------------------------
# Pure-JAX reference (mirrors the PyTorch forward, NCHW, f32)
# ----------------------------------------------------------------------------
def convgru_cell_ref(params, x, inh, exc, K):
  hp = K // 2
  P = lax.Precision.HIGHEST

  def conv(inp, w, pad):
    return lax.conv_general_dilated(
        inp, w, (1, 1), [(pad, pad), (pad, pad)],
        dimension_numbers=('NCHW', 'OIHW', 'NCHW'), precision=P)

  def conv1x1(inp, w, b):
    return conv(inp, w, 0) + b[None, :, None, None]

  def bn(v, w, b):
    m = jnp.mean(v, axis=(0, 2, 3), keepdims=True)
    va = jnp.mean((v - m) ** 2, axis=(0, 2, 3), keepdims=True)
    return ((v - m) / jnp.sqrt(va + BN_EPS) * w[None, :, None, None]
            + b[None, :, None, None])

  def softplus(v):
    return jnp.where(v > SOFTPLUS_THRESH, v,
                     jnp.log1p(jnp.exp(jnp.minimum(v, SOFTPLUS_THRESH))))

  def chb(p):
    return p[None, :, None, None]

  sig = jax.nn.sigmoid
  att = sig(conv1x1(jnp.concatenate([x, exc], axis=1),
                    params['a_w'], params['a_b']))
  g_exc = att * exc
  g_inh = att
  inh_intx = bn(conv(g_exc, params['w_inh'], hp),
                params['bn0_w'], params['bn0_b'])
  inhibition_hat = softplus(
      softplus(conv1x1(x, params['ff_w'], params['ff_b']))
      - softplus(inh_intx * (chb(params['alpha']) * g_inh + chb(params['mu']))))
  inh_gate = sig(conv1x1(jnp.concatenate([x, g_inh], axis=1),
                         params['iw_w'], params['iw_b']))
  inhibition = (1 - inh_gate) * inh + inh_gate * inhibition_hat
  exc_gate = sig(conv1x1(jnp.concatenate([g_exc, g_inh], axis=1),
                         params['ew_w'], params['ew_b']))
  exc_intx = bn(conv(inhibition, params['w_exc'], hp),
                params['bn1_w'], params['bn1_b'])
  excitation_hat = softplus(
      exc_intx * (chb(params['kappa']) * inhibition + chb(params['gamma'])))
  excitation = (1 - exc_gate) * exc + exc_gate * excitation_hat
  return excitation, inhibition


# ----------------------------------------------------------------------------
# Deterministic parameter init (shapes match the PyTorch module __init__)
# ----------------------------------------------------------------------------
def init_params(key, Ci, Ch, K, timesteps=64):
  ks = jax.random.split(key, 8)

  def w_init(k, shape, scale=0.2):
    return (jax.random.normal(k, shape) * scale).astype(jnp.float32)

  iw_b = jnp.log(jax.random.uniform(
      ks[3], (Ch,), minval=1.0, maxval=float(timesteps - 1))).astype(jnp.float32)

  # TODO(synk): orthogonal init replaced by deterministic scaled-normal init
  # (init scheme is not part of the forward-pass semantics).
  return dict(
      a_w=w_init(ks[0], (Ch, Ci + Ch, 1, 1)),
      a_b=jnp.full((Ch,), 1.0, jnp.float32),
      ff_w=w_init(ks[1], (Ch, Ci, 1, 1)),
      ff_b=jnp.zeros((Ch,), jnp.float32),
      iw_w=w_init(ks[2], (Ch, Ci + Ch, 1, 1)),
      iw_b=iw_b,
      ew_w=w_init(ks[4], (Ch, 2 * Ch, 1, 1)),
      ew_b=-iw_b,
      w_inh=w_init(ks[5], (Ch, Ch, K, K)),
      w_exc=w_init(ks[6], (Ch, Ch, K, K)),
      alpha=jnp.ones((Ch,), jnp.float32),
      mu=jnp.zeros((Ch,), jnp.float32),
      gamma=jnp.zeros((Ch,), jnp.float32),
      kappa=jnp.ones((Ch,), jnp.float32),
      bn0_w=jnp.full((Ch,), 0.1, jnp.float32),
      bn0_b=jnp.zeros((Ch,), jnp.float32),
      bn1_w=jnp.full((Ch,), 0.1, jnp.float32),
      bn1_b=jnp.zeros((Ch,), jnp.float32),
  )


if __name__ == "__main__":
  N, Ci, Ch, H, W, K, T = 2, 4, 32, 16, 16, 3, 4

  key = jax.random.PRNGKey(0)
  kp, kx, ki, ke = jax.random.split(key, 4)
  params = init_params(kp, Ci, Ch, K, timesteps=64)

  x_seq = jax.random.normal(kx, (T, N, Ci, H, W), jnp.float32)
  inh0 = jax.random.normal(ki, (N, Ch, H, W), jnp.float32) * 0.5
  exc0 = jax.random.normal(ke, (N, Ch, H, W), jnp.float32) * 0.5

  # --- single step: matches the PyTorch module forward ---
  exc1, inh1 = convgru_cell_pallas(params, x_seq[0], inh0, exc0, K)
  jax.block_until_ready((exc1, inh1))
  exc1_r, inh1_r = convgru_cell_ref(params, x_seq[0], inh0, exc0, K)
  d1 = max(float(jnp.max(jnp.abs(exc1 - exc1_r))),
           float(jnp.max(jnp.abs(inh1 - inh1_r))))
  assert d1 < 1e-2, f"single-step mismatch vs reference: {d1}"

  # --- T-step recurrence fused into one pallas_call (grid over T) ---
  excT, inhT = convgru_scan_pallas(params, x_seq, inh0, exc0, K)
  jax.block_until_ready((excT, inhT))
  er, ir = exc0, inh0
  for tt in range(T):
    er, ir = convgru_cell_ref(params, x_seq[tt], ir, er, K)
  dT = max(float(jnp.max(jnp.abs(excT - er))),
           float(jnp.max(jnp.abs(inhT - ir))))
  # bf16 MXU operands vs f32 HIGHEST reference compound mildly over T steps.
  assert dT < 2e-2, f"{T}-step mismatch vs reference: {dT}"

  print("KERNEL_OK")
</pallas_src>

<mosaic_0001>
module attributes {stable_mosaic.version = 11 : i64} {
  func.func @kernel(%arg0: i32, %arg1: memref<1x8x512xf32, #tpu.memory_space<vmem>>, %arg2: memref<64x512xf32, #tpu.memory_space<vmem>>, %arg3: memref<96x40xbf16, #tpu.memory_space<vmem>>, %arg4: memref<64x64xbf16, #tpu.memory_space<vmem>>, %arg5: memref<32x288xbf16, #tpu.memory_space<vmem>>, %arg6: memref<32x288xbf16, #tpu.memory_space<vmem>>, %arg7: memref<32x12xf32, #tpu.memory_space<vmem>>, %arg8: memref<9x512xf32, #tpu.memory_space<vmem>>, %arg9: memref<64x512xf32, #tpu.memory_space<vmem>>, %arg10: memref<64x512xf32, #tpu.memory_space<vmem>>, %arg11: memref<32x768xf32, #tpu.memory_space<vmem>>, %arg12: memref<288x512xbf16, #tpu.memory_space<vmem>>) attributes {dimension_semantics = [#tpu.dimension_semantics<arbitrary>], iteration_bounds = array<i64: 1>, scalar_prefetch = 0 : i64, scratch_operands = 3 : i64, tpu.core_type = #tpu.core_type<tc>, window_params = [{transform_indices = @transform_0, window_bounds = array<i64: 1, 8, 512>}, {pipeline_mode = #tpu.pipeline_mode<synchronous>, transform_indices = @transform_1, window_bounds = array<i64: 64, 512>}, {pipeline_mode = #tpu.pipeline_mode<synchronous>, transform_indices = @transform_2, window_bounds = array<i64: 96, 40>}, {pipeline_mode = #tpu.pipeline_mode<synchronous>, transform_indices = @transform_3, window_bounds = array<i64: 64, 64>}, {pipeline_mode = #tpu.pipeline_mode<synchronous>, transform_indices = @transform_4, window_bounds = array<i64: 32, 288>}, {pipeline_mode = #tpu.pipeline_mode<synchronous>, transform_indices = @transform_5, window_bounds = array<i64: 32, 288>}, {pipeline_mode = #tpu.pipeline_mode<synchronous>, transform_indices = @transform_6, window_bounds = array<i64: 32, 12>}, {pipeline_mode = #tpu.pipeline_mode<synchronous>, transform_indices = @transform_7, window_bounds = array<i64: 9, 512>}, {pipeline_mode = #tpu.pipeline_mode<synchronous>, transform_indices = @transform_8, window_bounds = array<i64: 64, 512>}]} {
    %c0_i32 = arith.constant 0 : i32
    %0 = arith.cmpi eq, %arg0, %c0_i32 : i32
    %1 = arith.extui %0 : i1 to i32
    %c0_i32_0 = arith.constant 0 : i32
    %2 = arith.cmpi ne, %1, %c0_i32_0 : i32
    scf.if %2 {
      %c0_172 = arith.constant 0 : index
      %c0_173 = arith.constant 0 : index
      %278 = vector.load %arg2[%c0_172, %c0_173] : memref<64x512xf32, #tpu.memory_space<vmem>>, vector<64x512xf32>
      %c0_174 = arith.constant 0 : index
      %c0_175 = arith.constant 0 : index
      %279 = vector.load %arg10[%c0_174, %c0_175] : memref<64x512xf32, #tpu.memory_space<vmem>>, vector<64x512xf32>
      tpu.vector_store %arg10[%c0_174, %c0_175], %278 {strides = array<i32>} : memref<64x512xf32, #tpu.memory_space<vmem>>, vector<64x512xf32>,
      %cst_176 = arith.constant 0.000000e+00 : f32
      %280 = vector.broadcast %cst_176 : f32 to vector<32x128xf32>
      %c0_177 = arith.constant 0 : index
      %c0_178 = arith.constant 0 : index
      %281 = vector.load %arg11[%c0_177, %c0_178] : memref<32x768xf32, #tpu.memory_space<vmem>>, vector<32x128xf32>
      tpu.vector_store %arg11[%c0_177, %c0_178], %280 {strides = array<i32>} : memref<32x768xf32, #tpu.memory_space<vmem>>, vector<32x128xf32>,
      %c0_179 = arith.constant 0 : index
      %c640 = arith.constant 640 : index
      %282 = vector.load %arg11[%c0_179, %c640] : memref<32x768xf32, #tpu.memory_space<vmem>>, vector<32x128xf32>
      tpu.vector_store %arg11[%c0_179, %c640], %280 {strides = array<i32>} : memref<32x768xf32, #tpu.memory_space<vmem>>, vector<32x128xf32>,
    } else {
    }
    %c0 = arith.constant 0 : index
    %c0_1 = arith.constant 0 : index
    %3 = vector.load %arg10[%c0, %c0_1] : memref<64x512xf32, #tpu.memory_space<vmem>>, vector<32x512xf32>
    %c32 = arith.constant 32 : index
    %c0_2 = arith.constant 0 : index
    %4 = vector.load %arg10[%c32, %c0_2] : memref<64x512xf32, #tpu.memory_space<vmem>>, vector<32x512xf32>
    %c0_3 = arith.constant 0 : index
    %c0_4 = arith.constant 0 : index
    %c0_5 = arith.constant 0 : index
    %5 = vector.load %arg1[%c0_3, %c0_4, %c0_5] : memref<1x8x512xf32, #tpu.memory_space<vmem>>, vector<1x8x512xf32>
    %6 = vector.shape_cast %5 : vector<1x8x512xf32> to vector<8x512xf32>
    %c0_6 = arith.constant 0 : index
    %c0_7 = arith.constant 0 : index
    %7 = vector.load %arg7[%c0_6, %c0_7] : memref<32x12xf32, #tpu.memory_space<vmem>>, vector<32x1xf32>
    %c0_8 = arith.constant 0 : index
    %c1 = arith.constant 1 : index
    %8 = vector.load %arg7[%c0_8, %c1] : memref<32x12xf32, #tpu.memory_space<vmem>>, vector<32x1xf32>
    %c0_9 = arith.constant 0 : index
    %c2 = arith.constant 2 : index
    %9 = vector.load %arg7[%c0_9, %c2] : memref<32x12xf32, #tpu.memory_space<vmem>>, vector<32x1xf32>
    %c0_10 = arith.constant 0 : index
    %c3 = arith.constant 3 : index
    %10 = vector.load %arg7[%c0_10, %c3] : memref<32x12xf32, #tpu.memory_space<vmem>>, vector<32x1xf32>
    %c0_11 = arith.constant 0 : index
    %c4 = arith.constant 4 : index
    %11 = vector.load %arg7[%c0_11, %c4] : memref<32x12xf32, #tpu.memory_space<vmem>>, vector<32x1xf32>
    %c0_12 = arith.constant 0 : index
    %c5 = arith.constant 5 : index
    %12 = vector.load %arg7[%c0_12, %c5] : memref<32x12xf32, #tpu.memory_space<vmem>>, vector<32x1xf32>
    %c0_13 = arith.constant 0 : index
    %c6 = arith.constant 6 : index
    %13 = vector.load %arg7[%c0_13, %c6] : memref<32x12xf32, #tpu.memory_space<vmem>>, vector<32x1xf32>
    %c0_14 = arith.constant 0 : index
    %c7 = arith.constant 7 : index
    %14 = vector.load %arg7[%c0_14, %c7] : memref<32x12xf32, #tpu.memory_space<vmem>>, vector<32x1xf32>
    %c0_15 = arith.constant 0 : index
    %c8 = arith.constant 8 : index
    %15 = vector.load %arg7[%c0_15, %c8] : memref<32x12xf32, #tpu.memory_space<vmem>>, vector<32x1xf32>
    %c0_16 = arith.constant 0 : index
    %c9 = arith.constant 9 : index
    %16 = vector.load %arg7[%c0_16, %c9] : memref<32x12xf32, #tpu.memory_space<vmem>>, vector<32x1xf32>
    %c0_17 = arith.constant 0 : index
    %c10 = arith.constant 10 : index
    %17 = vector.load %arg7[%c0_17, %c10] : memref<32x12xf32, #tpu.memory_space<vmem>>, vector<32x1xf32>
    %c0_18 = arith.constant 0 : index
    %c11 = arith.constant 11 : index
    %18 = vector.load %arg7[%c0_18, %c11] : memref<32x12xf32, #tpu.memory_space<vmem>>, vector<32x1xf32>
    %19 = tpu.concatenate %6, %3 in 0 : vector<8x512xf32>, vector<32x512xf32> -> vector<40x512xf32>
    %20 = arith.truncf %19 : vector<40x512xf32> to vector<40x512xbf16>
    %c0_19 = arith.constant 0 : index
    %c0_20 = arith.constant 0 : index
    %21 = vector.load %arg3[%c0_19, %c0_20] : memref<96x40xbf16, #tpu.memory_space<vmem>>, vector<96x40xbf16>
    %cst = arith.constant dense<0.000000e+00> : vector<96x512xf32>
    %22 = tpu.matmul %21, %20, %cst {dimension_numbers = #tpu.dot_dimension_numbers<[1], [0], [0], [1], [0, 0, 1, 1], [], []>} : vector<96x40xbf16>, vector<40x512xbf16>, vector<96x512xf32> -> vector<96x512xf32>
    %23 = vector.extract_strided_slice %22 {offsets = [0, 0], sizes = [32, 512], strides = [1, 1]} : vector<96x512xf32> to vector<32x512xf32>
    %24 = vector.broadcast %7 : vector<32x1xf32> to vector<32x512xf32>
    %25 = arith.addf %23, %24 : vector<32x512xf32>
    %cst_21 = arith.constant 5.000000e-01 : f32
    %26 = vector.broadcast %cst_21 : f32 to vector<32x512xf32>
    %27 = arith.mulf %26, %25 : vector<32x512xf32>
    %28 = math.tanh %27 : vector<32x512xf32>
    %cst_22 = arith.constant 1.000000e+00 : f32
    %29 = vector.broadcast %cst_22 : f32 to vector<32x512xf32>
    %30 = arith.addf %28, %29 : vector<32x512xf32>
    %cst_23 = arith.constant 5.000000e-01 : f32
    %31 = vector.broadcast %cst_23 : f32 to vector<32x512xf32>
    %32 = arith.mulf %31, %30 : vector<32x512xf32>
    %33 = arith.mulf %32, %3 : vector<32x512xf32>
    %c0_24 = arith.constant 0 : index
    %c128 = arith.constant 128 : index
    %34 = vector.load %arg11[%c0_24, %c128] : memref<32x768xf32, #tpu.memory_space<vmem>>, vector<32x512xf32>
    tpu.vector_store %arg11[%c0_24, %c128], %33 {strides = array<i32>} : memref<32x768xf32, #tpu.memory_space<vmem>>, vector<32x512xf32>,
    %c0_25 = arith.constant 0 : index
    %c111 = arith.constant 111 : index
    %35 = vector.load %arg11[%c0_25, %c111] : memref<32x768xf32, #tpu.memory_space<vmem>>, vector<32x512xf32>
    %c0_26 = arith.constant 0 : index
    %c0_27 = arith.constant 0 : index
    %36 = vector.load %arg8[%c0_26, %c0_27] : memref<9x512xf32, #tpu.memory_space<vmem>>, vector<1x512xf32>
    %37 = vector.broadcast %36 : vector<1x512xf32> to vector<32x512xf32>
    %38 = arith.mulf %35, %37 : vector<32x512xf32>
    %39 = arith.truncf %38 : vector<32x512xf32> to vector<32x512xbf16>
    %c0_28 = arith.constant 0 : index
    %c0_29 = arith.constant 0 : index
    %40 = vector.load %arg12[%c0_28, %c0_29] : memref<288x512xbf16, #tpu.memory_space<vmem>>, vector<32x512xbf16>
    tpu.vector_store %arg12[%c0_28, %c0_29], %39 {strides = array<i32>} : memref<288x512xbf16, #tpu.memory_space<vmem>>, vector<32x512xbf16>,
    %c0_30 = arith.constant 0 : index
    %c112 = arith.constant 112 : index
    %41 = vector.load %arg11[%c0_30, %c112] : memref<32x768xf32, #tpu.memory_space<vmem>>, vector<32x512xf32>
    %c1_31 = arith.constant 1 : index
    %c0_32 = arith.constant 0 : index
    %42 = vector.load %arg8[%c1_31, %c0_32] : memref<9x512xf32, #tpu.memory_space<vmem>>, vector<1x512xf32>
    %43 = vector.broadcast %42 : vector<1x512xf32> to vector<32x512xf32>
    %44 = arith.mulf %41, %43 : vector<32x512xf32>
    %45 = arith.truncf %44 : vector<32x512xf32> to vector<32x512xbf16>
    %c32_33 = arith.constant 32 : index
    %c0_34 = arith.constant 0 : index
    %46 = vector.load %arg12[%c32_33, %c0_34] : memref<288x512xbf16, #tpu.memory_space<vmem>>, vector<32x512xbf16>
    tpu.vector_store %arg12[%c32_33, %c0_34], %45 {strides = array<i32>} : memref<288x512xbf16, #tpu.memory_space<vmem>>, vector<32x512xbf16>,
    %c0_35 = arith.constant 0 : index
    %c113 = arith.constant 113 : index
    %47 = vector.load %arg11[%c0_35, %c113] : memref<32x768xf32, #tpu.memory_space<vmem>>, vector<32x512xf32>
    %c2_36 = arith.constant 2 : index
    %c0_37 = arith.constant 0 : index
    %48 = vector.load %arg8[%c2_36, %c0_37] : memref<9x512xf32, #tpu.memory_space<vmem>>, vector<1x512xf32>
    %49 = vector.broadcast %48 : vector<1x512xf32> to vector<32x512xf32>
    %50 = arith.mulf %47, %49 : vector<32x512xf32>
    %51 = arith.truncf %50 : vector<32x512xf32> to vector<32x512xbf16>
    %c64 = arith.constant 64 : index
    %c0_38 = arith.constant 0 : index
    %52 = vector.load %arg12[%c64, %c0_38] : memref<288x512xbf16, #tpu.memory_space<vmem>>, vector<32x512xbf16>
    tpu.vector_store %arg12[%c64, %c0_38], %51 {strides = array<i32>} : memref<288x512xbf16, #tpu.memory_space<vmem>>, vector<32x512xbf16>,
    %c0_39 = arith.constant 0 : index
    %c127 = arith.constant 127 : index
    %53 = vector.load %arg11[%c0_39, %c127] : memref<32x768xf32, #tpu.memory_space<vmem>>, vector<32x512xf32>
    %c3_40 = arith.constant 3 : index
    %c0_41 = arith.constant 0 : index
    %54 = vector.load %arg8[%c3_40, %c0_41] : memref<9x512xf32, #tpu.memory_space<vmem>>, vector<1x512xf32>
    %55 = vector.broadcast %54 : vector<1x512xf32> to vector<32x512xf32>
    %56 = arith.mulf %53, %55 : vector<32x512xf32>
    %57 = arith.truncf %56 : vector<32x512xf32> to vector<32x512xbf16>
    %c96 = arith.constant 96 : index
    %c0_42 = arith.constant 0 : index
    %58 = vector.load %arg12[%c96, %c0_42] : memref<288x512xbf16, #tpu.memory_space<vmem>>, vector<32x512xbf16>
    tpu.vector_store %arg12[%c96, %c0_42], %57 {strides = array<i32>} : memref<288x512xbf16, #tpu.memory_space<vmem>>, vector<32x512xbf16>,
    %c0_43 = arith.constant 0 : index
    %c128_44 = arith.constant 128 : index
    %59 = vector.load %arg11[%c0_43, %c128_44] : memref<32x768xf32, #tpu.memory_space<vmem>>, vector<32x512xf32>
    %c4_45 = arith.constant 4 : index
    %c0_46 = arith.constant 0 : index
    %60 = vector.load %arg8[%c4_45, %c0_46] : memref<9x512xf32, #tpu.memory_space<vmem>>, vector<1x512xf32>
    %61 = vector.broadcast %60 : vector<1x512xf32> to vector<32x512xf32>
    %62 = arith.mulf %59, %61 : vector<32x512xf32>
    %63 = arith.truncf %62 : vector<32x512xf32> to vector<32x512xbf16>
    %c128_47 = arith.constant 128 : index
    %c0_48 = arith.constant 0 : index
    %64 = vector.load %arg12[%c128_47, %c0_48] : memref<288x512xbf16, #tpu.memory_space<vmem>>, vector<32x512xbf16>
    tpu.vector_store %arg12[%c128_47, %c0_48], %63 {strides = array<i32>} : memref<288x512xbf16, #tpu.memory_space<vmem>>, vector<32x512xbf16>,
    %c0_49 = arith.constant 0 : index
    %c129 = arith.constant 129 : index
    %65 = vector.load %arg11[%c0_49, %c129] : memref<32x768xf32, #tpu.memory_space<vmem>>, vector<32x512xf32>
    %c5_50 = arith.constant 5 : index
    %c0_51 = arith.constant 0 : index
    %66 = vector.load %arg8[%c5_50, %c0_51] : memref<9x512xf32, #tpu.memory_space<vmem>>, vector<1x512xf32>
    %67 = vector.broadcast %66 : vector<1x512xf32> to vector<32x512xf32>
    %68 = arith.mulf %65, %67 : vector<32x512xf32>
    %69 = arith.truncf %68 : vector<32x512xf32> to vector<32x512xbf16>
    %c160 = arith.constant 160 : index
    %c0_52 = arith.constant 0 : index
    %70 = vector.load %arg12[%c160, %c0_52] : memref<288x512xbf16, #tpu.memory_space<vmem>>, vector<32x512xbf16>
    tpu.vector_store %arg12[%c160, %c0_52], %69 {strides = array<i32>} : memref<288x512xbf16, #tpu.memory_space<vmem>>, vector<32x512xbf16>,
    %c0_53 = arith.constant 0 : index
    %c143 = arith.constant 143 : index
    %71 = vector.load %arg11[%c0_53, %c143] : memref<32x768xf32, #tpu.memory_space<vmem>>, vector<32x512xf32>
    %c6_54 = arith.constant 6 : index
    %c0_55 = arith.constant 0 : index
    %72 = vector.load %arg8[%c6_54, %c0_55] : memref<9x512xf32, #tpu.memory_space<vmem>>, vector<1x512xf32>
    %73 = vector.broadcast %72 : vector<1x512xf32> to vector<32x512xf32>
    %74 = arith.mulf %71, %73 : vector<32x512xf32>
    %75 = arith.truncf %74 : vector<32x512xf32> to vector<32x512xbf16>
    %c192 = arith.constant 192 : index
    %c0_56 = arith.constant 0 : index
    %76 = vector.load %arg12[%c192, %c0_56] : memref<288x512xbf16, #tpu.memory_space<vmem>>, vector<32x512xbf16>
    tpu.vector_store %arg12[%c192, %c0_56], %75 {strides = array<i32>} : memref<288x512xbf16, #tpu.memory_space<vmem>>, vector<32x512xbf16>,
    %c0_57 = arith.constant 0 : index
    %c144 = arith.constant 144 : index
    %77 = vector.load %arg11[%c0_57, %c144] : memref<32x768xf32, #tpu.memory_space<vmem>>, vector<32x512xf32>
    %c7_58 = arith.constant 7 : index
    %c0_59 = arith.constant 0 : index
    %78 = vector.load %arg8[%c7_58, %c0_59] : memref<9x512xf32, #tpu.memory_space<vmem>>, vector<1x512xf32>
    %79 = vector.broadcast %78 : vector<1x512xf32> to vector<32x512xf32>
    %80 = arith.mulf %77, %79 : vector<32x512xf32>
    %81 = arith.truncf %80 : vector<32x512xf32> to vector<32x512xbf16>
    %c224 = arith.constant 224 : index
    %c0_60 = arith.constant 0 : index
    %82 = vector.load %arg12[%c224, %c0_60] : memref<288x512xbf16, #tpu.memory_space<vmem>>, vector<32x512xbf16>
    tpu.vector_store %arg12[%c224, %c0_60], %81 {strides = array<i32>} : memref<288x512xbf16, #tpu.memory_space<vmem>>, vector<32x512xbf16>,
    %c0_61 = arith.constant 0 : index
    %c145 = arith.constant 145 : index
    %83 = vector.load %arg11[%c0_61, %c145] : memref<32x768xf32, #tpu.memory_space<vmem>>, vector<32x512xf32>
    %c8_62 = arith.constant 8 : index
    %c0_63 = arith.constant 0 : index
    %84 = vector.load %arg8[%c8_62, %c0_63] : memref<9x512xf32, #tpu.memory_space<vmem>>, vector<1x512xf32>
    %85 = vector.broadcast %84 : vector<1x512xf32> to vector<32x512xf32>
    %86 = arith.mulf %83, %85 : vector<32x512xf32>
    %87 = arith.truncf %86 : vector<32x512xf32> to vector<32x512xbf16>
    %c256 = arith.constant 256 : index
    %c0_64 = arith.constant 0 : index
    %88 = vector.load %arg12[%c256, %c0_64] : memref<288x512xbf16, #tpu.memory_space<vmem>>, vector<32x512xbf16>
    tpu.vector_store %arg12[%c256, %c0_64], %87 {strides = array<i32>} : memref<288x512xbf16, #tpu.memory_space<vmem>>, vector<32x512xbf16>,
    %c0_65 = arith.constant 0 : index
    %c0_66 = arith.constant 0 : index
    %89 = vector.load %arg5[%c0_65, %c0_66] : memref<32x288xbf16, #tpu.memory_space<vmem>>, vector<32x288xbf16>
    %c0_67 = arith.constant 0 : index
    %c0_68 = arith.constant 0 : index
    %90 = vector.load %arg12[%c0_67, %c0_68] : memref<288x512xbf16, #tpu.memory_space<vmem>>, vector<288x512xbf16>
    %cst_69 = arith.constant dense<0.000000e+00> : vector<32x512xf32>
    %91 = tpu.matmul %89, %90, %cst_69 {dimension_numbers = #tpu.dot_dimension_numbers<[1], [0], [0], [1], [0, 0, 1, 1], [], []>} : vector<32x288xbf16>, vector<288x512xbf16>, vector<32x512xf32> -> vector<32x512xf32>
    %cst_70 = arith.constant dense<0.000000e+00> : vector<32xf32>
    %92 = vector.multi_reduction <add>, %91, %cst_70 [1] : vector<32x512xf32> to vector<32xf32>
    %93 = vector.shape_cast %92 : vector<32xf32> to vector<32x1xf32>
    %cst_71 = arith.constant 0.001953125 : f32
    %94 = vector.broadcast %cst_71 : f32 to vector<32x1xf32>
    %95 = arith.mulf %93, %94 : vector<32x1xf32>
    %96 = vector.broadcast %95 : vector<32x1xf32> to vector<32x512xf32>
    %97 = arith.subf %91, %96 : vector<32x512xf32>
    %98 = arith.mulf %97, %97 : vector<32x512xf32>
    %cst_72 = arith.constant dense<0.000000e+00> : vector<32xf32>
    %99 = vector.multi_reduction <add>, %98, %cst_72 [1] : vector<32x512xf32> to vector<32xf32>
    %100 = vector.shape_cast %99 : vector<32xf32> to vector<32x1xf32>
    %cst_73 = arith.constant 0.001953125 : f32
    %101 = vector.broadcast %cst_73 : f32 to vector<32x1xf32>
    %102 = arith.mulf %100, %101 : vector<32x1xf32>
    %cst_74 = arith.constant 1.000000e-03 : f32
    %103 = vector.broadcast %cst_74 : f32 to vector<32x1xf32>
    %104 = arith.addf %102, %103 : vector<32x1xf32>
    %105 = math.rsqrt %104 : vector<32x1xf32>
    %106 = arith.mulf %105, %15 : vector<32x1xf32>
    %107 = vector.broadcast %106 : vector<32x1xf32> to vector<32x512xf32>
    %108 = arith.mulf %97, %107 : vector<32x512xf32>
    %109 = vector.broadcast %16 : vector<32x1xf32> to vector<32x512xf32>
    %110 = arith.addf %108, %109 : vector<32x512xf32>
    %111 = vector.extract_strided_slice %22 {offsets = [32, 0], sizes = [32, 512], strides = [1, 1]} : vector<96x512xf32> to vector<32x512xf32>
    %112 = vector.broadcast %8 : vector<32x1xf32> to vector<32x512xf32>
    %113 = arith.addf %111, %112 : vector<32x512xf32>
    %cst_75 = arith.constant 2.000000e+01 : f32
    %114 = vector.broadcast %cst_75 : f32 to vector<32x512xf32>
    %115 = arith.minimumf %113, %114 : vector<32x512xf32>
    %cst_76 = arith.constant 2.000000e+01 : f32
    %116 = vector.broadcast %cst_76 : f32 to vector<32x512xf32>
    %117 = arith.cmpf ogt, %113, %116 : vector<32x512xf32>
    %118 = math.exp %115 : vector<32x512xf32>
    %cst_77 = arith.constant 1.000000e+00 : f32
    %119 = vector.broadcast %cst_77 : f32 to vector<32x512xf32>
    %120 = arith.addf %119, %118 : vector<32x512xf32>
    %121 = math.log %120 : vector<32x512xf32>
    %122 = arith.select %117, %113, %121 : vector<32x512xi1>, vector<32x512xf32>
    %123 = vector.broadcast %11 : vector<32x1xf32> to vector<32x512xf32>
    %124 = arith.mulf %123, %32 : vector<32x512xf32>
    %125 = vector.broadcast %12 : vector<32x1xf32> to vector<32x512xf32>
    %126 = arith.addf %124, %125 : vector<32x512xf32>
    %127 = arith.mulf %110, %126 : vector<32x512xf32>
    %cst_78 = arith.constant 2.000000e+01 : f32
    %128 = vector.broadcast %cst_78 : f32 to vector<32x512xf32>
    %129 = arith.minimumf %127, %128 : vector<32x512xf32>
    %cst_79 = arith.constant 2.000000e+01 : f32
    %130 = vector.broadcast %cst_79 : f32 to vector<32x512xf32>
    %131 = arith.cmpf ogt, %127, %130 : vector<32x512xf32>
    %132 = math.exp %129 : vector<32x512xf32>
    %cst_80 = arith.constant 1.000000e+00 : f32
    %133 = vector.broadcast %cst_80 : f32 to vector<32x512xf32>
    %134 = arith.addf %133, %132 : vector<32x512xf32>
    %135 = math.log %134 : vector<32x512xf32>
    %136 = arith.select %131, %127, %135 : vector<32x512xi1>, vector<32x512xf32>
    %137 = arith.subf %122, %136 : vector<32x512xf32>
    %cst_81 = arith.constant 2.000000e+01 : f32
    %138 = vector.broadcast %cst_81 : f32 to vector<32x512xf32>
    %139 = arith.minimumf %137, %138 : vector<32x512xf32>
    %cst_82 = arith.constant 2.000000e+01 : f32
    %140 = vector.broadcast %cst_82 : f32 to vector<32x512xf32>
    %141 = arith.cmpf ogt, %137, %140 : vector<32x512xf32>
    %142 = math.exp %139 : vector<32x512xf32>
    %cst_83 = arith.constant 1.000000e+00 : f32
    %143 = vector.broadcast %cst_83 : f32 to vector<32x512xf32>
    %144 = arith.addf %143, %142 : vector<32x512xf32>
    %145 = math.log %144 : vector<32x512xf32>
    %146 = arith.select %141, %137, %145 : vector<32x512xi1>, vector<32x512xf32>
    %147 = tpu.concatenate %32, %33 in 0 : vector<32x512xf32>, vector<32x512xf32> -> vector<64x512xf32>
    %148 = arith.truncf %147 : vector<64x512xf32> to vector<64x512xbf16>
    %c0_84 = arith.constant 0 : index
    %c0_85 = arith.constant 0 : index
    %149 = vector.load %arg4[%c0_84, %c0_85] : memref<64x64xbf16, #tpu.memory_space<vmem>>, vector<64x64xbf16>
    %cst_86 = arith.constant dense<0.000000e+00> : vector<64x512xf32>
    %150 = tpu.matmul %149, %148, %cst_86 {dimension_numbers = #tpu.dot_dimension_numbers<[1], [0], [0], [1], [0, 0, 1, 1], [], []>} : vector<64x64xbf16>, vector<64x512xbf16>, vector<64x512xf32> -> vector<64x512xf32>
    %151 = vector.extract_strided_slice %22 {offsets = [64, 0], sizes = [32, 512], strides = [1, 1]} : vector<96x512xf32> to vector<32x512xf32>
    %152 = vector.extract_strided_slice %150 {offsets = [0, 0], sizes = [32, 512], strides = [1, 1]} : vector<64x512xf32> to vector<32x512xf32>
    %153 = arith.addf %151, %152 : vector<32x512xf32>
    %154 = vector.broadcast %9 : vector<32x1xf32> to vector<32x512xf32>
    %155 = arith.addf %153, %154 : vector<32x512xf32>
    %cst_87 = arith.constant 5.000000e-01 : f32
    %156 = vector.broadcast %cst_87 : f32 to vector<32x512xf32>
    %157 = arith.mulf %156, %155 : vector<32x512xf32>
    %158 = math.tanh %157 : vector<32x512xf32>
    %cst_88 = arith.constant 1.000000e+00 : f32
    %159 = vector.broadcast %cst_88 : f32 to vector<32x512xf32>
    %160 = arith.addf %158, %159 : vector<32x512xf32>
    %cst_89 = arith.constant 5.000000e-01 : f32
    %161 = vector.broadcast %cst_89 : f32 to vector<32x512xf32>
    %162 = arith.mulf %161, %160 : vector<32x512xf32>
    %cst_90 = arith.constant 1.000000e+00 : f32
    %163 = vector.broadcast %cst_90 : f32 to vector<32x512xf32>
    %164 = arith.subf %163, %162 : vector<32x512xf32>
    %165 = arith.mulf %164, %4 : vector<32x512xf32>
    %166 = arith.mulf %162, %146 : vector<32x512xf32>
    %167 = arith.addf %165, %166 : vector<32x512xf32>
    %168 = vector.extract_strided_slice %150 {offsets = [32, 0], sizes = [32, 512], strides = [1, 1]} : vector<64x512xf32> to vector<32x512xf32>
    %169 = vector.broadcast %10 : vector<32x1xf32> to vector<32x512xf32>
    %170 = arith.addf %168, %169 : vector<32x512xf32>
    %cst_91 = arith.constant 5.000000e-01 : f32
    %171 = vector.broadcast %cst_91 : f32 to vector<32x512xf32>
    %172 = arith.mulf %171, %170 : vector<32x512xf32>
    %173 = math.tanh %172 : vector<32x512xf32>
    %cst_92 = arith.constant 1.000000e+00 : f32
    %174 = vector.broadcast %cst_92 : f32 to vector<32x512xf32>
    %175 = arith.addf %173, %174 : vector<32x512xf32>
    %cst_93 = arith.constant 5.000000e-01 : f32
    %176 = vector.broadcast %cst_93 : f32 to vector<32x512xf32>
    %177 = arith.mulf %176, %175 : vector<32x512xf32>
    %c0_94 = arith.constant 0 : index
    %c128_95 = arith.constant 128 : index
    %178 = vector.load %arg11[%c0_94, %c128_95] : memref<32x768xf32, #tpu.memory_space<vmem>>, vector<32x512xf32>
    tpu.vector_store %arg11[%c0_94, %c128_95], %167 {strides = array<i32>} : memref<32x768xf32, #tpu.memory_space<vmem>>, vector<32x512xf32>,
    %c0_96 = arith.constant 0 : index
    %c111_97 = arith.constant 111 : index
    %179 = vector.load %arg11[%c0_96, %c111_97] : memref<32x768xf32, #tpu.memory_space<vmem>>, vector<32x512xf32>
    %c0_98 = arith.constant 0 : index
    %c0_99 = arith.constant 0 : index
    %180 = vector.load %arg8[%c0_98, %c0_99] : memref<9x512xf32, #tpu.memory_space<vmem>>, vector<1x512xf32>
    %181 = vector.broadcast %180 : vector<1x512xf32> to vector<32x512xf32>
    %182 = arith.mulf %179, %181 : vector<32x512xf32>
    %183 = arith.truncf %182 : vector<32x512xf32> to vector<32x512xbf16>
    %c0_100 = arith.constant 0 : index
    %c0_101 = arith.constant 0 : index
    %184 = vector.load %arg12[%c0_100, %c0_101] : memref<288x512xbf16, #tpu.memory_space<vmem>>, vector<32x512xbf16>
    tpu.vector_store %arg12[%c0_100, %c0_101], %183 {strides = array<i32>} : memref<288x512xbf16, #tpu.memory_space<vmem>>, vector<32x512xbf16>,
    %c0_102 = arith.constant 0 : index
    %c112_103 = arith.constant 112 : index
    %185 = vector.load %arg11[%c0_102, %c112_103] : memref<32x768xf32, #tpu.memory_space<vmem>>, vector<32x512xf32>
    %c1_104 = arith.constant 1 : index
    %c0_105 = arith.constant 0 : index
    %186 = vector.load %arg8[%c1_104, %c0_105] : memref<9x512xf32, #tpu.memory_space<vmem>>, vector<1x512xf32>
    %187 = vector.broadcast %186 : vector<1x512xf32> to vector<32x512xf32>
    %188 = arith.mulf %185, %187 : vector<32x512xf32>
    %189 = arith.truncf %188 : vector<32x512xf32> to vector<32x512xbf16>
    %c32_106 = arith.constant 32 : index
    %c0_107 = arith.constant 0 : index
    %190 = vector.load %arg12[%c32_106, %c0_107] : memref<288x512xbf16, #tpu.memory_space<vmem>>, vector<32x512xbf16>
    tpu.vector_store %arg12[%c32_106, %c0_107], %189 {strides = array<i32>} : memref<288x512xbf16, #tpu.memory_space<vmem>>, vector<32x512xbf16>,
    %c0_108 = arith.constant 0 : index
    %c113_109 = arith.constant 113 : index
    %191 = vector.load %arg11[%c0_108, %c113_109] : memref<32x768xf32, #tpu.memory_space<vmem>>, vector<32x512xf32>
    %c2_110 = arith.constant 2 : index
    %c0_111 = arith.constant 0 : index
    %192 = vector.load %arg8[%c2_110, %c0_111] : memref<9x512xf32, #tpu.memory_space<vmem>>, vector<1x512xf32>
    %193 = vector.broadcast %192 : vector<1x512xf32> to vector<32x512xf32>
    %194 = arith.mulf %191, %193 : vector<32x512xf32>
    %195 = arith.truncf %194 : vector<32x512xf32> to vector<32x512xbf16>
    %c64_112 = arith.constant 64 : index
    %c0_113 = arith.constant 0 : index
    %196 = vector.load %arg12[%c64_112, %c0_113] : memref<288x512xbf16, #tpu.memory_space<vmem>>, vector<32x512xbf16>
    tpu.vector_store %arg12[%c64_112, %c0_113], %195 {strides = array<i32>} : memref<288x512xbf16, #tpu.memory_space<vmem>>, vector<32x512xbf16>,
    %c0_114 = arith.constant 0 : index
    %c127_115 = arith.constant 127 : index
    %197 = vector.load %arg11[%c0_114, %c127_115] : memref<32x768xf32, #tpu.memory_space<vmem>>, vector<32x512xf32>
    %c3_116 = arith.constant 3 : index
    %c0_117 = arith.constant 0 : index
    %198 = vector.load %arg8[%c3_116, %c0_117] : memref<9x512xf32, #tpu.memory_space<vmem>>, vector<1x512xf32>
    %199 = vector.broadcast %198 : vector<1x512xf32> to vector<32x512xf32>
    %200 = arith.mulf %197, %199 : vector<32x512xf32>
    %201 = arith.truncf %200 : vector<32x512xf32> to vector<32x512xbf16>
    %c96_118 = arith.constant 96 : index
    %c0_119 = arith.constant 0 : index
    %202 = vector.load %arg12[%c96_118, %c0_119] : memref<288x512xbf16, #tpu.memory_space<vmem>>, vector<32x512xbf16>
    tpu.vector_store %arg12[%c96_118, %c0_119], %201 {strides = array<i32>} : memref<288x512xbf16, #tpu.memory_space<vmem>>, vector<32x512xbf16>,
    %c0_120 = arith.constant 0 : index
    %c128_121 = arith.constant 128 : index
    %203 = vector.load %arg11[%c0_120, %c128_121] : memref<32x768xf32, #tpu.memory_space<vmem>>, vector<32x512xf32>
    %c4_122 = arith.constant 4 : index
    %c0_123 = arith.constant 0 : index
    %204 = vector.load %arg8[%c4_122, %c0_123] : memref<9x512xf32, #tpu.memory_space<vmem>>, vector<1x512xf32>
    %205 = vector.broadcast %204 : vector<1x512xf32> to vector<32x512xf32>
    %206 = arith.mulf %203, %205 : vector<32x512xf32>
    %207 = arith.truncf %206 : vector<32x512xf32> to vector<32x512xbf16>
    %c128_124 = arith.constant 128 : index
    %c0_125 = arith.constant 0 : index
    %208 = vector.load %arg12[%c128_124, %c0_125] : memref<288x512xbf16, #tpu.memory_space<vmem>>, vector<32x512xbf16>
    tpu.vector_store %arg12[%c128_124, %c0_125], %207 {strides = array<i32>} : memref<288x512xbf16, #tpu.memory_space<vmem>>, vector<32x512xbf16>,
    %c0_126 = arith.constant 0 : index
    %c129_127 = arith.constant 129 : index
    %209 = vector.load %arg11[%c0_126, %c129_127] : memref<32x768xf32, #tpu.memory_space<vmem>>, vector<32x512xf32>
    %c5_128 = arith.constant 5 : index
    %c0_129 = arith.constant 0 : index
    %210 = vector.load %arg8[%c5_128, %c0_129] : memref<9x512xf32, #tpu.memory_space<vmem>>, vector<1x512xf32>
    %211 = vector.broadcast %210 : vector<1x512xf32> to vector<32x512xf32>
    %212 = arith.mulf %209, %211 : vector<32x512xf32>
    %213 = arith.truncf %212 : vector<32x512xf32> to vector<32x512xbf16>
    %c160_130 = arith.constant 160 : index
    %c0_131 = arith.constant 0 : index
    %214 = vector.load %arg12[%c160_130, %c0_131] : memref<288x512xbf16, #tpu.memory_space<vmem>>, vector<32x512xbf16>
    tpu.vector_store %arg12[%c160_130, %c0_131], %213 {strides = array<i32>} : memref<288x512xbf16, #tpu.memory_space<vmem>>, vector<32x512xbf16>,
    %c0_132 = arith.constant 0 : index
    %c143_133 = arith.constant 143 : index
    %215 = vector.load %arg11[%c0_132, %c143_133] : memref<32x768xf32, #tpu.memory_space<vmem>>, vector<32x512xf32>
    %c6_134 = arith.constant 6 : index
    %c0_135 = arith.constant 0 : index
    %216 = vector.load %arg8[%c6_134, %c0_135] : memref<9x512xf32, #tpu.memory_space<vmem>>, vector<1x512xf32>
    %217 = vector.broadcast %216 : vector<1x512xf32> to vector<32x512xf32>
    %218 = arith.mulf %215, %217 : vector<32x512xf32>
    %219 = arith.truncf %218 : vector<32x512xf32> to vector<32x512xbf16>
    %c192_136 = arith.constant 192 : index
    %c0_137 = arith.constant 0 : index
    %220 = vector.load %arg12[%c192_136, %c0_137] : memref<288x512xbf16, #tpu.memory_space<vmem>>, vector<32x512xbf16>
    tpu.vector_store %arg12[%c192_136, %c0_137], %219 {strides = array<i32>} : memref<288x512xbf16, #tpu.memory_space<vmem>>, vector<32x512xbf16>,
    %c0_138 = arith.constant 0 : index
    %c144_139 = arith.constant 144 : index
    %221 = vector.load %arg11[%c0_138, %c144_139] : memref<32x768xf32, #tpu.memory_space<vmem>>, vector<32x512xf32>
    %c7_140 = arith.constant 7 : index
    %c0_141 = arith.constant 0 : index
    %222 = vector.load %arg8[%c7_140, %c0_141] : memref<9x512xf32, #tpu.memory_space<vmem>>, vector<1x512xf32>
    %223 = vector.broadcast %222 : vector<1x512xf32> to vector<32x512xf32>
    %224 = arith.mulf %221, %223 : vector<32x512xf32>
    %225 = arith.truncf %224 : vector<32x512xf32> to vector<32x512xbf16>
    %c224_142 = arith.constant 224 : index
    %c0_143 = arith.constant 0 : index
    %226 = vector.load %arg12[%c224_142, %c0_143] : memref<288x512xbf16, #tpu.memory_space<vmem>>, vector<32x512xbf16>
    tpu.vector_store %arg12[%c224_142, %c0_143], %225 {strides = array<i32>} : memref<288x512xbf16, #tpu.memory_space<vmem>>, vector<32x512xbf16>,
    %c0_144 = arith.constant 0 : index
    %c145_145 = arith.constant 145 : index
    %227 = vector.load %arg11[%c0_144, %c145_145] : memref<32x768xf32, #tpu.memory_space<vmem>>, vector<32x512xf32>
    %c8_146 = arith.constant 8 : index
    %c0_147 = arith.constant 0 : index
    %228 = vector.load %arg8[%c8_146, %c0_147] : memref<9x512xf32, #tpu.memory_space<vmem>>, vector<1x512xf32>
    %229 = vector.broadcast %228 : vector<1x512xf32> to vector<32x512xf32>
    %230 = arith.mulf %227, %229 : vector<32x512xf32>
    %231 = arith.truncf %230 : vector<32x512xf32> to vector<32x512xbf16>
    %c256_148 = arith.constant 256 : index
    %c0_149 = arith.constant 0 : index
    %232 = vector.load %arg12[%c256_148, %c0_149] : memref<288x512xbf16, #tpu.memory_space<vmem>>, vector<32x512xbf16>
    tpu.vector_store %arg12[%c256_148, %c0_149], %231 {strides = array<i32>} : memref<288x512xbf16, #tpu.memory_space<vmem>>, vector<32x512xbf16>,
    %c0_150 = arith.constant 0 : index
    %c0_151 = arith.constant 0 : index
    %233 = vector.load %arg6[%c0_150, %c0_151] : memref<32x288xbf16, #tpu.memory_space<vmem>>, vector<32x288xbf16>
    %c0_152 = arith.constant 0 : index
    %c0_153 = arith.constant 0 : index
    %234 = vector.load %arg12[%c0_152, %c0_153] : memref<288x512xbf16, #tpu.memory_space<vmem>>, vector<288x512xbf16>
    %cst_154 = arith.constant dense<0.000000e+00> : vector<32x512xf32>
    %235 = tpu.matmul %233, %234, %cst_154 {dimension_numbers = #tpu.dot_dimension_numbers<[1], [0], [0], [1], [0, 0, 1, 1], [], []>} : vector<32x288xbf16>, vector<288x512xbf16>, vector<32x512xf32> -> vector<32x512xf32>
    %cst_155 = arith.constant dense<0.000000e+00> : vector<32xf32>
    %236 = vector.multi_reduction <add>, %235, %cst_155 [1] : vector<32x512xf32> to vector<32xf32>
    %237 = vector.shape_cast %236 : vector<32xf32> to vector<32x1xf32>
    %cst_156 = arith.constant 0.001953125 : f32
    %238 = vector.broadcast %cst_156 : f32 to vector<32x1xf32>
    %239 = arith.mulf %237, %238 : vector<32x1xf32>
    %240 = vector.broadcast %239 : vector<32x1xf32> to vector<32x512xf32>
    %241 = arith.subf %235, %240 : vector<32x512xf32>
    %242 = arith.mulf %241, %241 : vector<32x512xf32>
    %cst_157 = arith.constant dense<0.000000e+00> : vector<32xf32>
    %243 = vector.multi_reduction <add>, %242, %cst_157 [1] : vector<32x512xf32> to vector<32xf32>
    %244 = vector.shape_cast %243 : vector<32xf32> to vector<32x1xf32>
    %cst_158 = arith.constant 0.001953125 : f32
    %245 = vector.broadcast %cst_158 : f32 to vector<32x1xf32>
    %246 = arith.mulf %244, %245 : vector<32x1xf32>
    %cst_159 = arith.constant 1.000000e-03 : f32
    %247 = vector.broadcast %cst_159 : f32 to vector<32x1xf32>
    %248 = arith.addf %246, %247 : vector<32x1xf32>
    %249 = math.rsqrt %248 : vector<32x1xf32>
    %250 = arith.mulf %249, %17 : vector<32x1xf32>
    %251 = vector.broadcast %250 : vector<32x1xf32> to vector<32x512xf32>
    %252 = arith.mulf %241, %251 : vector<32x512xf32>
    %253 = vector.broadcast %18 : vector<32x1xf32> to vector<32x512xf32>
    %254 = arith.addf %252, %253 : vector<32x512xf32>
    %255 = vector.broadcast %13 : vector<32x1xf32> to vector<32x512xf32>
    %256 = arith.mulf %255, %167 : vector<32x512xf32>
    %257 = vector.broadcast %14 : vector<32x1xf32> to vector<32x512xf32>
    %258 = arith.addf %256, %257 : vector<32x512xf32>
    %259 = arith.mulf %254, %258 : vector<32x512xf32>
    %cst_160 = arith.constant 2.000000e+01 : f32
    %260 = vector.broadcast %cst_160 : f32 to vector<32x512xf32>
    %261 = arith.minimumf %259, %260 : vector<32x512xf32>
    %cst_161 = arith.constant 2.000000e+01 : f32
    %262 = vector.broadcast %cst_161 : f32 to vector<32x512xf32>
    %263 = arith.cmpf ogt, %259, %262 : vector<32x512xf32>
    %264 = math.exp %261 : vector<32x512xf32>
    %cst_162 = arith.constant 1.000000e+00 : f32
    %265 = vector.broadcast %cst_162 : f32 to vector<32x512xf32>
    %266 = arith.addf %265, %264 : vector<32x512xf32>
    %267 = math.log %266 : vector<32x512xf32>
    %268 = arith.select %263, %259, %267 : vector<32x512xi1>, vector<32x512xf32>
    %cst_163 = arith.constant 1.000000e+00 : f32
    %269 = vector.broadcast %cst_163 : f32 to vector<32x512xf32>
    %270 = arith.subf %269, %177 : vector<32x512xf32>
    %271 = arith.mulf %270, %3 : vector<32x512xf32>
    %272 = arith.mulf %177, %268 : vector<32x512xf32>
    %273 = arith.addf %271, %272 : vector<32x512xf32>
    %c0_164 = arith.constant 0 : index
    %c0_165 = arith.constant 0 : index
    %274 = vector.load %arg10[%c0_164, %c0_165] : memref<64x512xf32, #tpu.memory_space<vmem>>, vector<32x512xf32>
    tpu.vector_store %arg10[%c0_164, %c0_165], %273 {strides = array<i32>} : memref<64x512xf32, #tpu.memory_space<vmem>>, vector<32x512xf32>,
    %c32_166 = arith.constant 32 : index
    %c0_167 = arith.constant 0 : index
    %275 = vector.load %arg10[%c32_166, %c0_167] : memref<64x512xf32, #tpu.memory_space<vmem>>, vector<32x512xf32>
    tpu.vector_store %arg10[%c32_166, %c0_167], %167 {strides = array<i32>} : memref<64x512xf32, #tpu.memory_space<vmem>>, vector<32x512xf32>,
    %c0_168 = arith.constant 0 : index
    %c0_169 = arith.constant 0 : index
    %276 = vector.load %arg9[%c0_168, %c0_169] : memref<64x512xf32, #tpu.memory_space<vmem>>, vector<32x512xf32>
    tpu.vector_store %arg9[%c0_168, %c0_169], %273 {strides = array<i32>} : memref<64x512xf32, #tpu.memory_space<vmem>>, vector<32x512xf32>,
    %c32_170 = arith.constant 32 : index
    %c0_171 = arith.constant 0 : index
    %277 = vector.load %arg9[%c32_170, %c0_171] : memref<64x512xf32, #tpu.memory_space<vmem>>, vector<32x512xf32>
    tpu.vector_store %arg9[%c32_170, %c0_171], %167 {strides = array<i32>} : memref<64x512xf32, #tpu.memory_space<vmem>>, vector<32x512xf32>,
    return
  }
  func.func @transform_0(%arg0: i32) -> (i32, i32, i32) {
    %c0_i32 = arith.constant 0 : i32
    %c0_i32_0 = arith.constant 0 : i32
    %c0_i32_1 = arith.constant 0 : i32
    return %arg0, %c0_i32, %c0_i32_0 : i32, i32, i32
  }
  func.func @transform_1(%arg0: i32) -> (i32, i32) {
    %c0_i32 = arith.constant 0 : i32
    %c0_i32_0 = arith.constant 0 : i32
    %c0_i32_1 = arith.constant 0 : i32
    return %c0_i32, %c0_i32_0 : i32, i32
  }
  func.func @transform_2(%arg0: i32) -> (i32, i32) {
    %c0_i32 = arith.constant 0 : i32
    %c0_i32_0 = arith.constant 0 : i32
    %c0_i32_1 = arith.constant 0 : i32
    return %c0_i32, %c0_i32_0 : i32, i32
  }
  func.func @transform_3(%arg0: i32) -> (i32, i32) {
    %c0_i32 = arith.constant 0 : i32
    %c0_i32_0 = arith.constant 0 : i32
    %c0_i32_1 = arith.constant 0 : i32
    return %c0_i32, %c0_i32_0 : i32, i32
  }
  func.func @transform_4(%arg0: i32) -> (i32, i32) {
    %c0_i32 = arith.constant 0 : i32
    %c0_i32_0 = arith.constant 0 : i32
    %c0_i32_1 = arith.constant 0 : i32
    return %c0_i32, %c0_i32_0 : i32, i32
  }
  func.func @transform_5(%arg0: i32) -> (i32, i32) {
    %c0_i32 = arith.constant 0 : i32
    %c0_i32_0 = arith.constant 0 : i32
    %c0_i32_1 = arith.constant 0 : i32
    return %c0_i32, %c0_i32_0 : i32, i32
  }
  func.func @transform_6(%arg0: i32) -> (i32, i32) {
    %c0_i32 = arith.constant 0 : i32
    %c0_i32_0 = arith.constant 0 : i32
    %c0_i32_1 = arith.constant 0 : i32
    return %c0_i32, %c0_i32_0 : i32, i32
  }
  func.func @transform_7(%arg0: i32) -> (i32, i32) {
    %c0_i32 = arith.constant 0 : i32
    %c0_i32_0 = arith.constant 0 : i32
    %c0_i32_1 = arith.constant 0 : i32
    return %c0_i32, %c0_i32_0 : i32, i32
  }
  func.func @transform_8(%arg0: i32) -> (i32, i32) {
    %c0_i32 = arith.constant 0 : i32
    %c0_i32_0 = arith.constant 0 : i32
    %c0_i32_1 = arith.constant 0 : i32
    return %c0_i32, %c0_i32_0 : i32, i32
  }
}

</mosaic_0001>

<llo_original>
// kernel: tpu_custom_call.1
$region0: #{tpu_custom_call.1}
  #allocation0 [shape = 'u32[]', space=smem, size = 0x4, offset = 0x4, fixed_abs, tag = 'smem constant byte address 0x4 - core index']
  #allocation1 [shape = 'u32[144,128]{1,0:T(1,128)}', space=vmem, size = 0x12000, scoped, tag = 'internal scratch']
  #allocation2 [shape = 'f32[64,512]{1,0:T(8,128)}', space=vmem, size = 0x20000, scoped, tag = 'scratch operand']
  #allocation3 [shape = 'f32[32,768]{1,0:T(8,128)}', space=vmem, size = 0x18000, scoped, tag = 'scratch operand']
  #allocation4 [shape = 'bf16[288,512]{1,0:T(8,128)(2,1)}', space=vmem, size = 0x48000, scoped, tag = 'scratch operand']
  %s0 = inlined_call_operand.hbm [shape: f32[1,8,512], index: 0, kind: input, shape index: {}]
  %s1 = inlined_call_operand.hbm [shape: f32[64,512], index: 1, kind: input, shape index: {}]
  %s2 = inlined_call_operand.vmem [shape: bf16[96,40], index: 2, kind: input, shape index: {}]
  %s3 = inlined_call_operand.hbm [shape: bf16[64,64], index: 3, kind: input, shape index: {}]
  %s4 = inlined_call_operand.vmem [shape: bf16[32,288], index: 4, kind: input, shape index: {}]
  %s5 = inlined_call_operand.hbm [shape: bf16[32,288], index: 5, kind: input, shape index: {}]
  %s6 = inlined_call_operand.vmem [shape: f32[32,12], index: 6, kind: input, shape index: {}]
  %s7 = inlined_call_operand.vmem [shape: f32[9,512], index: 7, kind: input, shape index: {}]
  %s8 = inlined_call_operand.hbm [shape: f32[64,512], index: 8, kind: output, shape index: {}]
  %s9 = sld [smem:[#allocation0]]
  $region62: #{tpu_custom_call.1} parent=0
    _
  %s11 = ssub.s32 1, %s9
  %s12 = scalar_select 0, %s11, %s9
  $region1: #{tpu_custom_call.1} parent=0
    #allocation5 [shape = 'u8[16384]{0}', space=vmem, size = 0x4000, scoped, tag = 'input window, operand 0, single buffered']
    #allocation6 [shape = 's32[1]{0}', space=sflag, size = 0x4, scoped, tag = 'scoped memory for tpu_custom_call.1']
    #allocation7 [shape = 's32[1]{0}', space=sflag, size = 0x4, scoped, tag = 'scoped memory for tpu_custom_call.1']
    #allocation8 [shape = 'u8[131072]{0}', space=vmem, size = 0x20000, scoped, tag = 'input window, operand 1, single buffered']
    #allocation9 [shape = 's32[1]{0}', space=sflag, size = 0x4, scoped, tag = 'scoped memory for tpu_custom_call.1']
    #allocation10 [shape = 'u8[16384]{0}', space=vmem, size = 0x4000, scoped, tag = 'input window, operand 3, single buffered']
    #allocation11 [shape = 'u8[24576]{0}', space=vmem, size = 0x6000, scoped, tag = 'input window, operand 5, single buffered']
    #allocation12 [shape = 's32[1]{0}', space=sflag, size = 0x4, scoped, tag = 'scoped memory for tpu_custom_call.1']
    #allocation13 [shape = 'u8[131072]{0}', space=vmem, size = 0x20000, scoped, tag = 'output window, operand 0, single buffered']
    %13 = vsyncpa [#allocation6], 0
    %14 = vsyncpa [#allocation9], 0
    %15 = vsyncpa [#allocation12], 0
    %16 = vsyncpa [#allocation7], 0
    // Predicated region
    $region2: #{tpu_custom_call.1} parent=1 // pred_check
      _
    $region3: #{tpu_custom_call.1} parent=1 // pred_check_branch
      %18 = sbr.rel (0) target = $region5
    $region4: #{tpu_custom_call.1} parent=1 // pred_region
      %s20 = ssub.s32 512, 512
      %21 = vsyncadd [#allocation6], %s20
      %s23 = sshll.u32 [#allocation5], 4
      %s24 = int_to_ptr.vmem [resolvable:$true] %s23
      %26 = dma.hbm_to_vmem [thread:$0]  %s0, 512, %s24, [#allocation6]
    $region5: #{tpu_custom_call.1} parent=1 // pred_fallthru
      _
    // Predicated region
    $region6: #{tpu_custom_call.1} parent=1 // pred_check
      _
    $region7: #{tpu_custom_call.1} parent=1 // pred_check_branch
      %28 = sbr.rel (0) target = $region9
    $region8: #{tpu_custom_call.1} parent=1 // pred_region
      %s30 = ssub.s32 4096, 4096
      %31 = vsyncadd [#allocation9], %s30
      %s32 = sshll.u32 [#allocation8], 4
      %s33 = int_to_ptr.vmem [resolvable:$true] %s32
      %38 = dma.hbm_to_vmem [thread:$0]  %s1, 4096, %s33, [#allocation9], 512, 512, 32
    $region9: #{tpu_custom_call.1} parent=1 // pred_fallthru
      _
    // Predicated region
    $region10: #{tpu_custom_call.1} parent=1 // pred_check
      _
    $region11: #{tpu_custom_call.1} parent=1 // pred_check_branch
      %40 = sbr.rel (0) target = $region13
    $region12: #{tpu_custom_call.1} parent=1 // pred_region
      _
    $region13: #{tpu_custom_call.1} parent=1 // pred_fallthru
      _
    // Predicated region
    $region14: #{tpu_custom_call.1} parent=1 // pred_check
      _
    $region15: #{tpu_custom_call.1} parent=1 // pred_check_branch
      %42 = sbr.rel (0) target = $region17
    $region16: #{tpu_custom_call.1} parent=1 // pred_region
      %s44 = ssub.s32 512, 512
      %45 = vsyncadd [#allocation9], %s44
      %s46 = sshll.u32 [#allocation10], 4
      %s47 = int_to_ptr.vmem [resolvable:$true] %s46
      %52 = dma.hbm_to_vmem [thread:$0]  %s3, 512, %s47, [#allocation9], 64, 64, 4
    $region17: #{tpu_custom_call.1} parent=1 // pred_fallthru
      _
    // Predicated region
    $region18: #{tpu_custom_call.1} parent=1 // pred_check
      _
    $region19: #{tpu_custom_call.1} parent=1 // pred_check_branch
      %54 = sbr.rel (0) target = $region21
    $region20: #{tpu_custom_call.1} parent=1 // pred_region
      _
    $region21: #{tpu_custom_call.1} parent=1 // pred_fallthru
      _
    // Predicated region
    $region22: #{tpu_custom_call.1} parent=1 // pred_check
      _
    $region23: #{tpu_custom_call.1} parent=1 // pred_check_branch
      %56 = sbr.rel (0) target = $region25
    $region24: #{tpu_custom_call.1} parent=1 // pred_region
      %s58 = ssub.s32 768, 768
      %59 = vsyncadd [#allocation12], %s58
      %s60 = sshll.u32 [#allocation11], 4
      %s61 = int_to_ptr.vmem [resolvable:$true] %s60
      %66 = dma.hbm_to_vmem [thread:$0]  %s5, 768, %s61, [#allocation12], 192, 192, 12
    $region25: #{tpu_custom_call.1} parent=1 // pred_fallthru
      _
    // Predicated region
    $region26: #{tpu_custom_call.1} parent=1 // pred_check
      _
    $region27: #{tpu_custom_call.1} parent=1 // pred_check_branch
      %68 = sbr.rel (0) target = $region29
    $region28: #{tpu_custom_call.1} parent=1 // pred_region
      _
    $region29: #{tpu_custom_call.1} parent=1 // pred_fallthru
      _
    // Predicated region
    $region30: #{tpu_custom_call.1} parent=1 // pred_check
      _
    $region31: #{tpu_custom_call.1} parent=1 // pred_check_branch
      %70 = sbr.rel (0) target = $region33
    $region32: #{tpu_custom_call.1} parent=1 // pred_region
      _
    $region33: #{tpu_custom_call.1} parent=1 // pred_fallthru
      _
    // Predicated region
    $region34: #{tpu_custom_call.1} parent=1 // pred_check
      _
    $region35: #{tpu_custom_call.1} parent=1 // pred_check_branch
      %72 = sbr.rel (0) target = $region37
    $region36: #{tpu_custom_call.1} parent=1 // pred_region
      %73 = dma.done [#allocation6], 512
    $region37: #{tpu_custom_call.1} parent=1 // pred_fallthru
      _
    // Predicated region
    $region38: #{tpu_custom_call.1} parent=1 // pred_check
      _
    $region39: #{tpu_custom_call.1} parent=1 // pred_check_branch
      %75 = sbr.rel (0) target = $region41
    $region40: #{tpu_custom_call.1} parent=1 // pred_region
      %76 = dma.done [#allocation9], 4096
    $region41: #{tpu_custom_call.1} parent=1 // pred_fallthru
      _
    // Predicated region
    $region42: #{tpu_custom_call.1} parent=1 // pred_check
      _
    $region43: #{tpu_custom_call.1} parent=1 // pred_check_branch
      %78 = sbr.rel (0) target = $region45
    $region44: #{tpu_custom_call.1} parent=1 // pred_region
      %79 = dma.done [#allocation9], 512
    $region45: #{tpu_custom_call.1} parent=1 // pred_fallthru
      _
    // Predicated region
    $region46: #{tpu_custom_call.1} parent=1 // pred_check
      _
    $region47: #{tpu_custom_call.1} parent=1 // pred_check_branch
      %81 = sbr.rel (0) target = $region49
    $region48: #{tpu_custom_call.1} parent=1 // pred_region
      %82 = dma.done [#allocation12], 768
    $region49: #{tpu_custom_call.1} parent=1 // pred_fallthru
      _
    %p84 = scmp.eq.s32.totalorder 0, 0
    // Predicated region
    $region50: #{tpu_custom_call.1} parent=1 // pred_check
      %p85 = pneg %p84
    $region51: #{tpu_custom_call.1} parent=1 // pred_check_branch
      %87 = sbr.rel (%p85) target = $region53
    $region52: #{tpu_custom_call.1} parent=1 // pred_region
      %v88 = vld [vmem:[#allocation8] sm:$0xff]
      %v89 = vld [vmem:[#allocation8 + $0x8] sm:$0xff]
      %v90 = vld [vmem:[#allocation8 + $0x10] sm:$0xff]
      %v91 = vld [vmem:[#allocation8 + $0x18] sm:$0xff]
      %v92 = vld [vmem:[#allocation8 + $0x20] sm:$0xff]
      %v93 = vld [vmem:[#allocation8 + $0x28] sm:$0xff]
      %v94 = vld [vmem:[#allocation8 + $0x30] sm:$0xff]
      %v95 = vld [vmem:[#allocation8 + $0x38] sm:$0xff]
      %v96 = vld [vmem:[#allocation8 + $0x40] sm:$0xff]
      %v97 = vld [vmem:[#allocation8 + $0x48] sm:$0xff]
      %v98 = vld [vmem:[#allocation8 + $0x50] sm:$0xff]
      %v99 = vld [vmem:[#allocation8 + $0x58] sm:$0xff]
      %v100 = vld [vmem:[#allocation8 + $0x60] sm:$0xff]
      %v101 = vld [vmem:[#allocation8 + $0x68] sm:$0xff]
      %v102 = vld [vmem:[#allocation8 + $0x70] sm:$0xff]
      %v103 = vld [vmem:[#allocation8 + $0x78] sm:$0xff]
      %v104 = vld [vmem:[#allocation8 + $0x80] sm:$0xff]
      %v105 = vld [vmem:[#allocation8 + $0x88] sm:$0xff]
      %v106 = vld [vmem:[#allocation8 + $0x90] sm:$0xff]
      %v107 = vld [vmem:[#allocation8 + $0x98] sm:$0xff]
      %v108 = vld [vmem:[#allocation8 + $0xa0] sm:$0xff]
      %v109 = vld [vmem:[#allocation8 + $0xa8] sm:$0xff]
      %v110 = vld [vmem:[#allocation8 + $0xb0] sm:$0xff]
      %v111 = vld [vmem:[#allocation8 + $0xb8] sm:$0xff]
      %v112 = vld [vmem:[#allocation8 + $0xc0] sm:$0xff]
      %v113 = vld [vmem:[#allocation8 + $0xc8] sm:$0xff]
      %v114 = vld [vmem:[#allocation8 + $0xd0] sm:$0xff]
      %v115 = vld [vmem:[#allocation8 + $0xd8] sm:$0xff]
      %v116 = vld [vmem:[#allocation8 + $0xe0] sm:$0xff]
      %v117 = vld [vmem:[#allocation8 + $0xe8] sm:$0xff]
      %v118 = vld [vmem:[#allocation8 + $0xf0] sm:$0xff]
      %v119 = vld [vmem:[#allocation8 + $0xf8] sm:$0xff]
      %120 = vst [vmem:[#allocation2] sm:$0xff] %v88
      %121 = vst [vmem:[#allocation2 + $0x8] sm:$0xff] %v89
      %122 = vst [vmem:[#allocation2 + $0x10] sm:$0xff] %v90
      %123 = vst [vmem:[#allocation2 + $0x18] sm:$0xff] %v91
      %124 = vst [vmem:[#allocation2 + $0x20] sm:$0xff] %v92
      %125 = vst [vmem:[#allocation2 + $0x28] sm:$0xff] %v93
      %126 = vst [vmem:[#allocation2 + $0x30] sm:$0xff] %v94
      %127 = vst [vmem:[#allocation2 + $0x38] sm:$0xff] %v95
      %128 = vst [vmem:[#allocation2 + $0x40] sm:$0xff] %v96
      %129 = vst [vmem:[#allocation2 + $0x48] sm:$0xff] %v97
      %130 = vst [vmem:[#allocation2 + $0x50] sm:$0xff] %v98
      %131 = vst [vmem:[#allocation2 + $0x58] sm:$0xff] %v99
      %132 = vst [vmem:[#allocation2 + $0x60] sm:$0xff] %v100
      %133 = vst [vmem:[#allocation2 + $0x68] sm:$0xff] %v101
      %134 = vst [vmem:[#allocation2 + $0x70] sm:$0xff] %v102
      %135 = vst [vmem:[#allocation2 + $0x78] sm:$0xff] %v103
      %136 = vst [vmem:[#allocation2 + $0x80] sm:$0xff] %v104
      %137 = vst [vmem:[#allocation2 + $0x88] sm:$0xff] %v105
      %138 = vst [vmem:[#allocation2 + $0x90] sm:$0xff] %v106
      %139 = vst [vmem:[#allocation2 + $0x98] sm:$0xff] %v107
      %140 = vst [vmem:[#allocation2 + $0xa0] sm:$0xff] %v108
      %141 = vst [vmem:[#allocation2 + $0xa8] sm:$0xff] %v109
      %142 = vst [vmem:[#allocation2 + $0xb0] sm:$0xff] %v110
      %143 = vst [vmem:[#allocation2 + $0xb8] sm:$0xff] %v111
      %144 = vst [vmem:[#allocation2 + $0xc0] sm:$0xff] %v112
      %145 = vst [vmem:[#allocation2 + $0xc8] sm:$0xff] %v113
      %146 = vst [vmem:[#allocation2 + $0xd0] sm:$0xff] %v114
      %147 = vst [vmem:[#allocation2 + $0xd8] sm:$0xff] %v115
      %148 = vst [vmem:[#allocation2 + $0xe0] sm:$0xff] %v116
      %149 = vst [vmem:[#allocation2 + $0xe8] sm:$0xff] %v117
      %150 = vst [vmem:[#allocation2 + $0xf0] sm:$0xff] %v118
      %151 = vst [vmem:[#allocation2 + $0xf8] sm:$0xff] %v119
      %152 = vst [vmem:[#allocation3] sm:$0xff] 0.0
      %153 = vst [vmem:[#allocation3 + $0x30] sm:$0xff] 0.0
      %154 = vst [vmem:[#allocation3 + $0x60] sm:$0xff] 0.0
      %155 = vst [vmem:[#allocation3 + $0x90] sm:$0xff] 0.0
      %156 = vst [vmem:[#allocation3 + $0x28] sm:$0xff] 0.0
      %157 = vst [vmem:[#allocation3 + $0x58] sm:$0xff] 0.0
      %158 = vst [vmem:[#allocation3 + $0x88] sm:$0xff] 0.0
      %159 = vst [vmem:[#allocation3 + $0xb8] sm:$0xff] 0.0
    $region53: #{tpu_custom_call.1} parent=1 // pred_fallthru
      _
    %v160 = vld [vmem:[#allocation2] sm:$0xff]
    %v161 = vld [vmem:[#allocation2 + $0x8] sm:$0xff]
    %v162 = vld [vmem:[#allocation2 + $0x10] sm:$0xff]
    %v163 = vld [vmem:[#allocation2 + $0x18] sm:$0xff]
    %v164 = vld [vmem:[#allocation2 + $0x20] sm:$0xff]
    %v165 = vld [vmem:[#allocation2 + $0x28] sm:$0xff]
    %v166 = vld [vmem:[#allocation2 + $0x30] sm:$0xff]
    %v167 = vld [vmem:[#allocation2 + $0x38] sm:$0xff]
    %v168 = vld [vmem:[#allocation2 + $0x40] sm:$0xff]
    %v169 = vld [vmem:[#allocation2 + $0x48] sm:$0xff]
    %v170 = vld [vmem:[#allocation2 + $0x50] sm:$0xff]
    %v171 = vld [vmem:[#allocation2 + $0x58] sm:$0xff]
    %v172 = vld [vmem:[#allocation2 + $0x60] sm:$0xff]
    %v173 = vld [vmem:[#allocation2 + $0x68] sm:$0xff]
    %v174 = vld [vmem:[#allocation2 + $0x70] sm:$0xff]
    %v175 = vld [vmem:[#allocation2 + $0x78] sm:$0xff]
    %v176 = vld [vmem:[#allocation2 + $0x80] sm:$0xff]
    %v177 = vld [vmem:[#allocation2 + $0x88] sm:$0xff]
    %v178 = vld [vmem:[#allocation2 + $0x90] sm:$0xff]
    %v179 = vld [vmem:[#allocation2 + $0x98] sm:$0xff]
    %v180 = vld [vmem:[#allocation2 + $0xa0] sm:$0xff]
    %v181 = vld [vmem:[#allocation2 + $0xa8] sm:$0xff]
    %v182 = vld [vmem:[#allocation2 + $0xb0] sm:$0xff]
    %v183 = vld [vmem:[#allocation2 + $0xb8] sm:$0xff]
    %v184 = vld [vmem:[#allocation2 + $0xc0] sm:$0xff]
    %v185 = vld [vmem:[#allocation2 + $0xc8] sm:$0xff]
    %v186 = vld [vmem:[#allocation2 + $0xd0] sm:$0xff]
    %v187 = vld [vmem:[#allocation2 + $0xd8] sm:$0xff]
    %v188 = vld [vmem:[#allocation2 + $0xe0] sm:$0xff]
    %v189 = vld [vmem:[#allocation2 + $0xe8] sm:$0xff]
    %v190 = vld [vmem:[#allocation2 + $0xf0] sm:$0xff]
    %v191 = vld [vmem:[#allocation2 + $0xf8] sm:$0xff]
    %v192 = vld [vmem:[#allocation5] sm:$0xff]
    %v193 = vld [vmem:[#allocation5 + $0x8] sm:$0xff]
    %v194 = vld [vmem:[#allocation5 + $0x10] sm:$0xff]
    %v195 = vld [vmem:[#allocation5 + $0x18] sm:$0xff]
    %v196 = vld [vmem:[%s6] sm:$0xff]
    %v197 = vld [vmem:[%s6 + $0x8] sm:$0xff]
    %v198 = vld [vmem:[%s6 + $0x10] sm:$0xff]
    %v199 = vld [vmem:[%s6 + $0x18] sm:$0xff]
    %v200 = vpack.c.bf16 %v160, %v192
    %v201 = vpack.c.bf16 %v161, %v193
    %v202 = vpack.c.bf16 %v162, %v194
    %v203 = vpack.c.bf16 %v163, %v195
    %v204 = vpack.c.bf16 %v168, %v164
    %v205 = vpack.c.bf16 %v169, %v165
    %v206 = vpack.c.bf16 %v170, %v166
    %v207 = vpack.c.bf16 %v171, %v167
    %v208 = vpack.c.bf16 %v172, %v172
    %v209 = vpack.c.bf16 %v173, %v173
    %v210 = vpack.c.bf16 %v174, %v174
    %v211 = vpack.c.bf16 %v175, %v175
    %v212 = vld [vmem:[%s2] sm:$0xf]
    %v213 = vld [vmem:[%s2 + $0x4] sm:$0xf]
    %v214 = vld [vmem:[%s2 + $0x8] sm:$0xf]
    %v215 = vld [vmem:[%s2 + $0xc] sm:$0xf]
    %v216 = vld [vmem:[%s2 + $0x10] sm:$0xf]
    %v217 = vld [vmem:[%s2 + $0x14] sm:$0xf]
    %v218 = vld [vmem:[%s2 + $0x18] sm:$0xf]
    %v219 = vld [vmem:[%s2 + $0x1c] sm:$0xf]
    %v220 = vld [vmem:[%s2 + $0x20] sm:$0xf]
    %v221 = vld [vmem:[%s2 + $0x24] sm:$0xf]
    %v222 = vld [vmem:[%s2 + $0x28] sm:$0xf]
    %v223 = vld [vmem:[%s2 + $0x2c] sm:$0xf]
    %v236 = vunpack.c.l.b16 %v212
    %v237 = vunpack.c.l.b16 %v213
    %v238 = vunpack.c.l.b16 %v214
    %v239 = vunpack.c.l.b16 %v215
    %v240 = vunpack.c.l.b16 %v216
    %v241 = vunpack.c.l.b16 %v217
    %v242 = vunpack.c.l.b16 %v218
    %v243 = vunpack.c.l.b16 %v219
    %v244 = vunpack.c.l.b16 %v220
    %v245 = vunpack.c.l.b16 %v221
    %v246 = vunpack.c.l.b16 %v222
    %v247 = vunpack.c.l.b16 %v223
    %v248 = vpack.c.b16 %v237, %v236
    %v249 = vpack.c.b16 %v239, %v238
    %v250 = vpack.c.b16 %v241, %v240
    %v251 = vpack.c.b16 %v243, %v242
    %v252 = vpack.c.b16 %v245, %v244
    %v253 = vpack.c.b16 %v247, %v246
    %vm254 = vcmask 326656
    %v256 = vsel %vm254, %v248, 0
    %v259 = vsel %vm254, %v249, 0
    %v262 = vsel %vm254, %v250, 0
    %v265 = vsel %vm254, %v251, 0
    %v268 = vsel %vm254, %v252, 0
    %v271 = vsel %vm254, %v253, 0
    %vm273 = vcmask 1043456
    %v275 = vsel %vm273, %v208, 0
    %v278 = vsel %vm273, %v209, 0
    %v281 = vsel %vm273, %v210, 0
    %v284 = vsel %vm273, %v211, 0
    %286 = vmatprep.subr.bf16.mxu0 0
    %287 = vmatpush1.bf16.msra.mxu0 0
    %288 = vmatprep.subr.bf16.mxu0 0
    %289 = vmatpush1.bf16.msra.mxu0 0
    %290 = vmatprep.subr.bf16.mxu0 0
    %291 = vmatpush1.bf16.msra.mxu0 0
    %292 = vmatprep.subr.bf16.mxu0 0
    %293 = vmatpush1.bf16.msra.mxu0 0
    %294 = vmatprep.subr.bf16.mxu0 0
    %295 = vmatpush1.bf16.msra.mxu0 0
    %296 = vmatprep.subr.bf16.mxu0 %v278
    %297 = vmatpush1.bf16.msra.mxu0 %v275
    %298 = vmatprep.subr.bf16.mxu0 %v205
    %299 = vmatpush1.bf16.msra.mxu0 %v204
    %300 = vmatprep.subr.bf16.mxu0 %v201
    %301 = vmatpush1.bf16.msra.mxu0 %v200
    %302 = vmatprep.subr.bf16.mxu0 0
    %303 = vmatpush2.bf16.msra.mxu0 0
    %304 = vmatprep.subr.bf16.mxu0 0
    %305 = vmatpush2.bf16.msra.mxu0 0
    %306 = vmatprep.subr.bf16.mxu0 0
    %307 = vmatpush2.bf16.msra.mxu0 0
    %308 = vmatprep.subr.bf16.mxu0 0
    %309 = vmatpush2.bf16.msra.mxu0 0
    %310 = vmatprep.subr.bf16.mxu0 0
    %311 = vmatpush2.bf16.msra.mxu0 0
    %312 = vmatprep.subr.bf16.mxu0 0
    %313 = vmatpush2.bf16.msra.mxu0 0
    %314 = vmatprep.subr.bf16.mxu0 0
    %315 = vmatpush2.bf16.msra.mxu0 0
    %316 = vmatprep.subr.bf16.mxu0 0
    %317 = vmatpush2.bf16.msra.mxu0 0
    %318 = vmatprep.mubr.bf16.mxu0 0
    %319 = vmatmul.mubr.bf16.gmra.mxu0 %v256
    %v320 = vpop.f32.mrf.mxu0
    %v321 = vadd.f32 0.0, %v320
    %v322 = vpop.f32.mrf.mxu0
    %v323 = vadd.f32 0.0, %v322
    %v324 = vpop.f32.mrf.mxu0
    %v325 = vadd.f32 0.0, %v324
    %v326 = vpop.f32.mrf.mxu0
    %v327 = vadd.f32 0.0, %v326
    %328 = vmatprep.mubr.bf16.mxu0 0
    %329 = vmatmul.mubr.bf16.gmra.mxu0 %v259
    %v330 = vpop.f32.mrf.mxu0
    %v331 = vadd.f32 0.0, %v330
    %v332 = vpop.f32.mrf.mxu0
    %v333 = vadd.f32 0.0, %v332
    %v334 = vpop.f32.mrf.mxu0
    %v335 = vadd.f32 0.0, %v334
    %v336 = vpop.f32.mrf.mxu0
    %v337 = vadd.f32 0.0, %v336
    %338 = vmatprep.mubr.bf16.mxu0 0
    %339 = vmatmul.mubr.bf16.gmra.mxu0 %v262
    %v340 = vpop.f32.mrf.mxu0
    %v341 = vadd.f32 0.0, %v340
    %v342 = vpop.f32.mrf.mxu0
    %v343 = vadd.f32 0.0, %v342
    %v344 = vpop.f32.mrf.mxu0
    %v345 = vadd.f32 0.0, %v344
    %v346 = vpop.f32.mrf.mxu0
    %v347 = vadd.f32 0.0, %v346
    %348 = vmatprep.mubr.bf16.mxu0 0
    %349 = vmatmul.mubr.bf16.gmra.mxu0 %v265
    %v350 = vpop.f32.mrf.mxu0
    %v351 = vadd.f32 0.0, %v350
    %v352 = vpop.f32.mrf.mxu0
    %v353 = vadd.f32 0.0, %v352
    %v354 = vpop.f32.mrf.mxu0
    %v355 = vadd.f32 0.0, %v354
    %v356 = vpop.f32.mrf.mxu0
    %v357 = vadd.f32 0.0, %v356
    %358 = vmatprep.mubr.bf16.mxu0 0
    %359 = vmatmul.mubr.bf16.gmra.mxu0 %v268
    %v360 = vpop.f32.mrf.mxu0
    %v361 = vadd.f32 0.0, %v360
    %v362 = vpop.f32.mrf.mxu0
    %v363 = vadd.f32 0.0, %v362
    %v364 = vpop.f32.mrf.mxu0
    %v365 = vadd.f32 0.0, %v364
    %v366 = vpop.f32.mrf.mxu0
    %v367 = vadd.f32 0.0, %v366
    %368 = vmatprep.mubr.bf16.mxu0 0
    %369 = vmatmul.mubr.bf16.gmra.mxu0 %v271
    %v370 = vpop.f32.mrf.mxu0
    %v371 = vadd.f32 0.0, %v370
    %v372 = vpop.f32.mrf.mxu0
    %v373 = vadd.f32 0.0, %v372
    %v374 = vpop.f32.mrf.mxu0
    %v375 = vadd.f32 0.0, %v374
    %v376 = vpop.f32.mrf.mxu0
    %v377 = vadd.f32 0.0, %v376
    %378 = vdwg.mxu0
    %379 = vmatprep.subr.bf16.mxu0 0
    %380 = vmatpush1.bf16.msra.mxu0 0
    %381 = vmatprep.subr.bf16.mxu0 0
    %382 = vmatpush1.bf16.msra.mxu0 0
    %383 = vmatprep.subr.bf16.mxu0 0
    %384 = vmatpush1.bf16.msra.mxu0 0
    %385 = vmatprep.subr.bf16.mxu0 0
    %386 = vmatpush1.bf16.msra.mxu0 0
    %387 = vmatprep.subr.bf16.mxu0 0
    %388 = vmatpush1.bf16.msra.mxu0 0
    %389 = vmatprep.subr.bf16.mxu0 %v284
    %390 = vmatpush1.bf16.msra.mxu0 %v281
    %391 = vmatprep.subr.bf16.mxu0 %v207
    %392 = vmatpush1.bf16.msra.mxu0 %v206
    %393 = vmatprep.subr.bf16.mxu0 %v203
    %394 = vmatpush1.bf16.msra.mxu0 %v202
    %395 = vmatprep.subr.bf16.mxu0 0
    %396 = vmatpush2.bf16.msra.mxu0 0
    %397 = vmatprep.subr.bf16.mxu0 0
    %398 = vmatpush2.bf16.msra.mxu0 0
    %399 = vmatprep.subr.bf16.mxu0 0
    %400 = vmatpush2.bf16.msra.mxu0 0
    %401 = vmatprep.subr.bf16.mxu0 0
    %402 = vmatpush2.bf16.msra.mxu0 0
    %403 = vmatprep.subr.bf16.mxu0 0
    %404 = vmatpush2.bf16.msra.mxu0 0
    %405 = vmatprep.subr.bf16.mxu0 0
    %406 = vmatpush2.bf16.msra.mxu0 0
    %407 = vmatprep.subr.bf16.mxu0 0
    %408 = vmatpush2.bf16.msra.mxu0 0
    %409 = vmatprep.subr.bf16.mxu0 0
    %410 = vmatpush2.bf16.msra.mxu0 0
    %411 = vmatprep.mubr.bf16.mxu0 0
    %412 = vmatmul.mubr.bf16.gmra.mxu0 %v256
    %v413 = vpop.f32.mrf.mxu0
    %v414 = vadd.f32 0.0, %v413
    %v415 = vpop.f32.mrf.mxu0
    %v416 = vadd.f32 0.0, %v415
    %v417 = vpop.f32.mrf.mxu0
    %v418 = vadd.f32 0.0, %v417
    %v419 = vpop.f32.mrf.mxu0
    %v420 = vadd.f32 0.0, %v419
    %421 = vmatprep.mubr.bf16.mxu0 0
    %422 = vmatmul.mubr.bf16.gmra.mxu0 %v259
    %v423 = vpop.f32.mrf.mxu0
    %v424 = vadd.f32 0.0, %v423
    %v425 = vpop.f32.mrf.mxu0
    %v426 = vadd.f32 0.0, %v425
    %v427 = vpop.f32.mrf.mxu0
    %v428 = vadd.f32 0.0, %v427
    %v429 = vpop.f32.mrf.mxu0
    %v430 = vadd.f32 0.0, %v429
    %431 = vmatprep.mubr.bf16.mxu0 0
    %432 = vmatmul.mubr.bf16.gmra.mxu0 %v262
    %v433 = vpop.f32.mrf.mxu0
    %v434 = vadd.f32 0.0, %v433
    %v435 = vpop.f32.mrf.mxu0
    %v436 = vadd.f32 0.0, %v435
    %v437 = vpop.f32.mrf.mxu0
    %v438 = vadd.f32 0.0, %v437
    %v439 = vpop.f32.mrf.mxu0
    %v440 = vadd.f32 0.0, %v439
    %441 = vmatprep.mubr.bf16.mxu0 0
    %442 = vmatmul.mubr.bf16.gmra.mxu0 %v265
    %v443 = vpop.f32.mrf.mxu0
    %v444 = vadd.f32 0.0, %v443
    %v445 = vpop.f32.mrf.mxu0
    %v446 = vadd.f32 0.0, %v445
    %v447 = vpop.f32.mrf.mxu0
    %v448 = vadd.f32 0.0, %v447
    %v449 = vpop.f32.mrf.mxu0
    %v450 = vadd.f32 0.0, %v449
    %451 = vmatprep.mubr.bf16.mxu0 0
    %452 = vmatmul.mubr.bf16.gmra.mxu0 %v268
    %v453 = vpop.f32.mrf.mxu0
    %v454 = vadd.f32 0.0, %v453
    %v455 = vpop.f32.mrf.mxu0
    %v456 = vadd.f32 0.0, %v455
    %v457 = vpop.f32.mrf.mxu0
    %v458 = vadd.f32 0.0, %v457
    %v459 = vpop.f32.mrf.mxu0
    %v460 = vadd.f32 0.0, %v459
    %461 = vmatprep.mubr.bf16.mxu0 0
    %462 = vmatmul.mubr.bf16.gmra.mxu0 %v271
    %v463 = vpop.f32.mrf.mxu0
    %v464 = vadd.f32 0.0, %v463
    %v465 = vpop.f32.mrf.mxu0
    %v466 = vadd.f32 0.0, %v465
    %v467 = vpop.f32.mrf.mxu0
    %v468 = vadd.f32 0.0, %v467
    %v469 = vpop.f32.mrf.mxu0
    %v470 = vadd.f32 0.0, %v469
    %471 = vdwg.mxu0
    %473 = vset.pattern.permute.xlu0 0
    %474 = vperm.xlu0 %473, %v196
    %v475 = vpop.permute.xlu0 %474
    %478 = vset.pattern.permute.xlu0 0
    %479 = vperm.xlu0 %478, %v197
    %v480 = vpop.permute.xlu0 %479
    %483 = vset.pattern.permute.xlu0 0
    %484 = vperm.xlu0 %483, %v198
    %v485 = vpop.permute.xlu0 %484
    %488 = vset.pattern.permute.xlu0 0
    %489 = vperm.xlu0 %488, %v199
    %v490 = vpop.permute.xlu0 %489
    %v492 = vadd.f32 %v321, %v475
    %v493 = vadd.f32 %v323, %v475
    %v494 = vadd.f32 %v414, %v475
    %v495 = vadd.f32 %v416, %v475
    %v496 = vadd.f32 %v325, %v480
    %v497 = vadd.f32 %v327, %v480
    %v498 = vadd.f32 %v418, %v480
    %v499 = vadd.f32 %v420, %v480
    %v500 = vadd.f32 %v331, %v485
    %v501 = vadd.f32 %v333, %v485
    %v502 = vadd.f32 %v424, %v485
    %v503 = vadd.f32 %v426, %v485
    %v504 = vadd.f32 %v335, %v490
    %v505 = vadd.f32 %v337, %v490
    %v506 = vadd.f32 %v428, %v490
    %v507 = vadd.f32 %v430, %v490
    %v508 = vmul.f32 %v492, 0.5
    %v509 = vmul.f32 %v493, 0.5
    %v510 = vmul.f32 %v494, 0.5
    %v511 = vmul.f32 %v495, 0.5
    %v512 = vmul.f32 %v496, 0.5
    %v513 = vmul.f32 %v497, 0.5
    %v514 = vmul.f32 %v498, 0.5
    %v515 = vmul.f32 %v499, 0.5
    %v516 = vmul.f32 %v500, 0.5
    %v517 = vmul.f32 %v501, 0.5
    %v518 = vmul.f32 %v502, 0.5
    %v519 = vmul.f32 %v503, 0.5
    %v520 = vmul.f32 %v504, 0.5
    %v521 = vmul.f32 %v505, 0.5
    %v522 = vmul.f32 %v506, 0.5
    %v523 = vmul.f32 %v507, 0.5
    %v524 = vtanh.pop %v508
    %v525 = vtanh.pop %v509
    %v526 = vtanh.pop %v510
    %v527 = vtanh.pop %v511
    %v528 = vtanh.pop %v512
    %v529 = vtanh.pop %v513
    %v530 = vtanh.pop %v514
    %v531 = vtanh.pop %v515
    %v532 = vtanh.pop %v516
    %v533 = vtanh.pop %v517
    %v534 = vtanh.pop %v518
    %v535 = vtanh.pop %v519
    %v536 = vtanh.pop %v520
    %v537 = vtanh.pop %v521
    %v538 = vtanh.pop %v522
    %v539 = vtanh.pop %v523
    %v540 = vadd.f32 %v524, 1.0
    %v541 = vadd.f32 %v525, 1.0
    %v542 = vadd.f32 %v526, 1.0
    %v543 = vadd.f32 %v527, 1.0
    %v544 = vadd.f32 %v528, 1.0
    %v545 = vadd.f32 %v529, 1.0
    %v546 = vadd.f32 %v530, 1.0
    %v547 = vadd.f32 %v531, 1.0
    %v548 = vadd.f32 %v532, 1.0
    %v549 = vadd.f32 %v533, 1.0
    %v550 = vadd.f32 %v534, 1.0
    %v551 = vadd.f32 %v535, 1.0
    %v552 = vadd.f32 %v536, 1.0
    %v553 = vadd.f32 %v537, 1.0
    %v554 = vadd.f32 %v538, 1.0
    %v555 = vadd.f32 %v539, 1.0
    %v556 = vmul.f32 %v540, 0.5
    %v557 = vmul.f32 %v541, 0.5
    %v558 = vmul.f32 %v542, 0.5
    %v559 = vmul.f32 %v543, 0.5
    %v560 = vmul.f32 %v544, 0.5
    %v561 = vmul.f32 %v545, 0.5
    %v562 = vmul.f32 %v546, 0.5
    %v563 = vmul.f32 %v547, 0.5
    %v564 = vmul.f32 %v548, 0.5
    %v565 = vmul.f32 %v549, 0.5
    %v566 = vmul.f32 %v550, 0.5
    %v567 = vmul.f32 %v551, 0.5
    %v568 = vmul.f32 %v552, 0.5
    %v569 = vmul.f32 %v553, 0.5
    %v570 = vmul.f32 %v554, 0.5
    %v571 = vmul.f32 %v555, 0.5
    %v572 = vmul.f32 %v556, %v160
    %v573 = vmul.f32 %v557, %v161
    %v574 = vmul.f32 %v558, %v162
    %v575 = vmul.f32 %v559, %v163
    %v576 = vmul.f32 %v560, %v164
    %v577 = vmul.f32 %v561, %v165
    %v578 = vmul.f32 %v562, %v166
    %v579 = vmul.f32 %v563, %v167
    %v580 = vmul.f32 %v564, %v168
    %v581 = vmul.f32 %v565, %v169
    %v582 = vmul.f32 %v566, %v170
    %v583 = vmul.f32 %v567, %v171
    %v584 = vmul.f32 %v568, %v172
    %v585 = vmul.f32 %v569, %v173
    %v586 = vmul.f32 %v570, %v174
    %v587 = vmul.f32 %v571, %v175
    %588 = vst [vmem:[#allocation3 + $0x8] sm:$0xff] %v572
    %589 = vst [vmem:[#allocation3 + $0x10] sm:$0xff] %v573
    %590 = vst [vmem:[#allocation3 + $0x18] sm:$0xff] %v574
    %591 = vst [vmem:[#allocation3 + $0x20] sm:$0xff] %v575
    %592 = vst [vmem:[#allocation3 + $0x38] sm:$0xff] %v576
    %593 = vst [vmem:[#allocation3 + $0x40] sm:$0xff] %v577
    %594 = vst [vmem:[#allocation3 + $0x48] sm:$0xff] %v578
    %595 = vst [vmem:[#allocation3 + $0x50] sm:$0xff] %v579
    %596 = vst [vmem:[#allocation3 + $0x68] sm:$0xff] %v580
    %597 = vst [vmem:[#allocation3 + $0x70] sm:$0xff] %v581
    %598 = vst [vmem:[#allocation3 + $0x78] sm:$0xff] %v582
    %599 = vst [vmem:[#allocation3 + $0x80] sm:$0xff] %v583
    %600 = vst [vmem:[#allocation3 + $0x98] sm:$0xff] %v584
    %601 = vst [vmem:[#allocation3 + $0xa0] sm:$0xff] %v585
    %602 = vst [vmem:[#allocation3 + $0xa8] sm:$0xff] %v586
    %603 = vst [vmem:[#allocation3 + $0xb0] sm:$0xff] %v587
    %v604 = vld [vmem:[#allocation3] sm:$0xff]
    %v605 = vld [vmem:[#allocation3 + $0x8] sm:$0xff]
    %v606 = vld [vmem:[#allocation3 + $0x10] sm:$0xff]
    %v607 = vld [vmem:[#allocation3 + $0x18] sm:$0xff]
    %v608 = vld [vmem:[#allocation3 + $0x20] sm:$0xff]
    %v609 = vld [vmem:[#allocation3 + $0x30] sm:$0xff]
    %v610 = vld [vmem:[#allocation3 + $0x38] sm:$0xff]
    %v611 = vld [vmem:[#allocation3 + $0x40] sm:$0xff]
    %v612 = vld [vmem:[#allocation3 + $0x48] sm:$0xff]
    %v613 = vld [vmem:[#allocation3 + $0x50] sm:$0xff]
    %v614 = vld [vmem:[#allocation3 + $0x60] sm:$0xff]
    %v615 = vld [vmem:[#allocation3 + $0x68] sm:$0xff]
    %v616 = vld [vmem:[#allocation3 + $0x70] sm:$0xff]
    %v617 = vld [vmem:[#allocation3 + $0x78] sm:$0xff]
    %v618 = vld [vmem:[#allocation3 + $0x80] sm:$0xff]
    %v619 = vld [vmem:[#allocation3 + $0x90] sm:$0xff]
    %v620 = vld [vmem:[#allocation3 + $0x98] sm:$0xff]
    %v621 = vld [vmem:[#allocation3 + $0xa0] sm:$0xff]
    %v622 = vld [vmem:[#allocation3 + $0xa8] sm:$0xff]
    %v623 = vld [vmem:[#allocation3 + $0xb0] sm:$0xff]
    %v624 = vld [vmem:[%s7] ss:$8 sm:$0xf]
    %v626 = vlaneseq
    %v627 = vshrl.u32 %v626, 7
    %v628 = vsub.s32 0, %v627
    %v629 = vrot.slane %v624, %v628
    %v630 = vlaneseq
    %v631 = vshrl.u32 %v630, 7
    %v632 = vsub.s32 1, %v631
    %v633 = vrot.slane %v624, %v632
    %v634 = vlaneseq
    %v635 = vshrl.u32 %v634, 7
    %v636 = vsub.s32 2, %v635
    %v637 = vrot.slane %v624, %v636
    %v638 = vlaneseq
    %v639 = vshrl.u32 %v638, 7
    %v640 = vsub.s32 3, %v639
    %v641 = vrot.slane %v624, %v640
    %642 = vrot.lane.b32.xlu0 %v629, 111
    %v643 = vpop.permute.xlu0 %642
    %644 = vrot.lane.b32.xlu0 %v633, 111
    %v645 = vpop.permute.xlu0 %644
    %646 = vrot.lane.b32.xlu0 %v637, 111
    %v647 = vpop.permute.xlu0 %646
    %648 = vrot.lane.b32.xlu0 %v641, 111
    %v649 = vpop.permute.xlu0 %648
    %vm650 = vcmask 908288
    %v651 = vsel %vm650, %v643, %v645
    %v652 = vsel %vm650, %v645, %v647
    %v653 = vsel %vm650, %v647, %v649
    %v659 = vmul.f32 %v604, %v643
    %v660 = vmul.f32 %v605, %v651
    %v661 = vmul.f32 %v606, %v652
    %v662 = vmul.f32 %v607, %v653
    %v663 = vmul.f32 %v608, %v649
    %v664 = vmul.f32 %v609, %v643
    %v665 = vmul.f32 %v610, %v651
    %v666 = vmul.f32 %v611, %v652
    %v667 = vmul.f32 %v612, %v653
    %v668 = vmul.f32 %v613, %v649
    %v669 = vmul.f32 %v614, %v643
    %v670 = vmul.f32 %v615, %v651
    %v671 = vmul.f32 %v616, %v652
    %v672 = vmul.f32 %v617, %v653
    %v673 = vmul.f32 %v618, %v649
    %v674 = vmul.f32 %v619, %v643
    %v675 = vmul.f32 %v620, %v651
    %v676 = vmul.f32 %v621, %v652
    %v677 = vmul.f32 %v622, %v653
    %v678 = vmul.f32 %v623, %v649
    %v679 = vpack.c.bf16 %v664, %v659
    %v680 = vpack.c.bf16 %v665, %v660
    %v681 = vpack.c.bf16 %v666, %v661
    %v682 = vpack.c.bf16 %v667, %v662
    %v683 = vpack.c.bf16 %v668, %v663
    %v684 = vpack.c.bf16 %v674, %v669
    %v685 = vpack.c.bf16 %v675, %v670
    %v686 = vpack.c.bf16 %v676, %v671
    %v687 = vpack.c.bf16 %v677, %v672
    %v688 = vpack.c.bf16 %v678, %v673
    %v699 = vunpack.c.l.b16 %v679
    %v700 = vunpack.c.l.b16 %v680
    %v701 = vunpack.c.l.b16 %v681
    %v702 = vunpack.c.l.b16 %v682
    %v703 = vunpack.c.l.b16 %v683
    %v704 = vunpack.c.h.b16 %v679
    %v705 = vunpack.c.h.b16 %v680
    %v706 = vunpack.c.h.b16 %v681
    %v707 = vunpack.c.h.b16 %v682
    %v708 = vunpack.c.h.b16 %v683
    %v709 = vunpack.c.l.b16 %v684
    %v710 = vunpack.c.l.b16 %v685
    %v711 = vunpack.c.l.b16 %v686
    %v712 = vunpack.c.l.b16 %v687
    %v713 = vunpack.c.l.b16 %v688
    %v714 = vunpack.c.h.b16 %v684
    %v715 = vunpack.c.h.b16 %v685
    %v716 = vunpack.c.h.b16 %v686
    %v717 = vunpack.c.h.b16 %v687
    %v718 = vunpack.c.h.b16 %v688
    %v719 = vpack.c.b16 %v700, %v699
    %v720 = vpack.c.b16 %v702, %v701
    %v721 = vpack.c.b16 %v703, %v703
    %v722 = vpack.c.b16 %v705, %v704
    %v723 = vpack.c.b16 %v707, %v706
    %v724 = vpack.c.b16 %v708, %v708
    %v725 = vpack.c.b16 %v710, %v709
    %v726 = vpack.c.b16 %v712, %v711
    %v727 = vpack.c.b16 %v713, %v713
    %v728 = vpack.c.b16 %v715, %v714
    %v729 = vpack.c.b16 %v717, %v716
    %v730 = vpack.c.b16 %v718, %v718
    %731 = vrot.lane.b32.xlu0 %v719, 17
    %v732 = vpop.permute.xlu0 %731
    %733 = vrot.lane.b32.xlu0 %v720, 17
    %v734 = vpop.permute.xlu0 %733
    %735 = vrot.lane.b32.xlu0 %v721, 17
    %v736 = vpop.permute.xlu0 %735
    %737 = vrot.lane.b32.xlu0 %v722, 17
    %v738 = vpop.permute.xlu0 %737
    %739 = vrot.lane.b32.xlu0 %v723, 17
    %v740 = vpop.permute.xlu0 %739
    %741 = vrot.lane.b32.xlu0 %v724, 17
    %v742 = vpop.permute.xlu0 %741
    %743 = vrot.lane.b32.xlu0 %v725, 17
    %v744 = vpop.permute.xlu0 %743
    %745 = vrot.lane.b32.xlu0 %v726, 17
    %v746 = vpop.permute.xlu0 %745
    %747 = vrot.lane.b32.xlu0 %v727, 17
    %v748 = vpop.permute.xlu0 %747
    %749 = vrot.lane.b32.xlu0 %v728, 17
    %v750 = vpop.permute.xlu0 %749
    %751 = vrot.lane.b32.xlu0 %v729, 17
    %v752 = vpop.permute.xlu0 %751
    %753 = vrot.lane.b32.xlu0 %v730, 17
    %v754 = vpop.permute.xlu0 %753
    %v755 = vrot.slane %v732, 4
    %v756 = vrot.slane %v734, 4
    %v757 = vrot.slane %v736, 4
    %v758 = vrot.slane %v738, 4
    %v759 = vrot.slane %v740, 4
    %v760 = vrot.slane %v742, 4
    %v761 = vrot.slane %v744, 4
    %v762 = vrot.slane %v746, 4
    %v763 = vrot.slane %v748, 4
    %v764 = vrot.slane %v750, 4
    %v765 = vrot.slane %v752, 4
    %v766 = vrot.slane %v754, 4
    %vm767 = vcmask 1043456
    %v768 = vsel %vm767, %v755, %v756
    %vm769 = vcmask 138240
    %v770 = vsel %vm769, %v732, %v768
    %v771 = vsel %vm767, %v756, %v757
    %v772 = vsel %vm769, %v734, %v771
    %v773 = vsel %vm767, %v758, %v759
    %v774 = vsel %vm769, %v738, %v773
    %v775 = vsel %vm767, %v759, %v760
    %v776 = vsel %vm769, %v740, %v775
    %v777 = vsel %vm767, %v761, %v762
    %v778 = vsel %vm769, %v744, %v777
    %v779 = vsel %vm767, %v762, %v763
    %v780 = vsel %vm769, %v746, %v779
    %v781 = vsel %vm767, %v764, %v765
    %v782 = vsel %vm769, %v750, %v781
    %v783 = vsel %vm767, %v765, %v766
    %v784 = vsel %vm769, %v752, %v783
    %793 = vst [vmem:[#allocation4] sm:$0xff] %v770
    %794 = vst [vmem:[#allocation4 + $0x8] sm:$0xff] %v772
    %795 = vst [vmem:[#allocation4 + $0x10] sm:$0xff] %v774
    %796 = vst [vmem:[#allocation4 + $0x18] sm:$0xff] %v776
    %797 = vst [vmem:[#allocation4 + $0x20] sm:$0xff] %v778
    %798 = vst [vmem:[#allocation4 + $0x28] sm:$0xff] %v780
    %799 = vst [vmem:[#allocation4 + $0x30] sm:$0xff] %v782
    %800 = vst [vmem:[#allocation4 + $0x38] sm:$0xff] %v784
    %v801 = vld [vmem:[#allocation3] sm:$0xff]
    %v802 = vld [vmem:[#allocation3 + $0x8] sm:$0xff]
    %v803 = vld [vmem:[#allocation3 + $0x10] sm:$0xff]
    %v804 = vld [vmem:[#allocation3 + $0x18] sm:$0xff]
    %v805 = vld [vmem:[#allocation3 + $0x20] sm:$0xff]
    %v806 = vld [vmem:[#allocation3 + $0x30] sm:$0xff]
    %v807 = vld [vmem:[#allocation3 + $0x38] sm:$0xff]
    %v808 = vld [vmem:[#allocation3 + $0x40] sm:$0xff]
    %v809 = vld [vmem:[#allocation3 + $0x48] sm:$0xff]
    %v810 = vld [vmem:[#allocation3 + $0x50] sm:$0xff]
    %v811 = vld [vmem:[#allocation3 + $0x60] sm:$0xff]
    %v812 = vld [vmem:[#allocation3 + $0x68] sm:$0xff]
    %v813 = vld [vmem:[#allocation3 + $0x70] sm:$0xff]
    %v814 = vld [vmem:[#allocation3 + $0x78] sm:$0xff]
    %v815 = vld [vmem:[#allocation3 + $0x80] sm:$0xff]
    %v816 = vld [vmem:[#allocation3 + $0x90] sm:$0xff]
    %v817 = vld [vmem:[#allocation3 + $0x98] sm:$0xff]
    %v818 = vld [vmem:[#allocation3 + $0xa0] sm:$0xff]
    %v819 = vld [vmem:[#allocation3 + $0xa8] sm:$0xff]
    %v820 = vld [vmem:[#allocation3 + $0xb0] sm:$0xff]
    %s821 = scalar_lea.vmem %s7, 1
    %v822 = vld [vmem:[%s821] ss:$8 sm:$0xf]
    %v824 = vlaneseq
    %v825 = vshrl.u32 %v824, 7
    %v826 = vsub.s32 0, %v825
    %v827 = vrot.slane %v822, %v826
    %v828 = vlaneseq
    %v829 = vshrl.u32 %v828, 7
    %v830 = vsub.s32 1, %v829
    %v831 = vrot.slane %v822, %v830
    %v832 = vlaneseq
    %v833 = vshrl.u32 %v832, 7
    %v834 = vsub.s32 2, %v833
    %v835 = vrot.slane %v822, %v834
    %v836 = vlaneseq
    %v837 = vshrl.u32 %v836, 7
    %v838 = vsub.s32 3, %v837
    %v839 = vrot.slane %v822, %v838
    %840 = vrot.lane.b32.xlu0 %v827, 112
    %v841 = vpop.permute.xlu0 %840
    %842 = vrot.lane.b32.xlu0 %v831, 112
    %v843 = vpop.permute.xlu0 %842
    %844 = vrot.lane.b32.xlu0 %v835, 112
    %v845 = vpop.permute.xlu0 %844
    %846 = vrot.lane.b32.xlu0 %v839, 112
    %v847 = vpop.permute.xlu0 %846
    %vm848 = vcmask 916480
    %v849 = vsel %vm848, %v841, %v843
    %v850 = vsel %vm848, %v843, %v845
    %v851 = vsel %vm848, %v845, %v847
    %v857 = vmul.f32 %v801, %v841
    %v858 = vmul.f32 %v802, %v849
    %v859 = vmul.f32 %v803, %v850
    %v860 = vmul.f32 %v804, %v851
    %v861 = vmul.f32 %v805, %v847
    %v862 = vmul.f32 %v806, %v841
    %v863 = vmul.f32 %v807, %v849
    %v864 = vmul.f32 %v808, %v850
    %v865 = vmul.f32 %v809, %v851
    %v866 = vmul.f32 %v810, %v847
    %v867 = vmul.f32 %v811, %v841
    %v868 = vmul.f32 %v812, %v849
    %v869 = vmul.f32 %v813, %v850
    %v870 = vmul.f32 %v814, %v851
    %v871 = vmul.f32 %v815, %v847
    %v872 = vmul.f32 %v816, %v841
    %v873 = vmul.f32 %v817, %v849
    %v874 = vmul.f32 %v818, %v850
    %v875 = vmul.f32 %v819, %v851
    %v876 = vmul.f32 %v820, %v847
    %v877 = vpack.c.bf16 %v862, %v857
    %v878 = vpack.c.bf16 %v863, %v858
    %v879 = vpack.c.bf16 %v864, %v859
    %v880 = vpack.c.bf16 %v865, %v860
    %v881 = vpack.c.bf16 %v866, %v861
    %v882 = vpack.c.bf16 %v872, %v867
    %v883 = vpack.c.bf16 %v873, %v868
    %v884 = vpack.c.bf16 %v874, %v869
    %v885 = vpack.c.bf16 %v875, %v870
    %v886 = vpack.c.bf16 %v876, %v871
    %v897 = vunpack.c.l.b16 %v877
    %v898 = vunpack.c.l.b16 %v878
    %v899 = vunpack.c.l.b16 %v879
    %v900 = vunpack.c.l.b16 %v880
    %v901 = vunpack.c.l.b16 %v881
    %v902 = vunpack.c.h.b16 %v877
    %v903 = vunpack.c.h.b16 %v878
    %v904 = vunpack.c.h.b16 %v879
    %v905 = vunpack.c.h.b16 %v880
    %v906 = vunpack.c.h.b16 %v881
    %v907 = vunpack.c.l.b16 %v882
    %v908 = vunpack.c.l.b16 %v883
    %v909 = vunpack.c.l.b16 %v884
    %v910 = vunpack.c.l.b16 %v885
    %v911 = vunpack.c.l.b16 %v886
    %v912 = vunpack.c.h.b16 %v882
    %v913 = vunpack.c.h.b16 %v883
    %v914 = vunpack.c.h.b16 %v884
    %v915 = vunpack.c.h.b16 %v885
    %v916 = vunpack.c.h.b16 %v886
    %v917 = vpack.c.b16 %v898, %v897
    %v918 = vpack.c.b16 %v900, %v899
    %v919 = vpack.c.b16 %v901, %v901
    %v920 = vpack.c.b16 %v903, %v902
    %v921 = vpack.c.b16 %v905, %v904
    %v922 = vpack.c.b16 %v906, %v906
    %v923 = vpack.c.b16 %v908, %v907
    %v924 = vpack.c.b16 %v910, %v909
    %v925 = vpack.c.b16 %v911, %v911
    %v926 = vpack.c.b16 %v913, %v912
    %v927 = vpack.c.b16 %v915, %v914
    %v928 = vpack.c.b16 %v916, %v916
    %929 = vrot.lane.b32.xlu0 %v917, 16
    %v930 = vpop.permute.xlu0 %929
    %931 = vrot.lane.b32.xlu0 %v918, 16
    %v932 = vpop.permute.xlu0 %931
    %933 = vrot.lane.b32.xlu0 %v919, 16
    %v934 = vpop.permute.xlu0 %933
    %935 = vrot.lane.b32.xlu0 %v920, 16
    %v936 = vpop.permute.xlu0 %935
    %937 = vrot.lane.b32.xlu0 %v921, 16
    %v938 = vpop.permute.xlu0 %937
    %939 = vrot.lane.b32.xlu0 %v922, 16
    %v940 = vpop.permute.xlu0 %939
    %941 = vrot.lane.b32.xlu0 %v923, 16
    %v942 = vpop.permute.xlu0 %941
    %943 = vrot.lane.b32.xlu0 %v924, 16
    %v944 = vpop.permute.xlu0 %943
    %945 = vrot.lane.b32.xlu0 %v925, 16
    %v946 = vpop.permute.xlu0 %945
    %947 = vrot.lane.b32.xlu0 %v926, 16
    %v948 = vpop.permute.xlu0 %947
    %949 = vrot.lane.b32.xlu0 %v927, 16
    %v950 = vpop.permute.xlu0 %949
    %951 = vrot.lane.b32.xlu0 %v928, 16
    %v952 = vpop.permute.xlu0 %951
    %v953 = vrot.slane %v930, 4
    %v954 = vrot.slane %v932, 4
    %v955 = vrot.slane %v934, 4
    %v956 = vrot.slane %v936, 4
    %v957 = vrot.slane %v938, 4
    %v958 = vrot.slane %v940, 4
    %v959 = vrot.slane %v942, 4
    %v960 = vrot.slane %v944, 4
    %v961 = vrot.slane %v946, 4
    %v962 = vrot.slane %v948, 4
    %v963 = vrot.slane %v950, 4
    %v964 = vrot.slane %v952, 4
    %v965 = vsel %vm767, %v953, %v954
    %vm966 = vcmask 130048
    %v967 = vsel %vm966, %v930, %v965
    %v968 = vsel %vm767, %v954, %v955
    %v969 = vsel %vm966, %v932, %v968
    %v970 = vsel %vm767, %v956, %v957
    %v971 = vsel %vm966, %v936, %v970
    %v972 = vsel %vm767, %v957, %v958
    %v973 = vsel %vm966, %v938, %v972
    %v974 = vsel %vm767, %v959, %v960
    %v975 = vsel %vm966, %v942, %v974
    %v976 = vsel %vm767, %v960, %v961
    %v977 = vsel %vm966, %v944, %v976
    %v978 = vsel %vm767, %v962, %v963
    %v979 = vsel %vm966, %v948, %v978
    %v980 = vsel %vm767, %v963, %v964
    %v981 = vsel %vm966, %v950, %v980
    %990 = vst [vmem:[#allocation4 + $0x40] sm:$0xff] %v967
    %991 = vst [vmem:[#allocation4 + $0x48] sm:$0xff] %v969
    %992 = vst [vmem:[#allocation4 + $0x50] sm:$0xff] %v971
    %993 = vst [vmem:[#allocation4 + $0x58] sm:$0xff] %v973
    %994 = vst [vmem:[#allocation4 + $0x60] sm:$0xff] %v975
    %995 = vst [vmem:[#allocation4 + $0x68] sm:$0xff] %v977
    %996 = vst [vmem:[#allocation4 + $0x70] sm:$0xff] %v979
    %997 = vst [vmem:[#allocation4 + $0x78] sm:$0xff] %v981
    %v998 = vld [vmem:[#allocation3] sm:$0xff]
    %v999 = vld [vmem:[#allocation3 + $0x8] sm:$0xff]
    %v1000 = vld [vmem:[#allocation3 + $0x10] sm:$0xff]
    %v1001 = vld [vmem:[#allocation3 + $0x18] sm:$0xff]
    %v1002 = vld [vmem:[#allocation3 + $0x20] sm:$0xff]
    %v1003 = vld [vmem:[#allocation3 + $0x30] sm:$0xff]
    %v1004 = vld [vmem:[#allocation3 + $0x38] sm:$0xff]
    %v1005 = vld [vmem:[#allocation3 + $0x40] sm:$0xff]
    %v1006 = vld [vmem:[#allocation3 + $0x48] sm:$0xff]
    %v1007 = vld [vmem:[#allocation3 + $0x50] sm:$0xff]
    %v1008 = vld [vmem:[#allocation3 + $0x60] sm:$0xff]
    %v1009 = vld [vmem:[#allocation3 + $0x68] sm:$0xff]
    %v1010 = vld [vmem:[#allocation3 + $0x70] sm:$0xff]
    %v1011 = vld [vmem:[#allocation3 + $0x78] sm:$0xff]
    %v1012 = vld [vmem:[#allocation3 + $0x80] sm:$0xff]
    %v1013 = vld [vmem:[#allocation3 + $0x90] sm:$0xff]
    %v1014 = vld [vmem:[#allocation3 + $0x98] sm:$0xff]
    %v1015 = vld [vmem:[#allocation3 + $0xa0] sm:$0xff]
    %v1016 = vld [vmem:[#allocation3 + $0xa8] sm:$0xff]
    %v1017 = vld [vmem:[#allocation3 + $0xb0] sm:$0xff]
    %s1018 = scalar_lea.vmem %s7, 2
    %v1019 = vld [vmem:[%s1018] ss:$8 sm:$0xf]
    %v1021 = vlaneseq
    %v1022 = vshrl.u32 %v1021, 7
    %v1023 = vsub.s32 0, %v1022
    %v1024 = vrot.slane %v1019, %v1023
    %v1025 = vlaneseq
    %v1026 = vshrl.u32 %v1025, 7
    %v1027 = vsub.s32 1, %v1026
    %v1028 = vrot.slane %v1019, %v1027
    %v1029 = vlaneseq
    %v1030 = vshrl.u32 %v1029, 7
    %v1031 = vsub.s32 2, %v1030
    %v1032 = vrot.slane %v1019, %v1031
    %v1033 = vlaneseq
    %v1034 = vshrl.u32 %v1033, 7
    %v1035 = vsub.s32 3, %v1034
    %v1036 = vrot.slane %v1019, %v1035
    %1037 = vrot.lane.b32.xlu0 %v1024, 113
    %v1038 = vpop.permute.xlu0 %1037
    %1039 = vrot.lane.b32.xlu0 %v1028, 113
    %v1040 = vpop.permute.xlu0 %1039
    %1041 = vrot.lane.b32.xlu0 %v1032, 113
    %v1042 = vpop.permute.xlu0 %1041
    %1043 = vrot.lane.b32.xlu0 %v1036, 113
    %v1044 = vpop.permute.xlu0 %1043
    %vm1045 = vcmask 924672
    %v1046 = vsel %vm1045, %v1038, %v1040
    %v1047 = vsel %vm1045, %v1040, %v1042
    %v1048 = vsel %vm1045, %v1042, %v1044
    %v1054 = vmul.f32 %v998, %v1038
    %v1055 = vmul.f32 %v999, %v1046
    %v1056 = vmul.f32 %v1000, %v1047
    %v1057 = vmul.f32 %v1001, %v1048
    %v1058 = vmul.f32 %v1002, %v1044
    %v1059 = vmul.f32 %v1003, %v1038
    %v1060 = vmul.f32 %v1004, %v1046
    %v1061 = vmul.f32 %v1005, %v1047
    %v1062 = vmul.f32 %v1006, %v1048
    %v1063 = vmul.f32 %v1007, %v1044
    %v1064 = vmul.f32 %v1008, %v1038
    %v1065 = vmul.f32 %v1009, %v1046
    %v1066 = vmul.f32 %v1010, %v1047
    %v1067 = vmul.f32 %v1011, %v1048
    %v1068 = vmul.f32 %v1012, %v1044
    %v1069 = vmul.f32 %v1013, %v1038
    %v1070 = vmul.f32 %v1014, %v1046
    %v1071 = vmul.f32 %v1015, %v1047
    %v1072 = vmul.f32 %v1016, %v1048
    %v1073 = vmul.f32 %v1017, %v1044
    %v1074 = vpack.c.bf16 %v1059, %v1054
    %v1075 = vpack.c.bf16 %v1060, %v1055
    %v1076 = vpack.c.bf16 %v1061, %v1056
    %v1077 = vpack.c.bf16 %v1062, %v1057
    %v1078 = vpack.c.bf16 %v1063, %v1058
    %v1079 = vpack.c.bf16 %v1069, %v1064
    %v1080 = vpack.c.bf16 %v1070, %v1065
    %v1081 = vpack.c.bf16 %v1071, %v1066
    %v1082 = vpack.c.bf16 %v1072, %v1067
    %v1083 = vpack.c.bf16 %v1073, %v1068
    %v1094 = vunpack.c.l.b16 %v1074
    %v1095 = vunpack.c.l.b16 %v1075
    %v1096 = vunpack.c.l.b16 %v1076
    %v1097 = vunpack.c.l.b16 %v1077
    %v1098 = vunpack.c.l.b16 %v1078
    %v1099 = vunpack.c.h.b16 %v1074
    %v1100 = vunpack.c.h.b16 %v1075
    %v1101 = vunpack.c.h.b16 %v1076
    %v1102 = vunpack.c.h.b16 %v1077
    %v1103 = vunpack.c.h.b16 %v1078
    %v1104 = vunpack.c.l.b16 %v1079
    %v1105 = vunpack.c.l.b16 %v1080
    %v1106 = vunpack.c.l.b16 %v1081
    %v1107 = vunpack.c.l.b16 %v1082
    %v1108 = vunpack.c.l.b16 %v1083
    %v1109 = vunpack.c.h.b16 %v1079
    %v1110 = vunpack.c.h.b16 %v1080
    %v1111 = vunpack.c.h.b16 %v1081
    %v1112 = vunpack.c.h.b16 %v1082
    %v1113 = vunpack.c.h.b16 %v1083
    %v1114 = vpack.c.b16 %v1095, %v1094
    %v1115 = vpack.c.b16 %v1097, %v1096
    %v1116 = vpack.c.b16 %v1098, %v1098
    %v1117 = vpack.c.b16 %v1100, %v1099
    %v1118 = vpack.c.b16 %v1102, %v1101
    %v1119 = vpack.c.b16 %v1103, %v1103
    %v1120 = vpack.c.b16 %v1105, %v1104
    %v1121 = vpack.c.b16 %v1107, %v1106
    %v1122 = vpack.c.b16 %v1108, %v1108
    %v1123 = vpack.c.b16 %v1110, %v1109
    %v1124 = vpack.c.b16 %v1112, %v1111
    %v1125 = vpack.c.b16 %v1113, %v1113
    %1126 = vrot.lane.b32.xlu0 %v1114, 15
    %v1127 = vpop.permute.xlu0 %1126
    %1128 = vrot.lane.b32.xlu0 %v1115, 15
    %v1129 = vpop.permute.xlu0 %1128
    %1130 = vrot.lane.b32.xlu0 %v1116, 15
    %v1131 = vpop.permute.xlu0 %1130
    %1132 = vrot.lane.b32.xlu0 %v1117, 15
    %v1133 = vpop.permute.xlu0 %1132
    %1134 = vrot.lane.b32.xlu0 %v1118, 15
    %v1135 = vpop.permute.xlu0 %1134
    %1136 = vrot.lane.b32.xlu0 %v1119, 15
    %v1137 = vpop.permute.xlu0 %1136
    %1138 = vrot.lane.b32.xlu0 %v1120, 15
    %v1139 = vpop.permute.xlu0 %1138
    %1140 = vrot.lane.b32.xlu0 %v1121, 15
    %v1141 = vpop.permute.xlu0 %1140
    %1142 = vrot.lane.b32.xlu0 %v1122, 15
    %v1143 = vpop.permute.xlu0 %1142
    %1144 = vrot.lane.b32.xlu0 %v1123, 15
    %v1145 = vpop.permute.xlu0 %1144
    %1146 = vrot.lane.b32.xlu0 %v1124, 15
    %v1147 = vpop.permute.xlu0 %1146
    %1148 = vrot.lane.b32.xlu0 %v1125, 15
    %v1149 = vpop.permute.xlu0 %1148
    %v1150 = vrot.slane %v1127, 4
    %v1151 = vrot.slane %v1129, 4
    %v1152 = vrot.slane %v1131, 4
    %v1153 = vrot.slane %v1133, 4
    %v1154 = vrot.slane %v1135, 4
    %v1155 = vrot.slane %v1137, 4
    %v1156 = vrot.slane %v1139, 4
    %v1157 = vrot.slane %v1141, 4
    %v1158 = vrot.slane %v1143, 4
    %v1159 = vrot.slane %v1145, 4
    %v1160 = vrot.slane %v1147, 4
    %v1161 = vrot.slane %v1149, 4
    %v1162 = vsel %vm767, %v1150, %v1151
    %vm1163 = vcmask 121856
    %v1164 = vsel %vm1163, %v1127, %v1162
    %v1165 = vsel %vm767, %v1151, %v1152
    %v1166 = vsel %vm1163, %v1129, %v1165
    %v1167 = vsel %vm767, %v1153, %v1154
    %v1168 = vsel %vm1163, %v1133, %v1167
    %v1169 = vsel %vm767, %v1154, %v1155
    %v1170 = vsel %vm1163, %v1135, %v1169
    %v1171 = vsel %vm767, %v1156, %v1157
    %v1172 = vsel %vm1163, %v1139, %v1171
    %v1173 = vsel %vm767, %v1157, %v1158
    %v1174 = vsel %vm1163, %v1141, %v1173
    %v1175 = vsel %vm767, %v1159, %v1160
    %v1176 = vsel %vm1163, %v1145, %v1175
    %v1177 = vsel %vm767, %v1160, %v1161
    %v1178 = vsel %vm1163, %v1147, %v1177
    %1187 = vst [vmem:[#allocation4 + $0x80] sm:$0xff] %v1164
    %1188 = vst [vmem:[#allocation4 + $0x88] sm:$0xff] %v1166
    %1189 = vst [vmem:[#allocation4 + $0x90] sm:$0xff] %v1168
    %1190 = vst [vmem:[#allocation4 + $0x98] sm:$0xff] %v1170
    %1191 = vst [vmem:[#allocation4 + $0xa0] sm:$0xff] %v1172
    %1192 = vst [vmem:[#allocation4 + $0xa8] sm:$0xff] %v1174
    %1193 = vst [vmem:[#allocation4 + $0xb0] sm:$0xff] %v1176
    %1194 = vst [vmem:[#allocation4 + $0xb8] sm:$0xff] %v1178
    %v1195 = vld [vmem:[#allocation3] sm:$0xff]
    %v1196 = vld [vmem:[#allocation3 + $0x8] sm:$0xff]
    %v1197 = vld [vmem:[#allocation3 + $0x10] sm:$0xff]
    %v1198 = vld [vmem:[#allocation3 + $0x18] sm:$0xff]
    %v1199 = vld [vmem:[#allocation3 + $0x20] sm:$0xff]
    %v1200 = vld [vmem:[#allocation3 + $0x30] sm:$0xff]
    %v1201 = vld [vmem:[#allocation3 + $0x38] sm:$0xff]
    %v1202 = vld [vmem:[#allocation3 + $0x40] sm:$0xff]
    %v1203 = vld [vmem:[#allocation3 + $0x48] sm:$0xff]
    %v1204 = vld [vmem:[#allocation3 + $0x50] sm:$0xff]
    %v1205 = vld [vmem:[#allocation3 + $0x60] sm:$0xff]
    %v1206 = vld [vmem:[#allocation3 + $0x68] sm:$0xff]
    %v1207 = vld [vmem:[#allocation3 + $0x70] sm:$0xff]
    %v1208 = vld [vmem:[#allocation3 + $0x78] sm:$0xff]
    %v1209 = vld [vmem:[#allocation3 + $0x80] sm:$0xff]
    %v1210 = vld [vmem:[#allocation3 + $0x90] sm:$0xff]
    %v1211 = vld [vmem:[#allocation3 + $0x98] sm:$0xff]
    %v1212 = vld [vmem:[#allocation3 + $0xa0] sm:$0xff]
    %v1213 = vld [vmem:[#allocation3 + $0xa8] sm:$0xff]
    %v1214 = vld [vmem:[#allocation3 + $0xb0] sm:$0xff]
    %s1215 = scalar_lea.vmem %s7, 3
    %v1216 = vld [vmem:[%s1215] ss:$8 sm:$0xf]
    %v1218 = vlaneseq
    %v1219 = vshrl.u32 %v1218, 7
    %v1220 = vsub.s32 0, %v1219
    %v1221 = vrot.slane %v1216, %v1220
    %v1222 = vlaneseq
    %v1223 = vshrl.u32 %v1222, 7
    %v1224 = vsub.s32 1, %v1223
    %v1225 = vrot.slane %v1216, %v1224
    %v1226 = vlaneseq
    %v1227 = vshrl.u32 %v1226, 7
    %v1228 = vsub.s32 2, %v1227
    %v1229 = vrot.slane %v1216, %v1228
    %v1230 = vlaneseq
    %v1231 = vshrl.u32 %v1230, 7
    %v1232 = vsub.s32 3, %v1231
    %v1233 = vrot.slane %v1216, %v1232
    %1234 = vrot.lane.b32.xlu0 %v1221, 127
    %v1235 = vpop.permute.xlu0 %1234
    %1236 = vrot.lane.b32.xlu0 %v1225, 127
    %v1237 = vpop.permute.xlu0 %1236
    %1238 = vrot.lane.b32.xlu0 %v1229, 127
    %v1239 = vpop.permute.xlu0 %1238
    %1240 = vrot.lane.b32.xlu0 %v1233, 127
    %v1241 = vpop.permute.xlu0 %1240
    %vm1242 = vcmask 1039360
    %v1243 = vsel %vm1242, %v1235, %v1237
    %v1244 = vsel %vm1242, %v1237, %v1239
    %v1245 = vsel %vm1242, %v1239, %v1241
    %v1251 = vmul.f32 %v1195, %v1235
    %v1252 = vmul.f32 %v1196, %v1243
    %v1253 = vmul.f32 %v1197, %v1244
    %v1254 = vmul.f32 %v1198, %v1245
    %v1255 = vmul.f32 %v1199, %v1241
    %v1256 = vmul.f32 %v1200, %v1235
    %v1257 = vmul.f32 %v1201, %v1243
    %v1258 = vmul.f32 %v1202, %v1244
    %v1259 = vmul.f32 %v1203, %v1245
    %v1260 = vmul.f32 %v1204, %v1241
    %v1261 = vmul.f32 %v1205, %v1235
    %v1262 = vmul.f32 %v1206, %v1243
    %v1263 = vmul.f32 %v1207, %v1244
    %v1264 = vmul.f32 %v1208, %v1245
    %v1265 = vmul.f32 %v1209, %v1241
    %v1266 = vmul.f32 %v1210, %v1235
    %v1267 = vmul.f32 %v1211, %v1243
    %v1268 = vmul.f32 %v1212, %v1244
    %v1269 = vmul.f32 %v1213, %v1245
    %v1270 = vmul.f32 %v1214, %v1241
    %v1271 = vpack.c.bf16 %v1256, %v1251
    %v1272 = vpack.c.bf16 %v1257, %v1252
    %v1273 = vpack.c.bf16 %v1258, %v1253
    %v1274 = vpack.c.bf16 %v1259, %v1254
    %v1275 = vpack.c.bf16 %v1260, %v1255
    %v1276 = vpack.c.bf16 %v1266, %v1261
    %v1277 = vpack.c.bf16 %v1267, %v1262
    %v1278 = vpack.c.bf16 %v1268, %v1263
    %v1279 = vpack.c.bf16 %v1269, %v1264
    %v1280 = vpack.c.bf16 %v1270, %v1265
    %v1291 = vunpack.c.l.b16 %v1271
    %v1292 = vunpack.c.l.b16 %v1272
    %v1293 = vunpack.c.l.b16 %v1273
    %v1294 = vunpack.c.l.b16 %v1274
    %v1295 = vunpack.c.l.b16 %v1275
    %v1296 = vunpack.c.h.b16 %v1271
    %v1297 = vunpack.c.h.b16 %v1272
    %v1298 = vunpack.c.h.b16 %v1273
    %v1299 = vunpack.c.h.b16 %v1274
    %v1300 = vunpack.c.h.b16 %v1275
    %v1301 = vunpack.c.l.b16 %v1276
    %v1302 = vunpack.c.l.b16 %v1277
    %v1303 = vunpack.c.l.b16 %v1278
    %v1304 = vunpack.c.l.b16 %v1279
    %v1305 = vunpack.c.l.b16 %v1280
    %v1306 = vunpack.c.h.b16 %v1276
    %v1307 = vunpack.c.h.b16 %v1277
    %v1308 = vunpack.c.h.b16 %v1278
    %v1309 = vunpack.c.h.b16 %v1279
    %v1310 = vunpack.c.h.b16 %v1280
    %v1311 = vpack.c.b16 %v1292, %v1291
    %v1312 = vpack.c.b16 %v1294, %v1293
    %v1313 = vpack.c.b16 %v1295, %v1295
    %v1314 = vpack.c.b16 %v1297, %v1296
    %v1315 = vpack.c.b16 %v1299, %v1298
    %v1316 = vpack.c.b16 %v1300, %v1300
    %v1317 = vpack.c.b16 %v1302, %v1301
    %v1318 = vpack.c.b16 %v1304, %v1303
    %v1319 = vpack.c.b16 %v1305, %v1305
    %v1320 = vpack.c.b16 %v1307, %v1306
    %v1321 = vpack.c.b16 %v1309, %v1308
    %v1322 = vpack.c.b16 %v1310, %v1310
    %1323 = vrot.lane.b32.xlu0 %v1311, 1
    %v1324 = vpop.permute.xlu0 %1323
    %1325 = vrot.lane.b32.xlu0 %v1312, 1
    %v1326 = vpop.permute.xlu0 %1325
    %1327 = vrot.lane.b32.xlu0 %v1313, 1
    %v1328 = vpop.permute.xlu0 %1327
    %1329 = vrot.lane.b32.xlu0 %v1314, 1
    %v1330 = vpop.permute.xlu0 %1329
    %1331 = vrot.lane.b32.xlu0 %v1315, 1
    %v1332 = vpop.permute.xlu0 %1331
    %1333 = vrot.lane.b32.xlu0 %v1316, 1
    %v1334 = vpop.permute.xlu0 %1333
    %1335 = vrot.lane.b32.xlu0 %v1317, 1
    %v1336 = vpop.permute.xlu0 %1335
    %1337 = vrot.lane.b32.xlu0 %v1318, 1
    %v1338 = vpop.permute.xlu0 %1337
    %1339 = vrot.lane.b32.xlu0 %v1319, 1
    %v1340 = vpop.permute.xlu0 %1339
    %1341 = vrot.lane.b32.xlu0 %v1320, 1
    %v1342 = vpop.permute.xlu0 %1341
    %1343 = vrot.lane.b32.xlu0 %v1321, 1
    %v1344 = vpop.permute.xlu0 %1343
    %1345 = vrot.lane.b32.xlu0 %v1322, 1
    %v1346 = vpop.permute.xlu0 %1345
    %v1347 = vrot.slane %v1324, 4
    %v1348 = vrot.slane %v1326, 4
    %v1349 = vrot.slane %v1328, 4
    %v1350 = vrot.slane %v1330, 4
    %v1351 = vrot.slane %v1332, 4
    %v1352 = vrot.slane %v1334, 4
    %v1353 = vrot.slane %v1336, 4
    %v1354 = vrot.slane %v1338, 4
    %v1355 = vrot.slane %v1340, 4
    %v1356 = vrot.slane %v1342, 4
    %v1357 = vrot.slane %v1344, 4
    %v1358 = vrot.slane %v1346, 4
    %v1359 = vsel %vm767, %v1347, %v1348
    %vm1360 = vcmask 7168
    %v1361 = vsel %vm1360, %v1324, %v1359
    %v1362 = vsel %vm767, %v1348, %v1349
    %v1363 = vsel %vm1360, %v1326, %v1362
    %v1364 = vsel %vm767, %v1350, %v1351
    %v1365 = vsel %vm1360, %v1330, %v1364
    %v1366 = vsel %vm767, %v1351, %v1352
    %v1367 = vsel %vm1360, %v1332, %v1366
    %v1368 = vsel %vm767, %v1353, %v1354
    %v1369 = vsel %vm1360, %v1336, %v1368
    %v1370 = vsel %vm767, %v1354, %v1355
    %v1371 = vsel %vm1360, %v1338, %v1370
    %v1372 = vsel %vm767, %v1356, %v1357
    %v1373 = vsel %vm1360, %v1342, %v1372
    %v1374 = vsel %vm767, %v1357, %v1358
    %v1375 = vsel %vm1360, %v1344, %v1374
    %1384 = vst [vmem:[#allocation4 + $0xc0] sm:$0xff] %v1361
    %1385 = vst [vmem:[#allocation4 + $0xc8] sm:$0xff] %v1363
    %1386 = vst [vmem:[#allocation4 + $0xd0] sm:$0xff] %v1365
    %1387 = vst [vmem:[#allocation4 + $0xd8] sm:$0xff] %v1367
    %1388 = vst [vmem:[#allocation4 + $0xe0] sm:$0xff] %v1369
    %1389 = vst [vmem:[#allocation4 + $0xe8] sm:$0xff] %v1371
    %1390 = vst [vmem:[#allocation4 + $0xf0] sm:$0xff] %v1373
    %1391 = vst [vmem:[#allocation4 + $0xf8] sm:$0xff] %v1375
    %v1392 = vld [vmem:[#allocation3 + $0x8] sm:$0xff]
    %v1393 = vld [vmem:[#allocation3 + $0x10] sm:$0xff]
    %v1394 = vld [vmem:[#allocation3 + $0x18] sm:$0xff]
    %v1395 = vld [vmem:[#allocation3 + $0x20] sm:$0xff]
    %v1396 = vld [vmem:[#allocation3 + $0x38] sm:$0xff]
    %v1397 = vld [vmem:[#allocation3 + $0x40] sm:$0xff]
    %v1398 = vld [vmem:[#allocation3 + $0x48] sm:$0xff]
    %v1399 = vld [vmem:[#allocation3 + $0x50] sm:$0xff]
    %v1400 = vld [vmem:[#allocation3 + $0x68] sm:$0xff]
    %v1401 = vld [vmem:[#allocation3 + $0x70] sm:$0xff]
    %v1402 = vld [vmem:[#allocation3 + $0x78] sm:$0xff]
    %v1403 = vld [vmem:[#allocation3 + $0x80] sm:$0xff]
    %v1404 = vld [vmem:[#allocation3 + $0x98] sm:$0xff]
    %v1405 = vld [vmem:[#allocation3 + $0xa0] sm:$0xff]
    %v1406 = vld [vmem:[#allocation3 + $0xa8] sm:$0xff]
    %v1407 = vld [vmem:[#allocation3 + $0xb0] sm:$0xff]
    %s1408 = scalar_lea.vmem %s7, 4
    %v1409 = vld [vmem:[%s1408] ss:$8 sm:$0xf]
    %v1411 = vlaneseq
    %v1412 = vshrl.u32 %v1411, 7
    %v1413 = vsub.s32 0, %v1412
    %v1414 = vrot.slane %v1409, %v1413
    %v1415 = vlaneseq
    %v1416 = vshrl.u32 %v1415, 7
    %v1417 = vsub.s32 1, %v1416
    %v1418 = vrot.slane %v1409, %v1417
    %v1419 = vlaneseq
    %v1420 = vshrl.u32 %v1419, 7
    %v1421 = vsub.s32 2, %v1420
    %v1422 = vrot.slane %v1409, %v1421
    %v1423 = vlaneseq
    %v1424 = vshrl.u32 %v1423, 7
    %v1425 = vsub.s32 3, %v1424
    %v1426 = vrot.slane %v1409, %v1425
    %v1431 = vmul.f32 %v1392, %v1414
    %v1432 = vmul.f32 %v1393, %v1418
    %v1433 = vmul.f32 %v1394, %v1422
    %v1434 = vmul.f32 %v1395, %v1426
    %v1435 = vmul.f32 %v1396, %v1414
    %v1436 = vmul.f32 %v1397, %v1418
    %v1437 = vmul.f32 %v1398, %v1422
    %v1438 = vmul.f32 %v1399, %v1426
    %v1439 = vmul.f32 %v1400, %v1414
    %v1440 = vmul.f32 %v1401, %v1418
    %v1441 = vmul.f32 %v1402, %v1422
    %v1442 = vmul.f32 %v1403, %v1426
    %v1443 = vmul.f32 %v1404, %v1414
    %v1444 = vmul.f32 %v1405, %v1418
    %v1445 = vmul.f32 %v1406, %v1422
    %v1446 = vmul.f32 %v1407, %v1426
    %v1447 = vpack.c.bf16 %v1435, %v1431
    %v1448 = vpack.c.bf16 %v1436, %v1432
    %v1449 = vpack.c.bf16 %v1437, %v1433
    %v1450 = vpack.c.bf16 %v1438, %v1434
    %v1451 = vpack.c.bf16 %v1443, %v1439
    %v1452 = vpack.c.bf16 %v1444, %v1440
    %v1453 = vpack.c.bf16 %v1445, %v1441
    %v1454 = vpack.c.bf16 %v1446, %v1442
    %v1463 = vunpack.c.l.b16 %v1447
    %v1464 = vunpack.c.l.b16 %v1448
    %v1465 = vunpack.c.l.b16 %v1449
    %v1466 = vunpack.c.l.b16 %v1450
    %v1467 = vunpack.c.h.b16 %v1447
    %v1468 = vunpack.c.h.b16 %v1448
    %v1469 = vunpack.c.h.b16 %v1449
    %v1470 = vunpack.c.h.b16 %v1450
    %v1471 = vunpack.c.l.b16 %v1451
    %v1472 = vunpack.c.l.b16 %v1452
    %v1473 = vunpack.c.l.b16 %v1453
    %v1474 = vunpack.c.l.b16 %v1454
    %v1475 = vunpack.c.h.b16 %v1451
    %v1476 = vunpack.c.h.b16 %v1452
    %v1477 = vunpack.c.h.b16 %v1453
    %v1478 = vunpack.c.h.b16 %v1454
    %v1479 = vpack.c.b16 %v1464, %v1463
    %v1480 = vpack.c.b16 %v1466, %v1465
    %v1481 = vpack.c.b16 %v1468, %v1467
    %v1482 = vpack.c.b16 %v1470, %v1469
    %v1483 = vpack.c.b16 %v1472, %v1471
    %v1484 = vpack.c.b16 %v1474, %v1473
    %v1485 = vpack.c.b16 %v1476, %v1475
    %v1486 = vpack.c.b16 %v1478, %v1477
    %1495 = vst [vmem:[#allocation4 + $0x100] sm:$0xff] %v1479
    %1496 = vst [vmem:[#allocation4 + $0x108] sm:$0xff] %v1480
    %1497 = vst [vmem:[#allocation4 + $0x110] sm:$0xff] %v1481
    %1498 = vst [vmem:[#allocation4 + $0x118] sm:$0xff] %v1482
    %1499 = vst [vmem:[#allocation4 + $0x120] sm:$0xff] %v1483
    %1500 = vst [vmem:[#allocation4 + $0x128] sm:$0xff] %v1484
    %1501 = vst [vmem:[#allocation4 + $0x130] sm:$0xff] %v1485
    %1502 = vst [vmem:[#allocation4 + $0x138] sm:$0xff] %v1486
    %v1503 = vld [vmem:[#allocation3 + $0x8] sm:$0xff]
    %v1504 = vld [vmem:[#allocation3 + $0x10] sm:$0xff]
    %v1505 = vld [vmem:[#allocation3 + $0x18] sm:$0xff]
    %v1506 = vld [vmem:[#allocation3 + $0x20] sm:$0xff]
    %v1507 = vld [vmem:[#allocation3 + $0x28] sm:$0xff]
    %v1508 = vld [vmem:[#allocation3 + $0x38] sm:$0xff]
    %v1509 = vld [vmem:[#allocation3 + $0x40] sm:$0xff]
    %v1510 = vld [vmem:[#allocation3 + $0x48] sm:$0xff]
    %v1511 = vld [vmem:[#allocation3 + $0x50] sm:$0xff]
    %v1512 = vld [vmem:[#allocation3 + $0x58] sm:$0xff]
    %v1513 = vld [vmem:[#allocation3 + $0x68] sm:$0xff]
    %v1514 = vld [vmem:[#allocation3 + $0x70] sm:$0xff]
    %v1515 = vld [vmem:[#allocation3 + $0x78] sm:$0xff]
    %v1516 = vld [vmem:[#allocation3 + $0x80] sm:$0xff]
    %v1517 = vld [vmem:[#allocation3 + $0x88] sm:$0xff]
    %v1518 = vld [vmem:[#allocation3 + $0x98] sm:$0xff]
    %v1519 = vld [vmem:[#allocation3 + $0xa0] sm:$0xff]
    %v1520 = vld [vmem:[#allocation3 + $0xa8] sm:$0xff]
    %v1521 = vld [vmem:[#allocation3 + $0xb0] sm:$0xff]
    %v1522 = vld [vmem:[#allocation3 + $0xb8] sm:$0xff]
    %s1523 = scalar_lea.vmem %s7, 5
    %v1524 = vld [vmem:[%s1523] ss:$8 sm:$0xf]
    %v1526 = vlaneseq
    %v1527 = vshrl.u32 %v1526, 7
    %v1528 = vsub.s32 0, %v1527
    %v1529 = vrot.slane %v1524, %v1528
    %v1530 = vlaneseq
    %v1531 = vshrl.u32 %v1530, 7
    %v1532 = vsub.s32 1, %v1531
    %v1533 = vrot.slane %v1524, %v1532
    %v1534 = vlaneseq
    %v1535 = vshrl.u32 %v1534, 7
    %v1536 = vsub.s32 2, %v1535
    %v1537 = vrot.slane %v1524, %v1536
    %v1538 = vlaneseq
    %v1539 = vshrl.u32 %v1538, 7
    %v1540 = vsub.s32 3, %v1539
    %v1541 = vrot.slane %v1524, %v1540
    %1542 = vrot.lane.b32.xlu0 %v1529, 1
    %v1543 = vpop.permute.xlu0 %1542
    %1544 = vrot.lane.b32.xlu0 %v1533, 1
    %v1545 = vpop.permute.xlu0 %1544
    %1546 = vrot.lane.b32.xlu0 %v1537, 1
    %v1547 = vpop.permute.xlu0 %1546
    %1548 = vrot.lane.b32.xlu0 %v1541, 1
    %v1549 = vpop.permute.xlu0 %1548
    %vm1550 = vcmask 7168
    %v1551 = vsel %vm1550, %v1543, %v1545
    %v1552 = vsel %vm1550, %v1545, %v1547
    %v1553 = vsel %vm1550, %v1547, %v1549
    %v1559 = vmul.f32 %v1503, %v1543
    %v1560 = vmul.f32 %v1504, %v1551
    %v1561 = vmul.f32 %v1505, %v1552
    %v1562 = vmul.f32 %v1506, %v1553
    %v1563 = vmul.f32 %v1507, %v1549
    %v1564 = vmul.f32 %v1508, %v1543
    %v1565 = vmul.f32 %v1509, %v1551
    %v1566 = vmul.f32 %v1510, %v1552
    %v1567 = vmul.f32 %v1511, %v1553
    %v1568 = vmul.f32 %v1512, %v1549
    %v1569 = vmul.f32 %v1513, %v1543
    %v1570 = vmul.f32 %v1514, %v1551
    %v1571 = vmul.f32 %v1515, %v1552
    %v1572 = vmul.f32 %v1516, %v1553
    %v1573 = vmul.f32 %v1517, %v1549
    %v1574 = vmul.f32 %v1518, %v1543
    %v1575 = vmul.f32 %v1519, %v1551
    %v1576 = vmul.f32 %v1520, %v1552
    %v1577 = vmul.f32 %v1521, %v1553
    %v1578 = vmul.f32 %v1522, %v1549
    %v1579 = vpack.c.bf16 %v1564, %v1559
    %v1580 = vpack.c.bf16 %v1565, %v1560
    %v1581 = vpack.c.bf16 %v1566, %v1561
    %v1582 = vpack.c.bf16 %v1567, %v1562
    %v1583 = vpack.c.bf16 %v1568, %v1563
    %v1584 = vpack.c.bf16 %v1574, %v1569
    %v1585 = vpack.c.bf16 %v1575, %v1570
    %v1586 = vpack.c.bf16 %v1576, %v1571
    %v1587 = vpack.c.bf16 %v1577, %v1572
    %v1588 = vpack.c.bf16 %v1578, %v1573
    %v1599 = vunpack.c.l.b16 %v1579
    %v1600 = vunpack.c.l.b16 %v1580
    %v1601 = vunpack.c.l.b16 %v1581
    %v1602 = vunpack.c.l.b16 %v1582
    %v1603 = vunpack.c.l.b16 %v1583
    %v1604 = vunpack.c.h.b16 %v1579
    %v1605 = vunpack.c.h.b16 %v1580
    %v1606 = vunpack.c.h.b16 %v1581
    %v1607 = vunpack.c.h.b16 %v1582
    %v1608 = vunpack.c.h.b16 %v1583
    %v1609 = vunpack.c.l.b16 %v1584
    %v1610 = vunpack.c.l.b16 %v1585
    %v1611 = vunpack.c.l.b16 %v1586
    %v1612 = vunpack.c.l.b16 %v1587
    %v1613 = vunpack.c.l.b16 %v1588
    %v1614 = vunpack.c.h.b16 %v1584
    %v1615 = vunpack.c.h.b16 %v1585
    %v1616 = vunpack.c.h.b16 %v1586
    %v1617 = vunpack.c.h.b16 %v1587
    %v1618 = vunpack.c.h.b16 %v1588
    %v1619 = vpack.c.b16 %v1600, %v1599
    %v1620 = vpack.c.b16 %v1602, %v1601
    %v1621 = vpack.c.b16 %v1603, %v1603
    %v1622 = vpack.c.b16 %v1605, %v1604
    %v1623 = vpack.c.b16 %v1607, %v1606
    %v1624 = vpack.c.b16 %v1608, %v1608
    %v1625 = vpack.c.b16 %v1610, %v1609
    %v1626 = vpack.c.b16 %v1612, %v1611
    %v1627 = vpack.c.b16 %v1613, %v1613
    %v1628 = vpack.c.b16 %v1615, %v1614
    %v1629 = vpack.c.b16 %v1617, %v1616
    %v1630 = vpack.c.b16 %v1618, %v1618
    %1631 = vrot.lane.b32.xlu0 %v1619, 127
    %v1632 = vpop.permute.xlu0 %1631
    %1633 = vrot.lane.b32.xlu0 %v1620, 127
    %v1634 = vpop.permute.xlu0 %1633
    %1635 = vrot.lane.b32.xlu0 %v1621, 127
    %v1636 = vpop.permute.xlu0 %1635
    %1637 = vrot.lane.b32.xlu0 %v1622, 127
    %v1638 = vpop.permute.xlu0 %1637
    %1639 = vrot.lane.b32.xlu0 %v1623, 127
    %v1640 = vpop.permute.xlu0 %1639
    %1641 = vrot.lane.b32.xlu0 %v1624, 127
    %v1642 = vpop.permute.xlu0 %1641
    %1643 = vrot.lane.b32.xlu0 %v1625, 127
    %v1644 = vpop.permute.xlu0 %1643
    %1645 = vrot.lane.b32.xlu0 %v1626, 127
    %v1646 = vpop.permute.xlu0 %1645
    %1647 = vrot.lane.b32.xlu0 %v1627, 127
    %v1648 = vpop.permute.xlu0 %1647
    %1649 = vrot.lane.b32.xlu0 %v1628, 127
    %v1650 = vpop.permute.xlu0 %1649
    %1651 = vrot.lane.b32.xlu0 %v1629, 127
    %v1652 = vpop.permute.xlu0 %1651
    %1653 = vrot.lane.b32.xlu0 %v1630, 127
    %v1654 = vpop.permute.xlu0 %1653
    %v1655 = vrot.slane %v1632, 4
    %v1656 = vrot.slane %v1634, 4
    %v1657 = vrot.slane %v1636, 4
    %v1658 = vrot.slane %v1638, 4
    %v1659 = vrot.slane %v1640, 4
    %v1660 = vrot.slane %v1642, 4
    %v1661 = vrot.slane %v1644, 4
    %v1662 = vrot.slane %v1646, 4
    %v1663 = vrot.slane %v1648, 4
    %v1664 = vrot.slane %v1650, 4
    %v1665 = vrot.slane %v1652, 4
    %v1666 = vrot.slane %v1654, 4
    %v1667 = vsel %vm767, %v1655, %v1656
    %vm1668 = vcmask 1039360
    %v1669 = vsel %vm1668, %v1632, %v1667
    %v1670 = vsel %vm767, %v1656, %v1657
    %v1671 = vsel %vm1668, %v1634, %v1670
    %v1672 = vsel %vm767, %v1658, %v1659
    %v1673 = vsel %vm1668, %v1638, %v1672
    %v1674 = vsel %vm767, %v1659, %v1660
    %v1675 = vsel %vm1668, %v1640, %v1674
    %v1676 = vsel %vm767, %v1661, %v1662
    %v1677 = vsel %vm1668, %v1644, %v1676
    %v1678 = vsel %vm767, %v1662, %v1663
    %v1679 = vsel %vm1668, %v1646, %v1678
    %v1680 = vsel %vm767, %v1664, %v1665
    %v1681 = vsel %vm1668, %v1650, %v1680
    %v1682 = vsel %vm767, %v1665, %v1666
    %v1683 = vsel %vm1668, %v1652, %v1682
    %1692 = vst [vmem:[#allocation4 + $0x140] sm:$0xff] %v1669
    %1693 = vst [vmem:[#allocation4 + $0x148] sm:$0xff] %v1671
    %1694 = vst [vmem:[#allocation4 + $0x150] sm:$0xff] %v1673
    %1695 = vst [vmem:[#allocation4 + $0x158] sm:$0xff] %v1675
    %1696 = vst [vmem:[#allocation4 + $0x160] sm:$0xff] %v1677
    %1697 = vst [vmem:[#allocation4 + $0x168] sm:$0xff] %v1679
    %1698 = vst [vmem:[#allocation4 + $0x170] sm:$0xff] %v1681
    %1699 = vst [vmem:[#allocation4 + $0x178] sm:$0xff] %v1683
    %v1700 = vld [vmem:[#allocation3 + $0x8] sm:$0xff]
    %v1701 = vld [vmem:[#allocation3 + $0x10] sm:$0xff]
    %v1702 = vld [vmem:[#allocation3 + $0x18] sm:$0xff]
    %v1703 = vld [vmem:[#allocation3 + $0x20] sm:$0xff]
    %v1704 = vld [vmem:[#allocation3 + $0x28] sm:$0xff]
    %v1705 = vld [vmem:[#allocation3 + $0x38] sm:$0xff]
    %v1706 = vld [vmem:[#allocation3 + $0x40] sm:$0xff]
    %v1707 = vld [vmem:[#allocation3 + $0x48] sm:$0xff]
    %v1708 = vld [vmem:[#allocation3 + $0x50] sm:$0xff]
    %v1709 = vld [vmem:[#allocation3 + $0x58] sm:$0xff]
    %v1710 = vld [vmem:[#allocation3 + $0x68] sm:$0xff]
    %v1711 = vld [vmem:[#allocation3 + $0x70] sm:$0xff]
    %v1712 = vld [vmem:[#allocation3 + $0x78] sm:$0xff]
    %v1713 = vld [vmem:[#allocation3 + $0x80] sm:$0xff]
    %v1714 = vld [vmem:[#allocation3 + $0x88] sm:$0xff]
    %v1715 = vld [vmem:[#allocation3 + $0x98] sm:$0xff]
    %v1716 = vld [vmem:[#allocation3 + $0xa0] sm:$0xff]
    %v1717 = vld [vmem:[#allocation3 + $0xa8] sm:$0xff]
    %v1718 = vld [vmem:[#allocation3 + $0xb0] sm:$0xff]
    %v1719 = vld [vmem:[#allocation3 + $0xb8] sm:$0xff]
    %s1720 = scalar_lea.vmem %s7, 6
    %v1721 = vld [vmem:[%s1720] ss:$8 sm:$0xf]
    %v1723 = vlaneseq
    %v1724 = vshrl.u32 %v1723, 7
    %v1725 = vsub.s32 0, %v1724
    %v1726 = vrot.slane %v1721, %v1725
    %v1727 = vlaneseq
    %v1728 = vshrl.u32 %v1727, 7
    %v1729 = vsub.s32 1, %v1728
    %v1730 = vrot.slane %v1721, %v1729
    %v1731 = vlaneseq
    %v1732 = vshrl.u32 %v1731, 7
    %v1733 = vsub.s32 2, %v1732
    %v1734 = vrot.slane %v1721, %v1733
    %v1735 = vlaneseq
    %v1736 = vshrl.u32 %v1735, 7
    %v1737 = vsub.s32 3, %v1736
    %v1738 = vrot.slane %v1721, %v1737
    %1739 = vrot.lane.b32.xlu0 %v1726, 15
    %v1740 = vpop.permute.xlu0 %1739
    %1741 = vrot.lane.b32.xlu0 %v1730, 15
    %v1742 = vpop.permute.xlu0 %1741
    %1743 = vrot.lane.b32.xlu0 %v1734, 15
    %v1744 = vpop.permute.xlu0 %1743
    %1745 = vrot.lane.b32.xlu0 %v1738, 15
    %v1746 = vpop.permute.xlu0 %1745
    %vm1747 = vcmask 121856
    %v1748 = vsel %vm1747, %v1740, %v1742
    %v1749 = vsel %vm1747, %v1742, %v1744
    %v1750 = vsel %vm1747, %v1744, %v1746
    %v1756 = vmul.f32 %v1700, %v1740
    %v1757 = vmul.f32 %v1701, %v1748
    %v1758 = vmul.f32 %v1702, %v1749
    %v1759 = vmul.f32 %v1703, %v1750
    %v1760 = vmul.f32 %v1704, %v1746
    %v1761 = vmul.f32 %v1705, %v1740
    %v1762 = vmul.f32 %v1706, %v1748
    %v1763 = vmul.f32 %v1707, %v1749
    %v1764 = vmul.f32 %v1708, %v1750
    %v1765 = vmul.f32 %v1709, %v1746
    %v1766 = vmul.f32 %v1710, %v1740
    %v1767 = vmul.f32 %v1711, %v1748
    %v1768 = vmul.f32 %v1712, %v1749
    %v1769 = vmul.f32 %v1713, %v1750
    %v1770 = vmul.f32 %v1714, %v1746
    %v1771 = vmul.f32 %v1715, %v1740
    %v1772 = vmul.f32 %v1716, %v1748
    %v1773 = vmul.f32 %v1717, %v1749
    %v1774 = vmul.f32 %v1718, %v1750
    %v1775 = vmul.f32 %v1719, %v1746
    %v1776 = vpack.c.bf16 %v1761, %v1756
    %v1777 = vpack.c.bf16 %v1762, %v1757
    %v1778 = vpack.c.bf16 %v1763, %v1758
    %v1779 = vpack.c.bf16 %v1764, %v1759
    %v1780 = vpack.c.bf16 %v1765, %v1760
    %v1781 = vpack.c.bf16 %v1771, %v1766
    %v1782 = vpack.c.bf16 %v1772, %v1767
    %v1783 = vpack.c.bf16 %v1773, %v1768
    %v1784 = vpack.c.bf16 %v1774, %v1769
    %v1785 = vpack.c.bf16 %v1775, %v1770
    %v1796 = vunpack.c.l.b16 %v1776
    %v1797 = vunpack.c.l.b16 %v1777
    %v1798 = vunpack.c.l.b16 %v1778
    %v1799 = vunpack.c.l.b16 %v1779
    %v1800 = vunpack.c.l.b16 %v1780
    %v1801 = vunpack.c.h.b16 %v1776
    %v1802 = vunpack.c.h.b16 %v1777
    %v1803 = vunpack.c.h.b16 %v1778
    %v1804 = vunpack.c.h.b16 %v1779
    %v1805 = vunpack.c.h.b16 %v1780
    %v1806 = vunpack.c.l.b16 %v1781
    %v1807 = vunpack.c.l.b16 %v1782
    %v1808 = vunpack.c.l.b16 %v1783
    %v1809 = vunpack.c.l.b16 %v1784
    %v1810 = vunpack.c.l.b16 %v1785
    %v1811 = vunpack.c.h.b16 %v1781
    %v1812 = vunpack.c.h.b16 %v1782
    %v1813 = vunpack.c.h.b16 %v1783
    %v1814 = vunpack.c.h.b16 %v1784
    %v1815 = vunpack.c.h.b16 %v1785
    %v1816 = vpack.c.b16 %v1797, %v1796
    %v1817 = vpack.c.b16 %v1799, %v1798
    %v1818 = vpack.c.b16 %v1800, %v1800
    %v1819 = vpack.c.b16 %v1802, %v1801
    %v1820 = vpack.c.b16 %v1804, %v1803
    %v1821 = vpack.c.b16 %v1805, %v1805
    %v1822 = vpack.c.b16 %v1807, %v1806
    %v1823 = vpack.c.b16 %v1809, %v1808
    %v1824 = vpack.c.b16 %v1810, %v1810
    %v1825 = vpack.c.b16 %v1812, %v1811
    %v1826 = vpack.c.b16 %v1814, %v1813
    %v1827 = vpack.c.b16 %v1815, %v1815
    %1828 = vrot.lane.b32.xlu0 %v1816, 113
    %v1829 = vpop.permute.xlu0 %1828
    %1830 = vrot.lane.b32.xlu0 %v1817, 113
    %v1831 = vpop.permute.xlu0 %1830
    %1832 = vrot.lane.b32.xlu0 %v1818, 113
    %v1833 = vpop.permute.xlu0 %1832
    %1834 = vrot.lane.b32.xlu0 %v1819, 113
    %v1835 = vpop.permute.xlu0 %1834
    %1836 = vrot.lane.b32.xlu0 %v1820, 113
    %v1837 = vpop.permute.xlu0 %1836
    %1838 = vrot.lane.b32.xlu0 %v1821, 113
    %v1839 = vpop.permute.xlu0 %1838
    %1840 = vrot.lane.b32.xlu0 %v1822, 113
    %v1841 = vpop.permute.xlu0 %1840
    %1842 = vrot.lane.b32.xlu0 %v1823, 113
    %v1843 = vpop.permute.xlu0 %1842
    %1844 = vrot.lane.b32.xlu0 %v1824, 113
    %v1845 = vpop.permute.xlu0 %1844
    %1846 = vrot.lane.b32.xlu0 %v1825, 113
    %v1847 = vpop.permute.xlu0 %1846
    %1848 = vrot.lane.b32.xlu0 %v1826, 113
    %v1849 = vpop.permute.xlu0 %1848
    %1850 = vrot.lane.b32.xlu0 %v1827, 113
    %v1851 = vpop.permute.xlu0 %1850
    %v1852 = vrot.slane %v1829, 4
    %v1853 = vrot.slane %v1831, 4
    %v1854 = vrot.slane %v1833, 4
    %v1855 = vrot.slane %v1835, 4
    %v1856 = vrot.slane %v1837, 4
    %v1857 = vrot.slane %v1839, 4
    %v1858 = vrot.slane %v1841, 4
    %v1859 = vrot.slane %v1843, 4
    %v1860 = vrot.slane %v1845, 4
    %v1861 = vrot.slane %v1847, 4
    %v1862 = vrot.slane %v1849, 4
    %v1863 = vrot.slane %v1851, 4
    %v1864 = vsel %vm767, %v1852, %v1853
    %vm1865 = vcmask 924672
    %v1866 = vsel %vm1865, %v1829, %v1864
    %v1867 = vsel %vm767, %v1853, %v1854
    %v1868 = vsel %vm1865, %v1831, %v1867
    %v1869 = vsel %vm767, %v1855, %v1856
    %v1870 = vsel %vm1865, %v1835, %v1869
    %v1871 = vsel %vm767, %v1856, %v1857
    %v1872 = vsel %vm1865, %v1837, %v1871
    %v1873 = vsel %vm767, %v1858, %v1859
    %v1874 = vsel %vm1865, %v1841, %v1873
    %v1875 = vsel %vm767, %v1859, %v1860
    %v1876 = vsel %vm1865, %v1843, %v1875
    %v1877 = vsel %vm767, %v1861, %v1862
    %v1878 = vsel %vm1865, %v1847, %v1877
    %v1879 = vsel %vm767, %v1862, %v1863
    %v1880 = vsel %vm1865, %v1849, %v1879
    %1889 = vst [vmem:[#allocation4 + $0x180] sm:$0xff] %v1866
    %1890 = vst [vmem:[#allocation4 + $0x188] sm:$0xff] %v1868
    %1891 = vst [vmem:[#allocation4 + $0x190] sm:$0xff] %v1870
    %1892 = vst [vmem:[#allocation4 + $0x198] sm:$0xff] %v1872
    %1893 = vst [vmem:[#allocation4 + $0x1a0] sm:$0xff] %v1874
    %1894 = vst [vmem:[#allocation4 + $0x1a8] sm:$0xff] %v1876
    %1895 = vst [vmem:[#allocation4 + $0x1b0] sm:$0xff] %v1878
    %1896 = vst [vmem:[#allocation4 + $0x1b8] sm:$0xff] %v1880
    %v1897 = vld [vmem:[#allocation3 + $0x8] sm:$0xff]
    %v1898 = vld [vmem:[#allocation3 + $0x10] sm:$0xff]
    %v1899 = vld [vmem:[#allocation3 + $0x18] sm:$0xff]
    %v1900 = vld [vmem:[#allocation3 + $0x20] sm:$0xff]
    %v1901 = vld [vmem:[#allocation3 + $0x28] sm:$0xff]
    %v1902 = vld [vmem:[#allocation3 + $0x38] sm:$0xff]
    %v1903 = vld [vmem:[#allocation3 + $0x40] sm:$0xff]
    %v1904 = vld [vmem:[#allocation3 + $0x48] sm:$0xff]
    %v1905 = vld [vmem:[#allocation3 + $0x50] sm:$0xff]
    %v1906 = vld [vmem:[#allocation3 + $0x58] sm:$0xff]
    %v1907 = vld [vmem:[#allocation3 + $0x68] sm:$0xff]
    %v1908 = vld [vmem:[#allocation3 + $0x70] sm:$0xff]
    %v1909 = vld [vmem:[#allocation3 + $0x78] sm:$0xff]
    %v1910 = vld [vmem:[#allocation3 + $0x80] sm:$0xff]
    %v1911 = vld [vmem:[#allocation3 + $0x88] sm:$0xff]
    %v1912 = vld [vmem:[#allocation3 + $0x98] sm:$0xff]
    %v1913 = vld [vmem:[#allocation3 + $0xa0] sm:$0xff]
    %v1914 = vld [vmem:[#allocation3 + $0xa8] sm:$0xff]
    %v1915 = vld [vmem:[#allocation3 + $0xb0] sm:$0xff]
    %v1916 = vld [vmem:[#allocation3 + $0xb8] sm:$0xff]
    %s1917 = scalar_lea.vmem %s7, 7
    %v1918 = vld [vmem:[%s1917] ss:$8 sm:$0xf]
    %v1920 = vlaneseq
    %v1921 = vshrl.u32 %v1920, 7
    %v1922 = vsub.s32 0, %v1921
    %v1923 = vrot.slane %v1918, %v1922
    %v1924 = vlaneseq
    %v1925 = vshrl.u32 %v1924, 7
    %v1926 = vsub.s32 1, %v1925
    %v1927 = vrot.slane %v1918, %v1926
    %v1928 = vlaneseq
    %v1929 = vshrl.u32 %v1928, 7
    %v1930 = vsub.s32 2, %v1929
    %v1931 = vrot.slane %v1918, %v1930
    %v1932 = vlaneseq
    %v1933 = vshrl.u32 %v1932, 7
    %v1934 = vsub.s32 3, %v1933
    %v1935 = vrot.slane %v1918, %v1934
    %1936 = vrot.lane.b32.xlu0 %v1923, 16
    %v1937 = vpop.permute.xlu0 %1936
    %1938 = vrot.lane.b32.xlu0 %v1927, 16
    %v1939 = vpop.permute.xlu0 %1938
    %1940 = vrot.lane.b32.xlu0 %v1931, 16
    %v1941 = vpop.permute.xlu0 %1940
    %1942 = vrot.lane.b32.xlu0 %v1935, 16
    %v1943 = vpop.permute.xlu0 %1942
    %vm1944 = vcmask 130048
    %v1945 = vsel %vm1944, %v1937, %v1939
    %v1946 = vsel %vm1944, %v1939, %v1941
    %v1947 = vsel %vm1944, %v1941, %v1943
    %v1953 = vmul.f32 %v1897, %v1937
    %v1954 = vmul.f32 %v1898, %v1945
    %v1955 = vmul.f32 %v1899, %v1946
    %v1956 = vmul.f32 %v1900, %v1947
    %v1957 = vmul.f32 %v1901, %v1943
    %v1958 = vmul.f32 %v1902, %v1937
    %v1959 = vmul.f32 %v1903, %v1945
    %v1960 = vmul.f32 %v1904, %v1946
    %v1961 = vmul.f32 %v1905, %v1947
    %v1962 = vmul.f32 %v1906, %v1943
    %v1963 = vmul.f32 %v1907, %v1937
    %v1964 = vmul.f32 %v1908, %v1945
    %v1965 = vmul.f32 %v1909, %v1946
    %v1966 = vmul.f32 %v1910, %v1947
    %v1967 = vmul.f32 %v1911, %v1943
    %v1968 = vmul.f32 %v1912, %v1937
    %v1969 = vmul.f32 %v1913, %v1945
    %v1970 = vmul.f32 %v1914, %v1946
    %v1971 = vmul.f32 %v1915, %v1947
    %v1972 = vmul.f32 %v1916, %v1943
    %v1973 = vpack.c.bf16 %v1958, %v1953
    %v1974 = vpack.c.bf16 %v1959, %v1954
    %v1975 = vpack.c.bf16 %v1960, %v1955
    %v1976 = vpack.c.bf16 %v1961, %v1956
    %v1977 = vpack.c.bf16 %v1962, %v1957
    %v1978 = vpack.c.bf16 %v1968, %v1963
    %v1979 = vpack.c.bf16 %v1969, %v1964
    %v1980 = vpack.c.bf16 %v1970, %v1965
    %v1981 = vpack.c.bf16 %v1971, %v1966
    %v1982 = vpack.c.bf16 %v1972, %v1967
    %v1993 = vunpack.c.l.b16 %v1973
    %v1994 = vunpack.c.l.b16 %v1974
    %v1995 = vunpack.c.l.b16 %v1975
    %v1996 = vunpack.c.l.b16 %v1976
    %v1997 = vunpack.c.l.b16 %v1977
    %v1998 = vunpack.c.h.b16 %v1973
    %v1999 = vunpack.c.h.b16 %v1974
    %v2000 = vunpack.c.h.b16 %v1975
    %v2001 = vunpack.c.h.b16 %v1976
    %v2002 = vunpack.c.h.b16 %v1977
    %v2003 = vunpack.c.l.b16 %v1978
    %v2004 = vunpack.c.l.b16 %v1979
    %v2005 = vunpack.c.l.b16 %v1980
    %v2006 = vunpack.c.l.b16 %v1981
    %v2007 = vunpack.c.l.b16 %v1982
    %v2008 = vunpack.c.h.b16 %v1978
    %v2009 = vunpack.c.h.b16 %v1979
    %v2010 = vunpack.c.h.b16 %v1980
    %v2011 = vunpack.c.h.b16 %v1981
    %v2012 = vunpack.c.h.b16 %v1982
    %v2013 = vpack.c.b16 %v1994, %v1993
    %v2014 = vpack.c.b16 %v1996, %v1995
    %v2015 = vpack.c.b16 %v1997, %v1997
    %v2016 = vpack.c.b16 %v1999, %v1998
    %v2017 = vpack.c.b16 %v2001, %v2000
    %v2018 = vpack.c.b16 %v2002, %v2002
    %v2019 = vpack.c.b16 %v2004, %v2003
    %v2020 = vpack.c.b16 %v2006, %v2005
    %v2021 = vpack.c.b16 %v2007, %v2007
    %v2022 = vpack.c.b16 %v2009, %v2008
    %v2023 = vpack.c.b16 %v2011, %v2010
    %v2024 = vpack.c.b16 %v2012, %v2012
    %2025 = vrot.lane.b32.xlu0 %v2013, 112
    %v2026 = vpop.permute.xlu0 %2025
    %2027 = vrot.lane.b32.xlu0 %v2014, 112
    %v2028 = vpop.permute.xlu0 %2027
    %2029 = vrot.lane.b32.xlu0 %v2015, 112
    %v2030 = vpop.permute.xlu0 %2029
    %2031 = vrot.lane.b32.xlu0 %v2016, 112
    %v2032 = vpop.permute.xlu0 %2031
    %2033 = vrot.lane.b32.xlu0 %v2017, 112
    %v2034 = vpop.permute.xlu0 %2033
    %2035 = vrot.lane.b32.xlu0 %v2018, 112
    %v2036 = vpop.permute.xlu0 %2035
    %2037 = vrot.lane.b32.xlu0 %v2019, 112
    %v2038 = vpop.permute.xlu0 %2037
    %2039 = vrot.lane.b32.xlu0 %v2020, 112
    %v2040 = vpop.permute.xlu0 %2039
    %2041 = vrot.lane.b32.xlu0 %v2021, 112
    %v2042 = vpop.permute.xlu0 %2041
    %2043 = vrot.lane.b32.xlu0 %v2022, 112
    %v2044 = vpop.permute.xlu0 %2043
    %2045 = vrot.lane.b32.xlu0 %v2023, 112
    %v2046 = vpop.permute.xlu0 %2045
    %2047 = vrot.lane.b32.xlu0 %v2024, 112
    %v2048 = vpop.permute.xlu0 %2047
    %v2049 = vrot.slane %v2026, 4
    %v2050 = vrot.slane %v2028, 4
    %v2051 = vrot.slane %v2030, 4
    %v2052 = vrot.slane %v2032, 4
    %v2053 = vrot.slane %v2034, 4
    %v2054 = vrot.slane %v2036, 4
    %v2055 = vrot.slane %v2038, 4
    %v2056 = vrot.slane %v2040, 4
    %v2057 = vrot.slane %v2042, 4
    %v2058 = vrot.slane %v2044, 4
    %v2059 = vrot.slane %v2046, 4
    %v2060 = vrot.slane %v2048, 4
    %v2061 = vsel %vm767, %v2049, %v2050
    %vm2062 = vcmask 916480
    %v2063 = vsel %vm2062, %v2026, %v2061
    %v2064 = vsel %vm767, %v2050, %v2051
    %v2065 = vsel %vm2062, %v2028, %v2064
    %v2066 = vsel %vm767, %v2052, %v2053
    %v2067 = vsel %vm2062, %v2032, %v2066
    %v2068 = vsel %vm767, %v2053, %v2054
    %v2069 = vsel %vm2062, %v2034, %v2068
    %v2070 = vsel %vm767, %v2055, %v2056
    %v2071 = vsel %vm2062, %v2038, %v2070
    %v2072 = vsel %vm767, %v2056, %v2057
    %v2073 = vsel %vm2062, %v2040, %v2072
    %v2074 = vsel %vm767, %v2058, %v2059
    %v2075 = vsel %vm2062, %v2044, %v2074
    %v2076 = vsel %vm767, %v2059, %v2060
    %v2077 = vsel %vm2062, %v2046, %v2076
    %2086 = vst [vmem:[#allocation4 + $0x1c0] sm:$0xff] %v2063
    %2087 = vst [vmem:[#allocation4 + $0x1c8] sm:$0xff] %v2065
    %2088 = vst [vmem:[#allocation4 + $0x1d0] sm:$0xff] %v2067
    %2089 = vst [vmem:[#allocation4 + $0x1d8] sm:$0xff] %v2069
    %2090 = vst [vmem:[#allocation4 + $0x1e0] sm:$0xff] %v2071
    %2091 = vst [vmem:[#allocation4 + $0x1e8] sm:$0xff] %v2073
    %2092 = vst [vmem:[#allocation4 + $0x1f0] sm:$0xff] %v2075
    %2093 = vst [vmem:[#allocation4 + $0x1f8] sm:$0xff] %v2077
    %v2094 = vld [vmem:[#allocation3 + $0x8] sm:$0xff]
    %v2095 = vld [vmem:[#allocation3 + $0x10] sm:$0xff]
    %v2096 = vld [vmem:[#allocation3 + $0x18] sm:$0xff]
    %v2097 = vld [vmem:[#allocation3 + $0x20] sm:$0xff]
    %v2098 = vld [vmem:[#allocation3 + $0x28] sm:$0xff]
    %v2099 = vld [vmem:[#allocation3 + $0x38] sm:$0xff]
    %v2100 = vld [vmem:[#allocation3 + $0x40] sm:$0xff]
    %v2101 = vld [vmem:[#allocation3 + $0x48] sm:$0xff]
    %v2102 = vld [vmem:[#allocation3 + $0x50] sm:$0xff]
    %v2103 = vld [vmem:[#allocation3 + $0x58] sm:$0xff]
    %v2104 = vld [vmem:[#allocation3 + $0x68] sm:$0xff]
    %v2105 = vld [vmem:[#allocation3 + $0x70] sm:$0xff]
    %v2106 = vld [vmem:[#allocation3 + $0x78] sm:$0xff]
    %v2107 = vld [vmem:[#allocation3 + $0x80] sm:$0xff]
    %v2108 = vld [vmem:[#allocation3 + $0x88] sm:$0xff]
    %v2109 = vld [vmem:[#allocation3 + $0x98] sm:$0xff]
    %v2110 = vld [vmem:[#allocation3 + $0xa0] sm:$0xff]
    %v2111 = vld [vmem:[#allocation3 + $0xa8] sm:$0xff]
    %v2112 = vld [vmem:[#allocation3 + $0xb0] sm:$0xff]
    %v2113 = vld [vmem:[#allocation3 + $0xb8] sm:$0xff]
    %s2114 = scalar_lea.vmem %s7, 32
    %v2115 = vld [vmem:[%s2114] ss:$8 sm:$0xf]
    %v2117 = vlaneseq
    %v2118 = vshrl.u32 %v2117, 7
    %v2119 = vsub.s32 0, %v2118
    %v2120 = vrot.slane %v2115, %v2119
    %v2121 = vlaneseq
    %v2122 = vshrl.u32 %v2121, 7
    %v2123 = vsub.s32 1, %v2122
    %v2124 = vrot.slane %v2115, %v2123
    %v2125 = vlaneseq
    %v2126 = vshrl.u32 %v2125, 7
    %v2127 = vsub.s32 2, %v2126
    %v2128 = vrot.slane %v2115, %v2127
    %v2129 = vlaneseq
    %v2130 = vshrl.u32 %v2129, 7
    %v2131 = vsub.s32 3, %v2130
    %v2132 = vrot.slane %v2115, %v2131
    %2133 = vrot.lane.b32.xlu0 %v2120, 17
    %v2134 = vpop.permute.xlu0 %2133
    %2135 = vrot.lane.b32.xlu0 %v2124, 17
    %v2136 = vpop.permute.xlu0 %2135
    %2137 = vrot.lane.b32.xlu0 %v2128, 17
    %v2138 = vpop.permute.xlu0 %2137
    %2139 = vrot.lane.b32.xlu0 %v2132, 17
    %v2140 = vpop.permute.xlu0 %2139
    %vm2141 = vcmask 138240
    %v2142 = vsel %vm2141, %v2134, %v2136
    %v2143 = vsel %vm2141, %v2136, %v2138
    %v2144 = vsel %vm2141, %v2138, %v2140
    %v2150 = vmul.f32 %v2094, %v2134
    %v2151 = vmul.f32 %v2095, %v2142
    %v2152 = vmul.f32 %v2096, %v2143
    %v2153 = vmul.f32 %v2097, %v2144
    %v2154 = vmul.f32 %v2098, %v2140
    %v2155 = vmul.f32 %v2099, %v2134
    %v2156 = vmul.f32 %v2100, %v2142
    %v2157 = vmul.f32 %v2101, %v2143
    %v2158 = vmul.f32 %v2102, %v2144
    %v2159 = vmul.f32 %v2103, %v2140
    %v2160 = vmul.f32 %v2104, %v2134
    %v2161 = vmul.f32 %v2105, %v2142
    %v2162 = vmul.f32 %v2106, %v2143
    %v2163 = vmul.f32 %v2107, %v2144
    %v2164 = vmul.f32 %v2108, %v2140
    %v2165 = vmul.f32 %v2109, %v2134
    %v2166 = vmul.f32 %v2110, %v2142
    %v2167 = vmul.f32 %v2111, %v2143
    %v2168 = vmul.f32 %v2112, %v2144
    %v2169 = vmul.f32 %v2113, %v2140
    %v2170 = vpack.c.bf16 %v2155, %v2150
    %v2171 = vpack.c.bf16 %v2156, %v2151
    %v2172 = vpack.c.bf16 %v2157, %v2152
    %v2173 = vpack.c.bf16 %v2158, %v2153
    %v2174 = vpack.c.bf16 %v2159, %v2154
    %v2175 = vpack.c.bf16 %v2165, %v2160
    %v2176 = vpack.c.bf16 %v2166, %v2161
    %v2177 = vpack.c.bf16 %v2167, %v2162
    %v2178 = vpack.c.bf16 %v2168, %v2163
    %v2179 = vpack.c.bf16 %v2169, %v2164
    %v2190 = vunpack.c.l.b16 %v2170
    %v2191 = vunpack.c.l.b16 %v2171
    %v2192 = vunpack.c.l.b16 %v2172
    %v2193 = vunpack.c.l.b16 %v2173
    %v2194 = vunpack.c.l.b16 %v2174
    %v2195 = vunpack.c.h.b16 %v2170
    %v2196 = vunpack.c.h.b16 %v2171
    %v2197 = vunpack.c.h.b16 %v2172
    %v2198 = vunpack.c.h.b16 %v2173
    %v2199 = vunpack.c.h.b16 %v2174
    %v2200 = vunpack.c.l.b16 %v2175
    %v2201 = vunpack.c.l.b16 %v2176
    %v2202 = vunpack.c.l.b16 %v2177
    %v2203 = vunpack.c.l.b16 %v2178
    %v2204 = vunpack.c.l.b16 %v2179
    %v2205 = vunpack.c.h.b16 %v2175
    %v2206 = vunpack.c.h.b16 %v2176
    %v2207 = vunpack.c.h.b16 %v2177
    %v2208 = vunpack.c.h.b16 %v2178
    %v2209 = vunpack.c.h.b16 %v2179
    %v2210 = vpack.c.b16 %v2191, %v2190
    %v2211 = vpack.c.b16 %v2193, %v2192
    %v2212 = vpack.c.b16 %v2194, %v2194
    %v2213 = vpack.c.b16 %v2196, %v2195
    %v2214 = vpack.c.b16 %v2198, %v2197
    %v2215 = vpack.c.b16 %v2199, %v2199
    %v2216 = vpack.c.b16 %v2201, %v2200
    %v2217 = vpack.c.b16 %v2203, %v2202
    %v2218 = vpack.c.b16 %v2204, %v2204
    %v2219 = vpack.c.b16 %v2206, %v2205
    %v2220 = vpack.c.b16 %v2208, %v2207
    %v2221 = vpack.c.b16 %v2209, %v2209
    %2222 = vrot.lane.b32.xlu0 %v2210, 111
    %v2223 = vpop.permute.xlu0 %2222
    %2224 = vrot.lane.b32.xlu0 %v2211, 111
    %v2225 = vpop.permute.xlu0 %2224
    %2226 = vrot.lane.b32.xlu0 %v2212, 111
    %v2227 = vpop.permute.xlu0 %2226
    %2228 = vrot.lane.b32.xlu0 %v2213, 111
    %v2229 = vpop.permute.xlu0 %2228
    %2230 = vrot.lane.b32.xlu0 %v2214, 111
    %v2231 = vpop.permute.xlu0 %2230
    %2232 = vrot.lane.b32.xlu0 %v2215, 111
    %v2233 = vpop.permute.xlu0 %2232
    %2234 = vrot.lane.b32.xlu0 %v2216, 111
    %v2235 = vpop.permute.xlu0 %2234
    %2236 = vrot.lane.b32.xlu0 %v2217, 111
    %v2237 = vpop.permute.xlu0 %2236
    %2238 = vrot.lane.b32.xlu0 %v2218, 111
    %v2239 = vpop.permute.xlu0 %2238
    %2240 = vrot.lane.b32.xlu0 %v2219, 111
    %v2241 = vpop.permute.xlu0 %2240
    %2242 = vrot.lane.b32.xlu0 %v2220, 111
    %v2243 = vpop.permute.xlu0 %2242
    %2244 = vrot.lane.b32.xlu0 %v2221, 111
    %v2245 = vpop.permute.xlu0 %2244
    %v2246 = vrot.slane %v2223, 4
    %v2247 = vrot.slane %v2225, 4
    %v2248 = vrot.slane %v2227, 4
    %v2249 = vrot.slane %v2229, 4
    %v2250 = vrot.slane %v2231, 4
    %v2251 = vrot.slane %v2233, 4
    %v2252 = vrot.slane %v2235, 4
    %v2253 = vrot.slane %v2237, 4
    %v2254 = vrot.slane %v2239, 4
    %v2255 = vrot.slane %v2241, 4
    %v2256 = vrot.slane %v2243, 4
    %v2257 = vrot.slane %v2245, 4
    %v2258 = vsel %vm767, %v2246, %v2247
    %vm2259 = vcmask 908288
    %v2260 = vsel %vm2259, %v2223, %v2258
    %v2261 = vsel %vm767, %v2247, %v2248
    %v2262 = vsel %vm2259, %v2225, %v2261
    %v2263 = vsel %vm767, %v2249, %v2250
    %v2264 = vsel %vm2259, %v2229, %v2263
    %v2265 = vsel %vm767, %v2250, %v2251
    %v2266 = vsel %vm2259, %v2231, %v2265
    %v2267 = vsel %vm767, %v2252, %v2253
    %v2268 = vsel %vm2259, %v2235, %v2267
    %v2269 = vsel %vm767, %v2253, %v2254
    %v2270 = vsel %vm2259, %v2237, %v2269
    %v2271 = vsel %vm767, %v2255, %v2256
    %v2272 = vsel %vm2259, %v2241, %v2271
    %v2273 = vsel %vm767, %v2256, %v2257
    %v2274 = vsel %vm2259, %v2243, %v2273
    %2283 = vst [vmem:[#allocation4 + $0x200] sm:$0xff] %v2260
    %2284 = vst [vmem:[#allocation4 + $0x208] sm:$0xff] %v2262
    %2285 = vst [vmem:[#allocation4 + $0x210] sm:$0xff] %v2264
    %2286 = vst [vmem:[#allocation4 + $0x218] sm:$0xff] %v2266
    %2287 = vst [vmem:[#allocation4 + $0x220] sm:$0xff] %v2268
    %2288 = vst [vmem:[#allocation4 + $0x228] sm:$0xff] %v2270
    %2289 = vst [vmem:[#allocation4 + $0x230] sm:$0xff] %v2272
    %2290 = vst [vmem:[#allocation4 + $0x238] sm:$0xff] %v2274
    %v2291 = vld [vmem:[%s4] sm:$0xff]
    %v2292 = vld [vmem:[%s4 + $0x8] sm:$0xf]
    %v2293 = vld [vmem:[%s4 + $0xc] sm:$0xff]
    %v2294 = vld [vmem:[%s4 + $0x14] sm:$0xf]
    %v2295 = vld [vmem:[%s4 + $0x18] sm:$0xff]
    %v2296 = vld [vmem:[%s4 + $0x20] sm:$0xf]
    %v2297 = vld [vmem:[%s4 + $0x24] sm:$0xff]
    %v2298 = vld [vmem:[%s4 + $0x2c] sm:$0xf]
    %v2299 = vld [vmem:[#allocation4] sm:$0xff]
    %v2300 = vld [vmem:[#allocation4 + $0x8] sm:$0xff]
    %v2301 = vld [vmem:[#allocation4 + $0x10] sm:$0xff]
    %v2302 = vld [vmem:[#allocation4 + $0x18] sm:$0xff]
    %v2303 = vld [vmem:[#allocation4 + $0x20] sm:$0xff]
    %v2304 = vld [vmem:[#allocation4 + $0x28] sm:$0xff]
    %v2305 = vld [vmem:[#allocation4 + $0x30] sm:$0xff]
    %v2306 = vld [vmem:[#allocation4 + $0x38] sm:$0xff]
    %v2307 = vld [vmem:[#allocation4 + $0x40] sm:$0xff]
    %v2308 = vld [vmem:[#allocation4 + $0x48] sm:$0xff]
    %v2309 = vld [vmem:[#allocation4 + $0x50] sm:$0xff]
    %v2310 = vld [vmem:[#allocation4 + $0x58] sm:$0xff]
    %v2311 = vld [vmem:[#allocation4 + $0x60] sm:$0xff]
    %v2312 = vld [vmem:[#allocation4 + $0x68] sm:$0xff]
    %v2313 = vld [vmem:[#allocation4 + $0x70] sm:$0xff]
    %v2314 = vld [vmem:[#allocation4 + $0x78] sm:$0xff]
    %v2315 = vld [vmem:[#allocation4 + $0x80] sm:$0xff]
    %v2316 = vld [vmem:[#allocation4 + $0x88] sm:$0xff]
    %v2317 = vld [vmem:[#allocation4 + $0x90] sm:$0xff]
    %v2318 = vld [vmem:[#allocation4 + $0x98] sm:$0xff]
    %v2319 = vld [vmem:[#allocation4 + $0xa0] sm:$0xff]
    %v2320 = vld [vmem:[#allocation4 + $0xa8] sm:$0xff]
    %v2321 = vld [vmem:[#allocation4 + $0xb0] sm:$0xff]
    %v2322 = vld [vmem:[#allocation4 + $0xb8] sm:$0xff]
    %v2323 = vld [vmem:[#allocation4 + $0xc0] sm:$0xff]
    %v2324 = vld [vmem:[#allocation4 + $0xc8] sm:$0xff]
    %v2325 = vld [vmem:[#allocation4 + $0xd0] sm:$0xff]
    %v2326 = vld [vmem:[#allocation4 + $0xd8] sm:$0xff]
    %v2327 = vld [vmem:[#allocation4 + $0xe0] sm:$0xff]
    %v2328 = vld [vmem:[#allocation4 + $0xe8] sm:$0xff]
    %v2329 = vld [vmem:[#allocation4 + $0xf0] sm:$0xff]
    %v2330 = vld [vmem:[#allocation4 + $0xf8] sm:$0xff]
    %v2331 = vld [vmem:[#allocation4 + $0x100] sm:$0xff]
    %v2332 = vld [vmem:[#allocation4 + $0x108] sm:$0xff]
    %v2333 = vld [vmem:[#allocation4 + $0x110] sm:$0xff]
    %v2334 = vld [vmem:[#allocation4 + $0x118] sm:$0xff]
    %v2335 = vld [vmem:[#allocation4 + $0x120] sm:$0xff]
    %v2336 = vld [vmem:[#allocation4 + $0x128] sm:$0xff]
    %v2337 = vld [vmem:[#allocation4 + $0x130] sm:$0xff]
    %v2338 = vld [vmem:[#allocation4 + $0x138] sm:$0xff]
    %v2339 = vld [vmem:[#allocation4 + $0x140] sm:$0xff]
    %v2340 = vld [vmem:[#allocation4 + $0x148] sm:$0xff]
    %v2341 = vld [vmem:[#allocation4 + $0x150] sm:$0xff]
    %v2342 = vld [vmem:[#allocation4 + $0x158] sm:$0xff]
    %v2343 = vld [vmem:[#allocation4 + $0x160] sm:$0xff]
    %v2344 = vld [vmem:[#allocation4 + $0x168] sm:$0xff]
    %v2345 = vld [vmem:[#allocation4 + $0x170] sm:$0xff]
    %v2346 = vld [vmem:[#allocation4 + $0x178] sm:$0xff]
    %v2347 = vld [vmem:[#allocation4 + $0x180] sm:$0xff]
    %v2348 = vld [vmem:[#allocation4 + $0x188] sm:$0xff]
    %v2349 = vld [vmem:[#allocation4 + $0x190] sm:$0xff]
    %v2350 = vld [vmem:[#allocation4 + $0x198] sm:$0xff]
    %v2351 = vld [vmem:[#allocation4 + $0x1a0] sm:$0xff]
    %v2352 = vld [vmem:[#allocation4 + $0x1a8] sm:$0xff]
    %v2353 = vld [vmem:[#allocation4 + $0x1b0] sm:$0xff]
    %v2354 = vld [vmem:[#allocation4 + $0x1b8] sm:$0xff]
    %v2355 = vld [vmem:[#allocation4 + $0x1c0] sm:$0xff]
    %v2356 = vld [vmem:[#allocation4 + $0x1c8] sm:$0xff]
    %v2357 = vld [vmem:[#allocation4 + $0x1d0] sm:$0xff]
    %v2358 = vld [vmem:[#allocation4 + $0x1d8] sm:$0xff]
    %v2359 = vld [vmem:[#allocation4 + $0x1e0] sm:$0xff]
    %v2360 = vld [vmem:[#allocation4 + $0x1e8] sm:$0xff]
    %v2361 = vld [vmem:[#allocation4 + $0x1f0] sm:$0xff]
    %v2362 = vld [vmem:[#allocation4 + $0x1f8] sm:$0xff]
    %v2363 = vld [vmem:[#allocation4 + $0x200] sm:$0xff]
    %v2364 = vld [vmem:[#allocation4 + $0x208] sm:$0xff]
    %v2365 = vld [vmem:[#allocation4 + $0x210] sm:$0xff]
    %v2366 = vld [vmem:[#allocation4 + $0x218] sm:$0xff]
    %v2367 = vld [vmem:[#allocation4 + $0x220] sm:$0xff]
    %v2368 = vld [vmem:[#allocation4 + $0x228] sm:$0xff]
    %v2369 = vld [vmem:[#allocation4 + $0x230] sm:$0xff]
    %v2370 = vld [vmem:[#allocation4 + $0x238] sm:$0xff]
    %v2379 = vunpack.c.l.b16 %v2291
    %v2380 = vunpack.c.h.b16 %v2291
    %v2381 = vunpack.c.l.b16 %v2292
    %v2382 = vunpack.c.l.b16 %v2293
    %v2383 = vunpack.c.h.b16 %v2293
    %v2384 = vunpack.c.l.b16 %v2294
    %v2385 = vunpack.c.l.b16 %v2295
    %v2386 = vunpack.c.h.b16 %v2295
    %v2387 = vunpack.c.l.b16 %v2296
    %v2388 = vunpack.c.l.b16 %v2297
    %v2389 = vunpack.c.h.b16 %v2297
    %v2390 = vunpack.c.l.b16 %v2298
    %v2391 = vpack.c.b16 %v2382, %v2379
    %v2392 = vpack.c.b16 %v2383, %v2380
    %v2393 = vpack.c.b16 %v2384, %v2381
    %v2394 = vpack.c.b16 %v2388, %v2385
    %v2395 = vpack.c.b16 %v2389, %v2386
    %v2396 = vpack.c.b16 %v2390, %v2387
    %v2473 = vunpack.c.l.b16 %v2299
    %v2474 = vunpack.c.h.b16 %v2299
    %v2475 = vunpack.c.l.b16 %v2300
    %v2476 = vunpack.c.h.b16 %v2300
    %v2477 = vunpack.c.l.b16 %v2301
    %v2478 = vunpack.c.h.b16 %v2301
    %v2479 = vunpack.c.l.b16 %v2302
    %v2480 = vunpack.c.h.b16 %v2302
    %v2481 = vunpack.c.l.b16 %v2303
    %v2482 = vunpack.c.h.b16 %v2303
    %v2483 = vunpack.c.l.b16 %v2304
    %v2484 = vunpack.c.h.b16 %v2304
    %v2485 = vunpack.c.l.b16 %v2305
    %v2486 = vunpack.c.h.b16 %v2305
    %v2487 = vunpack.c.l.b16 %v2306
    %v2488 = vunpack.c.h.b16 %v2306
    %v2489 = vunpack.c.l.b16 %v2307
    %v2490 = vunpack.c.h.b16 %v2307
    %v2491 = vunpack.c.l.b16 %v2308
    %v2492 = vunpack.c.h.b16 %v2308
    %v2493 = vunpack.c.l.b16 %v2309
    %v2494 = vunpack.c.h.b16 %v2309
    %v2495 = vunpack.c.l.b16 %v2310
    %v2496 = vunpack.c.h.b16 %v2310
    %v2497 = vunpack.c.l.b16 %v2311
    %v2498 = vunpack.c.h.b16 %v2311
    %v2499 = vunpack.c.l.b16 %v2312
    %v2500 = vunpack.c.h.b16 %v2312
    %v2501 = vunpack.c.l.b16 %v2313
    %v2502 = vunpack.c.h.b16 %v2313
    %v2503 = vunpack.c.l.b16 %v2314
    %v2504 = vunpack.c.h.b16 %v2314
    %v2505 = vunpack.c.l.b16 %v2315
    %v2506 = vunpack.c.h.b16 %v2315
    %v2507 = vunpack.c.l.b16 %v2316
    %v2508 = vunpack.c.h.b16 %v2316
    %v2509 = vunpack.c.l.b16 %v2317
    %v2510 = vunpack.c.h.b16 %v2317
    %v2511 = vunpack.c.l.b16 %v2318
    %v2512 = vunpack.c.h.b16 %v2318
    %v2513 = vunpack.c.l.b16 %v2319
    %v2514 = vunpack.c.h.b16 %v2319
    %v2515 = vunpack.c.l.b16 %v2320
    %v2516 = vunpack.c.h.b16 %v2320
    %v2517 = vunpack.c.l.b16 %v2321
    %v2518 = vunpack.c.h.b16 %v2321
    %v2519 = vunpack.c.l.b16 %v2322
    %v2520 = vunpack.c.h.b16 %v2322
    %v2521 = vunpack.c.l.b16 %v2323
    %v2522 = vunpack.c.h.b16 %v2323
    %v2523 = vunpack.c.l.b16 %v2324
    %v2524 = vunpack.c.h.b16 %v2324
    %v2525 = vunpack.c.l.b16 %v2325
    %v2526 = vunpack.c.h.b16 %v2325
    %v2527 = vunpack.c.l.b16 %v2326
    %v2528 = vunpack.c.h.b16 %v2326
    %v2529 = vunpack.c.l.b16 %v2327
    %v2530 = vunpack.c.h.b16 %v2327
    %v2531 = vunpack.c.l.b16 %v2328
    %v2532 = vunpack.c.h.b16 %v2328
    %v2533 = vunpack.c.l.b16 %v2329
    %v2534 = vunpack.c.h.b16 %v2329
    %v2535 = vunpack.c.l.b16 %v2330
    %v2536 = vunpack.c.h.b16 %v2330
    %v2537 = vunpack.c.l.b16 %v2331
    %v2538 = vunpack.c.h.b16 %v2331
    %v2539 = vunpack.c.l.b16 %v2332
    %v2540 = vunpack.c.h.b16 %v2332
    %v2541 = vunpack.c.l.b16 %v2333
    %v2542 = vunpack.c.h.b16 %v2333
    %v2543 = vunpack.c.l.b16 %v2334
    %v2544 = vunpack.c.h.b16 %v2334
    %v2545 = vunpack.c.l.b16 %v2335
    %v2546 = vunpack.c.h.b16 %v2335
    %v2547 = vunpack.c.l.b16 %v2336
    %v2548 = vunpack.c.h.b16 %v2336
    %v2549 = vunpack.c.l.b16 %v2337
    %v2550 = vunpack.c.h.b16 %v2337
    %v2551 = vunpack.c.l.b16 %v2338
    %v2552 = vunpack.c.h.b16 %v2338
    %v2553 = vunpack.c.l.b16 %v2339
    %v2554 = vunpack.c.h.b16 %v2339
    %v2555 = vunpack.c.l.b16 %v2340
    %v2556 = vunpack.c.h.b16 %v2340
    %v2557 = vunpack.c.l.b16 %v2341
    %v2558 = vunpack.c.h.b16 %v2341
    %v2559 = vunpack.c.l.b16 %v2342
    %v2560 = vunpack.c.h.b16 %v2342
    %v2561 = vunpack.c.l.b16 %v2343
    %v2562 = vunpack.c.h.b16 %v2343
    %v2563 = vunpack.c.l.b16 %v2344
    %v2564 = vunpack.c.h.b16 %v2344
    %v2565 = vunpack.c.l.b16 %v2345
    %v2566 = vunpack.c.h.b16 %v2345
    %v2567 = vunpack.c.l.b16 %v2346
    %v2568 = vunpack.c.h.b16 %v2346
    %v2569 = vunpack.c.l.b16 %v2347
    %v2570 = vunpack.c.h.b16 %v2347
    %v2571 = vunpack.c.l.b16 %v2348
    %v2572 = vunpack.c.h.b16 %v2348
    %v2573 = vunpack.c.l.b16 %v2349
    %v2574 = vunpack.c.h.b16 %v2349
    %v2575 = vunpack.c.l.b16 %v2350
    %v2576 = vunpack.c.h.b16 %v2350
    %v2577 = vunpack.c.l.b16 %v2351
    %v2578 = vunpack.c.h.b16 %v2351
    %v2579 = vunpack.c.l.b16 %v2352
    %v2580 = vunpack.c.h.b16 %v2352
    %v2581 = vunpack.c.l.b16 %v2353
    %v2582 = vunpack.c.h.b16 %v2353
    %v2583 = vunpack.c.l.b16 %v2354
    %v2584 = vunpack.c.h.b16 %v2354
    %v2585 = vunpack.c.l.b16 %v2355
    %v2586 = vunpack.c.h.b16 %v2355
    %v2587 = vunpack.c.l.b16 %v2356
    %v2588 = vunpack.c.h.b16 %v2356
    %v2589 = vunpack.c.l.b16 %v2357
    %v2590 = vunpack.c.h.b16 %v2357
    %v2591 = vunpack.c.l.b16 %v2358
    %v2592 = vunpack.c.h.b16 %v2358
    %v2593 = vunpack.c.l.b16 %v2359
    %v2594 = vunpack.c.h.b16 %v2359
    %v2595 = vunpack.c.l.b16 %v2360
    %v2596 = vunpack.c.h.b16 %v2360
    %v2597 = vunpack.c.l.b16 %v2361
    %v2598 = vunpack.c.h.b16 %v2361
    %v2599 = vunpack.c.l.b16 %v2362
    %v2600 = vunpack.c.h.b16 %v2362
    %v2601 = vunpack.c.l.b16 %v2363
    %v2602 = vunpack.c.h.b16 %v2363
    %v2603 = vunpack.c.l.b16 %v2364
    %v2604 = vunpack.c.h.b16 %v2364
    %v2605 = vunpack.c.l.b16 %v2365
    %v2606 = vunpack.c.h.b16 %v2365
    %v2607 = vunpack.c.l.b16 %v2366
    %v2608 = vunpack.c.h.b16 %v2366
    %v2609 = vunpack.c.l.b16 %v2367
    %v2610 = vunpack.c.h.b16 %v2367
    %v2611 = vunpack.c.l.b16 %v2368
    %v2612 = vunpack.c.h.b16 %v2368
    %v2613 = vunpack.c.l.b16 %v2369
    %v2614 = vunpack.c.h.b16 %v2369
    %v2615 = vunpack.c.l.b16 %v2370
    %v2616 = vunpack.c.h.b16 %v2370
    %v2617 = vpack.c.b16 %v2477, %v2473
    %v2618 = vpack.c.b16 %v2478, %v2474
    %v2619 = vpack.c.b16 %v2479, %v2475
    %v2620 = vpack.c.b16 %v2480, %v2476
    %v2621 = vpack.c.b16 %v2485, %v2481
    %v2622 = vpack.c.b16 %v2486, %v2482
    %v2623 = vpack.c.b16 %v2487, %v2483
    %v2624 = vpack.c.b16 %v2488, %v2484
    %v2625 = vpack.c.b16 %v2493, %v2489
    %v2626 = vpack.c.b16 %v2494, %v2490
    %v2627 = vpack.c.b16 %v2495, %v2491
    %v2628 = vpack.c.b16 %v2496, %v2492
    %v2629 = vpack.c.b16 %v2501, %v2497
    %v2630 = vpack.c.b16 %v2502, %v2498
    %v2631 = vpack.c.b16 %v2503, %v2499
    %v2632 = vpack.c.b16 %v2504, %v2500
    %v2633 = vpack.c.b16 %v2509, %v2505
    %v2634 = vpack.c.b16 %v2510, %v2506
    %v2635 = vpack.c.b16 %v2511, %v2507
    %v2636 = vpack.c.b16 %v2512, %v2508
    %v2637 = vpack.c.b16 %v2517, %v2513
    %v2638 = vpack.c.b16 %v2518, %v2514
    %v2639 = vpack.c.b16 %v2519, %v2515
    %v2640 = vpack.c.b16 %v2520, %v2516
    %v2641 = vpack.c.b16 %v2525, %v2521
    %v2642 = vpack.c.b16 %v2526, %v2522
    %v2643 = vpack.c.b16 %v2527, %v2523
    %v2644 = vpack.c.b16 %v2528, %v2524
    %v2645 = vpack.c.b16 %v2533, %v2529
    %v2646 = vpack.c.b16 %v2534, %v2530
    %v2647 = vpack.c.b16 %v2535, %v2531
    %v2648 = vpack.c.b16 %v2536, %v2532
    %v2649 = vpack.c.b16 %v2541, %v2537
    %v2650 = vpack.c.b16 %v2542, %v2538
    %v2651 = vpack.c.b16 %v2543, %v2539
    %v2652 = vpack.c.b16 %v2544, %v2540
    %v2653 = vpack.c.b16 %v2549, %v2545
    %v2654 = vpack.c.b16 %v2550, %v2546
    %v2655 = vpack.c.b16 %v2551, %v2547
    %v2656 = vpack.c.b16 %v2552, %v2548
    %v2657 = vpack.c.b16 %v2557, %v2553
    %v2658 = vpack.c.b16 %v2558, %v2554
    %v2659 = vpack.c.b16 %v2559, %v2555
    %v2660 = vpack.c.b16 %v2560, %v2556
    %v2661 = vpack.c.b16 %v2565, %v2561
    %v2662 = vpack.c.b16 %v2566, %v2562
    %v2663 = vpack.c.b16 %v2567, %v2563
    %v2664 = vpack.c.b16 %v2568, %v2564
    %v2665 = vpack.c.b16 %v2573, %v2569
    %v2666 = vpack.c.b16 %v2574, %v2570
    %v2667 = vpack.c.b16 %v2575, %v2571
    %v2668 = vpack.c.b16 %v2576, %v2572
    %v2669 = vpack.c.b16 %v2581, %v2577
    %v2670 = vpack.c.b16 %v2582, %v2578
    %v2671 = vpack.c.b16 %v2583, %v2579
    %v2672 = vpack.c.b16 %v2584, %v2580
    %v2673 = vpack.c.b16 %v2589, %v2585
    %v2674 = vpack.c.b16 %v2590, %v2586
    %v2675 = vpack.c.b16 %v2591, %v2587
    %v2676 = vpack.c.b16 %v2592, %v2588
    %v2677 = vpack.c.b16 %v2597, %v2593
    %v2678 = vpack.c.b16 %v2598, %v2594
    %v2679 = vpack.c.b16 %v2599, %v2595
    %v2680 = vpack.c.b16 %v2600, %v2596
    %v2681 = vpack.c.b16 %v2605, %v2601
    %v2682 = vpack.c.b16 %v2606, %v2602
    %v2683 = vpack.c.b16 %v2607, %v2603
    %v2684 = vpack.c.b16 %v2608, %v2604
    %v2685 = vpack.c.b16 %v2613, %v2609
    %v2686 = vpack.c.b16 %v2614, %v2610
    %v2687 = vpack.c.b16 %v2615, %v2611
    %v2688 = vpack.c.b16 %v2616, %v2612
    %vm2761 = vcmask 261120
    %v2763 = vsel %vm2761, %v2393, 0
    %v2766 = vsel %vm2761, %v2396, 0
    %2768 = vmatprep.subr.bf16.mxu0 %v2646
    %2769 = vmatpush1.bf16.msra.mxu0 %v2645
    %2770 = vmatprep.subr.bf16.mxu0 %v2642
    %2771 = vmatpush1.bf16.msra.mxu0 %v2641
    %2772 = vmatprep.subr.bf16.mxu0 %v2638
    %2773 = vmatpush1.bf16.msra.mxu0 %v2637
    %2774 = vmatprep.subr.bf16.mxu0 %v2634
    %2775 = vmatpush1.bf16.msra.mxu0 %v2633
    %2776 = vmatprep.subr.bf16.mxu0 %v2630
    %2777 = vmatpush1.bf16.msra.mxu0 %v2629
    %2778 = vmatprep.subr.bf16.mxu0 %v2626
    %2779 = vmatpush1.bf16.msra.mxu0 %v2625
    %2780 = vmatprep.subr.bf16.mxu0 %v2622
    %2781 = vmatpush1.bf16.msra.mxu0 %v2621
    %2782 = vmatprep.subr.bf16.mxu0 %v2618
    %2783 = vmatpush1.bf16.msra.mxu0 %v2617
    %2784 = vmatprep.subr.bf16.mxu0 %v2678
    %2785 = vmatpush2.bf16.msra.mxu0 %v2677
    %2786 = vmatprep.subr.bf16.mxu0 %v2674
    %2787 = vmatpush2.bf16.msra.mxu0 %v2673
    %2788 = vmatprep.subr.bf16.mxu0 %v2670
    %2789 = vmatpush2.bf16.msra.mxu0 %v2669
    %2790 = vmatprep.subr.bf16.mxu0 %v2666
    %2791 = vmatpush2.bf16.msra.mxu0 %v2665
    %2792 = vmatprep.subr.bf16.mxu0 %v2662
    %2793 = vmatpush2.bf16.msra.mxu0 %v2661
    %2794 = vmatprep.subr.bf16.mxu0 %v2658
    %2795 = vmatpush2.bf16.msra.mxu0 %v2657
    %2796 = vmatprep.subr.bf16.mxu0 %v2654
    %2797 = vmatpush2.bf16.msra.mxu0 %v2653
    %2798 = vmatprep.subr.bf16.mxu0 %v2650
    %2799 = vmatpush2.bf16.msra.mxu0 %v2649
    %2800 = vmatprep.mubr.bf16.mxu0 %v2392
    %2801 = vmatmul.mubr.bf16.gmra.mxu0 %v2391
    %v2802 = vpop.f32.mrf.mxu0
    %v2803 = vadd.f32 0.0, %v2802
    %v2804 = vpop.f32.mrf.mxu0
    %v2805 = vadd.f32 0.0, %v2804
    %v2806 = vpop.f32.mrf.mxu0
    %v2807 = vadd.f32 0.0, %v2806
    %v2808 = vpop.f32.mrf.mxu0
    %v2809 = vadd.f32 0.0, %v2808
    %2810 = vmatprep.mubr.bf16.mxu0 %v2395
    %2811 = vmatmul.mubr.bf16.gmra.mxu0 %v2394
    %v2812 = vpop.f32.mrf.mxu0
    %v2813 = vadd.f32 0.0, %v2812
    %v2814 = vpop.f32.mrf.mxu0
    %v2815 = vadd.f32 0.0, %v2814
    %v2816 = vpop.f32.mrf.mxu0
    %v2817 = vadd.f32 0.0, %v2816
    %v2818 = vpop.f32.mrf.mxu0
    %v2819 = vadd.f32 0.0, %v2818
    %2820 = vdwg.mxu0
    %2821 = vmatprep.subr.bf16.mxu0 0
    %2822 = vmatpush1.bf16.msra.mxu0 0
    %2823 = vmatprep.subr.bf16.mxu0 0
    %2824 = vmatpush1.bf16.msra.mxu0 0
    %2825 = vmatprep.subr.bf16.mxu0 0
    %2826 = vmatpush1.bf16.msra.mxu0 0
    %2827 = vmatprep.subr.bf16.mxu0 0
    %2828 = vmatpush1.bf16.msra.mxu0 0
    %2829 = vmatprep.subr.bf16.mxu0 0
    %2830 = vmatpush1.bf16.msra.mxu0 0
    %2831 = vmatprep.subr.bf16.mxu0 0
    %2832 = vmatpush1.bf16.msra.mxu0 0
    %2833 = vmatprep.subr.bf16.mxu0 %v2686
    %2834 = vmatpush1.bf16.msra.mxu0 %v2685
    %2835 = vmatprep.subr.bf16.mxu0 %v2682
    %2836 = vmatpush1.bf16.msra.mxu0 %v2681
    %2837 = vmatprep.subr.bf16.mxu0 0
    %2838 = vmatpush2.bf16.msra.mxu0 0
    %2839 = vmatprep.subr.bf16.mxu0 0
    %2840 = vmatpush2.bf16.msra.mxu0 0
    %2841 = vmatprep.subr.bf16.mxu0 0
    %2842 = vmatpush2.bf16.msra.mxu0 0
    %2843 = vmatprep.subr.bf16.mxu0 0
    %2844 = vmatpush2.bf16.msra.mxu0 0
    %2845 = vmatprep.subr.bf16.mxu0 0
    %2846 = vmatpush2.bf16.msra.mxu0 0
    %2847 = vmatprep.subr.bf16.mxu0 0
    %2848 = vmatpush2.bf16.msra.mxu0 0
    %2849 = vmatprep.subr.bf16.mxu0 0
    %2850 = vmatpush2.bf16.msra.mxu0 0
    %2851 = vmatprep.subr.bf16.mxu0 0
    %2852 = vmatpush2.bf16.msra.mxu0 0
    %2853 = vmatprep.mubr.bf16.mxu0 0
    %2854 = vmatmul.mubr.bf16.gmra.mxu0 %v2763
    %v2855 = vpop.f32.mrf.mxu0
    %v2856 = vadd.f32 %v2803, %v2855
    %v2857 = vpop.f32.mrf.mxu0
    %v2858 = vadd.f32 %v2805, %v2857
    %v2859 = vpop.f32.mrf.mxu0
    %v2860 = vadd.f32 %v2807, %v2859
    %v2861 = vpop.f32.mrf.mxu0
    %v2862 = vadd.f32 %v2809, %v2861
    %2863 = vmatprep.mubr.bf16.mxu0 0
    %2864 = vmatmul.mubr.bf16.gmra.mxu0 %v2766
    %v2865 = vpop.f32.mrf.mxu0
    %v2866 = vadd.f32 %v2813, %v2865
    %v2867 = vpop.f32.mrf.mxu0
    %v2868 = vadd.f32 %v2815, %v2867
    %v2869 = vpop.f32.mrf.mxu0
    %v2870 = vadd.f32 %v2817, %v2869
    %v2871 = vpop.f32.mrf.mxu0
    %v2872 = vadd.f32 %v2819, %v2871
    %2873 = vdwg.mxu0
    %2874 = vmatprep.subr.bf16.mxu0 %v2648
    %2875 = vmatpush1.bf16.msra.mxu0 %v2647
    %2876 = vmatprep.subr.bf16.mxu0 %v2644
    %2877 = vmatpush1.bf16.msra.mxu0 %v2643
    %2878 = vmatprep.subr.bf16.mxu0 %v2640
    %2879 = vmatpush1.bf16.msra.mxu0 %v2639
    %2880 = vmatprep.subr.bf16.mxu0 %v2636
    %2881 = vmatpush1.bf16.msra.mxu0 %v2635
    %2882 = vmatprep.subr.bf16.mxu0 %v2632
    %2883 = vmatpush1.bf16.msra.mxu0 %v2631
    %2884 = vmatprep.subr.bf16.mxu0 %v2628
    %2885 = vmatpush1.bf16.msra.mxu0 %v2627
    %2886 = vmatprep.subr.bf16.mxu0 %v2624
    %2887 = vmatpush1.bf16.msra.mxu0 %v2623
    %2888 = vmatprep.subr.bf16.mxu0 %v2620
    %2889 = vmatpush1.bf16.msra.mxu0 %v2619
    %2890 = vmatprep.subr.bf16.mxu0 %v2680
    %2891 = vmatpush2.bf16.msra.mxu0 %v2679
    %2892 = vmatprep.subr.bf16.mxu0 %v2676
    %2893 = vmatpush2.bf16.msra.mxu0 %v2675
    %2894 = vmatprep.subr.bf16.mxu0 %v2672
    %2895 = vmatpush2.bf16.msra.mxu0 %v2671
    %2896 = vmatprep.subr.bf16.mxu0 %v2668
    %2897 = vmatpush2.bf16.msra.mxu0 %v2667
    %2898 = vmatprep.subr.bf16.mxu0 %v2664
    %2899 = vmatpush2.bf16.msra.mxu0 %v2663
    %2900 = vmatprep.subr.bf16.mxu0 %v2660
    %2901 = vmatpush2.bf16.msra.mxu0 %v2659
    %2902 = vmatprep.subr.bf16.mxu0 %v2656
    %2903 = vmatpush2.bf16.msra.mxu0 %v2655
    %2904 = vmatprep.subr.bf16.mxu0 %v2652
    %2905 = vmatpush2.bf16.msra.mxu0 %v2651
    %2906 = vmatprep.mubr.bf16.mxu0 %v2392
    %2907 = vmatmul.mubr.bf16.gmra.mxu0 %v2391
    %v2908 = vpop.f32.mrf.mxu0
    %v2909 = vadd.f32 0.0, %v2908
    %v2910 = vpop.f32.mrf.mxu0
    %v2911 = vadd.f32 0.0, %v2910
    %v2912 = vpop.f32.mrf.mxu0
    %v2913 = vadd.f32 0.0, %v2912
    %v2914 = vpop.f32.mrf.mxu0
    %v2915 = vadd.f32 0.0, %v2914
    %2916 = vmatprep.mubr.bf16.mxu0 %v2395
    %2917 = vmatmul.mubr.bf16.gmra.mxu0 %v2394
    %v2918 = vpop.f32.mrf.mxu0
    %v2919 = vadd.f32 0.0, %v2918
    %v2920 = vpop.f32.mrf.mxu0
    %v2921 = vadd.f32 0.0, %v2920
    %v2922 = vpop.f32.mrf.mxu0
    %v2923 = vadd.f32 0.0, %v2922
    %v2924 = vpop.f32.mrf.mxu0
    %v2925 = vadd.f32 0.0, %v2924
    %2926 = vdwg.mxu0
    %2927 = vmatprep.subr.bf16.mxu0 0
    %2928 = vmatpush1.bf16.msra.mxu0 0
    %2929 = vmatprep.subr.bf16.mxu0 0
    %2930 = vmatpush1.bf16.msra.mxu0 0
    %2931 = vmatprep.subr.bf16.mxu0 0
    %2932 = vmatpush1.bf16.msra.mxu0 0
    %2933 = vmatprep.subr.bf16.mxu0 0
    %2934 = vmatpush1.bf16.msra.mxu0 0
    %2935 = vmatprep.subr.bf16.mxu0 0
    %2936 = vmatpush1.bf16.msra.mxu0 0
    %2937 = vmatprep.subr.bf16.mxu0 0
    %2938 = vmatpush1.bf16.msra.mxu0 0
    %2939 = vmatprep.subr.bf16.mxu0 %v2688
    %2940 = vmatpush1.bf16.msra.mxu0 %v2687
    %2941 = vmatprep.subr.bf16.mxu0 %v2684
    %2942 = vmatpush1.bf16.msra.mxu0 %v2683
    %2943 = vmatprep.subr.bf16.mxu0 0
    %2944 = vmatpush2.bf16.msra.mxu0 0
    %2945 = vmatprep.subr.bf16.mxu0 0
    %2946 = vmatpush2.bf16.msra.mxu0 0
    %2947 = vmatprep.subr.bf16.mxu0 0
    %2948 = vmatpush2.bf16.msra.mxu0 0
    %2949 = vmatprep.subr.bf16.mxu0 0
    %2950 = vmatpush2.bf16.msra.mxu0 0
    %2951 = vmatprep.subr.bf16.mxu0 0
    %2952 = vmatpush2.bf16.msra.mxu0 0
    %2953 = vmatprep.subr.bf16.mxu0 0
    %2954 = vmatpush2.bf16.msra.mxu0 0
    %2955 = vmatprep.subr.bf16.mxu0 0
    %2956 = vmatpush2.bf16.msra.mxu0 0
    %2957 = vmatprep.subr.bf16.mxu0 0
    %2958 = vmatpush2.bf16.msra.mxu0 0
    %2959 = vmatprep.mubr.bf16.mxu0 0
    %2960 = vmatmul.mubr.bf16.gmra.mxu0 %v2763
    %v2961 = vpop.f32.mrf.mxu0
    %v2962 = vadd.f32 %v2909, %v2961
    %v2963 = vpop.f32.mrf.mxu0
    %v2964 = vadd.f32 %v2911, %v2963
    %v2965 = vpop.f32.mrf.mxu0
    %v2966 = vadd.f32 %v2913, %v2965
    %v2967 = vpop.f32.mrf.mxu0
    %v2968 = vadd.f32 %v2915, %v2967
    %2969 = vmatprep.mubr.bf16.mxu0 0
    %2970 = vmatmul.mubr.bf16.gmra.mxu0 %v2766
    %v2971 = vpop.f32.mrf.mxu0
    %v2972 = vadd.f32 %v2919, %v2971
    %v2973 = vpop.f32.mrf.mxu0
    %v2974 = vadd.f32 %v2921, %v2973
    %v2975 = vpop.f32.mrf.mxu0
    %v2976 = vadd.f32 %v2923, %v2975
    %v2977 = vpop.f32.mrf.mxu0
    %v2978 = vadd.f32 %v2925, %v2977
    %2979 = vdwg.mxu0
    %v2980 = vadd.f32 %v2856, %v2858
    %v2981 = vadd.f32 %v2980, %v2962
    %v2982 = vadd.f32 %v2981, %v2964
    %2983 = vadd.xlane.f32.xlu0 %v2982
    %v2984 = vpop.xlane.xlu0 %2983
    %v2985 = vadd.f32 %v2860, %v2862
    %v2986 = vadd.f32 %v2985, %v2966
    %v2987 = vadd.f32 %v2986, %v2968
    %2988 = vadd.xlane.f32.xlu0 %v2987
    %v2989 = vpop.xlane.xlu0 %2988
    %v2990 = vadd.f32 %v2866, %v2868
    %v2991 = vadd.f32 %v2990, %v2972
    %v2992 = vadd.f32 %v2991, %v2974
    %2993 = vadd.xlane.f32.xlu0 %v2992
    %v2994 = vpop.xlane.xlu0 %2993
    %v2995 = vadd.f32 %v2870, %v2872
    %v2996 = vadd.f32 %v2995, %v2976
    %v2997 = vadd.f32 %v2996, %v2978
    %2998 = vadd.xlane.f32.xlu0 %v2997
    %v2999 = vpop.xlane.xlu0 %2998
    %v3000 = vmul.f32 %v2984, 0.001953125
    %v3001 = vmul.f32 %v2989, 0.001953125
    %v3002 = vmul.f32 %v2994, 0.001953125
    %v3003 = vmul.f32 %v2999, 0.001953125
    %v3004 = vsub.f32 %v2856, %v3000
    %v3005 = vsub.f32 %v2858, %v3000
    %v3006 = vsub.f32 %v2962, %v3000
    %v3007 = vsub.f32 %v2964, %v3000
    %v3008 = vsub.f32 %v2860, %v3001
    %v3009 = vsub.f32 %v2862, %v3001
    %v3010 = vsub.f32 %v2966, %v3001
    %v3011 = vsub.f32 %v2968, %v3001
    %v3012 = vsub.f32 %v2866, %v3002
    %v3013 = vsub.f32 %v2868, %v3002
    %v3014 = vsub.f32 %v2972, %v3002
    %v3015 = vsub.f32 %v2974, %v3002
    %v3016 = vsub.f32 %v2870, %v3003
    %v3017 = vsub.f32 %v2872, %v3003
    %v3018 = vsub.f32 %v2976, %v3003
    %v3019 = vsub.f32 %v2978, %v3003
    %v3020 = vmul.f32 %v3004, %v3004
    %v3021 = vmul.f32 %v3005, %v3005
    %v3022 = vmul.f32 %v3006, %v3006
    %v3023 = vmul.f32 %v3007, %v3007
    %v3024 = vmul.f32 %v3008, %v3008
    %v3025 = vmul.f32 %v3009, %v3009
    %v3026 = vmul.f32 %v3010, %v3010
    %v3027 = vmul.f32 %v3011, %v3011
    %v3028 = vmul.f32 %v3012, %v3012
    %v3029 = vmul.f32 %v3013, %v3013
    %v3030 = vmul.f32 %v3014, %v3014
    %v3031 = vmul.f32 %v3015, %v3015
    %v3032 = vmul.f32 %v3016, %v3016
    %v3033 = vmul.f32 %v3017, %v3017
    %v3034 = vmul.f32 %v3018, %v3018
    %v3035 = vmul.f32 %v3019, %v3019
    %v3036 = vadd.f32 %v3020, %v3021
    %v3037 = vadd.f32 %v3036, %v3022
    %v3038 = vadd.f32 %v3037, %v3023
    %3039 = vadd.xlane.f32.xlu0 %v3038
    %v3040 = vpop.xlane.xlu0 %3039
    %v3041 = vadd.f32 %v3024, %v3025
    %v3042 = vadd.f32 %v3041, %v3026
    %v3043 = vadd.f32 %v3042, %v3027
    %3044 = vadd.xlane.f32.xlu0 %v3043
    %v3045 = vpop.xlane.xlu0 %3044
    %v3046 = vadd.f32 %v3028, %v3029
    %v3047 = vadd.f32 %v3046, %v3030
    %v3048 = vadd.f32 %v3047, %v3031
    %3049 = vadd.xlane.f32.xlu0 %v3048
    %v3050 = vpop.xlane.xlu0 %3049
    %v3051 = vadd.f32 %v3032, %v3033
    %v3052 = vadd.f32 %v3051, %v3034
    %v3053 = vadd.f32 %v3052, %v3035
    %3054 = vadd.xlane.f32.xlu0 %v3053
    %v3055 = vpop.xlane.xlu0 %3054
    %v3056 = vmul.f32 %v3040, 0.001953125
    %v3057 = vmul.f32 %v3045, 0.001953125
    %v3058 = vmul.f32 %v3050, 0.001953125
    %v3059 = vmul.f32 %v3055, 0.001953125
    %v3060 = vadd.f32 %v3056, 0.001
    %v3061 = vadd.f32 %v3057, 0.001
    %v3062 = vadd.f32 %v3058, 0.001
    %v3063 = vadd.f32 %v3059, 0.001
    %v3064 = vrsqrt.pop %v3060
    %v3065 = vrsqrt.pop %v3061
    %v3066 = vrsqrt.pop %v3062
    %v3067 = vrsqrt.pop %v3063
    %v3068 = vmul.f32 %v3064, %v196
    %v3069 = vmul.f32 %v3065, %v197
    %v3070 = vmul.f32 %v3066, %v198
    %v3071 = vmul.f32 %v3067, %v199
    %3073 = vset.pattern.permute.xlu0 8
    %3074 = vperm.xlu0 %3073, %v3068
    %v3075 = vpop.permute.xlu0 %3074
    %3078 = vset.pattern.permute.xlu0 8
    %3079 = vperm.xlu0 %3078, %v3069
    %v3080 = vpop.permute.xlu0 %3079
    %3083 = vset.pattern.permute.xlu0 8
    %3084 = vperm.xlu0 %3083, %v3070
    %v3085 = vpop.permute.xlu0 %3084
    %3088 = vset.pattern.permute.xlu0 8
    %3089 = vperm.xlu0 %3088, %v3071
    %v3090 = vpop.permute.xlu0 %3089
    %v3092 = vmul.f32 %v3004, %v3075
    %v3093 = vmul.f32 %v3005, %v3075
    %v3094 = vmul.f32 %v3006, %v3075
    %v3095 = vmul.f32 %v3007, %v3075
    %v3096 = vmul.f32 %v3008, %v3080
    %v3097 = vmul.f32 %v3009, %v3080
    %v3098 = vmul.f32 %v3010, %v3080
    %v3099 = vmul.f32 %v3011, %v3080
    %v3100 = vmul.f32 %v3012, %v3085
    %v3101 = vmul.f32 %v3013, %v3085
    %v3102 = vmul.f32 %v3014, %v3085
    %v3103 = vmul.f32 %v3015, %v3085
    %v3104 = vmul.f32 %v3016, %v3090
    %v3105 = vmul.f32 %v3017, %v3090
    %v3106 = vmul.f32 %v3018, %v3090
    %v3107 = vmul.f32 %v3019, %v3090
    %3108 = vset.pattern.permute.xlu0 9
    %3109 = vperm.xlu0 %3108, %v196
    %v3110 = vpop.permute.xlu0 %3109
    %3112 = vset.pattern.permute.xlu0 9
    %3113 = vperm.xlu0 %3112, %v197
    %v3114 = vpop.permute.xlu0 %3113
    %3116 = vset.pattern.permute.xlu0 9
    %3117 = vperm.xlu0 %3116, %v198
    %v3118 = vpop.permute.xlu0 %3117
    %3120 = vset.pattern.permute.xlu0 9
    %3121 = vperm.xlu0 %3120, %v199
    %v3122 = vpop.permute.xlu0 %3121
    %v3124 = vadd.f32 %v3092, %v3110
    %v3125 = vadd.f32 %v3093, %v3110
    %v3126 = vadd.f32 %v3094, %v3110
    %v3127 = vadd.f32 %v3095, %v3110
    %v3128 = vadd.f32 %v3096, %v3114
    %v3129 = vadd.f32 %v3097, %v3114
    %v3130 = vadd.f32 %v3098, %v3114
    %v3131 = vadd.f32 %v3099, %v3114
    %v3132 = vadd.f32 %v3100, %v3118
    %v3133 = vadd.f32 %v3101, %v3118
    %v3134 = vadd.f32 %v3102, %v3118
    %v3135 = vadd.f32 %v3103, %v3118
    %v3136 = vadd.f32 %v3104, %v3122
    %v3137 = vadd.f32 %v3105, %v3122
    %v3138 = vadd.f32 %v3106, %v3122
    %v3139 = vadd.f32 %v3107, %v3122
    %3140 = vset.pattern.permute.xlu0 1
    %3141 = vperm.xlu0 %3140, %v196
    %v3142 = vpop.permute.xlu0 %3141
    %3144 = vset.pattern.permute.xlu0 1
    %3145 = vperm.xlu0 %3144, %v197
    %v3146 = vpop.permute.xlu0 %3145
    %3148 = vset.pattern.permute.xlu0 1
    %3149 = vperm.xlu0 %3148, %v198
    %v3150 = vpop.permute.xlu0 %3149
    %3152 = vset.pattern.permute.xlu0 1
    %3153 = vperm.xlu0 %3152, %v199
    %v3154 = vpop.permute.xlu0 %3153
    %v3156 = vadd.f32 %v341, %v3142
    %v3157 = vadd.f32 %v343, %v3142
    %v3158 = vadd.f32 %v434, %v3142
    %v3159 = vadd.f32 %v436, %v3142
    %v3160 = vadd.f32 %v345, %v3146
    %v3161 = vadd.f32 %v347, %v3146
    %v3162 = vadd.f32 %v438, %v3146
    %v3163 = vadd.f32 %v440, %v3146
    %v3164 = vadd.f32 %v351, %v3150
    %v3165 = vadd.f32 %v353, %v3150
    %v3166 = vadd.f32 %v444, %v3150
    %v3167 = vadd.f32 %v446, %v3150
    %v3168 = vadd.f32 %v355, %v3154
    %v3169 = vadd.f32 %v357, %v3154
    %v3170 = vadd.f32 %v448, %v3154
    %v3171 = vadd.f32 %v450, %v3154
    %v3172 = vmin.f32 %v3156, 20.0
    %v3173 = vmin.f32 %v3157, 20.0
    %v3174 = vmin.f32 %v3158, 20.0
    %v3175 = vmin.f32 %v3159, 20.0
    %v3176 = vmin.f32 %v3160, 20.0
    %v3177 = vmin.f32 %v3161, 20.0
    %v3178 = vmin.f32 %v3162, 20.0
    %v3179 = vmin.f32 %v3163, 20.0
    %v3180 = vmin.f32 %v3164, 20.0
    %v3181 = vmin.f32 %v3165, 20.0
    %v3182 = vmin.f32 %v3166, 20.0
    %v3183 = vmin.f32 %v3167, 20.0
    %v3184 = vmin.f32 %v3168, 20.0
    %v3185 = vmin.f32 %v3169, 20.0
    %v3186 = vmin.f32 %v3170, 20.0
    %v3187 = vmin.f32 %v3171, 20.0
    %vm3188 = vcmp.gt.f32.partialorder %v3156, 20.0
    %vm3189 = vcmp.gt.f32.partialorder %v3157, 20.0
    %vm3190 = vcmp.gt.f32.partialorder %v3158, 20.0
    %vm3191 = vcmp.gt.f32.partialorder %v3159, 20.0
    %vm3192 = vcmp.gt.f32.partialorder %v3160, 20.0
    %vm3193 = vcmp.gt.f32.partialorder %v3161, 20.0
    %vm3194 = vcmp.gt.f32.partialorder %v3162, 20.0
    %vm3195 = vcmp.gt.f32.partialorder %v3163, 20.0
    %vm3196 = vcmp.gt.f32.partialorder %v3164, 20.0
    %vm3197 = vcmp.gt.f32.partialorder %v3165, 20.0
    %vm3198 = vcmp.gt.f32.partialorder %v3166, 20.0
    %vm3199 = vcmp.gt.f32.partialorder %v3167, 20.0
    %vm3200 = vcmp.gt.f32.partialorder %v3168, 20.0
    %vm3201 = vcmp.gt.f32.partialorder %v3169, 20.0
    %vm3202 = vcmp.gt.f32.partialorder %v3170, 20.0
    %vm3203 = vcmp.gt.f32.partialorder %v3171, 20.0
    %v3204 = vmul.f32 %v3172, 1.442695
    %v3205 = vpow.pop %v3204
    %v3206 = vmul.f32 %v3173, 1.442695
    %v3207 = vpow.pop %v3206
    %v3208 = vmul.f32 %v3174, 1.442695
    %v3209 = vpow.pop %v3208
    %v3210 = vmul.f32 %v3175, 1.442695
    %v3211 = vpow.pop %v3210
    %v3212 = vmul.f32 %v3176, 1.442695
    %v3213 = vpow.pop %v3212
    %v3214 = vmul.f32 %v3177, 1.442695
    %v3215 = vpow.pop %v3214
    %v3216 = vmul.f32 %v3178, 1.442695
    %v3217 = vpow.pop %v3216
    %v3218 = vmul.f32 %v3179, 1.442695
    %v3219 = vpow.pop %v3218
    %v3220 = vmul.f32 %v3180, 1.442695
    %v3221 = vpow.pop %v3220
    %v3222 = vmul.f32 %v3181, 1.442695
    %v3223 = vpow.pop %v3222
    %v3224 = vmul.f32 %v3182, 1.442695
    %v3225 = vpow.pop %v3224
    %v3226 = vmul.f32 %v3183, 1.442695
    %v3227 = vpow.pop %v3226
    %v3228 = vmul.f32 %v3184, 1.442695
    %v3229 = vpow.pop %v3228
    %v3230 = vmul.f32 %v3185, 1.442695
    %v3231 = vpow.pop %v3230
    %v3232 = vmul.f32 %v3186, 1.442695
    %v3233 = vpow.pop %v3232
    %v3234 = vmul.f32 %v3187, 1.442695
    %v3235 = vpow.pop %v3234
    %v3236 = vadd.f32 %v3205, 1.0
    %v3237 = vadd.f32 %v3207, 1.0
    %v3238 = vadd.f32 %v3209, 1.0
    %v3239 = vadd.f32 %v3211, 1.0
    %v3240 = vadd.f32 %v3213, 1.0
    %v3241 = vadd.f32 %v3215, 1.0
    %v3242 = vadd.f32 %v3217, 1.0
    %v3243 = vadd.f32 %v3219, 1.0
    %v3244 = vadd.f32 %v3221, 1.0
    %v3245 = vadd.f32 %v3223, 1.0
    %v3246 = vadd.f32 %v3225, 1.0
    %v3247 = vadd.f32 %v3227, 1.0
    %v3248 = vadd.f32 %v3229, 1.0
    %v3249 = vadd.f32 %v3231, 1.0
    %v3250 = vadd.f32 %v3233, 1.0
    %v3251 = vadd.f32 %v3235, 1.0
    %v3252 = vlog2.pop %v3236
    %v3253 = vmul.f32 %v3252, 0.6931472
    %v3254 = vlog2.pop %v3237
    %v3255 = vmul.f32 %v3254, 0.6931472
    %v3256 = vlog2.pop %v3238
    %v3257 = vmul.f32 %v3256, 0.6931472
    %v3258 = vlog2.pop %v3239
    %v3259 = vmul.f32 %v3258, 0.6931472
    %v3260 = vlog2.pop %v3240
    %v3261 = vmul.f32 %v3260, 0.6931472
    %v3262 = vlog2.pop %v3241
    %v3263 = vmul.f32 %v3262, 0.6931472
    %v3264 = vlog2.pop %v3242
    %v3265 = vmul.f32 %v3264, 0.6931472
    %v3266 = vlog2.pop %v3243
    %v3267 = vmul.f32 %v3266, 0.6931472
    %v3268 = vlog2.pop %v3244
    %v3269 = vmul.f32 %v3268, 0.6931472
    %v3270 = vlog2.pop %v3245
    %v3271 = vmul.f32 %v3270, 0.6931472
    %v3272 = vlog2.pop %v3246
    %v3273 = vmul.f32 %v3272, 0.6931472
    %v3274 = vlog2.pop %v3247
    %v3275 = vmul.f32 %v3274, 0.6931472
    %v3276 = vlog2.pop %v3248
    %v3277 = vmul.f32 %v3276, 0.6931472
    %v3278 = vlog2.pop %v3249
    %v3279 = vmul.f32 %v3278, 0.6931472
    %v3280 = vlog2.pop %v3250
    %v3281 = vmul.f32 %v3280, 0.6931472
    %v3282 = vlog2.pop %v3251
    %v3283 = vmul.f32 %v3282, 0.6931472
    %v3284 = vsel %vm3188, %v3156, %v3253
    %v3285 = vsel %vm3189, %v3157, %v3255
    %v3286 = vsel %vm3190, %v3158, %v3257
    %v3287 = vsel %vm3191, %v3159, %v3259
    %v3288 = vsel %vm3192, %v3160, %v3261
    %v3289 = vsel %vm3193, %v3161, %v3263
    %v3290 = vsel %vm3194, %v3162, %v3265
    %v3291 = vsel %vm3195, %v3163, %v3267
    %v3292 = vsel %vm3196, %v3164, %v3269
    %v3293 = vsel %vm3197, %v3165, %v3271
    %v3294 = vsel %vm3198, %v3166, %v3273
    %v3295 = vsel %vm3199, %v3167, %v3275
    %v3296 = vsel %vm3200, %v3168, %v3277
    %v3297 = vsel %vm3201, %v3169, %v3279
    %v3298 = vsel %vm3202, %v3170, %v3281
    %v3299 = vsel %vm3203, %v3171, %v3283
    %3300 = vset.pattern.permute.xlu0 4
    %3301 = vperm.xlu0 %3300, %v196
    %v3302 = vpop.permute.xlu0 %3301
    %3304 = vset.pattern.permute.xlu0 4
    %3305 = vperm.xlu0 %3304, %v197
    %v3306 = vpop.permute.xlu0 %3305
    %3308 = vset.pattern.permute.xlu0 4
    %3309 = vperm.xlu0 %3308, %v198
    %v3310 = vpop.permute.xlu0 %3309
    %3312 = vset.pattern.permute.xlu0 4
    %3313 = vperm.xlu0 %3312, %v199
    %v3314 = vpop.permute.xlu0 %3313
    %v3316 = vmul.f32 %v3302, %v556
    %v3317 = vmul.f32 %v3302, %v557
    %v3318 = vmul.f32 %v3302, %v558
    %v3319 = vmul.f32 %v3302, %v559
    %v3320 = vmul.f32 %v3306, %v560
    %v3321 = vmul.f32 %v3306, %v561
    %v3322 = vmul.f32 %v3306, %v562
    %v3323 = vmul.f32 %v3306, %v563
    %v3324 = vmul.f32 %v3310, %v564
    %v3325 = vmul.f32 %v3310, %v565
    %v3326 = vmul.f32 %v3310, %v566
    %v3327 = vmul.f32 %v3310, %v567
    %v3328 = vmul.f32 %v3314, %v568
    %v3329 = vmul.f32 %v3314, %v569
    %v3330 = vmul.f32 %v3314, %v570
    %v3331 = vmul.f32 %v3314, %v571
    %3332 = vset.pattern.permute.xlu0 5
    %3333 = vperm.xlu0 %3332, %v196
    %v3334 = vpop.permute.xlu0 %3333
    %3336 = vset.pattern.permute.xlu0 5
    %3337 = vperm.xlu0 %3336, %v197
    %v3338 = vpop.permute.xlu0 %3337
    %3340 = vset.pattern.permute.xlu0 5
    %3341 = vperm.xlu0 %3340, %v198
    %v3342 = vpop.permute.xlu0 %3341
    %3344 = vset.pattern.permute.xlu0 5
    %3345 = vperm.xlu0 %3344, %v199
    %v3346 = vpop.permute.xlu0 %3345
    %v3348 = vadd.f32 %v3316, %v3334
    %v3349 = vadd.f32 %v3317, %v3334
    %v3350 = vadd.f32 %v3318, %v3334
    %v3351 = vadd.f32 %v3319, %v3334
    %v3352 = vadd.f32 %v3320, %v3338
    %v3353 = vadd.f32 %v3321, %v3338
    %v3354 = vadd.f32 %v3322, %v3338
    %v3355 = vadd.f32 %v3323, %v3338
    %v3356 = vadd.f32 %v3324, %v3342
    %v3357 = vadd.f32 %v3325, %v3342
    %v3358 = vadd.f32 %v3326, %v3342
    %v3359 = vadd.f32 %v3327, %v3342
    %v3360 = vadd.f32 %v3328, %v3346
    %v3361 = vadd.f32 %v3329, %v3346
    %v3362 = vadd.f32 %v3330, %v3346
    %v3363 = vadd.f32 %v3331, %v3346
    %v3364 = vmul.f32 %v3124, %v3348
    %v3365 = vmul.f32 %v3125, %v3349
    %v3366 = vmul.f32 %v3126, %v3350
    %v3367 = vmul.f32 %v3127, %v3351
    %v3368 = vmul.f32 %v3128, %v3352
    %v3369 = vmul.f32 %v3129, %v3353
    %v3370 = vmul.f32 %v3130, %v3354
    %v3371 = vmul.f32 %v3131, %v3355
    %v3372 = vmul.f32 %v3132, %v3356
    %v3373 = vmul.f32 %v3133, %v3357
    %v3374 = vmul.f32 %v3134, %v3358
    %v3375 = vmul.f32 %v3135, %v3359
    %v3376 = vmul.f32 %v3136, %v3360
    %v3377 = vmul.f32 %v3137, %v3361
    %v3378 = vmul.f32 %v3138, %v3362
    %v3379 = vmul.f32 %v3139, %v3363
    %v3380 = vmin.f32 %v3364, 20.0
    %v3381 = vmin.f32 %v3365, 20.0
    %v3382 = vmin.f32 %v3366, 20.0
    %v3383 = vmin.f32 %v3367, 20.0
    %v3384 = vmin.f32 %v3368, 20.0
    %v3385 = vmin.f32 %v3369, 20.0
    %v3386 = vmin.f32 %v3370, 20.0
    %v3387 = vmin.f32 %v3371, 20.0
    %v3388 = vmin.f32 %v3372, 20.0
    %v3389 = vmin.f32 %v3373, 20.0
    %v3390 = vmin.f32 %v3374, 20.0
    %v3391 = vmin.f32 %v3375, 20.0
    %v3392 = vmin.f32 %v3376, 20.0
    %v3393 = vmin.f32 %v3377, 20.0
    %v3394 = vmin.f32 %v3378, 20.0
    %v3395 = vmin.f32 %v3379, 20.0
    %vm3396 = vcmp.gt.f32.partialorder %v3364, 20.0
    %vm3397 = vcmp.gt.f32.partialorder %v3365, 20.0
    %vm3398 = vcmp.gt.f32.partialorder %v3366, 20.0
    %vm3399 = vcmp.gt.f32.partialorder %v3367, 20.0
    %vm3400 = vcmp.gt.f32.partialorder %v3368, 20.0
    %vm3401 = vcmp.gt.f32.partialorder %v3369, 20.0
    %vm3402 = vcmp.gt.f32.partialorder %v3370, 20.0
    %vm3403 = vcmp.gt.f32.partialorder %v3371, 20.0
    %vm3404 = vcmp.gt.f32.partialorder %v3372, 20.0
    %vm3405 = vcmp.gt.f32.partialorder %v3373, 20.0
    %vm3406 = vcmp.gt.f32.partialorder %v3374, 20.0
    %vm3407 = vcmp.gt.f32.partialorder %v3375, 20.0
    %vm3408 = vcmp.gt.f32.partialorder %v3376, 20.0
    %vm3409 = vcmp.gt.f32.partialorder %v3377, 20.0
    %vm3410 = vcmp.gt.f32.partialorder %v3378, 20.0
    %vm3411 = vcmp.gt.f32.partialorder %v3379, 20.0
    %v3412 = vmul.f32 %v3380, 1.442695
    %v3413 = vpow.pop %v3412
    %v3414 = vmul.f32 %v3381, 1.442695
    %v3415 = vpow.pop %v3414
    %v3416 = vmul.f32 %v3382, 1.442695
    %v3417 = vpow.pop %v3416
    %v3418 = vmul.f32 %v3383, 1.442695
    %v3419 = vpow.pop %v3418
    %v3420 = vmul.f32 %v3384, 1.442695
    %v3421 = vpow.pop %v3420
    %v3422 = vmul.f32 %v3385, 1.442695
    %v3423 = vpow.pop %v3422
    %v3424 = vmul.f32 %v3386, 1.442695
    %v3425 = vpow.pop %v3424
    %v3426 = vmul.f32 %v3387, 1.442695
    %v3427 = vpow.pop %v3426
    %v3428 = vmul.f32 %v3388, 1.442695
    %v3429 = vpow.pop %v3428
    %v3430 = vmul.f32 %v3389, 1.442695
    %v3431 = vpow.pop %v3430
    %v3432 = vmul.f32 %v3390, 1.442695
    %v3433 = vpow.pop %v3432
    %v3434 = vmul.f32 %v3391, 1.442695
    %v3435 = vpow.pop %v3434
    %v3436 = vmul.f32 %v3392, 1.442695
    %v3437 = vpow.pop %v3436
    %v3438 = vmul.f32 %v3393, 1.442695
    %v3439 = vpow.pop %v3438
    %v3440 = vmul.f32 %v3394, 1.442695
    %v3441 = vpow.pop %v3440
    %v3442 = vmul.f32 %v3395, 1.442695
    %v3443 = vpow.pop %v3442
    %v3444 = vadd.f32 %v3413, 1.0
    %v3445 = vadd.f32 %v3415, 1.0
    %v3446 = vadd.f32 %v3417, 1.0
    %v3447 = vadd.f32 %v3419, 1.0
    %v3448 = vadd.f32 %v3421, 1.0
    %v3449 = vadd.f32 %v3423, 1.0
    %v3450 = vadd.f32 %v3425, 1.0
    %v3451 = vadd.f32 %v3427, 1.0
    %v3452 = vadd.f32 %v3429, 1.0
    %v3453 = vadd.f32 %v3431, 1.0
    %v3454 = vadd.f32 %v3433, 1.0
    %v3455 = vadd.f32 %v3435, 1.0
    %v3456 = vadd.f32 %v3437, 1.0
    %v3457 = vadd.f32 %v3439, 1.0
    %v3458 = vadd.f32 %v3441, 1.0
    %v3459 = vadd.f32 %v3443, 1.0
    %v3460 = vlog2.pop %v3444
    %v3461 = vmul.f32 %v3460, 0.6931472
    %v3462 = vlog2.pop %v3445
    %v3463 = vmul.f32 %v3462, 0.6931472
    %v3464 = vlog2.pop %v3446
    %v3465 = vmul.f32 %v3464, 0.6931472
    %v3466 = vlog2.pop %v3447
    %v3467 = vmul.f32 %v3466, 0.6931472
    %v3468 = vlog2.pop %v3448
    %v3469 = vmul.f32 %v3468, 0.6931472
    %v3470 = vlog2.pop %v3449
    %v3471 = vmul.f32 %v3470, 0.6931472
    %v3472 = vlog2.pop %v3450
    %v3473 = vmul.f32 %v3472, 0.6931472
    %v3474 = vlog2.pop %v3451
    %v3475 = vmul.f32 %v3474, 0.6931472
    %v3476 = vlog2.pop %v3452
    %v3477 = vmul.f32 %v3476, 0.6931472
    %v3478 = vlog2.pop %v3453
    %v3479 = vmul.f32 %v3478, 0.6931472
    %v3480 = vlog2.pop %v3454
    %v3481 = vmul.f32 %v3480, 0.6931472
    %v3482 = vlog2.pop %v3455
    %v3483 = vmul.f32 %v3482, 0.6931472
    %v3484 = vlog2.pop %v3456
    %v3485 = vmul.f32 %v3484, 0.6931472
    %v3486 = vlog2.pop %v3457
    %v3487 = vmul.f32 %v3486, 0.6931472
    %v3488 = vlog2.pop %v3458
    %v3489 = vmul.f32 %v3488, 0.6931472
    %v3490 = vlog2.pop %v3459
    %v3491 = vmul.f32 %v3490, 0.6931472
    %v3492 = vsel %vm3396, %v3364, %v3461
    %v3493 = vsel %vm3397, %v3365, %v3463
    %v3494 = vsel %vm3398, %v3366, %v3465
    %v3495 = vsel %vm3399, %v3367, %v3467
    %v3496 = vsel %vm3400, %v3368, %v3469
    %v3497 = vsel %vm3401, %v3369, %v3471
    %v3498 = vsel %vm3402, %v3370, %v3473
    %v3499 = vsel %vm3403, %v3371, %v3475
    %v3500 = vsel %vm3404, %v3372, %v3477
    %v3501 = vsel %vm3405, %v3373, %v3479
    %v3502 = vsel %vm3406, %v3374, %v3481
    %v3503 = vsel %vm3407, %v3375, %v3483
    %v3504 = vsel %vm3408, %v3376, %v3485
    %v3505 = vsel %vm3409, %v3377, %v3487
    %v3506 = vsel %vm3410, %v3378, %v3489
    %v3507 = vsel %vm3411, %v3379, %v3491
    %v3508 = vsub.f32 %v3284, %v3492
    %v3509 = vsub.f32 %v3285, %v3493
    %v3510 = vsub.f32 %v3286, %v3494
    %v3511 = vsub.f32 %v3287, %v3495
    %v3512 = vsub.f32 %v3288, %v3496
    %v3513 = vsub.f32 %v3289, %v3497
    %v3514 = vsub.f32 %v3290, %v3498
    %v3515 = vsub.f32 %v3291, %v3499
    %v3516 = vsub.f32 %v3292, %v3500
    %v3517 = vsub.f32 %v3293, %v3501
    %v3518 = vsub.f32 %v3294, %v3502
    %v3519 = vsub.f32 %v3295, %v3503
    %v3520 = vsub.f32 %v3296, %v3504
    %v3521 = vsub.f32 %v3297, %v3505
    %v3522 = vsub.f32 %v3298, %v3506
    %v3523 = vsub.f32 %v3299, %v3507
    %v3524 = vmin.f32 %v3508, 20.0
    %v3525 = vmin.f32 %v3509, 20.0
    %v3526 = vmin.f32 %v3510, 20.0
    %v3527 = vmin.f32 %v3511, 20.0
    %v3528 = vmin.f32 %v3512, 20.0
    %v3529 = vmin.f32 %v3513, 20.0
    %v3530 = vmin.f32 %v3514, 20.0
    %v3531 = vmin.f32 %v3515, 20.0
    %v3532 = vmin.f32 %v3516, 20.0
    %v3533 = vmin.f32 %v3517, 20.0
    %v3534 = vmin.f32 %v3518, 20.0
    %v3535 = vmin.f32 %v3519, 20.0
    %v3536 = vmin.f32 %v3520, 20.0
    %v3537 = vmin.f32 %v3521, 20.0
    %v3538 = vmin.f32 %v3522, 20.0
    %v3539 = vmin.f32 %v3523, 20.0
    %vm3540 = vcmp.gt.f32.partialorder %v3508, 20.0
    %vm3541 = vcmp.gt.f32.partialorder %v3509, 20.0
    %vm3542 = vcmp.gt.f32.partialorder %v3510, 20.0
    %vm3543 = vcmp.gt.f32.partialorder %v3511, 20.0
    %vm3544 = vcmp.gt.f32.partialorder %v3512, 20.0
    %vm3545 = vcmp.gt.f32.partialorder %v3513, 20.0
    %vm3546 = vcmp.gt.f32.partialorder %v3514, 20.0
    %vm3547 = vcmp.gt.f32.partialorder %v3515, 20.0
    %vm3548 = vcmp.gt.f32.partialorder %v3516, 20.0
    %vm3549 = vcmp.gt.f32.partialorder %v3517, 20.0
    %vm3550 = vcmp.gt.f32.partialorder %v3518, 20.0
    %vm3551 = vcmp.gt.f32.partialorder %v3519, 20.0
    %vm3552 = vcmp.gt.f32.partialorder %v3520, 20.0
    %vm3553 = vcmp.gt.f32.partialorder %v3521, 20.0
    %vm3554 = vcmp.gt.f32.partialorder %v3522, 20.0
    %vm3555 = vcmp.gt.f32.partialorder %v3523, 20.0
    %v3556 = vmul.f32 %v3524, 1.442695
    %v3557 = vpow.pop %v3556
    %v3558 = vmul.f32 %v3525, 1.442695
    %v3559 = vpow.pop %v3558
    %v3560 = vmul.f32 %v3526, 1.442695
    %v3561 = vpow.pop %v3560
    %v3562 = vmul.f32 %v3527, 1.442695
    %v3563 = vpow.pop %v3562
    %v3564 = vmul.f32 %v3528, 1.442695
    %v3565 = vpow.pop %v3564
    %v3566 = vmul.f32 %v3529, 1.442695
    %v3567 = vpow.pop %v3566
    %v3568 = vmul.f32 %v3530, 1.442695
    %v3569 = vpow.pop %v3568
    %v3570 = vmul.f32 %v3531, 1.442695
    %v3571 = vpow.pop %v3570
    %v3572 = vmul.f32 %v3532, 1.442695
    %v3573 = vpow.pop %v3572
    %v3574 = vmul.f32 %v3533, 1.442695
    %v3575 = vpow.pop %v3574
    %v3576 = vmul.f32 %v3534, 1.442695
    %v3577 = vpow.pop %v3576
    %v3578 = vmul.f32 %v3535, 1.442695
    %v3579 = vpow.pop %v3578
    %v3580 = vmul.f32 %v3536, 1.442695
    %v3581 = vpow.pop %v3580
    %v3582 = vmul.f32 %v3537, 1.442695
    %v3583 = vpow.pop %v3582
    %v3584 = vmul.f32 %v3538, 1.442695
    %v3585 = vpow.pop %v3584
    %v3586 = vmul.f32 %v3539, 1.442695
    %v3587 = vpow.pop %v3586
    %v3588 = vadd.f32 %v3557, 1.0
    %v3589 = vadd.f32 %v3559, 1.0
    %v3590 = vadd.f32 %v3561, 1.0
    %v3591 = vadd.f32 %v3563, 1.0
    %v3592 = vadd.f32 %v3565, 1.0
    %v3593 = vadd.f32 %v3567, 1.0
    %v3594 = vadd.f32 %v3569, 1.0
    %v3595 = vadd.f32 %v3571, 1.0
    %v3596 = vadd.f32 %v3573, 1.0
    %v3597 = vadd.f32 %v3575, 1.0
    %v3598 = vadd.f32 %v3577, 1.0
    %v3599 = vadd.f32 %v3579, 1.0
    %v3600 = vadd.f32 %v3581, 1.0
    %v3601 = vadd.f32 %v3583, 1.0
    %v3602 = vadd.f32 %v3585, 1.0
    %v3603 = vadd.f32 %v3587, 1.0
    %v3604 = vlog2.pop %v3588
    %v3605 = vmul.f32 %v3604, 0.6931472
    %v3606 = vlog2.pop %v3589
    %v3607 = vmul.f32 %v3606, 0.6931472
    %v3608 = vlog2.pop %v3590
    %v3609 = vmul.f32 %v3608, 0.6931472
    %v3610 = vlog2.pop %v3591
    %v3611 = vmul.f32 %v3610, 0.6931472
    %v3612 = vlog2.pop %v3592
    %v3613 = vmul.f32 %v3612, 0.6931472
    %v3614 = vlog2.pop %v3593
    %v3615 = vmul.f32 %v3614, 0.6931472
    %v3616 = vlog2.pop %v3594
    %v3617 = vmul.f32 %v3616, 0.6931472
    %v3618 = vlog2.pop %v3595
    %v3619 = vmul.f32 %v3618, 0.6931472
    %v3620 = vlog2.pop %v3596
    %v3621 = vmul.f32 %v3620, 0.6931472
    %v3622 = vlog2.pop %v3597
    %v3623 = vmul.f32 %v3622, 0.6931472
    %v3624 = vlog2.pop %v3598
    %v3625 = vmul.f32 %v3624, 0.6931472
    %v3626 = vlog2.pop %v3599
    %v3627 = vmul.f32 %v3626, 0.6931472
    %v3628 = vlog2.pop %v3600
    %v3629 = vmul.f32 %v3628, 0.6931472
    %v3630 = vlog2.pop %v3601
    %v3631 = vmul.f32 %v3630, 0.6931472
    %v3632 = vlog2.pop %v3602
    %v3633 = vmul.f32 %v3632, 0.6931472
    %v3634 = vlog2.pop %v3603
    %v3635 = vmul.f32 %v3634, 0.6931472
    %v3636 = vsel %vm3540, %v3508, %v3605
    %v3637 = vsel %vm3541, %v3509, %v3607
    %v3638 = vsel %vm3542, %v3510, %v3609
    %v3639 = vsel %vm3543, %v3511, %v3611
    %v3640 = vsel %vm3544, %v3512, %v3613
    %v3641 = vsel %vm3545, %v3513, %v3615
    %v3642 = vsel %vm3546, %v3514, %v3617
    %v3643 = vsel %vm3547, %v3515, %v3619
    %v3644 = vsel %vm3548, %v3516, %v3621
    %v3645 = vsel %vm3549, %v3517, %v3623
    %v3646 = vsel %vm3550, %v3518, %v3625
    %v3647 = vsel %vm3551, %v3519, %v3627
    %v3648 = vsel %vm3552, %v3520, %v3629
    %v3649 = vsel %vm3553, %v3521, %v3631
    %v3650 = vsel %vm3554, %v3522, %v3633
    %v3651 = vsel %vm3555, %v3523, %v3635
    %v3652 = vpack.c.bf16 %v560, %v556
    %v3653 = vpack.c.bf16 %v561, %v557
    %v3654 = vpack.c.bf16 %v562, %v558
    %v3655 = vpack.c.bf16 %v563, %v559
    %v3656 = vpack.c.bf16 %v568, %v564
    %v3657 = vpack.c.bf16 %v569, %v565
    %v3658 = vpack.c.bf16 %v570, %v566
    %v3659 = vpack.c.bf16 %v571, %v567
    %v3660 = vpack.c.bf16 %v576, %v572
    %v3661 = vpack.c.bf16 %v577, %v573
    %v3662 = vpack.c.bf16 %v578, %v574
    %v3663 = vpack.c.bf16 %v579, %v575
    %v3664 = vpack.c.bf16 %v584, %v580
    %v3665 = vpack.c.bf16 %v585, %v581
    %v3666 = vpack.c.bf16 %v586, %v582
    %v3667 = vpack.c.bf16 %v587, %v583
    %v3668 = vld [vmem:[#allocation10] sm:$0xf]
    %v3669 = vld [vmem:[#allocation10 + $0x4] sm:$0xf]
    %v3670 = vld [vmem:[#allocation10 + $0x8] sm:$0xf]
    %v3671 = vld [vmem:[#allocation10 + $0xc] sm:$0xf]
    %v3672 = vld [vmem:[#allocation10 + $0x10] sm:$0xf]
    %v3673 = vld [vmem:[#allocation10 + $0x14] sm:$0xf]
    %v3674 = vld [vmem:[#allocation10 + $0x18] sm:$0xf]
    %v3675 = vld [vmem:[#allocation10 + $0x1c] sm:$0xf]
    %v3684 = vunpack.c.l.b16 %v3668
    %v3685 = vunpack.c.l.b16 %v3669
    %v3686 = vunpack.c.l.b16 %v3670
    %v3687 = vunpack.c.l.b16 %v3671
    %v3688 = vunpack.c.l.b16 %v3672
    %v3689 = vunpack.c.l.b16 %v3673
    %v3690 = vunpack.c.l.b16 %v3674
    %v3691 = vunpack.c.l.b16 %v3675
    %v3692 = vpack.c.b16 %v3685, %v3684
    %v3693 = vpack.c.b16 %v3687, %v3686
    %v3694 = vpack.c.b16 %v3689, %v3688
    %v3695 = vpack.c.b16 %v3691, %v3690
    %vm3696 = vcmask 523264
    %v3698 = vsel %vm3696, %v3692, 0
    %v3701 = vsel %vm3696, %v3693, 0
    %v3704 = vsel %vm3696, %v3694, 0
    %v3707 = vsel %vm3696, %v3695, 0
    %3709 = vmatprep.subr.bf16.mxu0 0
    %3710 = vmatpush1.bf16.msra.mxu0 0
    %3711 = vmatprep.subr.bf16.mxu0 0
    %3712 = vmatpush1.bf16.msra.mxu0 0
    %3713 = vmatprep.subr.bf16.mxu0 0
    %3714 = vmatpush1.bf16.msra.mxu0 0
    %3715 = vmatprep.subr.bf16.mxu0 0
    %3716 = vmatpush1.bf16.msra.mxu0 0
    %3717 = vmatprep.subr.bf16.mxu0 %v3665
    %3718 = vmatpush1.bf16.msra.mxu0 %v3664
    %3719 = vmatprep.subr.bf16.mxu0 %v3661
    %3720 = vmatpush1.bf16.msra.mxu0 %v3660
    %3721 = vmatprep.subr.bf16.mxu0 %v3657
    %3722 = vmatpush1.bf16.msra.mxu0 %v3656
    %3723 = vmatprep.subr.bf16.mxu0 %v3653
    %3724 = vmatpush1.bf16.msra.mxu0 %v3652
    %3725 = vmatprep.subr.bf16.mxu0 0
    %3726 = vmatpush2.bf16.msra.mxu0 0
    %3727 = vmatprep.subr.bf16.mxu0 0
    %3728 = vmatpush2.bf16.msra.mxu0 0
    %3729 = vmatprep.subr.bf16.mxu0 0
    %3730 = vmatpush2.bf16.msra.mxu0 0
    %3731 = vmatprep.subr.bf16.mxu0 0
    %3732 = vmatpush2.bf16.msra.mxu0 0
    %3733 = vmatprep.subr.bf16.mxu0 0
    %3734 = vmatpush2.bf16.msra.mxu0 0
    %3735 = vmatprep.subr.bf16.mxu0 0
    %3736 = vmatpush2.bf16.msra.mxu0 0
    %3737 = vmatprep.subr.bf16.mxu0 0
    %3738 = vmatpush2.bf16.msra.mxu0 0
    %3739 = vmatprep.subr.bf16.mxu0 0
    %3740 = vmatpush2.bf16.msra.mxu0 0
    %3741 = vmatprep.mubr.bf16.mxu0 0
    %3742 = vmatmul.mubr.bf16.gmra.mxu0 %v3698
    %v3743 = vpop.f32.mrf.mxu0
    %v3744 = vadd.f32 0.0, %v3743
    %v3745 = vpop.f32.mrf.mxu0
    %v3746 = vadd.f32 0.0, %v3745
    %v3747 = vpop.f32.mrf.mxu0
    %v3748 = vadd.f32 0.0, %v3747
    %v3749 = vpop.f32.mrf.mxu0
    %v3750 = vadd.f32 0.0, %v3749
    %3751 = vmatprep.mubr.bf16.mxu0 0
    %3752 = vmatmul.mubr.bf16.gmra.mxu0 %v3701
    %v3753 = vpop.f32.mrf.mxu0
    %v3754 = vadd.f32 0.0, %v3753
    %v3755 = vpop.f32.mrf.mxu0
    %v3756 = vadd.f32 0.0, %v3755
    %v3757 = vpop.f32.mrf.mxu0
    %v3758 = vadd.f32 0.0, %v3757
    %v3759 = vpop.f32.mrf.mxu0
    %v3760 = vadd.f32 0.0, %v3759
    %3761 = vmatprep.mubr.bf16.mxu0 0
    %3762 = vmatmul.mubr.bf16.gmra.mxu0 %v3704
    %v3763 = vpop.f32.mrf.mxu0
    %v3764 = vadd.f32 0.0, %v3763
    %v3765 = vpop.f32.mrf.mxu0
    %v3766 = vadd.f32 0.0, %v3765
    %v3767 = vpop.f32.mrf.mxu0
    %v3768 = vadd.f32 0.0, %v3767
    %v3769 = vpop.f32.mrf.mxu0
    %v3770 = vadd.f32 0.0, %v3769
    %3771 = vmatprep.mubr.bf16.mxu0 0
    %3772 = vmatmul.mubr.bf16.gmra.mxu0 %v3707
    %v3773 = vpop.f32.mrf.mxu0
    %v3774 = vadd.f32 0.0, %v3773
    %v3775 = vpop.f32.mrf.mxu0
    %v3776 = vadd.f32 0.0, %v3775
    %v3777 = vpop.f32.mrf.mxu0
    %v3778 = vadd.f32 0.0, %v3777
    %v3779 = vpop.f32.mrf.mxu0
    %v3780 = vadd.f32 0.0, %v3779
    %3781 = vdwg.mxu0
    %3782 = vmatprep.subr.bf16.mxu0 0
    %3783 = vmatpush1.bf16.msra.mxu0 0
    %3784 = vmatprep.subr.bf16.mxu0 0
    %3785 = vmatpush1.bf16.msra.mxu0 0
    %3786 = vmatprep.subr.bf16.mxu0 0
    %3787 = vmatpush1.bf16.msra.mxu0 0
    %3788 = vmatprep.subr.bf16.mxu0 0
    %3789 = vmatpush1.bf16.msra.mxu0 0
    %3790 = vmatprep.subr.bf16.mxu0 %v3667
    %3791 = vmatpush1.bf16.msra.mxu0 %v3666
    %3792 = vmatprep.subr.bf16.mxu0 %v3663
    %3793 = vmatpush1.bf16.msra.mxu0 %v3662
    %3794 = vmatprep.subr.bf16.mxu0 %v3659
    %3795 = vmatpush1.bf16.msra.mxu0 %v3658
    %3796 = vmatprep.subr.bf16.mxu0 %v3655
    %3797 = vmatpush1.bf16.msra.mxu0 %v3654
    %3798 = vmatprep.subr.bf16.mxu0 0
    %3799 = vmatpush2.bf16.msra.mxu0 0
    %3800 = vmatprep.subr.bf16.mxu0 0
    %3801 = vmatpush2.bf16.msra.mxu0 0
    %3802 = vmatprep.subr.bf16.mxu0 0
    %3803 = vmatpush2.bf16.msra.mxu0 0
    %3804 = vmatprep.subr.bf16.mxu0 0
    %3805 = vmatpush2.bf16.msra.mxu0 0
    %3806 = vmatprep.subr.bf16.mxu0 0
    %3807 = vmatpush2.bf16.msra.mxu0 0
    %3808 = vmatprep.subr.bf16.mxu0 0
    %3809 = vmatpush2.bf16.msra.mxu0 0
    %3810 = vmatprep.subr.bf16.mxu0 0
    %3811 = vmatpush2.bf16.msra.mxu0 0
    %3812 = vmatprep.subr.bf16.mxu0 0
    %3813 = vmatpush2.bf16.msra.mxu0 0
    %3814 = vmatprep.mubr.bf16.mxu0 0
    %3815 = vmatmul.mubr.bf16.gmra.mxu0 %v3698
    %v3816 = vpop.f32.mrf.mxu0
    %v3817 = vadd.f32 0.0, %v3816
    %v3818 = vpop.f32.mrf.mxu0
    %v3819 = vadd.f32 0.0, %v3818
    %v3820 = vpop.f32.mrf.mxu0
    %v3821 = vadd.f32 0.0, %v3820
    %v3822 = vpop.f32.mrf.mxu0
    %v3823 = vadd.f32 0.0, %v3822
    %3824 = vmatprep.mubr.bf16.mxu0 0
    %3825 = vmatmul.mubr.bf16.gmra.mxu0 %v3701
    %v3826 = vpop.f32.mrf.mxu0
    %v3827 = vadd.f32 0.0, %v3826
    %v3828 = vpop.f32.mrf.mxu0
    %v3829 = vadd.f32 0.0, %v3828
    %v3830 = vpop.f32.mrf.mxu0
    %v3831 = vadd.f32 0.0, %v3830
    %v3832 = vpop.f32.mrf.mxu0
    %v3833 = vadd.f32 0.0, %v3832
    %3834 = vmatprep.mubr.bf16.mxu0 0
    %3835 = vmatmul.mubr.bf16.gmra.mxu0 %v3704
    %v3836 = vpop.f32.mrf.mxu0
    %v3837 = vadd.f32 0.0, %v3836
    %v3838 = vpop.f32.mrf.mxu0
    %v3839 = vadd.f32 0.0, %v3838
    %v3840 = vpop.f32.mrf.mxu0
    %v3841 = vadd.f32 0.0, %v3840
    %v3842 = vpop.f32.mrf.mxu0
    %v3843 = vadd.f32 0.0, %v3842
    %3844 = vmatprep.mubr.bf16.mxu0 0
    %3845 = vmatmul.mubr.bf16.gmra.mxu0 %v3707
    %v3846 = vpop.f32.mrf.mxu0
    %v3847 = vadd.f32 0.0, %v3846
    %v3848 = vpop.f32.mrf.mxu0
    %v3849 = vadd.f32 0.0, %v3848
    %v3850 = vpop.f32.mrf.mxu0
    %v3851 = vadd.f32 0.0, %v3850
    %v3852 = vpop.f32.mrf.mxu0
    %v3853 = vadd.f32 0.0, %v3852
    %3854 = vdwg.mxu0
    %v3855 = vadd.f32 %v361, %v3744
    %v3856 = vadd.f32 %v363, %v3746
    %v3857 = vadd.f32 %v454, %v3817
    %v3858 = vadd.f32 %v456, %v3819
    %v3859 = vadd.f32 %v365, %v3748
    %v3860 = vadd.f32 %v367, %v3750
    %v3861 = vadd.f32 %v458, %v3821
    %v3862 = vadd.f32 %v460, %v3823
    %v3863 = vadd.f32 %v371, %v3754
    %v3864 = vadd.f32 %v373, %v3756
    %v3865 = vadd.f32 %v464, %v3827
    %v3866 = vadd.f32 %v466, %v3829
    %v3867 = vadd.f32 %v375, %v3758
    %v3868 = vadd.f32 %v377, %v3760
    %v3869 = vadd.f32 %v468, %v3831
    %v3870 = vadd.f32 %v470, %v3833
    %3871 = vset.pattern.permute.xlu0 2
    %3872 = vperm.xlu0 %3871, %v196
    %v3873 = vpop.permute.xlu0 %3872
    %3875 = vset.pattern.permute.xlu0 2
    %3876 = vperm.xlu0 %3875, %v197
    %v3877 = vpop.permute.xlu0 %3876
    %3879 = vset.pattern.permute.xlu0 2
    %3880 = vperm.xlu0 %3879, %v198
    %v3881 = vpop.permute.xlu0 %3880
    %3883 = vset.pattern.permute.xlu0 2
    %3884 = vperm.xlu0 %3883, %v199
    %v3885 = vpop.permute.xlu0 %3884
    %v3887 = vadd.f32 %v3855, %v3873
    %v3888 = vadd.f32 %v3856, %v3873
    %v3889 = vadd.f32 %v3857, %v3873
    %v3890 = vadd.f32 %v3858, %v3873
    %v3891 = vadd.f32 %v3859, %v3877
    %v3892 = vadd.f32 %v3860, %v3877
    %v3893 = vadd.f32 %v3861, %v3877
    %v3894 = vadd.f32 %v3862, %v3877
    %v3895 = vadd.f32 %v3863, %v3881
    %v3896 = vadd.f32 %v3864, %v3881
    %v3897 = vadd.f32 %v3865, %v3881
    %v3898 = vadd.f32 %v3866, %v3881
    %v3899 = vadd.f32 %v3867, %v3885
    %v3900 = vadd.f32 %v3868, %v3885
    %v3901 = vadd.f32 %v3869, %v3885
    %v3902 = vadd.f32 %v3870, %v3885
    %v3903 = vmul.f32 %v3887, 0.5
    %v3904 = vmul.f32 %v3888, 0.5
    %v3905 = vmul.f32 %v3889, 0.5
    %v3906 = vmul.f32 %v3890, 0.5
    %v3907 = vmul.f32 %v3891, 0.5
    %v3908 = vmul.f32 %v3892, 0.5
    %v3909 = vmul.f32 %v3893, 0.5
    %v3910 = vmul.f32 %v3894, 0.5
    %v3911 = vmul.f32 %v3895, 0.5
    %v3912 = vmul.f32 %v3896, 0.5
    %v3913 = vmul.f32 %v3897, 0.5
    %v3914 = vmul.f32 %v3898, 0.5
    %v3915 = vmul.f32 %v3899, 0.5
    %v3916 = vmul.f32 %v3900, 0.5
    %v3917 = vmul.f32 %v3901, 0.5
    %v3918 = vmul.f32 %v3902, 0.5
    %v3919 = vtanh.pop %v3903
    %v3920 = vtanh.pop %v3904
    %v3921 = vtanh.pop %v3905
    %v3922 = vtanh.pop %v3906
    %v3923 = vtanh.pop %v3907
    %v3924 = vtanh.pop %v3908
    %v3925 = vtanh.pop %v3909
    %v3926 = vtanh.pop %v3910
    %v3927 = vtanh.pop %v3911
    %v3928 = vtanh.pop %v3912
    %v3929 = vtanh.pop %v3913
    %v3930 = vtanh.pop %v3914
    %v3931 = vtanh.pop %v3915
    %v3932 = vtanh.pop %v3916
    %v3933 = vtanh.pop %v3917
    %v3934 = vtanh.pop %v3918
    %v3935 = vadd.f32 %v3919, 1.0
    %v3936 = vadd.f32 %v3920, 1.0
    %v3937 = vadd.f32 %v3921, 1.0
    %v3938 = vadd.f32 %v3922, 1.0
    %v3939 = vadd.f32 %v3923, 1.0
    %v3940 = vadd.f32 %v3924, 1.0
    %v3941 = vadd.f32 %v3925, 1.0
    %v3942 = vadd.f32 %v3926, 1.0
    %v3943 = vadd.f32 %v3927, 1.0
    %v3944 = vadd.f32 %v3928, 1.0
    %v3945 = vadd.f32 %v3929, 1.0
    %v3946 = vadd.f32 %v3930, 1.0
    %v3947 = vadd.f32 %v3931, 1.0
    %v3948 = vadd.f32 %v3932, 1.0
    %v3949 = vadd.f32 %v3933, 1.0
    %v3950 = vadd.f32 %v3934, 1.0
    %v3951 = vmul.f32 %v3935, 0.5
    %v3952 = vmul.f32 %v3936, 0.5
    %v3953 = vmul.f32 %v3937, 0.5
    %v3954 = vmul.f32 %v3938, 0.5
    %v3955 = vmul.f32 %v3939, 0.5
    %v3956 = vmul.f32 %v3940, 0.5
    %v3957 = vmul.f32 %v3941, 0.5
    %v3958 = vmul.f32 %v3942, 0.5
    %v3959 = vmul.f32 %v3943, 0.5
    %v3960 = vmul.f32 %v3944, 0.5
    %v3961 = vmul.f32 %v3945, 0.5
    %v3962 = vmul.f32 %v3946, 0.5
    %v3963 = vmul.f32 %v3947, 0.5
    %v3964 = vmul.f32 %v3948, 0.5
    %v3965 = vmul.f32 %v3949, 0.5
    %v3966 = vmul.f32 %v3950, 0.5
    %v3967 = vsub.f32 1.0, %v3951
    %v3968 = vsub.f32 1.0, %v3952
    %v3969 = vsub.f32 1.0, %v3953
    %v3970 = vsub.f32 1.0, %v3954
    %v3971 = vsub.f32 1.0, %v3955
    %v3972 = vsub.f32 1.0, %v3956
    %v3973 = vsub.f32 1.0, %v3957
    %v3974 = vsub.f32 1.0, %v3958
    %v3975 = vsub.f32 1.0, %v3959
    %v3976 = vsub.f32 1.0, %v3960
    %v3977 = vsub.f32 1.0, %v3961
    %v3978 = vsub.f32 1.0, %v3962
    %v3979 = vsub.f32 1.0, %v3963
    %v3980 = vsub.f32 1.0, %v3964
    %v3981 = vsub.f32 1.0, %v3965
    %v3982 = vsub.f32 1.0, %v3966
    %v3983 = vmul.f32 %v3967, %v176
    %v3984 = vmul.f32 %v3968, %v177
    %v3985 = vmul.f32 %v3969, %v178
    %v3986 = vmul.f32 %v3970, %v179
    %v3987 = vmul.f32 %v3971, %v180
    %v3988 = vmul.f32 %v3972, %v181
    %v3989 = vmul.f32 %v3973, %v182
    %v3990 = vmul.f32 %v3974, %v183
    %v3991 = vmul.f32 %v3975, %v184
    %v3992 = vmul.f32 %v3976, %v185
    %v3993 = vmul.f32 %v3977, %v186
    %v3994 = vmul.f32 %v3978, %v187
    %v3995 = vmul.f32 %v3979, %v188
    %v3996 = vmul.f32 %v3980, %v189
    %v3997 = vmul.f32 %v3981, %v190
    %v3998 = vmul.f32 %v3982, %v191
    %v3999 = vmul.f32 %v3951, %v3636
    %v4000 = vmul.f32 %v3952, %v3637
    %v4001 = vmul.f32 %v3953, %v3638
    %v4002 = vmul.f32 %v3954, %v3639
    %v4003 = vmul.f32 %v3955, %v3640
    %v4004 = vmul.f32 %v3956, %v3641
    %v4005 = vmul.f32 %v3957, %v3642
    %v4006 = vmul.f32 %v3958, %v3643
    %v4007 = vmul.f32 %v3959, %v3644
    %v4008 = vmul.f32 %v3960, %v3645
    %v4009 = vmul.f32 %v3961, %v3646
    %v4010 = vmul.f32 %v3962, %v3647
    %v4011 = vmul.f32 %v3963, %v3648
    %v4012 = vmul.f32 %v3964, %v3649
    %v4013 = vmul.f32 %v3965, %v3650
    %v4014 = vmul.f32 %v3966, %v3651
    %v4015 = vadd.f32 %v3983, %v3999
    %v4016 = vadd.f32 %v3984, %v4000
    %v4017 = vadd.f32 %v3985, %v4001
    %v4018 = vadd.f32 %v3986, %v4002
    %v4019 = vadd.f32 %v3987, %v4003
    %v4020 = vadd.f32 %v3988, %v4004
    %v4021 = vadd.f32 %v3989, %v4005
    %v4022 = vadd.f32 %v3990, %v4006
    %v4023 = vadd.f32 %v3991, %v4007
    %v4024 = vadd.f32 %v3992, %v4008
    %v4025 = vadd.f32 %v3993, %v4009
    %v4026 = vadd.f32 %v3994, %v4010
    %v4027 = vadd.f32 %v3995, %v4011
    %v4028 = vadd.f32 %v3996, %v4012
    %v4029 = vadd.f32 %v3997, %v4013
    %v4030 = vadd.f32 %v3998, %v4014
    %4031 = vset.pattern.permute.xlu0 3
    %4032 = vperm.xlu0 %4031, %v196
    %v4033 = vpop.permute.xlu0 %4032
    %4035 = vset.pattern.permute.xlu0 3
    %4036 = vperm.xlu0 %4035, %v197
    %v4037 = vpop.permute.xlu0 %4036
    %4039 = vset.pattern.permute.xlu0 3
    %4040 = vperm.xlu0 %4039, %v198
    %v4041 = vpop.permute.xlu0 %4040
    %4043 = vset.pattern.permute.xlu0 3
    %4044 = vperm.xlu0 %4043, %v199
    %v4045 = vpop.permute.xlu0 %4044
    %v4047 = vadd.f32 %v3764, %v4033
    %v4048 = vadd.f32 %v3766, %v4033
    %v4049 = vadd.f32 %v3837, %v4033
    %v4050 = vadd.f32 %v3839, %v4033
    %v4051 = vadd.f32 %v3768, %v4037
    %v4052 = vadd.f32 %v3770, %v4037
    %v4053 = vadd.f32 %v3841, %v4037
    %v4054 = vadd.f32 %v3843, %v4037
    %v4055 = vadd.f32 %v3774, %v4041
    %v4056 = vadd.f32 %v3776, %v4041
    %v4057 = vadd.f32 %v3847, %v4041
    %v4058 = vadd.f32 %v3849, %v4041
    %v4059 = vadd.f32 %v3778, %v4045
    %v4060 = vadd.f32 %v3780, %v4045
    %v4061 = vadd.f32 %v3851, %v4045
    %v4062 = vadd.f32 %v3853, %v4045
    %v4063 = vmul.f32 %v4047, 0.5
    %v4064 = vmul.f32 %v4048, 0.5
    %v4065 = vmul.f32 %v4049, 0.5
    %v4066 = vmul.f32 %v4050, 0.5
    %v4067 = vmul.f32 %v4051, 0.5
    %v4068 = vmul.f32 %v4052, 0.5
    %v4069 = vmul.f32 %v4053, 0.5
    %v4070 = vmul.f32 %v4054, 0.5
    %v4071 = vmul.f32 %v4055, 0.5
    %v4072 = vmul.f32 %v4056, 0.5
    %v4073 = vmul.f32 %v4057, 0.5
    %v4074 = vmul.f32 %v4058, 0.5
    %v4075 = vmul.f32 %v4059, 0.5
    %v4076 = vmul.f32 %v4060, 0.5
    %v4077 = vmul.f32 %v4061, 0.5
    %v4078 = vmul.f32 %v4062, 0.5
    %v4079 = vtanh.pop %v4063
    %v4080 = vtanh.pop %v4064
    %v4081 = vtanh.pop %v4065
    %v4082 = vtanh.pop %v4066
    %v4083 = vtanh.pop %v4067
    %v4084 = vtanh.pop %v4068
    %v4085 = vtanh.pop %v4069
    %v4086 = vtanh.pop %v4070
    %v4087 = vtanh.pop %v4071
    %v4088 = vtanh.pop %v4072
    %v4089 = vtanh.pop %v4073
    %v4090 = vtanh.pop %v4074
    %v4091 = vtanh.pop %v4075
    %v4092 = vtanh.pop %v4076
    %v4093 = vtanh.pop %v4077
    %v4094 = vtanh.pop %v4078
    %v4095 = vadd.f32 %v4079, 1.0
    %v4096 = vadd.f32 %v4080, 1.0
    %v4097 = vadd.f32 %v4081, 1.0
    %v4098 = vadd.f32 %v4082, 1.0
    %v4099 = vadd.f32 %v4083, 1.0
    %v4100 = vadd.f32 %v4084, 1.0
    %v4101 = vadd.f32 %v4085, 1.0
    %v4102 = vadd.f32 %v4086, 1.0
    %v4103 = vadd.f32 %v4087, 1.0
    %v4104 = vadd.f32 %v4088, 1.0
    %v4105 = vadd.f32 %v4089, 1.0
    %v4106 = vadd.f32 %v4090, 1.0
    %v4107 = vadd.f32 %v4091, 1.0
    %v4108 = vadd.f32 %v4092, 1.0
    %v4109 = vadd.f32 %v4093, 1.0
    %v4110 = vadd.f32 %v4094, 1.0
    %v4111 = vmul.f32 %v4095, 0.5
    %v4112 = vmul.f32 %v4096, 0.5
    %v4113 = vmul.f32 %v4097, 0.5
    %v4114 = vmul.f32 %v4098, 0.5
    %v4115 = vmul.f32 %v4099, 0.5
    %v4116 = vmul.f32 %v4100, 0.5
    %v4117 = vmul.f32 %v4101, 0.5
    %v4118 = vmul.f32 %v4102, 0.5
    %v4119 = vmul.f32 %v4103, 0.5
    %v4120 = vmul.f32 %v4104, 0.5
    %v4121 = vmul.f32 %v4105, 0.5
    %v4122 = vmul.f32 %v4106, 0.5
    %v4123 = vmul.f32 %v4107, 0.5
    %v4124 = vmul.f32 %v4108, 0.5
    %v4125 = vmul.f32 %v4109, 0.5
    %v4126 = vmul.f32 %v4110, 0.5
    %4127 = vst [vmem:[#allocation3 + $0x8] sm:$0xff] %v4015
    %4128 = vst [vmem:[#allocation3 + $0x10] sm:$0xff] %v4016
    %4129 = vst [vmem:[#allocation3 + $0x18] sm:$0xff] %v4017
    %4130 = vst [vmem:[#allocation3 + $0x20] sm:$0xff] %v4018
    %4131 = vst [vmem:[#allocation3 + $0x38] sm:$0xff] %v4019
    %4132 = vst [vmem:[#allocation3 + $0x40] sm:$0xff] %v4020
    %4133 = vst [vmem:[#allocation3 + $0x48] sm:$0xff] %v4021
    %4134 = vst [vmem:[#allocation3 + $0x50] sm:$0xff] %v4022
    %4135 = vst [vmem:[#allocation3 + $0x68] sm:$0xff] %v4023
    %4136 = vst [vmem:[#allocation3 + $0x70] sm:$0xff] %v4024
    %4137 = vst [vmem:[#allocation3 + $0x78] sm:$0xff] %v4025
    %4138 = vst [vmem:[#allocation3 + $0x80] sm:$0xff] %v4026
    %4139 = vst [vmem:[#allocation3 + $0x98] sm:$0xff] %v4027
    %4140 = vst [vmem:[#allocation3 + $0xa0] sm:$0xff] %v4028
    %4141 = vst [vmem:[#allocation3 + $0xa8] sm:$0xff] %v4029
    %4142 = vst [vmem:[#allocation3 + $0xb0] sm:$0xff] %v4030
    %v4143 = vld [vmem:[#allocation3] sm:$0xff]
    %v4144 = vld [vmem:[#allocation3 + $0x8] sm:$0xff]
    %v4145 = vld [vmem:[#allocation3 + $0x10] sm:$0xff]
    %v4146 = vld [vmem:[#allocation3 + $0x18] sm:$0xff]
    %v4147 = vld [vmem:[#allocation3 + $0x20] sm:$0xff]
    %v4148 = vld [vmem:[#allocation3 + $0x30] sm:$0xff]
    %v4149 = vld [vmem:[#allocation3 + $0x38] sm:$0xff]
    %v4150 = vld [vmem:[#allocation3 + $0x40] sm:$0xff]
    %v4151 = vld [vmem:[#allocation3 + $0x48] sm:$0xff]
    %v4152 = vld [vmem:[#allocation3 + $0x50] sm:$0xff]
    %v4153 = vld [vmem:[#allocation3 + $0x60] sm:$0xff]
    %v4154 = vld [vmem:[#allocation3 + $0x68] sm:$0xff]
    %v4155 = vld [vmem:[#allocation3 + $0x70] sm:$0xff]
    %v4156 = vld [vmem:[#allocation3 + $0x78] sm:$0xff]
    %v4157 = vld [vmem:[#allocation3 + $0x80] sm:$0xff]
    %v4158 = vld [vmem:[#allocation3 + $0x90] sm:$0xff]
    %v4159 = vld [vmem:[#allocation3 + $0x98] sm:$0xff]
    %v4160 = vld [vmem:[#allocation3 + $0xa0] sm:$0xff]
    %v4161 = vld [vmem:[#allocation3 + $0xa8] sm:$0xff]
    %v4162 = vld [vmem:[#allocation3 + $0xb0] sm:$0xff]
    %v4163 = vld [vmem:[%s7] ss:$8 sm:$0xf]
    %v4165 = vlaneseq
    %v4166 = vshrl.u32 %v4165, 7
    %v4167 = vsub.s32 0, %v4166
    %v4168 = vrot.slane %v4163, %v4167
    %v4169 = vlaneseq
    %v4170 = vshrl.u32 %v4169, 7
    %v4171 = vsub.s32 1, %v4170
    %v4172 = vrot.slane %v4163, %v4171
    %v4173 = vlaneseq
    %v4174 = vshrl.u32 %v4173, 7
    %v4175 = vsub.s32 2, %v4174
    %v4176 = vrot.slane %v4163, %v4175
    %v4177 = vlaneseq
    %v4178 = vshrl.u32 %v4177, 7
    %v4179 = vsub.s32 3, %v4178
    %v4180 = vrot.slane %v4163, %v4179
    %4181 = vrot.lane.b32.xlu0 %v4168, 111
    %v4182 = vpop.permute.xlu0 %4181
    %4183 = vrot.lane.b32.xlu0 %v4172, 111
    %v4184 = vpop.permute.xlu0 %4183
    %4185 = vrot.lane.b32.xlu0 %v4176, 111
    %v4186 = vpop.permute.xlu0 %4185
    %4187 = vrot.lane.b32.xlu0 %v4180, 111
    %v4188 = vpop.permute.xlu0 %4187
    %v4189 = vsel %vm650, %v4182, %v4184
    %v4190 = vsel %vm650, %v4184, %v4186
    %v4191 = vsel %vm650, %v4186, %v4188
    %v4197 = vmul.f32 %v4143, %v4182
    %v4198 = vmul.f32 %v4144, %v4189
    %v4199 = vmul.f32 %v4145, %v4190
    %v4200 = vmul.f32 %v4146, %v4191
    %v4201 = vmul.f32 %v4147, %v4188
    %v4202 = vmul.f32 %v4148, %v4182
    %v4203 = vmul.f32 %v4149, %v4189
    %v4204 = vmul.f32 %v4150, %v4190
    %v4205 = vmul.f32 %v4151, %v4191
    %v4206 = vmul.f32 %v4152, %v4188
    %v4207 = vmul.f32 %v4153, %v4182
    %v4208 = vmul.f32 %v4154, %v4189
    %v4209 = vmul.f32 %v4155, %v4190
    %v4210 = vmul.f32 %v4156, %v4191
    %v4211 = vmul.f32 %v4157, %v4188
    %v4212 = vmul.f32 %v4158, %v4182
    %v4213 = vmul.f32 %v4159, %v4189
    %v4214 = vmul.f32 %v4160, %v4190
    %v4215 = vmul.f32 %v4161, %v4191
    %v4216 = vmul.f32 %v4162, %v4188
    %v4217 = vpack.c.bf16 %v4202, %v4197
    %v4218 = vpack.c.bf16 %v4203, %v4198
    %v4219 = vpack.c.bf16 %v4204, %v4199
    %v4220 = vpack.c.bf16 %v4205, %v4200
    %v4221 = vpack.c.bf16 %v4206, %v4201
    %v4222 = vpack.c.bf16 %v4212, %v4207
    %v4223 = vpack.c.bf16 %v4213, %v4208
    %v4224 = vpack.c.bf16 %v4214, %v4209
    %v4225 = vpack.c.bf16 %v4215, %v4210
    %v4226 = vpack.c.bf16 %v4216, %v4211
    %v4237 = vunpack.c.l.b16 %v4217
    %v4238 = vunpack.c.l.b16 %v4218
    %v4239 = vunpack.c.l.b16 %v4219
    %v4240 = vunpack.c.l.b16 %v4220
    %v4241 = vunpack.c.l.b16 %v4221
    %v4242 = vunpack.c.h.b16 %v4217
    %v4243 = vunpack.c.h.b16 %v4218
    %v4244 = vunpack.c.h.b16 %v4219
    %v4245 = vunpack.c.h.b16 %v4220
    %v4246 = vunpack.c.h.b16 %v4221
    %v4247 = vunpack.c.l.b16 %v4222
    %v4248 = vunpack.c.l.b16 %v4223
    %v4249 = vunpack.c.l.b16 %v4224
    %v4250 = vunpack.c.l.b16 %v4225
    %v4251 = vunpack.c.l.b16 %v4226
    %v4252 = vunpack.c.h.b16 %v4222
    %v4253 = vunpack.c.h.b16 %v4223
    %v4254 = vunpack.c.h.b16 %v4224
    %v4255 = vunpack.c.h.b16 %v4225
    %v4256 = vunpack.c.h.b16 %v4226
    %v4257 = vpack.c.b16 %v4238, %v4237
    %v4258 = vpack.c.b16 %v4240, %v4239
    %v4259 = vpack.c.b16 %v4241, %v4241
    %v4260 = vpack.c.b16 %v4243, %v4242
    %v4261 = vpack.c.b16 %v4245, %v4244
    %v4262 = vpack.c.b16 %v4246, %v4246
    %v4263 = vpack.c.b16 %v4248, %v4247
    %v4264 = vpack.c.b16 %v4250, %v4249
    %v4265 = vpack.c.b16 %v4251, %v4251
    %v4266 = vpack.c.b16 %v4253, %v4252
    %v4267 = vpack.c.b16 %v4255, %v4254
    %v4268 = vpack.c.b16 %v4256, %v4256
    %4269 = vrot.lane.b32.xlu0 %v4257, 17
    %v4270 = vpop.permute.xlu0 %4269
    %4271 = vrot.lane.b32.xlu0 %v4258, 17
    %v4272 = vpop.permute.xlu0 %4271
    %4273 = vrot.lane.b32.xlu0 %v4259, 17
    %v4274 = vpop.permute.xlu0 %4273
    %4275 = vrot.lane.b32.xlu0 %v4260, 17
    %v4276 = vpop.permute.xlu0 %4275
    %4277 = vrot.lane.b32.xlu0 %v4261, 17
    %v4278 = vpop.permute.xlu0 %4277
    %4279 = vrot.lane.b32.xlu0 %v4262, 17
    %v4280 = vpop.permute.xlu0 %4279
    %4281 = vrot.lane.b32.xlu0 %v4263, 17
    %v4282 = vpop.permute.xlu0 %4281
    %4283 = vrot.lane.b32.xlu0 %v4264, 17
    %v4284 = vpop.permute.xlu0 %4283
    %4285 = vrot.lane.b32.xlu0 %v4265, 17
    %v4286 = vpop.permute.xlu0 %4285
    %4287 = vrot.lane.b32.xlu0 %v4266, 17
    %v4288 = vpop.permute.xlu0 %4287
    %4289 = vrot.lane.b32.xlu0 %v4267, 17
    %v4290 = vpop.permute.xlu0 %4289
    %4291 = vrot.lane.b32.xlu0 %v4268, 17
    %v4292 = vpop.permute.xlu0 %4291
    %v4293 = vrot.slane %v4270, 4
    %v4294 = vrot.slane %v4272, 4
    %v4295 = vrot.slane %v4274, 4
    %v4296 = vrot.slane %v4276, 4
    %v4297 = vrot.slane %v4278, 4
    %v4298 = vrot.slane %v4280, 4
    %v4299 = vrot.slane %v4282, 4
    %v4300 = vrot.slane %v4284, 4
    %v4301 = vrot.slane %v4286, 4
    %v4302 = vrot.slane %v4288, 4
    %v4303 = vrot.slane %v4290, 4
    %v4304 = vrot.slane %v4292, 4
    %v4305 = vsel %vm767, %v4293, %v4294
    %v4306 = vsel %vm769, %v4270, %v4305
    %v4307 = vsel %vm767, %v4294, %v4295
    %v4308 = vsel %vm769, %v4272, %v4307
    %v4309 = vsel %vm767, %v4296, %v4297
    %v4310 = vsel %vm769, %v4276, %v4309
    %v4311 = vsel %vm767, %v4297, %v4298
    %v4312 = vsel %vm769, %v4278, %v4311
    %v4313 = vsel %vm767, %v4299, %v4300
    %v4314 = vsel %vm769, %v4282, %v4313
    %v4315 = vsel %vm767, %v4300, %v4301
    %v4316 = vsel %vm769, %v4284, %v4315
    %v4317 = vsel %vm767, %v4302, %v4303
    %v4318 = vsel %vm769, %v4288, %v4317
    %v4319 = vsel %vm767, %v4303, %v4304
    %v4320 = vsel %vm769, %v4290, %v4319
    %4329 = vst [vmem:[#allocation4] sm:$0xff] %v4306
    %4330 = vst [vmem:[#allocation4 + $0x8] sm:$0xff] %v4308
    %4331 = vst [vmem:[#allocation4 + $0x10] sm:$0xff] %v4310
    %4332 = vst [vmem:[#allocation4 + $0x18] sm:$0xff] %v4312
    %4333 = vst [vmem:[#allocation4 + $0x20] sm:$0xff] %v4314
    %4334 = vst [vmem:[#allocation4 + $0x28] sm:$0xff] %v4316
    %4335 = vst [vmem:[#allocation4 + $0x30] sm:$0xff] %v4318
    %4336 = vst [vmem:[#allocation4 + $0x38] sm:$0xff] %v4320
    %v4337 = vld [vmem:[#allocation3] sm:$0xff]
    %v4338 = vld [vmem:[#allocation3 + $0x8] sm:$0xff]
    %v4339 = vld [vmem:[#allocation3 + $0x10] sm:$0xff]
    %v4340 = vld [vmem:[#allocation3 + $0x18] sm:$0xff]
    %v4341 = vld [vmem:[#allocation3 + $0x20] sm:$0xff]
    %v4342 = vld [vmem:[#allocation3 + $0x30] sm:$0xff]
    %v4343 = vld [vmem:[#allocation3 + $0x38] sm:$0xff]
    %v4344 = vld [vmem:[#allocation3 + $0x40] sm:$0xff]
    %v4345 = vld [vmem:[#allocation3 + $0x48] sm:$0xff]
    %v4346 = vld [vmem:[#allocation3 + $0x50] sm:$0xff]
    %v4347 = vld [vmem:[#allocation3 + $0x60] sm:$0xff]
    %v4348 = vld [vmem:[#allocation3 + $0x68] sm:$0xff]
    %v4349 = vld [vmem:[#allocation3 + $0x70] sm:$0xff]
    %v4350 = vld [vmem:[#allocation3 + $0x78] sm:$0xff]
    %v4351 = vld [vmem:[#allocation3 + $0x80] sm:$0xff]
    %v4352 = vld [vmem:[#allocation3 + $0x90] sm:$0xff]
    %v4353 = vld [vmem:[#allocation3 + $0x98] sm:$0xff]
    %v4354 = vld [vmem:[#allocation3 + $0xa0] sm:$0xff]
    %v4355 = vld [vmem:[#allocation3 + $0xa8] sm:$0xff]
    %v4356 = vld [vmem:[#allocation3 + $0xb0] sm:$0xff]
    %v4357 = vld [vmem:[%s821] ss:$8 sm:$0xf]
    %v4359 = vlaneseq
    %v4360 = vshrl.u32 %v4359, 7
    %v4361 = vsub.s32 0, %v4360
    %v4362 = vrot.slane %v4357, %v4361
    %v4363 = vlaneseq
    %v4364 = vshrl.u32 %v4363, 7
    %v4365 = vsub.s32 1, %v4364
    %v4366 = vrot.slane %v4357, %v4365
    %v4367 = vlaneseq
    %v4368 = vshrl.u32 %v4367, 7
    %v4369 = vsub.s32 2, %v4368
    %v4370 = vrot.slane %v4357, %v4369
    %v4371 = vlaneseq
    %v4372 = vshrl.u32 %v4371, 7
    %v4373 = vsub.s32 3, %v4372
    %v4374 = vrot.slane %v4357, %v4373
    %4375 = vrot.lane.b32.xlu0 %v4362, 112
    %v4376 = vpop.permute.xlu0 %4375
    %4377 = vrot.lane.b32.xlu0 %v4366, 112
    %v4378 = vpop.permute.xlu0 %4377
    %4379 = vrot.lane.b32.xlu0 %v4370, 112
    %v4380 = vpop.permute.xlu0 %4379
    %4381 = vrot.lane.b32.xlu0 %v4374, 112
    %v4382 = vpop.permute.xlu0 %4381
    %v4383 = vsel %vm848, %v4376, %v4378
    %v4384 = vsel %vm848, %v4378, %v4380
    %v4385 = vsel %vm848, %v4380, %v4382
    %v4391 = vmul.f32 %v4337, %v4376
    %v4392 = vmul.f32 %v4338, %v4383
    %v4393 = vmul.f32 %v4339, %v4384
    %v4394 = vmul.f32 %v4340, %v4385
    %v4395 = vmul.f32 %v4341, %v4382
    %v4396 = vmul.f32 %v4342, %v4376
    %v4397 = vmul.f32 %v4343, %v4383
    %v4398 = vmul.f32 %v4344, %v4384
    %v4399 = vmul.f32 %v4345, %v4385
    %v4400 = vmul.f32 %v4346, %v4382
    %v4401 = vmul.f32 %v4347, %v4376
    %v4402 = vmul.f32 %v4348, %v4383
    %v4403 = vmul.f32 %v4349, %v4384
    %v4404 = vmul.f32 %v4350, %v4385
    %v4405 = vmul.f32 %v4351, %v4382
    %v4406 = vmul.f32 %v4352, %v4376
    %v4407 = vmul.f32 %v4353, %v4383
    %v4408 = vmul.f32 %v4354, %v4384
    %v4409 = vmul.f32 %v4355, %v4385
    %v4410 = vmul.f32 %v4356, %v4382
    %v4411 = vpack.c.bf16 %v4396, %v4391
    %v4412 = vpack.c.bf16 %v4397, %v4392
    %v4413 = vpack.c.bf16 %v4398, %v4393
    %v4414 = vpack.c.bf16 %v4399, %v4394
    %v4415 = vpack.c.bf16 %v4400, %v4395
    %v4416 = vpack.c.bf16 %v4406, %v4401
    %v4417 = vpack.c.bf16 %v4407, %v4402
    %v4418 = vpack.c.bf16 %v4408, %v4403
    %v4419 = vpack.c.bf16 %v4409, %v4404
    %v4420 = vpack.c.bf16 %v4410, %v4405
    %v4431 = vunpack.c.l.b16 %v4411
    %v4432 = vunpack.c.l.b16 %v4412
    %v4433 = vunpack.c.l.b16 %v4413
    %v4434 = vunpack.c.l.b16 %v4414
    %v4435 = vunpack.c.l.b16 %v4415
    %v4436 = vunpack.c.h.b16 %v4411
    %v4437 = vunpack.c.h.b16 %v4412
    %v4438 = vunpack.c.h.b16 %v4413
    %v4439 = vunpack.c.h.b16 %v4414
    %v4440 = vunpack.c.h.b16 %v4415
    %v4441 = vunpack.c.l.b16 %v4416
    %v4442 = vunpack.c.l.b16 %v4417
    %v4443 = vunpack.c.l.b16 %v4418
    %v4444 = vunpack.c.l.b16 %v4419
    %v4445 = vunpack.c.l.b16 %v4420
    %v4446 = vunpack.c.h.b16 %v4416
    %v4447 = vunpack.c.h.b16 %v4417
    %v4448 = vunpack.c.h.b16 %v4418
    %v4449 = vunpack.c.h.b16 %v4419
    %v4450 = vunpack.c.h.b16 %v4420
    %v4451 = vpack.c.b16 %v4432, %v4431
    %v4452 = vpack.c.b16 %v4434, %v4433
    %v4453 = vpack.c.b16 %v4435, %v4435
    %v4454 = vpack.c.b16 %v4437, %v4436
    %v4455 = vpack.c.b16 %v4439, %v4438
    %v4456 = vpack.c.b16 %v4440, %v4440
    %v4457 = vpack.c.b16 %v4442, %v4441
    %v4458 = vpack.c.b16 %v4444, %v4443
    %v4459 = vpack.c.b16 %v4445, %v4445
    %v4460 = vpack.c.b16 %v4447, %v4446
    %v4461 = vpack.c.b16 %v4449, %v4448
    %v4462 = vpack.c.b16 %v4450, %v4450
    %4463 = vrot.lane.b32.xlu0 %v4451, 16
    %v4464 = vpop.permute.xlu0 %4463
    %4465 = vrot.lane.b32.xlu0 %v4452, 16
    %v4466 = vpop.permute.xlu0 %4465
    %4467 = vrot.lane.b32.xlu0 %v4453, 16
    %v4468 = vpop.permute.xlu0 %4467
    %4469 = vrot.lane.b32.xlu0 %v4454, 16
    %v4470 = vpop.permute.xlu0 %4469
    %4471 = vrot.lane.b32.xlu0 %v4455, 16
    %v4472 = vpop.permute.xlu0 %4471
    %4473 = vrot.lane.b32.xlu0 %v4456, 16
    %v4474 = vpop.permute.xlu0 %4473
    %4475 = vrot.lane.b32.xlu0 %v4457, 16
    %v4476 = vpop.permute.xlu0 %4475
    %4477 = vrot.lane.b32.xlu0 %v4458, 16
    %v4478 = vpop.permute.xlu0 %4477
    %4479 = vrot.lane.b32.xlu0 %v4459, 16
    %v4480 = vpop.permute.xlu0 %4479
    %4481 = vrot.lane.b32.xlu0 %v4460, 16
    %v4482 = vpop.permute.xlu0 %4481
    %4483 = vrot.lane.b32.xlu0 %v4461, 16
    %v4484 = vpop.permute.xlu0 %4483
    %4485 = vrot.lane.b32.xlu0 %v4462, 16
    %v4486 = vpop.permute.xlu0 %4485
    %v4487 = vrot.slane %v4464, 4
    %v4488 = vrot.slane %v4466, 4
    %v4489 = vrot.slane %v4468, 4
    %v4490 = vrot.slane %v4470, 4
    %v4491 = vrot.slane %v4472, 4
    %v4492 = vrot.slane %v4474, 4
    %v4493 = vrot.slane %v4476, 4
    %v4494 = vrot.slane %v4478, 4
    %v4495 = vrot.slane %v4480, 4
    %v4496 = vrot.slane %v4482, 4
    %v4497 = vrot.slane %v4484, 4
    %v4498 = vrot.slane %v4486, 4
    %v4499 = vsel %vm767, %v4487, %v4488
    %v4500 = vsel %vm966, %v4464, %v4499
    %v4501 = vsel %vm767, %v4488, %v4489
    %v4502 = vsel %vm966, %v4466, %v4501
    %v4503 = vsel %vm767, %v4490, %v4491
    %v4504 = vsel %vm966, %v4470, %v4503
    %v4505 = vsel %vm767, %v4491, %v4492
    %v4506 = vsel %vm966, %v4472, %v4505
    %v4507 = vsel %vm767, %v4493, %v4494
    %v4508 = vsel %vm966, %v4476, %v4507
    %v4509 = vsel %vm767, %v4494, %v4495
    %v4510 = vsel %vm966, %v4478, %v4509
    %v4511 = vsel %vm767, %v4496, %v4497
    %v4512 = vsel %vm966, %v4482, %v4511
    %v4513 = vsel %vm767, %v4497, %v4498
    %v4514 = vsel %vm966, %v4484, %v4513
    %4523 = vst [vmem:[#allocation4 + $0x40] sm:$0xff] %v4500
    %4524 = vst [vmem:[#allocation4 + $0x48] sm:$0xff] %v4502
    %4525 = vst [vmem:[#allocation4 + $0x50] sm:$0xff] %v4504
    %4526 = vst [vmem:[#allocation4 + $0x58] sm:$0xff] %v4506
    %4527 = vst [vmem:[#allocation4 + $0x60] sm:$0xff] %v4508
    %4528 = vst [vmem:[#allocation4 + $0x68] sm:$0xff] %v4510
    %4529 = vst [vmem:[#allocation4 + $0x70] sm:$0xff] %v4512
    %4530 = vst [vmem:[#allocation4 + $0x78] sm:$0xff] %v4514
    %v4531 = vld [vmem:[#allocation3] sm:$0xff]
    %v4532 = vld [vmem:[#allocation3 + $0x8] sm:$0xff]
    %v4533 = vld [vmem:[#allocation3 + $0x10] sm:$0xff]
    %v4534 = vld [vmem:[#allocation3 + $0x18] sm:$0xff]
    %v4535 = vld [vmem:[#allocation3 + $0x20] sm:$0xff]
    %v4536 = vld [vmem:[#allocation3 + $0x30] sm:$0xff]
    %v4537 = vld [vmem:[#allocation3 + $0x38] sm:$0xff]
    %v4538 = vld [vmem:[#allocation3 + $0x40] sm:$0xff]
    %v4539 = vld [vmem:[#allocation3 + $0x48] sm:$0xff]
    %v4540 = vld [vmem:[#allocation3 + $0x50] sm:$0xff]
    %v4541 = vld [vmem:[#allocation3 + $0x60] sm:$0xff]
    %v4542 = vld [vmem:[#allocation3 + $0x68] sm:$0xff]
    %v4543 = vld [vmem:[#allocation3 + $0x70] sm:$0xff]
    %v4544 = vld [vmem:[#allocation3 + $0x78] sm:$0xff]
    %v4545 = vld [vmem:[#allocation3 + $0x80] sm:$0xff]
    %v4546 = vld [vmem:[#allocation3 + $0x90] sm:$0xff]
    %v4547 = vld [vmem:[#allocation3 + $0x98] sm:$0xff]
    %v4548 = vld [vmem:[#allocation3 + $0xa0] sm:$0xff]
    %v4549 = vld [vmem:[#allocation3 + $0xa8] sm:$0xff]
    %v4550 = vld [vmem:[#allocation3 + $0xb0] sm:$0xff]
    %v4551 = vld [vmem:[%s1018] ss:$8 sm:$0xf]
    %v4553 = vlaneseq
    %v4554 = vshrl.u32 %v4553, 7
    %v4555 = vsub.s32 0, %v4554
    %v4556 = vrot.slane %v4551, %v4555
    %v4557 = vlaneseq
    %v4558 = vshrl.u32 %v4557, 7
    %v4559 = vsub.s32 1, %v4558
    %v4560 = vrot.slane %v4551, %v4559
    %v4561 = vlaneseq
    %v4562 = vshrl.u32 %v4561, 7
    %v4563 = vsub.s32 2, %v4562
    %v4564 = vrot.slane %v4551, %v4563
    %v4565 = vlaneseq
    %v4566 = vshrl.u32 %v4565, 7
    %v4567 = vsub.s32 3, %v4566
    %v4568 = vrot.slane %v4551, %v4567
    %4569 = vrot.lane.b32.xlu0 %v4556, 113
    %v4570 = vpop.permute.xlu0 %4569
    %4571 = vrot.lane.b32.xlu0 %v4560, 113
    %v4572 = vpop.permute.xlu0 %4571
    %4573 = vrot.lane.b32.xlu0 %v4564, 113
    %v4574 = vpop.permute.xlu0 %4573
    %4575 = vrot.lane.b32.xlu0 %v4568, 113
    %v4576 = vpop.permute.xlu0 %4575
    %v4577 = vsel %vm1045, %v4570, %v4572
    %v4578 = vsel %vm1045, %v4572, %v4574
    %v4579 = vsel %vm1045, %v4574, %v4576
    %v4585 = vmul.f32 %v4531, %v4570
    %v4586 = vmul.f32 %v4532, %v4577
    %v4587 = vmul.f32 %v4533, %v4578
    %v4588 = vmul.f32 %v4534, %v4579
    %v4589 = vmul.f32 %v4535, %v4576
    %v4590 = vmul.f32 %v4536, %v4570
    %v4591 = vmul.f32 %v4537, %v4577
    %v4592 = vmul.f32 %v4538, %v4578
    %v4593 = vmul.f32 %v4539, %v4579
    %v4594 = vmul.f32 %v4540, %v4576
    %v4595 = vmul.f32 %v4541, %v4570
    %v4596 = vmul.f32 %v4542, %v4577
    %v4597 = vmul.f32 %v4543, %v4578
    %v4598 = vmul.f32 %v4544, %v4579
    %v4599 = vmul.f32 %v4545, %v4576
    %v4600 = vmul.f32 %v4546, %v4570
    %v4601 = vmul.f32 %v4547, %v4577
    %v4602 = vmul.f32 %v4548, %v4578
    %v4603 = vmul.f32 %v4549, %v4579
    %v4604 = vmul.f32 %v4550, %v4576
    %v4605 = vpack.c.bf16 %v4590, %v4585
    %v4606 = vpack.c.bf16 %v4591, %v4586
    %v4607 = vpack.c.bf16 %v4592, %v4587
    %v4608 = vpack.c.bf16 %v4593, %v4588
    %v4609 = vpack.c.bf16 %v4594, %v4589
    %v4610 = vpack.c.bf16 %v4600, %v4595
    %v4611 = vpack.c.bf16 %v4601, %v4596
    %v4612 = vpack.c.bf16 %v4602, %v4597
    %v4613 = vpack.c.bf16 %v4603, %v4598
    %v4614 = vpack.c.bf16 %v4604, %v4599
    %v4625 = vunpack.c.l.b16 %v4605
    %v4626 = vunpack.c.l.b16 %v4606
    %v4627 = vunpack.c.l.b16 %v4607
    %v4628 = vunpack.c.l.b16 %v4608
    %v4629 = vunpack.c.l.b16 %v4609
    %v4630 = vunpack.c.h.b16 %v4605
    %v4631 = vunpack.c.h.b16 %v4606
    %v4632 = vunpack.c.h.b16 %v4607
    %v4633 = vunpack.c.h.b16 %v4608
    %v4634 = vunpack.c.h.b16 %v4609
    %v4635 = vunpack.c.l.b16 %v4610
    %v4636 = vunpack.c.l.b16 %v4611
    %v4637 = vunpack.c.l.b16 %v4612
    %v4638 = vunpack.c.l.b16 %v4613
    %v4639 = vunpack.c.l.b16 %v4614
    %v4640 = vunpack.c.h.b16 %v4610
    %v4641 = vunpack.c.h.b16 %v4611
    %v4642 = vunpack.c.h.b16 %v4612
    %v4643 = vunpack.c.h.b16 %v4613
    %v4644 = vunpack.c.h.b16 %v4614
    %v4645 = vpack.c.b16 %v4626, %v4625
    %v4646 = vpack.c.b16 %v4628, %v4627
    %v4647 = vpack.c.b16 %v4629, %v4629
    %v4648 = vpack.c.b16 %v4631, %v4630
    %v4649 = vpack.c.b16 %v4633, %v4632
    %v4650 = vpack.c.b16 %v4634, %v4634
    %v4651 = vpack.c.b16 %v4636, %v4635
    %v4652 = vpack.c.b16 %v4638, %v4637
    %v4653 = vpack.c.b16 %v4639, %v4639
    %v4654 = vpack.c.b16 %v4641, %v4640
    %v4655 = vpack.c.b16 %v4643, %v4642
    %v4656 = vpack.c.b16 %v4644, %v4644
    %4657 = vrot.lane.b32.xlu0 %v4645, 15
    %v4658 = vpop.permute.xlu0 %4657
    %4659 = vrot.lane.b32.xlu0 %v4646, 15
    %v4660 = vpop.permute.xlu0 %4659
    %4661 = vrot.lane.b32.xlu0 %v4647, 15
    %v4662 = vpop.permute.xlu0 %4661
    %4663 = vrot.lane.b32.xlu0 %v4648, 15
    %v4664 = vpop.permute.xlu0 %4663
    %4665 = vrot.lane.b32.xlu0 %v4649, 15
    %v4666 = vpop.permute.xlu0 %4665
    %4667 = vrot.lane.b32.xlu0 %v4650, 15
    %v4668 = vpop.permute.xlu0 %4667
    %4669 = vrot.lane.b32.xlu0 %v4651, 15
    %v4670 = vpop.permute.xlu0 %4669
    %4671 = vrot.lane.b32.xlu0 %v4652, 15
    %v4672 = vpop.permute.xlu0 %4671
    %4673 = vrot.lane.b32.xlu0 %v4653, 15
    %v4674 = vpop.permute.xlu0 %4673
    %4675 = vrot.lane.b32.xlu0 %v4654, 15
    %v4676 = vpop.permute.xlu0 %4675
    %4677 = vrot.lane.b32.xlu0 %v4655, 15
    %v4678 = vpop.permute.xlu0 %4677
    %4679 = vrot.lane.b32.xlu0 %v4656, 15
    %v4680 = vpop.permute.xlu0 %4679
    %v4681 = vrot.slane %v4658, 4
    %v4682 = vrot.slane %v4660, 4
    %v4683 = vrot.slane %v4662, 4
    %v4684 = vrot.slane %v4664, 4
    %v4685 = vrot.slane %v4666, 4
    %v4686 = vrot.slane %v4668, 4
    %v4687 = vrot.slane %v4670, 4
    %v4688 = vrot.slane %v4672, 4
    %v4689 = vrot.slane %v4674, 4
    %v4690 = vrot.slane %v4676, 4
    %v4691 = vrot.slane %v4678, 4
    %v4692 = vrot.slane %v4680, 4
    %v4693 = vsel %vm767, %v4681, %v4682
    %v4694 = vsel %vm1163, %v4658, %v4693
    %v4695 = vsel %vm767, %v4682, %v4683
    %v4696 = vsel %vm1163, %v4660, %v4695
    %v4697 = vsel %vm767, %v4684, %v4685
    %v4698 = vsel %vm1163, %v4664, %v4697
    %v4699 = vsel %vm767, %v4685, %v4686
    %v4700 = vsel %vm1163, %v4666, %v4699
    %v4701 = vsel %vm767, %v4687, %v4688
    %v4702 = vsel %vm1163, %v4670, %v4701
    %v4703 = vsel %vm767, %v4688, %v4689
    %v4704 = vsel %vm1163, %v4672, %v4703
    %v4705 = vsel %vm767, %v4690, %v4691
    %v4706 = vsel %vm1163, %v4676, %v4705
    %v4707 = vsel %vm767, %v4691, %v4692
    %v4708 = vsel %vm1163, %v4678, %v4707
    %4717 = vst [vmem:[#allocation4 + $0x80] sm:$0xff] %v4694
    %4718 = vst [vmem:[#allocation4 + $0x88] sm:$0xff] %v4696
    %4719 = vst [vmem:[#allocation4 + $0x90] sm:$0xff] %v4698
    %4720 = vst [vmem:[#allocation4 + $0x98] sm:$0xff] %v4700
    %4721 = vst [vmem:[#allocation4 + $0xa0] sm:$0xff] %v4702
    %4722 = vst [vmem:[#allocation4 + $0xa8] sm:$0xff] %v4704
    %4723 = vst [vmem:[#allocation4 + $0xb0] sm:$0xff] %v4706
    %4724 = vst [vmem:[#allocation4 + $0xb8] sm:$0xff] %v4708
    %v4725 = vld [vmem:[#allocation3] sm:$0xff]
    %v4726 = vld [vmem:[#allocation3 + $0x8] sm:$0xff]
    %v4727 = vld [vmem:[#allocation3 + $0x10] sm:$0xff]
    %v4728 = vld [vmem:[#allocation3 + $0x18] sm:$0xff]
    %v4729 = vld [vmem:[#allocation3 + $0x20] sm:$0xff]
    %v4730 = vld [vmem:[#allocation3 + $0x30] sm:$0xff]
    %v4731 = vld [vmem:[#allocation3 + $0x38] sm:$0xff]
    %v4732 = vld [vmem:[#allocation3 + $0x40] sm:$0xff]
    %v4733 = vld [vmem:[#allocation3 + $0x48] sm:$0xff]
    %v4734 = vld [vmem:[#allocation3 + $0x50] sm:$0xff]
    %v4735 = vld [vmem:[#allocation3 + $0x60] sm:$0xff]
    %v4736 = vld [vmem:[#allocation3 + $0x68] sm:$0xff]
    %v4737 = vld [vmem:[#allocation3 + $0x70] sm:$0xff]
    %v4738 = vld [vmem:[#allocation3 + $0x78] sm:$0xff]
    %v4739 = vld [vmem:[#allocation3 + $0x80] sm:$0xff]
    %v4740 = vld [vmem:[#allocation3 + $0x90] sm:$0xff]
    %v4741 = vld [vmem:[#allocation3 + $0x98] sm:$0xff]
    %v4742 = vld [vmem:[#allocation3 + $0xa0] sm:$0xff]
    %v4743 = vld [vmem:[#allocation3 + $0xa8] sm:$0xff]
    %v4744 = vld [vmem:[#allocation3 + $0xb0] sm:$0xff]
    %v4745 = vld [vmem:[%s1215] ss:$8 sm:$0xf]
    %v4747 = vlaneseq
    %v4748 = vshrl.u32 %v4747, 7
    %v4749 = vsub.s32 0, %v4748
    %v4750 = vrot.slane %v4745, %v4749
    %v4751 = vlaneseq
    %v4752 = vshrl.u32 %v4751, 7
    %v4753 = vsub.s32 1, %v4752
    %v4754 = vrot.slane %v4745, %v4753
    %v4755 = vlaneseq
    %v4756 = vshrl.u32 %v4755, 7
    %v4757 = vsub.s32 2, %v4756
    %v4758 = vrot.slane %v4745, %v4757
    %v4759 = vlaneseq
    %v4760 = vshrl.u32 %v4759, 7
    %v4761 = vsub.s32 3, %v4760
    %v4762 = vrot.slane %v4745, %v4761
    %4763 = vrot.lane.b32.xlu0 %v4750, 127
    %v4764 = vpop.permute.xlu0 %4763
    %4765 = vrot.lane.b32.xlu0 %v4754, 127
    %v4766 = vpop.permute.xlu0 %4765
    %4767 = vrot.lane.b32.xlu0 %v4758, 127
    %v4768 = vpop.permute.xlu0 %4767
    %4769 = vrot.lane.b32.xlu0 %v4762, 127
    %v4770 = vpop.permute.xlu0 %4769
    %v4771 = vsel %vm1242, %v4764, %v4766
    %v4772 = vsel %vm1242, %v4766, %v4768
    %v4773 = vsel %vm1242, %v4768, %v4770
    %v4779 = vmul.f32 %v4725, %v4764
    %v4780 = vmul.f32 %v4726, %v4771
    %v4781 = vmul.f32 %v4727, %v4772
    %v4782 = vmul.f32 %v4728, %v4773
    %v4783 = vmul.f32 %v4729, %v4770
    %v4784 = vmul.f32 %v4730, %v4764
    %v4785 = vmul.f32 %v4731, %v4771
    %v4786 = vmul.f32 %v4732, %v4772
    %v4787 = vmul.f32 %v4733, %v4773
    %v4788 = vmul.f32 %v4734, %v4770
    %v4789 = vmul.f32 %v4735, %v4764
    %v4790 = vmul.f32 %v4736, %v4771
    %v4791 = vmul.f32 %v4737, %v4772
    %v4792 = vmul.f32 %v4738, %v4773
    %v4793 = vmul.f32 %v4739, %v4770
    %v4794 = vmul.f32 %v4740, %v4764
    %v4795 = vmul.f32 %v4741, %v4771
    %v4796 = vmul.f32 %v4742, %v4772
    %v4797 = vmul.f32 %v4743, %v4773
    %v4798 = vmul.f32 %v4744, %v4770
    %v4799 = vpack.c.bf16 %v4784, %v4779
    %v4800 = vpack.c.bf16 %v4785, %v4780
    %v4801 = vpack.c.bf16 %v4786, %v4781
    %v4802 = vpack.c.bf16 %v4787, %v4782
    %v4803 = vpack.c.bf16 %v4788, %v4783
    %v4804 = vpack.c.bf16 %v4794, %v4789
    %v4805 = vpack.c.bf16 %v4795, %v4790
    %v4806 = vpack.c.bf16 %v4796, %v4791
    %v4807 = vpack.c.bf16 %v4797, %v4792
    %v4808 = vpack.c.bf16 %v4798, %v4793
    %v4819 = vunpack.c.l.b16 %v4799
    %v4820 = vunpack.c.l.b16 %v4800
    %v4821 = vunpack.c.l.b16 %v4801
    %v4822 = vunpack.c.l.b16 %v4802
    %v4823 = vunpack.c.l.b16 %v4803
    %v4824 = vunpack.c.h.b16 %v4799
    %v4825 = vunpack.c.h.b16 %v4800
    %v4826 = vunpack.c.h.b16 %v4801
    %v4827 = vunpack.c.h.b16 %v4802
    %v4828 = vunpack.c.h.b16 %v4803
    %v4829 = vunpack.c.l.b16 %v4804
    %v4830 = vunpack.c.l.b16 %v4805
    %v4831 = vunpack.c.l.b16 %v4806
    %v4832 = vunpack.c.l.b16 %v4807
    %v4833 = vunpack.c.l.b16 %v4808
    %v4834 = vunpack.c.h.b16 %v4804
    %v4835 = vunpack.c.h.b16 %v4805
    %v4836 = vunpack.c.h.b16 %v4806
    %v4837 = vunpack.c.h.b16 %v4807
    %v4838 = vunpack.c.h.b16 %v4808
    %v4839 = vpack.c.b16 %v4820, %v4819
    %v4840 = vpack.c.b16 %v4822, %v4821
    %v4841 = vpack.c.b16 %v4823, %v4823
    %v4842 = vpack.c.b16 %v4825, %v4824
    %v4843 = vpack.c.b16 %v4827, %v4826
    %v4844 = vpack.c.b16 %v4828, %v4828
    %v4845 = vpack.c.b16 %v4830, %v4829
    %v4846 = vpack.c.b16 %v4832, %v4831
    %v4847 = vpack.c.b16 %v4833, %v4833
    %v4848 = vpack.c.b16 %v4835, %v4834
    %v4849 = vpack.c.b16 %v4837, %v4836
    %v4850 = vpack.c.b16 %v4838, %v4838
    %4851 = vrot.lane.b32.xlu0 %v4839, 1
    %v4852 = vpop.permute.xlu0 %4851
    %4853 = vrot.lane.b32.xlu0 %v4840, 1
    %v4854 = vpop.permute.xlu0 %4853
    %4855 = vrot.lane.b32.xlu0 %v4841, 1
    %v4856 = vpop.permute.xlu0 %4855
    %4857 = vrot.lane.b32.xlu0 %v4842, 1
    %v4858 = vpop.permute.xlu0 %4857
    %4859 = vrot.lane.b32.xlu0 %v4843, 1
    %v4860 = vpop.permute.xlu0 %4859
    %4861 = vrot.lane.b32.xlu0 %v4844, 1
    %v4862 = vpop.permute.xlu0 %4861
    %4863 = vrot.lane.b32.xlu0 %v4845, 1
    %v4864 = vpop.permute.xlu0 %4863
    %4865 = vrot.lane.b32.xlu0 %v4846, 1
    %v4866 = vpop.permute.xlu0 %4865
    %4867 = vrot.lane.b32.xlu0 %v4847, 1
    %v4868 = vpop.permute.xlu0 %4867
    %4869 = vrot.lane.b32.xlu0 %v4848, 1
    %v4870 = vpop.permute.xlu0 %4869
    %4871 = vrot.lane.b32.xlu0 %v4849, 1
    %v4872 = vpop.permute.xlu0 %4871
    %4873 = vrot.lane.b32.xlu0 %v4850, 1
    %v4874 = vpop.permute.xlu0 %4873
    %v4875 = vrot.slane %v4852, 4
    %v4876 = vrot.slane %v4854, 4
    %v4877 = vrot.slane %v4856, 4
    %v4878 = vrot.slane %v4858, 4
    %v4879 = vrot.slane %v4860, 4
    %v4880 = vrot.slane %v4862, 4
    %v4881 = vrot.slane %v4864, 4
    %v4882 = vrot.slane %v4866, 4
    %v4883 = vrot.slane %v4868, 4
    %v4884 = vrot.slane %v4870, 4
    %v4885 = vrot.slane %v4872, 4
    %v4886 = vrot.slane %v4874, 4
    %v4887 = vsel %vm767, %v4875, %v4876
    %v4888 = vsel %vm1360, %v4852, %v4887
    %v4889 = vsel %vm767, %v4876, %v4877
    %v4890 = vsel %vm1360, %v4854, %v4889
    %v4891 = vsel %vm767, %v4878, %v4879
    %v4892 = vsel %vm1360, %v4858, %v4891
    %v4893 = vsel %vm767, %v4879, %v4880
    %v4894 = vsel %vm1360, %v4860, %v4893
    %v4895 = vsel %vm767, %v4881, %v4882
    %v4896 = vsel %vm1360, %v4864, %v4895
    %v4897 = vsel %vm767, %v4882, %v4883
    %v4898 = vsel %vm1360, %v4866, %v4897
    %v4899 = vsel %vm767, %v4884, %v4885
    %v4900 = vsel %vm1360, %v4870, %v4899
    %v4901 = vsel %vm767, %v4885, %v4886
    %v4902 = vsel %vm1360, %v4872, %v4901
    %4911 = vst [vmem:[#allocation4 + $0xc0] sm:$0xff] %v4888
    %4912 = vst [vmem:[#allocation4 + $0xc8] sm:$0xff] %v4890
    %4913 = vst [vmem:[#allocation4 + $0xd0] sm:$0xff] %v4892
    %4914 = vst [vmem:[#allocation4 + $0xd8] sm:$0xff] %v4894
    %4915 = vst [vmem:[#allocation4 + $0xe0] sm:$0xff] %v4896
    %4916 = vst [vmem:[#allocation4 + $0xe8] sm:$0xff] %v4898
    %4917 = vst [vmem:[#allocation4 + $0xf0] sm:$0xff] %v4900
    %4918 = vst [vmem:[#allocation4 + $0xf8] sm:$0xff] %v4902
    %v4919 = vld [vmem:[#allocation3 + $0x8] sm:$0xff]
    %v4920 = vld [vmem:[#allocation3 + $0x10] sm:$0xff]
    %v4921 = vld [vmem:[#allocation3 + $0x18] sm:$0xff]
    %v4922 = vld [vmem:[#allocation3 + $0x20] sm:$0xff]
    %v4923 = vld [vmem:[#allocation3 + $0x38] sm:$0xff]
    %v4924 = vld [vmem:[#allocation3 + $0x40] sm:$0xff]
    %v4925 = vld [vmem:[#allocation3 + $0x48] sm:$0xff]
    %v4926 = vld [vmem:[#allocation3 + $0x50] sm:$0xff]
    %v4927 = vld [vmem:[#allocation3 + $0x68] sm:$0xff]
    %v4928 = vld [vmem:[#allocation3 + $0x70] sm:$0xff]
    %v4929 = vld [vmem:[#allocation3 + $0x78] sm:$0xff]
    %v4930 = vld [vmem:[#allocation3 + $0x80] sm:$0xff]
    %v4931 = vld [vmem:[#allocation3 + $0x98] sm:$0xff]
    %v4932 = vld [vmem:[#allocation3 + $0xa0] sm:$0xff]
    %v4933 = vld [vmem:[#allocation3 + $0xa8] sm:$0xff]
    %v4934 = vld [vmem:[#allocation3 + $0xb0] sm:$0xff]
    %v4935 = vld [vmem:[%s1408] ss:$8 sm:$0xf]
    %v4937 = vlaneseq
    %v4938 = vshrl.u32 %v4937, 7
    %v4939 = vsub.s32 0, %v4938
    %v4940 = vrot.slane %v4935, %v4939
    %v4941 = vlaneseq
    %v4942 = vshrl.u32 %v4941, 7
    %v4943 = vsub.s32 1, %v4942
    %v4944 = vrot.slane %v4935, %v4943
    %v4945 = vlaneseq
    %v4946 = vshrl.u32 %v4945, 7
    %v4947 = vsub.s32 2, %v4946
    %v4948 = vrot.slane %v4935, %v4947
    %v4949 = vlaneseq
    %v4950 = vshrl.u32 %v4949, 7
    %v4951 = vsub.s32 3, %v4950
    %v4952 = vrot.slane %v4935, %v4951
    %v4957 = vmul.f32 %v4919, %v4940
    %v4958 = vmul.f32 %v4920, %v4944
    %v4959 = vmul.f32 %v4921, %v4948
    %v4960 = vmul.f32 %v4922, %v4952
    %v4961 = vmul.f32 %v4923, %v4940
    %v4962 = vmul.f32 %v4924, %v4944
    %v4963 = vmul.f32 %v4925, %v4948
    %v4964 = vmul.f32 %v4926, %v4952
    %v4965 = vmul.f32 %v4927, %v4940
    %v4966 = vmul.f32 %v4928, %v4944
    %v4967 = vmul.f32 %v4929, %v4948
    %v4968 = vmul.f32 %v4930, %v4952
    %v4969 = vmul.f32 %v4931, %v4940
    %v4970 = vmul.f32 %v4932, %v4944
    %v4971 = vmul.f32 %v4933, %v4948
    %v4972 = vmul.f32 %v4934, %v4952
    %v4973 = vpack.c.bf16 %v4961, %v4957
    %v4974 = vpack.c.bf16 %v4962, %v4958
    %v4975 = vpack.c.bf16 %v4963, %v4959
    %v4976 = vpack.c.bf16 %v4964, %v4960
    %v4977 = vpack.c.bf16 %v4969, %v4965
    %v4978 = vpack.c.bf16 %v4970, %v4966
    %v4979 = vpack.c.bf16 %v4971, %v4967
    %v4980 = vpack.c.bf16 %v4972, %v4968
    %v4989 = vunpack.c.l.b16 %v4973
    %v4990 = vunpack.c.l.b16 %v4974
    %v4991 = vunpack.c.l.b16 %v4975
    %v4992 = vunpack.c.l.b16 %v4976
    %v4993 = vunpack.c.h.b16 %v4973
    %v4994 = vunpack.c.h.b16 %v4974
    %v4995 = vunpack.c.h.b16 %v4975
    %v4996 = vunpack.c.h.b16 %v4976
    %v4997 = vunpack.c.l.b16 %v4977
    %v4998 = vunpack.c.l.b16 %v4978
    %v4999 = vunpack.c.l.b16 %v4979
    %v5000 = vunpack.c.l.b16 %v4980
    %v5001 = vunpack.c.h.b16 %v4977
    %v5002 = vunpack.c.h.b16 %v4978
    %v5003 = vunpack.c.h.b16 %v4979
    %v5004 = vunpack.c.h.b16 %v4980
    %v5005 = vpack.c.b16 %v4990, %v4989
    %v5006 = vpack.c.b16 %v4992, %v4991
    %v5007 = vpack.c.b16 %v4994, %v4993
    %v5008 = vpack.c.b16 %v4996, %v4995
    %v5009 = vpack.c.b16 %v4998, %v4997
    %v5010 = vpack.c.b16 %v5000, %v4999
    %v5011 = vpack.c.b16 %v5002, %v5001
    %v5012 = vpack.c.b16 %v5004, %v5003
    %5021 = vst [vmem:[#allocation4 + $0x100] sm:$0xff] %v5005
    %5022 = vst [vmem:[#allocation4 + $0x108] sm:$0xff] %v5006
    %5023 = vst [vmem:[#allocation4 + $0x110] sm:$0xff] %v5007
    %5024 = vst [vmem:[#allocation4 + $0x118] sm:$0xff] %v5008
    %5025 = vst [vmem:[#allocation4 + $0x120] sm:$0xff] %v5009
    %5026 = vst [vmem:[#allocation4 + $0x128] sm:$0xff] %v5010
    %5027 = vst [vmem:[#allocation4 + $0x130] sm:$0xff] %v5011
    %5028 = vst [vmem:[#allocation4 + $0x138] sm:$0xff] %v5012
    %v5029 = vld [vmem:[#allocation3 + $0x8] sm:$0xff]
    %v5030 = vld [vmem:[#allocation3 + $0x10] sm:$0xff]
    %v5031 = vld [vmem:[#allocation3 + $0x18] sm:$0xff]
    %v5032 = vld [vmem:[#allocation3 + $0x20] sm:$0xff]
    %v5033 = vld [vmem:[#allocation3 + $0x28] sm:$0xff]
    %v5034 = vld [vmem:[#allocation3 + $0x38] sm:$0xff]
    %v5035 = vld [vmem:[#allocation3 + $0x40] sm:$0xff]
    %v5036 = vld [vmem:[#allocation3 + $0x48] sm:$0xff]
    %v5037 = vld [vmem:[#allocation3 + $0x50] sm:$0xff]
    %v5038 = vld [vmem:[#allocation3 + $0x58] sm:$0xff]
    %v5039 = vld [vmem:[#allocation3 + $0x68] sm:$0xff]
    %v5040 = vld [vmem:[#allocation3 + $0x70] sm:$0xff]
    %v5041 = vld [vmem:[#allocation3 + $0x78] sm:$0xff]
    %v5042 = vld [vmem:[#allocation3 + $0x80] sm:$0xff]
    %v5043 = vld [vmem:[#allocation3 + $0x88] sm:$0xff]
    %v5044 = vld [vmem:[#allocation3 + $0x98] sm:$0xff]
    %v5045 = vld [vmem:[#allocation3 + $0xa0] sm:$0xff]
    %v5046 = vld [vmem:[#allocation3 + $0xa8] sm:$0xff]
    %v5047 = vld [vmem:[#allocation3 + $0xb0] sm:$0xff]
    %v5048 = vld [vmem:[#allocation3 + $0xb8] sm:$0xff]
    %v5049 = vld [vmem:[%s1523] ss:$8 sm:$0xf]
    %v5051 = vlaneseq
    %v5052 = vshrl.u32 %v5051, 7
    %v5053 = vsub.s32 0, %v5052
    %v5054 = vrot.slane %v5049, %v5053
    %v5055 = vlaneseq
    %v5056 = vshrl.u32 %v5055, 7
    %v5057 = vsub.s32 1, %v5056
    %v5058 = vrot.slane %v5049, %v5057
    %v5059 = vlaneseq
    %v5060 = vshrl.u32 %v5059, 7
    %v5061 = vsub.s32 2, %v5060
    %v5062 = vrot.slane %v5049, %v5061
    %v5063 = vlaneseq
    %v5064 = vshrl.u32 %v5063, 7
    %v5065 = vsub.s32 3, %v5064
    %v5066 = vrot.slane %v5049, %v5065
    %5067 = vrot.lane.b32.xlu0 %v5054, 1
    %v5068 = vpop.permute.xlu0 %5067
    %5069 = vrot.lane.b32.xlu0 %v5058, 1
    %v5070 = vpop.permute.xlu0 %5069
    %5071 = vrot.lane.b32.xlu0 %v5062, 1
    %v5072 = vpop.permute.xlu0 %5071
    %5073 = vrot.lane.b32.xlu0 %v5066, 1
    %v5074 = vpop.permute.xlu0 %5073
    %v5075 = vsel %vm1550, %v5068, %v5070
    %v5076 = vsel %vm1550, %v5070, %v5072
    %v5077 = vsel %vm1550, %v5072, %v5074
    %v5083 = vmul.f32 %v5029, %v5068
    %v5084 = vmul.f32 %v5030, %v5075
    %v5085 = vmul.f32 %v5031, %v5076
    %v5086 = vmul.f32 %v5032, %v5077
    %v5087 = vmul.f32 %v5033, %v5074
    %v5088 = vmul.f32 %v5034, %v5068
    %v5089 = vmul.f32 %v5035, %v5075
    %v5090 = vmul.f32 %v5036, %v5076
    %v5091 = vmul.f32 %v5037, %v5077
    %v5092 = vmul.f32 %v5038, %v5074
    %v5093 = vmul.f32 %v5039, %v5068
    %v5094 = vmul.f32 %v5040, %v5075
    %v5095 = vmul.f32 %v5041, %v5076
    %v5096 = vmul.f32 %v5042, %v5077
    %v5097 = vmul.f32 %v5043, %v5074
    %v5098 = vmul.f32 %v5044, %v5068
    %v5099 = vmul.f32 %v5045, %v5075
    %v5100 = vmul.f32 %v5046, %v5076
    %v5101 = vmul.f32 %v5047, %v5077
    %v5102 = vmul.f32 %v5048, %v5074
    %v5103 = vpack.c.bf16 %v5088, %v5083
    %v5104 = vpack.c.bf16 %v5089, %v5084
    %v5105 = vpack.c.bf16 %v5090, %v5085
    %v5106 = vpack.c.bf16 %v5091, %v5086
    %v5107 = vpack.c.bf16 %v5092, %v5087
    %v5108 = vpack.c.bf16 %v5098, %v5093
    %v5109 = vpack.c.bf16 %v5099, %v5094
    %v5110 = vpack.c.bf16 %v5100, %v5095
    %v5111 = vpack.c.bf16 %v5101, %v5096
    %v5112 = vpack.c.bf16 %v5102, %v5097
    %v5123 = vunpack.c.l.b16 %v5103
    %v5124 = vunpack.c.l.b16 %v5104
    %v5125 = vunpack.c.l.b16 %v5105
    %v5126 = vunpack.c.l.b16 %v5106
    %v5127 = vunpack.c.l.b16 %v5107
    %v5128 = vunpack.c.h.b16 %v5103
    %v5129 = vunpack.c.h.b16 %v5104
    %v5130 = vunpack.c.h.b16 %v5105
    %v5131 = vunpack.c.h.b16 %v5106
    %v5132 = vunpack.c.h.b16 %v5107
    %v5133 = vunpack.c.l.b16 %v5108
    %v5134 = vunpack.c.l.b16 %v5109
    %v5135 = vunpack.c.l.b16 %v5110
    %v5136 = vunpack.c.l.b16 %v5111
    %v5137 = vunpack.c.l.b16 %v5112
    %v5138 = vunpack.c.h.b16 %v5108
    %v5139 = vunpack.c.h.b16 %v5109
    %v5140 = vunpack.c.h.b16 %v5110
    %v5141 = vunpack.c.h.b16 %v5111
    %v5142 = vunpack.c.h.b16 %v5112
    %v5143 = vpack.c.b16 %v5124, %v5123
    %v5144 = vpack.c.b16 %v5126, %v5125
    %v5145 = vpack.c.b16 %v5127, %v5127
    %v5146 = vpack.c.b16 %v5129, %v5128
    %v5147 = vpack.c.b16 %v5131, %v5130
    %v5148 = vpack.c.b16 %v5132, %v5132
    %v5149 = vpack.c.b16 %v5134, %v5133
    %v5150 = vpack.c.b16 %v5136, %v5135
    %v5151 = vpack.c.b16 %v5137, %v5137
    %v5152 = vpack.c.b16 %v5139, %v5138
    %v5153 = vpack.c.b16 %v5141, %v5140
    %v5154 = vpack.c.b16 %v5142, %v5142
    %5155 = vrot.lane.b32.xlu0 %v5143, 127
    %v5156 = vpop.permute.xlu0 %5155
    %5157 = vrot.lane.b32.xlu0 %v5144, 127
    %v5158 = vpop.permute.xlu0 %5157
    %5159 = vrot.lane.b32.xlu0 %v5145, 127
    %v5160 = vpop.permute.xlu0 %5159
    %5161 = vrot.lane.b32.xlu0 %v5146, 127
    %v5162 = vpop.permute.xlu0 %5161
    %5163 = vrot.lane.b32.xlu0 %v5147, 127
    %v5164 = vpop.permute.xlu0 %5163
    %5165 = vrot.lane.b32.xlu0 %v5148, 127
    %v5166 = vpop.permute.xlu0 %5165
    %5167 = vrot.lane.b32.xlu0 %v5149, 127
    %v5168 = vpop.permute.xlu0 %5167
    %5169 = vrot.lane.b32.xlu0 %v5150, 127
    %v5170 = vpop.permute.xlu0 %5169
    %5171 = vrot.lane.b32.xlu0 %v5151, 127
    %v5172 = vpop.permute.xlu0 %5171
    %5173 = vrot.lane.b32.xlu0 %v5152, 127
    %v5174 = vpop.permute.xlu0 %5173
    %5175 = vrot.lane.b32.xlu0 %v5153, 127
    %v5176 = vpop.permute.xlu0 %5175
    %5177 = vrot.lane.b32.xlu0 %v5154, 127
    %v5178 = vpop.permute.xlu0 %5177
    %v5179 = vrot.slane %v5156, 4
    %v5180 = vrot.slane %v5158, 4
    %v5181 = vrot.slane %v5160, 4
    %v5182 = vrot.slane %v5162, 4
    %v5183 = vrot.slane %v5164, 4
    %v5184 = vrot.slane %v5166, 4
    %v5185 = vrot.slane %v5168, 4
    %v5186 = vrot.slane %v5170, 4
    %v5187 = vrot.slane %v5172, 4
    %v5188 = vrot.slane %v5174, 4
    %v5189 = vrot.slane %v5176, 4
    %v5190 = vrot.slane %v5178, 4
    %v5191 = vsel %vm767, %v5179, %v5180
    %v5192 = vsel %vm1668, %v5156, %v5191
    %v5193 = vsel %vm767, %v5180, %v5181
    %v5194 = vsel %vm1668, %v5158, %v5193
    %v5195 = vsel %vm767, %v5182, %v5183
    %v5196 = vsel %vm1668, %v5162, %v5195
    %v5197 = vsel %vm767, %v5183, %v5184
    %v5198 = vsel %vm1668, %v5164, %v5197
    %v5199 = vsel %vm767, %v5185, %v5186
    %v5200 = vsel %vm1668, %v5168, %v5199
    %v5201 = vsel %vm767, %v5186, %v5187
    %v5202 = vsel %vm1668, %v5170, %v5201
    %v5203 = vsel %vm767, %v5188, %v5189
    %v5204 = vsel %vm1668, %v5174, %v5203
    %v5205 = vsel %vm767, %v5189, %v5190
    %v5206 = vsel %vm1668, %v5176, %v5205
    %5215 = vst [vmem:[#allocation4 + $0x140] sm:$0xff] %v5192
    %5216 = vst [vmem:[#allocation4 + $0x148] sm:$0xff] %v5194
    %5217 = vst [vmem:[#allocation4 + $0x150] sm:$0xff] %v5196
    %5218 = vst [vmem:[#allocation4 + $0x158] sm:$0xff] %v5198
    %5219 = vst [vmem:[#allocation4 + $0x160] sm:$0xff] %v5200
    %5220 = vst [vmem:[#allocation4 + $0x168] sm:$0xff] %v5202
    %5221 = vst [vmem:[#allocation4 + $0x170] sm:$0xff] %v5204
    %5222 = vst [vmem:[#allocation4 + $0x178] sm:$0xff] %v5206
    %v5223 = vld [vmem:[#allocation3 + $0x8] sm:$0xff]
    %v5224 = vld [vmem:[#allocation3 + $0x10] sm:$0xff]
    %v5225 = vld [vmem:[#allocation3 + $0x18] sm:$0xff]
    %v5226 = vld [vmem:[#allocation3 + $0x20] sm:$0xff]
    %v5227 = vld [vmem:[#allocation3 + $0x28] sm:$0xff]
    %v5228 = vld [vmem:[#allocation3 + $0x38] sm:$0xff]
    %v5229 = vld [vmem:[#allocation3 + $0x40] sm:$0xff]
    %v5230 = vld [vmem:[#allocation3 + $0x48] sm:$0xff]
    %v5231 = vld [vmem:[#allocation3 + $0x50] sm:$0xff]
    %v5232 = vld [vmem:[#allocation3 + $0x58] sm:$0xff]
    %v5233 = vld [vmem:[#allocation3 + $0x68] sm:$0xff]
    %v5234 = vld [vmem:[#allocation3 + $0x70] sm:$0xff]
    %v5235 = vld [vmem:[#allocation3 + $0x78] sm:$0xff]
    %v5236 = vld [vmem:[#allocation3 + $0x80] sm:$0xff]
    %v5237 = vld [vmem:[#allocation3 + $0x88] sm:$0xff]
    %v5238 = vld [vmem:[#allocation3 + $0x98] sm:$0xff]
    %v5239 = vld [vmem:[#allocation3 + $0xa0] sm:$0xff]
    %v5240 = vld [vmem:[#allocation3 + $0xa8] sm:$0xff]
    %v5241 = vld [vmem:[#allocation3 + $0xb0] sm:$0xff]
    %v5242 = vld [vmem:[#allocation3 + $0xb8] sm:$0xff]
    %v5243 = vld [vmem:[%s1720] ss:$8 sm:$0xf]
    %v5245 = vlaneseq
    %v5246 = vshrl.u32 %v5245, 7
    %v5247 = vsub.s32 0, %v5246
    %v5248 = vrot.slane %v5243, %v5247
    %v5249 = vlaneseq
    %v5250 = vshrl.u32 %v5249, 7
    %v5251 = vsub.s32 1, %v5250
    %v5252 = vrot.slane %v5243, %v5251
    %v5253 = vlaneseq
    %v5254 = vshrl.u32 %v5253, 7
    %v5255 = vsub.s32 2, %v5254
    %v5256 = vrot.slane %v5243, %v5255
    %v5257 = vlaneseq
    %v5258 = vshrl.u32 %v5257, 7
    %v5259 = vsub.s32 3, %v5258
    %v5260 = vrot.slane %v5243, %v5259
    %5261 = vrot.lane.b32.xlu0 %v5248, 15
    %v5262 = vpop.permute.xlu0 %5261
    %5263 = vrot.lane.b32.xlu0 %v5252, 15
    %v5264 = vpop.permute.xlu0 %5263
    %5265 = vrot.lane.b32.xlu0 %v5256, 15
    %v5266 = vpop.permute.xlu0 %5265
    %5267 = vrot.lane.b32.xlu0 %v5260, 15
    %v5268 = vpop.permute.xlu0 %5267
    %v5269 = vsel %vm1747, %v5262, %v5264
    %v5270 = vsel %vm1747, %v5264, %v5266
    %v5271 = vsel %vm1747, %v5266, %v5268
    %v5277 = vmul.f32 %v5223, %v5262
    %v5278 = vmul.f32 %v5224, %v5269
    %v5279 = vmul.f32 %v5225, %v5270
    %v5280 = vmul.f32 %v5226, %v5271
    %v5281 = vmul.f32 %v5227, %v5268
    %v5282 = vmul.f32 %v5228, %v5262
    %v5283 = vmul.f32 %v5229, %v5269
    %v5284 = vmul.f32 %v5230, %v5270
    %v5285 = vmul.f32 %v5231, %v5271
    %v5286 = vmul.f32 %v5232, %v5268
    %v5287 = vmul.f32 %v5233, %v5262
    %v5288 = vmul.f32 %v5234, %v5269
    %v5289 = vmul.f32 %v5235, %v5270
    %v5290 = vmul.f32 %v5236, %v5271
    %v5291 = vmul.f32 %v5237, %v5268
    %v5292 = vmul.f32 %v5238, %v5262
    %v5293 = vmul.f32 %v5239, %v5269
    %v5294 = vmul.f32 %v5240, %v5270
    %v5295 = vmul.f32 %v5241, %v5271
    %v5296 = vmul.f32 %v5242, %v5268
    %v5297 = vpack.c.bf16 %v5282, %v5277
    %v5298 = vpack.c.bf16 %v5283, %v5278
    %v5299 = vpack.c.bf16 %v5284, %v5279
    %v5300 = vpack.c.bf16 %v5285, %v5280
    %v5301 = vpack.c.bf16 %v5286, %v5281
    %v5302 = vpack.c.bf16 %v5292, %v5287
    %v5303 = vpack.c.bf16 %v5293, %v5288
    %v5304 = vpack.c.bf16 %v5294, %v5289
    %v5305 = vpack.c.bf16 %v5295, %v5290
    %v5306 = vpack.c.bf16 %v5296, %v5291
    %v5317 = vunpack.c.l.b16 %v5297
    %v5318 = vunpack.c.l.b16 %v5298
    %v5319 = vunpack.c.l.b16 %v5299
    %v5320 = vunpack.c.l.b16 %v5300
    %v5321 = vunpack.c.l.b16 %v5301
    %v5322 = vunpack.c.h.b16 %v5297
    %v5323 = vunpack.c.h.b16 %v5298
    %v5324 = vunpack.c.h.b16 %v5299
    %v5325 = vunpack.c.h.b16 %v5300
    %v5326 = vunpack.c.h.b16 %v5301
    %v5327 = vunpack.c.l.b16 %v5302
    %v5328 = vunpack.c.l.b16 %v5303
    %v5329 = vunpack.c.l.b16 %v5304
    %v5330 = vunpack.c.l.b16 %v5305
    %v5331 = vunpack.c.l.b16 %v5306
    %v5332 = vunpack.c.h.b16 %v5302
    %v5333 = vunpack.c.h.b16 %v5303
    %v5334 = vunpack.c.h.b16 %v5304
    %v5335 = vunpack.c.h.b16 %v5305
    %v5336 = vunpack.c.h.b16 %v5306
    %v5337 = vpack.c.b16 %v5318, %v5317
    %v5338 = vpack.c.b16 %v5320, %v5319
    %v5339 = vpack.c.b16 %v5321, %v5321
    %v5340 = vpack.c.b16 %v5323, %v5322
    %v5341 = vpack.c.b16 %v5325, %v5324
    %v5342 = vpack.c.b16 %v5326, %v5326
    %v5343 = vpack.c.b16 %v5328, %v5327
    %v5344 = vpack.c.b16 %v5330, %v5329
    %v5345 = vpack.c.b16 %v5331, %v5331
    %v5346 = vpack.c.b16 %v5333, %v5332
    %v5347 = vpack.c.b16 %v5335, %v5334
    %v5348 = vpack.c.b16 %v5336, %v5336
    %5349 = vrot.lane.b32.xlu0 %v5337, 113
    %v5350 = vpop.permute.xlu0 %5349
    %5351 = vrot.lane.b32.xlu0 %v5338, 113
    %v5352 = vpop.permute.xlu0 %5351
    %5353 = vrot.lane.b32.xlu0 %v5339, 113
    %v5354 = vpop.permute.xlu0 %5353
    %5355 = vrot.lane.b32.xlu0 %v5340, 113
    %v5356 = vpop.permute.xlu0 %5355
    %5357 = vrot.lane.b32.xlu0 %v5341, 113
    %v5358 = vpop.permute.xlu0 %5357
    %5359 = vrot.lane.b32.xlu0 %v5342, 113
    %v5360 = vpop.permute.xlu0 %5359
    %5361 = vrot.lane.b32.xlu0 %v5343, 113
    %v5362 = vpop.permute.xlu0 %5361
    %5363 = vrot.lane.b32.xlu0 %v5344, 113
    %v5364 = vpop.permute.xlu0 %5363
    %5365 = vrot.lane.b32.xlu0 %v5345, 113
    %v5366 = vpop.permute.xlu0 %5365
    %5367 = vrot.lane.b32.xlu0 %v5346, 113
    %v5368 = vpop.permute.xlu0 %5367
    %5369 = vrot.lane.b32.xlu0 %v5347, 113
    %v5370 = vpop.permute.xlu0 %5369
    %5371 = vrot.lane.b32.xlu0 %v5348, 113
    %v5372 = vpop.permute.xlu0 %5371
    %v5373 = vrot.slane %v5350, 4
    %v5374 = vrot.slane %v5352, 4
    %v5375 = vrot.slane %v5354, 4
    %v5376 = vrot.slane %v5356, 4
    %v5377 = vrot.slane %v5358, 4
    %v5378 = vrot.slane %v5360, 4
    %v5379 = vrot.slane %v5362, 4
    %v5380 = vrot.slane %v5364, 4
    %v5381 = vrot.slane %v5366, 4
    %v5382 = vrot.slane %v5368, 4
    %v5383 = vrot.slane %v5370, 4
    %v5384 = vrot.slane %v5372, 4
    %v5385 = vsel %vm767, %v5373, %v5374
    %v5386 = vsel %vm1865, %v5350, %v5385
    %v5387 = vsel %vm767, %v5374, %v5375
    %v5388 = vsel %vm1865, %v5352, %v5387
    %v5389 = vsel %vm767, %v5376, %v5377
    %v5390 = vsel %vm1865, %v5356, %v5389
    %v5391 = vsel %vm767, %v5377, %v5378
    %v5392 = vsel %vm1865, %v5358, %v5391
    %v5393 = vsel %vm767, %v5379, %v5380
    %v5394 = vsel %vm1865, %v5362, %v5393
    %v5395 = vsel %vm767, %v5380, %v5381
    %v5396 = vsel %vm1865, %v5364, %v5395
    %v5397 = vsel %vm767, %v5382, %v5383
    %v5398 = vsel %vm1865, %v5368, %v5397
    %v5399 = vsel %vm767, %v5383, %v5384
    %v5400 = vsel %vm1865, %v5370, %v5399
    %5409 = vst [vmem:[#allocation4 + $0x180] sm:$0xff] %v5386
    %5410 = vst [vmem:[#allocation4 + $0x188] sm:$0xff] %v5388
    %5411 = vst [vmem:[#allocation4 + $0x190] sm:$0xff] %v5390
    %5412 = vst [vmem:[#allocation4 + $0x198] sm:$0xff] %v5392
    %5413 = vst [vmem:[#allocation4 + $0x1a0] sm:$0xff] %v5394
    %5414 = vst [vmem:[#allocation4 + $0x1a8] sm:$0xff] %v5396
    %5415 = vst [vmem:[#allocation4 + $0x1b0] sm:$0xff] %v5398
    %5416 = vst [vmem:[#allocation4 + $0x1b8] sm:$0xff] %v5400
    %v5417 = vld [vmem:[#allocation3 + $0x8] sm:$0xff]
    %v5418 = vld [vmem:[#allocation3 + $0x10] sm:$0xff]
    %v5419 = vld [vmem:[#allocation3 + $0x18] sm:$0xff]
    %v5420 = vld [vmem:[#allocation3 + $0x20] sm:$0xff]
    %v5421 = vld [vmem:[#allocation3 + $0x28] sm:$0xff]
    %v5422 = vld [vmem:[#allocation3 + $0x38] sm:$0xff]
    %v5423 = vld [vmem:[#allocation3 + $0x40] sm:$0xff]
    %v5424 = vld [vmem:[#allocation3 + $0x48] sm:$0xff]
    %v5425 = vld [vmem:[#allocation3 + $0x50] sm:$0xff]
    %v5426 = vld [vmem:[#allocation3 + $0x58] sm:$0xff]
    %v5427 = vld [vmem:[#allocation3 + $0x68] sm:$0xff]
    %v5428 = vld [vmem:[#allocation3 + $0x70] sm:$0xff]
    %v5429 = vld [vmem:[#allocation3 + $0x78] sm:$0xff]
    %v5430 = vld [vmem:[#allocation3 + $0x80] sm:$0xff]
    %v5431 = vld [vmem:[#allocation3 + $0x88] sm:$0xff]
    %v5432 = vld [vmem:[#allocation3 + $0x98] sm:$0xff]
    %v5433 = vld [vmem:[#allocation3 + $0xa0] sm:$0xff]
    %v5434 = vld [vmem:[#allocation3 + $0xa8] sm:$0xff]
    %v5435 = vld [vmem:[#allocation3 + $0xb0] sm:$0xff]
    %v5436 = vld [vmem:[#allocation3 + $0xb8] sm:$0xff]
    %v5437 = vld [vmem:[%s1917] ss:$8 sm:$0xf]
    %v5439 = vlaneseq
    %v5440 = vshrl.u32 %v5439, 7
    %v5441 = vsub.s32 0, %v5440
    %v5442 = vrot.slane %v5437, %v5441
    %v5443 = vlaneseq
    %v5444 = vshrl.u32 %v5443, 7
    %v5445 = vsub.s32 1, %v5444
    %v5446 = vrot.slane %v5437, %v5445
    %v5447 = vlaneseq
    %v5448 = vshrl.u32 %v5447, 7
    %v5449 = vsub.s32 2, %v5448
    %v5450 = vrot.slane %v5437, %v5449
    %v5451 = vlaneseq
    %v5452 = vshrl.u32 %v5451, 7
    %v5453 = vsub.s32 3, %v5452
    %v5454 = vrot.slane %v5437, %v5453
    %5455 = vrot.lane.b32.xlu0 %v5442, 16
    %v5456 = vpop.permute.xlu0 %5455
    %5457 = vrot.lane.b32.xlu0 %v5446, 16
    %v5458 = vpop.permute.xlu0 %5457
    %5459 = vrot.lane.b32.xlu0 %v5450, 16
    %v5460 = vpop.permute.xlu0 %5459
    %5461 = vrot.lane.b32.xlu0 %v5454, 16
    %v5462 = vpop.permute.xlu0 %5461
    %v5463 = vsel %vm1944, %v5456, %v5458
    %v5464 = vsel %vm1944, %v5458, %v5460
    %v5465 = vsel %vm1944, %v5460, %v5462
    %v5471 = vmul.f32 %v5417, %v5456
    %v5472 = vmul.f32 %v5418, %v5463
    %v5473 = vmul.f32 %v5419, %v5464
    %v5474 = vmul.f32 %v5420, %v5465
    %v5475 = vmul.f32 %v5421, %v5462
    %v5476 = vmul.f32 %v5422, %v5456
    %v5477 = vmul.f32 %v5423, %v5463
    %v5478 = vmul.f32 %v5424, %v5464
    %v5479 = vmul.f32 %v5425, %v5465
    %v5480 = vmul.f32 %v5426, %v5462
    %v5481 = vmul.f32 %v5427, %v5456
    %v5482 = vmul.f32 %v5428, %v5463
    %v5483 = vmul.f32 %v5429, %v5464
    %v5484 = vmul.f32 %v5430, %v5465
    %v5485 = vmul.f32 %v5431, %v5462
    %v5486 = vmul.f32 %v5432, %v5456
    %v5487 = vmul.f32 %v5433, %v5463
    %v5488 = vmul.f32 %v5434, %v5464
    %v5489 = vmul.f32 %v5435, %v5465
    %v5490 = vmul.f32 %v5436, %v5462
    %v5491 = vpack.c.bf16 %v5476, %v5471
    %v5492 = vpack.c.bf16 %v5477, %v5472
    %v5493 = vpack.c.bf16 %v5478, %v5473
    %v5494 = vpack.c.bf16 %v5479, %v5474
    %v5495 = vpack.c.bf16 %v5480, %v5475
    %v5496 = vpack.c.bf16 %v5486, %v5481
    %v5497 = vpack.c.bf16 %v5487, %v5482
    %v5498 = vpack.c.bf16 %v5488, %v5483
    %v5499 = vpack.c.bf16 %v5489, %v5484
    %v5500 = vpack.c.bf16 %v5490, %v5485
    %v5511 = vunpack.c.l.b16 %v5491
    %v5512 = vunpack.c.l.b16 %v5492
    %v5513 = vunpack.c.l.b16 %v5493
    %v5514 = vunpack.c.l.b16 %v5494
    %v5515 = vunpack.c.l.b16 %v5495
    %v5516 = vunpack.c.h.b16 %v5491
    %v5517 = vunpack.c.h.b16 %v5492
    %v5518 = vunpack.c.h.b16 %v5493
    %v5519 = vunpack.c.h.b16 %v5494
    %v5520 = vunpack.c.h.b16 %v5495
    %v5521 = vunpack.c.l.b16 %v5496
    %v5522 = vunpack.c.l.b16 %v5497
    %v5523 = vunpack.c.l.b16 %v5498
    %v5524 = vunpack.c.l.b16 %v5499
    %v5525 = vunpack.c.l.b16 %v5500
    %v5526 = vunpack.c.h.b16 %v5496
    %v5527 = vunpack.c.h.b16 %v5497
    %v5528 = vunpack.c.h.b16 %v5498
    %v5529 = vunpack.c.h.b16 %v5499
    %v5530 = vunpack.c.h.b16 %v5500
    %v5531 = vpack.c.b16 %v5512, %v5511
    %v5532 = vpack.c.b16 %v5514, %v5513
    %v5533 = vpack.c.b16 %v5515, %v5515
    %v5534 = vpack.c.b16 %v5517, %v5516
    %v5535 = vpack.c.b16 %v5519, %v5518
    %v5536 = vpack.c.b16 %v5520, %v5520
    %v5537 = vpack.c.b16 %v5522, %v5521
    %v5538 = vpack.c.b16 %v5524, %v5523
    %v5539 = vpack.c.b16 %v5525, %v5525
    %v5540 = vpack.c.b16 %v5527, %v5526
    %v5541 = vpack.c.b16 %v5529, %v5528
    %v5542 = vpack.c.b16 %v5530, %v5530
    %5543 = vrot.lane.b32.xlu0 %v5531, 112
    %v5544 = vpop.permute.xlu0 %5543
    %5545 = vrot.lane.b32.xlu0 %v5532, 112
    %v5546 = vpop.permute.xlu0 %5545
    %5547 = vrot.lane.b32.xlu0 %v5533, 112
    %v5548 = vpop.permute.xlu0 %5547
    %5549 = vrot.lane.b32.xlu0 %v5534, 112
    %v5550 = vpop.permute.xlu0 %5549
    %5551 = vrot.lane.b32.xlu0 %v5535, 112
    %v5552 = vpop.permute.xlu0 %5551
    %5553 = vrot.lane.b32.xlu0 %v5536, 112
    %v5554 = vpop.permute.xlu0 %5553
    %5555 = vrot.lane.b32.xlu0 %v5537, 112
    %v5556 = vpop.permute.xlu0 %5555
    %5557 = vrot.lane.b32.xlu0 %v5538, 112
    %v5558 = vpop.permute.xlu0 %5557
    %5559 = vrot.lane.b32.xlu0 %v5539, 112
    %v5560 = vpop.permute.xlu0 %5559
    %5561 = vrot.lane.b32.xlu0 %v5540, 112
    %v5562 = vpop.permute.xlu0 %5561
    %5563 = vrot.lane.b32.xlu0 %v5541, 112
    %v5564 = vpop.permute.xlu0 %5563
    %5565 = vrot.lane.b32.xlu0 %v5542, 112
    %v5566 = vpop.permute.xlu0 %5565
    %v5567 = vrot.slane %v5544, 4
    %v5568 = vrot.slane %v5546, 4
    %v5569 = vrot.slane %v5548, 4
    %v5570 = vrot.slane %v5550, 4
    %v5571 = vrot.slane %v5552, 4
    %v5572 = vrot.slane %v5554, 4
    %v5573 = vrot.slane %v5556, 4
    %v5574 = vrot.slane %v5558, 4
    %v5575 = vrot.slane %v5560, 4
    %v5576 = vrot.slane %v5562, 4
    %v5577 = vrot.slane %v5564, 4
    %v5578 = vrot.slane %v5566, 4
    %v5579 = vsel %vm767, %v5567, %v5568
    %v5580 = vsel %vm2062, %v5544, %v5579
    %v5581 = vsel %vm767, %v5568, %v5569
    %v5582 = vsel %vm2062, %v5546, %v5581
    %v5583 = vsel %vm767, %v5570, %v5571
    %v5584 = vsel %vm2062, %v5550, %v5583
    %v5585 = vsel %vm767, %v5571, %v5572
    %v5586 = vsel %vm2062, %v5552, %v5585
    %v5587 = vsel %vm767, %v5573, %v5574
    %v5588 = vsel %vm2062, %v5556, %v5587
    %v5589 = vsel %vm767, %v5574, %v5575
    %v5590 = vsel %vm2062, %v5558, %v5589
    %v5591 = vsel %vm767, %v5576, %v5577
    %v5592 = vsel %vm2062, %v5562, %v5591
    %v5593 = vsel %vm767, %v5577, %v5578
    %v5594 = vsel %vm2062, %v5564, %v5593
    %5603 = vst [vmem:[#allocation4 + $0x1c0] sm:$0xff] %v5580
    %5604 = vst [vmem:[#allocation4 + $0x1c8] sm:$0xff] %v5582
    %5605 = vst [vmem:[#allocation4 + $0x1d0] sm:$0xff] %v5584
    %5606 = vst [vmem:[#allocation4 + $0x1d8] sm:$0xff] %v5586
    %5607 = vst [vmem:[#allocation4 + $0x1e0] sm:$0xff] %v5588
    %5608 = vst [vmem:[#allocation4 + $0x1e8] sm:$0xff] %v5590
    %5609 = vst [vmem:[#allocation4 + $0x1f0] sm:$0xff] %v5592
    %5610 = vst [vmem:[#allocation4 + $0x1f8] sm:$0xff] %v5594
    %v5611 = vld [vmem:[#allocation3 + $0x8] sm:$0xff]
    %v5612 = vld [vmem:[#allocation3 + $0x10] sm:$0xff]
    %v5613 = vld [vmem:[#allocation3 + $0x18] sm:$0xff]
    %v5614 = vld [vmem:[#allocation3 + $0x20] sm:$0xff]
    %v5615 = vld [vmem:[#allocation3 + $0x28] sm:$0xff]
    %v5616 = vld [vmem:[#allocation3 + $0x38] sm:$0xff]
    %v5617 = vld [vmem:[#allocation3 + $0x40] sm:$0xff]
    %v5618 = vld [vmem:[#allocation3 + $0x48] sm:$0xff]
    %v5619 = vld [vmem:[#allocation3 + $0x50] sm:$0xff]
    %v5620 = vld [vmem:[#allocation3 + $0x58] sm:$0xff]
    %v5621 = vld [vmem:[#allocation3 + $0x68] sm:$0xff]
    %v5622 = vld [vmem:[#allocation3 + $0x70] sm:$0xff]
    %v5623 = vld [vmem:[#allocation3 + $0x78] sm:$0xff]
    %v5624 = vld [vmem:[#allocation3 + $0x80] sm:$0xff]
    %v5625 = vld [vmem:[#allocation3 + $0x88] sm:$0xff]
    %v5626 = vld [vmem:[#allocation3 + $0x98] sm:$0xff]
    %v5627 = vld [vmem:[#allocation3 + $0xa0] sm:$0xff]
    %v5628 = vld [vmem:[#allocation3 + $0xa8] sm:$0xff]
    %v5629 = vld [vmem:[#allocation3 + $0xb0] sm:$0xff]
    %v5630 = vld [vmem:[#allocation3 + $0xb8] sm:$0xff]
    %v5631 = vld [vmem:[%s2114] ss:$8 sm:$0xf]
    %v5633 = vlaneseq
    %v5634 = vshrl.u32 %v5633, 7
    %v5635 = vsub.s32 0, %v5634
    %v5636 = vrot.slane %v5631, %v5635
    %v5637 = vlaneseq
    %v5638 = vshrl.u32 %v5637, 7
    %v5639 = vsub.s32 1, %v5638
    %v5640 = vrot.slane %v5631, %v5639
    %v5641 = vlaneseq
    %v5642 = vshrl.u32 %v5641, 7
    %v5643 = vsub.s32 2, %v5642
    %v5644 = vrot.slane %v5631, %v5643
    %v5645 = vlaneseq
    %v5646 = vshrl.u32 %v5645, 7
    %v5647 = vsub.s32 3, %v5646
    %v5648 = vrot.slane %v5631, %v5647
    %5649 = vrot.lane.b32.xlu0 %v5636, 17
    %v5650 = vpop.permute.xlu0 %5649
    %5651 = vrot.lane.b32.xlu0 %v5640, 17
    %v5652 = vpop.permute.xlu0 %5651
    %5653 = vrot.lane.b32.xlu0 %v5644, 17
    %v5654 = vpop.permute.xlu0 %5653
    %5655 = vrot.lane.b32.xlu0 %v5648, 17
    %v5656 = vpop.permute.xlu0 %5655
    %v5657 = vsel %vm2141, %v5650, %v5652
    %v5658 = vsel %vm2141, %v5652, %v5654
    %v5659 = vsel %vm2141, %v5654, %v5656
    %v5665 = vmul.f32 %v5611, %v5650
    %v5666 = vmul.f32 %v5612, %v5657
    %v5667 = vmul.f32 %v5613, %v5658
    %v5668 = vmul.f32 %v5614, %v5659
    %v5669 = vmul.f32 %v5615, %v5656
    %v5670 = vmul.f32 %v5616, %v5650
    %v5671 = vmul.f32 %v5617, %v5657
    %v5672 = vmul.f32 %v5618, %v5658
    %v5673 = vmul.f32 %v5619, %v5659
    %v5674 = vmul.f32 %v5620, %v5656
    %v5675 = vmul.f32 %v5621, %v5650
    %v5676 = vmul.f32 %v5622, %v5657
    %v5677 = vmul.f32 %v5623, %v5658
    %v5678 = vmul.f32 %v5624, %v5659
    %v5679 = vmul.f32 %v5625, %v5656
    %v5680 = vmul.f32 %v5626, %v5650
    %v5681 = vmul.f32 %v5627, %v5657
    %v5682 = vmul.f32 %v5628, %v5658
    %v5683 = vmul.f32 %v5629, %v5659
    %v5684 = vmul.f32 %v5630, %v5656
    %v5685 = vpack.c.bf16 %v5670, %v5665
    %v5686 = vpack.c.bf16 %v5671, %v5666
    %v5687 = vpack.c.bf16 %v5672, %v5667
    %v5688 = vpack.c.bf16 %v5673, %v5668
    %v5689 = vpack.c.bf16 %v5674, %v5669
    %v5690 = vpack.c.bf16 %v5680, %v5675
    %v5691 = vpack.c.bf16 %v5681, %v5676
    %v5692 = vpack.c.bf16 %v5682, %v5677
    %v5693 = vpack.c.bf16 %v5683, %v5678
    %v5694 = vpack.c.bf16 %v5684, %v5679
    %v5705 = vunpack.c.l.b16 %v5685
    %v5706 = vunpack.c.l.b16 %v5686
    %v5707 = vunpack.c.l.b16 %v5687
    %v5708 = vunpack.c.l.b16 %v5688
    %v5709 = vunpack.c.l.b16 %v5689
    %v5710 = vunpack.c.h.b16 %v5685
    %v5711 = vunpack.c.h.b16 %v5686
    %v5712 = vunpack.c.h.b16 %v5687
    %v5713 = vunpack.c.h.b16 %v5688
    %v5714 = vunpack.c.h.b16 %v5689
    %v5715 = vunpack.c.l.b16 %v5690
    %v5716 = vunpack.c.l.b16 %v5691
    %v5717 = vunpack.c.l.b16 %v5692
    %v5718 = vunpack.c.l.b16 %v5693
    %v5719 = vunpack.c.l.b16 %v5694
    %v5720 = vunpack.c.h.b16 %v5690
    %v5721 = vunpack.c.h.b16 %v5691
    %v5722 = vunpack.c.h.b16 %v5692
    %v5723 = vunpack.c.h.b16 %v5693
    %v5724 = vunpack.c.h.b16 %v5694
    %v5725 = vpack.c.b16 %v5706, %v5705
    %v5726 = vpack.c.b16 %v5708, %v5707
    %v5727 = vpack.c.b16 %v5709, %v5709
    %v5728 = vpack.c.b16 %v5711, %v5710
    %v5729 = vpack.c.b16 %v5713, %v5712
    %v5730 = vpack.c.b16 %v5714, %v5714
    %v5731 = vpack.c.b16 %v5716, %v5715
    %v5732 = vpack.c.b16 %v5718, %v5717
    %v5733 = vpack.c.b16 %v5719, %v5719
    %v5734 = vpack.c.b16 %v5721, %v5720
    %v5735 = vpack.c.b16 %v5723, %v5722
    %v5736 = vpack.c.b16 %v5724, %v5724
    %5737 = vrot.lane.b32.xlu0 %v5725, 111
    %v5738 = vpop.permute.xlu0 %5737
    %5739 = vrot.lane.b32.xlu0 %v5726, 111
    %v5740 = vpop.permute.xlu0 %5739
    %5741 = vrot.lane.b32.xlu0 %v5727, 111
    %v5742 = vpop.permute.xlu0 %5741
    %5743 = vrot.lane.b32.xlu0 %v5728, 111
    %v5744 = vpop.permute.xlu0 %5743
    %5745 = vrot.lane.b32.xlu0 %v5729, 111
    %v5746 = vpop.permute.xlu0 %5745
    %5747 = vrot.lane.b32.xlu0 %v5730, 111
    %v5748 = vpop.permute.xlu0 %5747
    %5749 = vrot.lane.b32.xlu0 %v5731, 111
    %v5750 = vpop.permute.xlu0 %5749
    %5751 = vrot.lane.b32.xlu0 %v5732, 111
    %v5752 = vpop.permute.xlu0 %5751
    %5753 = vrot.lane.b32.xlu0 %v5733, 111
    %v5754 = vpop.permute.xlu0 %5753
    %5755 = vrot.lane.b32.xlu0 %v5734, 111
    %v5756 = vpop.permute.xlu0 %5755
    %5757 = vrot.lane.b32.xlu0 %v5735, 111
    %v5758 = vpop.permute.xlu0 %5757
    %5759 = vrot.lane.b32.xlu0 %v5736, 111
    %v5760 = vpop.permute.xlu0 %5759
    %v5761 = vrot.slane %v5738, 4
    %v5762 = vrot.slane %v5740, 4
    %v5763 = vrot.slane %v5742, 4
    %v5764 = vrot.slane %v5744, 4
    %v5765 = vrot.slane %v5746, 4
    %v5766 = vrot.slane %v5748, 4
    %v5767 = vrot.slane %v5750, 4
    %v5768 = vrot.slane %v5752, 4
    %v5769 = vrot.slane %v5754, 4
    %v5770 = vrot.slane %v5756, 4
    %v5771 = vrot.slane %v5758, 4
    %v5772 = vrot.slane %v5760, 4
    %v5773 = vsel %vm767, %v5761, %v5762
    %v5774 = vsel %vm2259, %v5738, %v5773
    %v5775 = vsel %vm767, %v5762, %v5763
    %v5776 = vsel %vm2259, %v5740, %v5775
    %v5777 = vsel %vm767, %v5764, %v5765
    %v5778 = vsel %vm2259, %v5744, %v5777
    %v5779 = vsel %vm767, %v5765, %v5766
    %v5780 = vsel %vm2259, %v5746, %v5779
    %v5781 = vsel %vm767, %v5767, %v5768
    %v5782 = vsel %vm2259, %v5750, %v5781
    %v5783 = vsel %vm767, %v5768, %v5769
    %v5784 = vsel %vm2259, %v5752, %v5783
    %v5785 = vsel %vm767, %v5770, %v5771
    %v5786 = vsel %vm2259, %v5756, %v5785
    %v5787 = vsel %vm767, %v5771, %v5772
    %v5788 = vsel %vm2259, %v5758, %v5787
    %5797 = vst [vmem:[#allocation4 + $0x200] sm:$0xff] %v5774
    %5798 = vst [vmem:[#allocation4 + $0x208] sm:$0xff] %v5776
    %5799 = vst [vmem:[#allocation4 + $0x210] sm:$0xff] %v5778
    %5800 = vst [vmem:[#allocation4 + $0x218] sm:$0xff] %v5780
    %5801 = vst [vmem:[#allocation4 + $0x220] sm:$0xff] %v5782
    %5802 = vst [vmem:[#allocation4 + $0x228] sm:$0xff] %v5784
    %5803 = vst [vmem:[#allocation4 + $0x230] sm:$0xff] %v5786
    %5804 = vst [vmem:[#allocation4 + $0x238] sm:$0xff] %v5788
    %v5805 = vld [vmem:[#allocation11] sm:$0xff]
    %v5806 = vld [vmem:[#allocation11 + $0x8] sm:$0xf]
    %v5807 = vld [vmem:[#allocation11 + $0xc] sm:$0xff]
    %v5808 = vld [vmem:[#allocation11 + $0x14] sm:$0xf]
    %v5809 = vld [vmem:[#allocation11 + $0x18] sm:$0xff]
    %v5810 = vld [vmem:[#allocation11 + $0x20] sm:$0xf]
    %v5811 = vld [vmem:[#allocation11 + $0x24] sm:$0xff]
    %v5812 = vld [vmem:[#allocation11 + $0x2c] sm:$0xf]
    %v5813 = vld [vmem:[#allocation4] sm:$0xff]
    %v5814 = vld [vmem:[#allocation4 + $0x8] sm:$0xff]
    %v5815 = vld [vmem:[#allocation4 + $0x10] sm:$0xff]
    %v5816 = vld [vmem:[#allocation4 + $0x18] sm:$0xff]
    %v5817 = vld [vmem:[#allocation4 + $0x20] sm:$0xff]
    %v5818 = vld [vmem:[#allocation4 + $0x28] sm:$0xff]
    %v5819 = vld [vmem:[#allocation4 + $0x30] sm:$0xff]
    %v5820 = vld [vmem:[#allocation4 + $0x38] sm:$0xff]
    %v5821 = vld [vmem:[#allocation4 + $0x40] sm:$0xff]
    %v5822 = vld [vmem:[#allocation4 + $0x48] sm:$0xff]
    %v5823 = vld [vmem:[#allocation4 + $0x50] sm:$0xff]
    %v5824 = vld [vmem:[#allocation4 + $0x58] sm:$0xff]
    %v5825 = vld [vmem:[#allocation4 + $0x60] sm:$0xff]
    %v5826 = vld [vmem:[#allocation4 + $0x68] sm:$0xff]
    %v5827 = vld [vmem:[#allocation4 + $0x70] sm:$0xff]
    %v5828 = vld [vmem:[#allocation4 + $0x78] sm:$0xff]
    %v5829 = vld [vmem:[#allocation4 + $0x80] sm:$0xff]
    %v5830 = vld [vmem:[#allocation4 + $0x88] sm:$0xff]
    %v5831 = vld [vmem:[#allocation4 + $0x90] sm:$0xff]
    %v5832 = vld [vmem:[#allocation4 + $0x98] sm:$0xff]
    %v5833 = vld [vmem:[#allocation4 + $0xa0] sm:$0xff]
    %v5834 = vld [vmem:[#allocation4 + $0xa8] sm:$0xff]
    %v5835 = vld [vmem:[#allocation4 + $0xb0] sm:$0xff]
    %v5836 = vld [vmem:[#allocation4 + $0xb8] sm:$0xff]
    %v5837 = vld [vmem:[#allocation4 + $0xc0] sm:$0xff]
    %v5838 = vld [vmem:[#allocation4 + $0xc8] sm:$0xff]
    %v5839 = vld [vmem:[#allocation4 + $0xd0] sm:$0xff]
    %v5840 = vld [vmem:[#allocation4 + $0xd8] sm:$0xff]
    %v5841 = vld [vmem:[#allocation4 + $0xe0] sm:$0xff]
    %v5842 = vld [vmem:[#allocation4 + $0xe8] sm:$0xff]
    %v5843 = vld [vmem:[#allocation4 + $0xf0] sm:$0xff]
    %v5844 = vld [vmem:[#allocation4 + $0xf8] sm:$0xff]
    %v5845 = vld [vmem:[#allocation4 + $0x100] sm:$0xff]
    %v5846 = vld [vmem:[#allocation4 + $0x108] sm:$0xff]
    %v5847 = vld [vmem:[#allocation4 + $0x110] sm:$0xff]
    %v5848 = vld [vmem:[#allocation4 + $0x118] sm:$0xff]
    %v5849 = vld [vmem:[#allocation4 + $0x120] sm:$0xff]
    %v5850 = vld [vmem:[#allocation4 + $0x128] sm:$0xff]
    %v5851 = vld [vmem:[#allocation4 + $0x130] sm:$0xff]
    %v5852 = vld [vmem:[#allocation4 + $0x138] sm:$0xff]
    %v5853 = vld [vmem:[#allocation4 + $0x140] sm:$0xff]
    %v5854 = vld [vmem:[#allocation4 + $0x148] sm:$0xff]
    %v5855 = vld [vmem:[#allocation4 + $0x150] sm:$0xff]
    %v5856 = vld [vmem:[#allocation4 + $0x158] sm:$0xff]
    %v5857 = vld [vmem:[#allocation4 + $0x160] sm:$0xff]
    %v5858 = vld [vmem:[#allocation4 + $0x168] sm:$0xff]
    %v5859 = vld [vmem:[#allocation4 + $0x170] sm:$0xff]
    %v5860 = vld [vmem:[#allocation4 + $0x178] sm:$0xff]
    %v5861 = vld [vmem:[#allocation4 + $0x180] sm:$0xff]
    %v5862 = vld [vmem:[#allocation4 + $0x188] sm:$0xff]
    %v5863 = vld [vmem:[#allocation4 + $0x190] sm:$0xff]
    %v5864 = vld [vmem:[#allocation4 + $0x198] sm:$0xff]
    %v5865 = vld [vmem:[#allocation4 + $0x1a0] sm:$0xff]
    %v5866 = vld [vmem:[#allocation4 + $0x1a8] sm:$0xff]
    %v5867 = vld [vmem:[#allocation4 + $0x1b0] sm:$0xff]
    %v5868 = vld [vmem:[#allocation4 + $0x1b8] sm:$0xff]
    %v5869 = vld [vmem:[#allocation4 + $0x1c0] sm:$0xff]
    %v5870 = vld [vmem:[#allocation4 + $0x1c8] sm:$0xff]
    %v5871 = vld [vmem:[#allocation4 + $0x1d0] sm:$0xff]
    %v5872 = vld [vmem:[#allocation4 + $0x1d8] sm:$0xff]
    %v5873 = vld [vmem:[#allocation4 + $0x1e0] sm:$0xff]
    %v5874 = vld [vmem:[#allocation4 + $0x1e8] sm:$0xff]
    %v5875 = vld [vmem:[#allocation4 + $0x1f0] sm:$0xff]
    %v5876 = vld [vmem:[#allocation4 + $0x1f8] sm:$0xff]
    %v5877 = vld [vmem:[#allocation4 + $0x200] sm:$0xff]
    %v5878 = vld [vmem:[#allocation4 + $0x208] sm:$0xff]
    %v5879 = vld [vmem:[#allocation4 + $0x210] sm:$0xff]
    %v5880 = vld [vmem:[#allocation4 + $0x218] sm:$0xff]
    %v5881 = vld [vmem:[#allocation4 + $0x220] sm:$0xff]
    %v5882 = vld [vmem:[#allocation4 + $0x228] sm:$0xff]
    %v5883 = vld [vmem:[#allocation4 + $0x230] sm:$0xff]
    %v5884 = vld [vmem:[#allocation4 + $0x238] sm:$0xff]
    %v5893 = vunpack.c.l.b16 %v5805
    %v5894 = vunpack.c.h.b16 %v5805
    %v5895 = vunpack.c.l.b16 %v5806
    %v5896 = vunpack.c.l.b16 %v5807
    %v5897 = vunpack.c.h.b16 %v5807
    %v5898 = vunpack.c.l.b16 %v5808
    %v5899 = vunpack.c.l.b16 %v5809
    %v5900 = vunpack.c.h.b16 %v5809
    %v5901 = vunpack.c.l.b16 %v5810
    %v5902 = vunpack.c.l.b16 %v5811
    %v5903 = vunpack.c.h.b16 %v5811
    %v5904 = vunpack.c.l.b16 %v5812
    %v5905 = vpack.c.b16 %v5896, %v5893
    %v5906 = vpack.c.b16 %v5897, %v5894
    %v5907 = vpack.c.b16 %v5898, %v5895
    %v5908 = vpack.c.b16 %v5902, %v5899
    %v5909 = vpack.c.b16 %v5903, %v5900
    %v5910 = vpack.c.b16 %v5904, %v5901
    %v5987 = vunpack.c.l.b16 %v5813
    %v5988 = vunpack.c.h.b16 %v5813
    %v5989 = vunpack.c.l.b16 %v5814
    %v5990 = vunpack.c.h.b16 %v5814
    %v5991 = vunpack.c.l.b16 %v5815
    %v5992 = vunpack.c.h.b16 %v5815
    %v5993 = vunpack.c.l.b16 %v5816
    %v5994 = vunpack.c.h.b16 %v5816
    %v5995 = vunpack.c.l.b16 %v5817
    %v5996 = vunpack.c.h.b16 %v5817
    %v5997 = vunpack.c.l.b16 %v5818
    %v5998 = vunpack.c.h.b16 %v5818
    %v5999 = vunpack.c.l.b16 %v5819
    %v6000 = vunpack.c.h.b16 %v5819
    %v6001 = vunpack.c.l.b16 %v5820
    %v6002 = vunpack.c.h.b16 %v5820
    %v6003 = vunpack.c.l.b16 %v5821
    %v6004 = vunpack.c.h.b16 %v5821
    %v6005 = vunpack.c.l.b16 %v5822
    %v6006 = vunpack.c.h.b16 %v5822
    %v6007 = vunpack.c.l.b16 %v5823
    %v6008 = vunpack.c.h.b16 %v5823
    %v6009 = vunpack.c.l.b16 %v5824
    %v6010 = vunpack.c.h.b16 %v5824
    %v6011 = vunpack.c.l.b16 %v5825
    %v6012 = vunpack.c.h.b16 %v5825
    %v6013 = vunpack.c.l.b16 %v5826
    %v6014 = vunpack.c.h.b16 %v5826
    %v6015 = vunpack.c.l.b16 %v5827
    %v6016 = vunpack.c.h.b16 %v5827
    %v6017 = vunpack.c.l.b16 %v5828
    %v6018 = vunpack.c.h.b16 %v5828
    %v6019 = vunpack.c.l.b16 %v5829
    %v6020 = vunpack.c.h.b16 %v5829
    %v6021 = vunpack.c.l.b16 %v5830
    %v6022 = vunpack.c.h.b16 %v5830
    %v6023 = vunpack.c.l.b16 %v5831
    %v6024 = vunpack.c.h.b16 %v5831
    %v6025 = vunpack.c.l.b16 %v5832
    %v6026 = vunpack.c.h.b16 %v5832
    %v6027 = vunpack.c.l.b16 %v5833
    %v6028 = vunpack.c.h.b16 %v5833
    %v6029 = vunpack.c.l.b16 %v5834
    %v6030 = vunpack.c.h.b16 %v5834
    %v6031 = vunpack.c.l.b16 %v5835
    %v6032 = vunpack.c.h.b16 %v5835
    %v6033 = vunpack.c.l.b16 %v5836
    %v6034 = vunpack.c.h.b16 %v5836
    %v6035 = vunpack.c.l.b16 %v5837
    %v6036 = vunpack.c.h.b16 %v5837
    %v6037 = vunpack.c.l.b16 %v5838
    %v6038 = vunpack.c.h.b16 %v5838
    %v6039 = vunpack.c.l.b16 %v5839
    %v6040 = vunpack.c.h.b16 %v5839
    %v6041 = vunpack.c.l.b16 %v5840
    %v6042 = vunpack.c.h.b16 %v5840
    %v6043 = vunpack.c.l.b16 %v5841
    %v6044 = vunpack.c.h.b16 %v5841
    %v6045 = vunpack.c.l.b16 %v5842
    %v6046 = vunpack.c.h.b16 %v5842
    %v6047 = vunpack.c.l.b16 %v5843
    %v6048 = vunpack.c.h.b16 %v5843
    %v6049 = vunpack.c.l.b16 %v5844
    %v6050 = vunpack.c.h.b16 %v5844
    %v6051 = vunpack.c.l.b16 %v5845
    %v6052 = vunpack.c.h.b16 %v5845
    %v6053 = vunpack.c.l.b16 %v5846
    %v6054 = vunpack.c.h.b16 %v5846
    %v6055 = vunpack.c.l.b16 %v5847
    %v6056 = vunpack.c.h.b16 %v5847
    %v6057 = vunpack.c.l.b16 %v5848
    %v6058 = vunpack.c.h.b16 %v5848
    %v6059 = vunpack.c.l.b16 %v5849
    %v6060 = vunpack.c.h.b16 %v5849
    %v6061 = vunpack.c.l.b16 %v5850
    %v6062 = vunpack.c.h.b16 %v5850
    %v6063 = vunpack.c.l.b16 %v5851
    %v6064 = vunpack.c.h.b16 %v5851
    %v6065 = vunpack.c.l.b16 %v5852
    %v6066 = vunpack.c.h.b16 %v5852
    %v6067 = vunpack.c.l.b16 %v5853
    %v6068 = vunpack.c.h.b16 %v5853
    %v6069 = vunpack.c.l.b16 %v5854
    %v6070 = vunpack.c.h.b16 %v5854
    %v6071 = vunpack.c.l.b16 %v5855
    %v6072 = vunpack.c.h.b16 %v5855
    %v6073 = vunpack.c.l.b16 %v5856
    %v6074 = vunpack.c.h.b16 %v5856
    %v6075 = vunpack.c.l.b16 %v5857
    %v6076 = vunpack.c.h.b16 %v5857
    %v6077 = vunpack.c.l.b16 %v5858
    %v6078 = vunpack.c.h.b16 %v5858
    %v6079 = vunpack.c.l.b16 %v5859
    %v6080 = vunpack.c.h.b16 %v5859
    %v6081 = vunpack.c.l.b16 %v5860
    %v6082 = vunpack.c.h.b16 %v5860
    %v6083 = vunpack.c.l.b16 %v5861
    %v6084 = vunpack.c.h.b16 %v5861
    %v6085 = vunpack.c.l.b16 %v5862
    %v6086 = vunpack.c.h.b16 %v5862
    %v6087 = vunpack.c.l.b16 %v5863
    %v6088 = vunpack.c.h.b16 %v5863
    %v6089 = vunpack.c.l.b16 %v5864
    %v6090 = vunpack.c.h.b16 %v5864
    %v6091 = vunpack.c.l.b16 %v5865
    %v6092 = vunpack.c.h.b16 %v5865
    %v6093 = vunpack.c.l.b16 %v5866
    %v6094 = vunpack.c.h.b16 %v5866
    %v6095 = vunpack.c.l.b16 %v5867
    %v6096 = vunpack.c.h.b16 %v5867
    %v6097 = vunpack.c.l.b16 %v5868
    %v6098 = vunpack.c.h.b16 %v5868
    %v6099 = vunpack.c.l.b16 %v5869
    %v6100 = vunpack.c.h.b16 %v5869
    %v6101 = vunpack.c.l.b16 %v5870
    %v6102 = vunpack.c.h.b16 %v5870
    %v6103 = vunpack.c.l.b16 %v5871
    %v6104 = vunpack.c.h.b16 %v5871
    %v6105 = vunpack.c.l.b16 %v5872
    %v6106 = vunpack.c.h.b16 %v5872
    %v6107 = vunpack.c.l.b16 %v5873
    %v6108 = vunpack.c.h.b16 %v5873
    %v6109 = vunpack.c.l.b16 %v5874
    %v6110 = vunpack.c.h.b16 %v5874
    %v6111 = vunpack.c.l.b16 %v5875
    %v6112 = vunpack.c.h.b16 %v5875
    %v6113 = vunpack.c.l.b16 %v5876
    %v6114 = vunpack.c.h.b16 %v5876
    %v6115 = vunpack.c.l.b16 %v5877
    %v6116 = vunpack.c.h.b16 %v5877
    %v6117 = vunpack.c.l.b16 %v5878
    %v6118 = vunpack.c.h.b16 %v5878
    %v6119 = vunpack.c.l.b16 %v5879
    %v6120 = vunpack.c.h.b16 %v5879
    %v6121 = vunpack.c.l.b16 %v5880
    %v6122 = vunpack.c.h.b16 %v5880
    %v6123 = vunpack.c.l.b16 %v5881
    %v6124 = vunpack.c.h.b16 %v5881
    %v6125 = vunpack.c.l.b16 %v5882
    %v6126 = vunpack.c.h.b16 %v5882
    %v6127 = vunpack.c.l.b16 %v5883
    %v6128 = vunpack.c.h.b16 %v5883
    %v6129 = vunpack.c.l.b16 %v5884
    %v6130 = vunpack.c.h.b16 %v5884
    %v6131 = vpack.c.b16 %v5991, %v5987
    %v6132 = vpack.c.b16 %v5992, %v5988
    %v6133 = vpack.c.b16 %v5993, %v5989
    %v6134 = vpack.c.b16 %v5994, %v5990
    %v6135 = vpack.c.b16 %v5999, %v5995
    %v6136 = vpack.c.b16 %v6000, %v5996
    %v6137 = vpack.c.b16 %v6001, %v5997
    %v6138 = vpack.c.b16 %v6002, %v5998
    %v6139 = vpack.c.b16 %v6007, %v6003
    %v6140 = vpack.c.b16 %v6008, %v6004
    %v6141 = vpack.c.b16 %v6009, %v6005
    %v6142 = vpack.c.b16 %v6010, %v6006
    %v6143 = vpack.c.b16 %v6015, %v6011
    %v6144 = vpack.c.b16 %v6016, %v6012
    %v6145 = vpack.c.b16 %v6017, %v6013
    %v6146 = vpack.c.b16 %v6018, %v6014
    %v6147 = vpack.c.b16 %v6023, %v6019
    %v6148 = vpack.c.b16 %v6024, %v6020
    %v6149 = vpack.c.b16 %v6025, %v6021
    %v6150 = vpack.c.b16 %v6026, %v6022
    %v6151 = vpack.c.b16 %v6031, %v6027
    %v6152 = vpack.c.b16 %v6032, %v6028
    %v6153 = vpack.c.b16 %v6033, %v6029
    %v6154 = vpack.c.b16 %v6034, %v6030
    %v6155 = vpack.c.b16 %v6039, %v6035
    %v6156 = vpack.c.b16 %v6040, %v6036
    %v6157 = vpack.c.b16 %v6041, %v6037
    %v6158 = vpack.c.b16 %v6042, %v6038
    %v6159 = vpack.c.b16 %v6047, %v6043
    %v6160 = vpack.c.b16 %v6048, %v6044
    %v6161 = vpack.c.b16 %v6049, %v6045
    %v6162 = vpack.c.b16 %v6050, %v6046
    %v6163 = vpack.c.b16 %v6055, %v6051
    %v6164 = vpack.c.b16 %v6056, %v6052
    %v6165 = vpack.c.b16 %v6057, %v6053
    %v6166 = vpack.c.b16 %v6058, %v6054
    %v6167 = vpack.c.b16 %v6063, %v6059
    %v6168 = vpack.c.b16 %v6064, %v6060
    %v6169 = vpack.c.b16 %v6065, %v6061
    %v6170 = vpack.c.b16 %v6066, %v6062
    %v6171 = vpack.c.b16 %v6071, %v6067
    %v6172 = vpack.c.b16 %v6072, %v6068
    %v6173 = vpack.c.b16 %v6073, %v6069
    %v6174 = vpack.c.b16 %v6074, %v6070
    %v6175 = vpack.c.b16 %v6079, %v6075
    %v6176 = vpack.c.b16 %v6080, %v6076
    %v6177 = vpack.c.b16 %v6081, %v6077
    %v6178 = vpack.c.b16 %v6082, %v6078
    %v6179 = vpack.c.b16 %v6087, %v6083
    %v6180 = vpack.c.b16 %v6088, %v6084
    %v6181 = vpack.c.b16 %v6089, %v6085
    %v6182 = vpack.c.b16 %v6090, %v6086
    %v6183 = vpack.c.b16 %v6095, %v6091
    %v6184 = vpack.c.b16 %v6096, %v6092
    %v6185 = vpack.c.b16 %v6097, %v6093
    %v6186 = vpack.c.b16 %v6098, %v6094
    %v6187 = vpack.c.b16 %v6103, %v6099
    %v6188 = vpack.c.b16 %v6104, %v6100
    %v6189 = vpack.c.b16 %v6105, %v6101
    %v6190 = vpack.c.b16 %v6106, %v6102
    %v6191 = vpack.c.b16 %v6111, %v6107
    %v6192 = vpack.c.b16 %v6112, %v6108
    %v6193 = vpack.c.b16 %v6113, %v6109
    %v6194 = vpack.c.b16 %v6114, %v6110
    %v6195 = vpack.c.b16 %v6119, %v6115
    %v6196 = vpack.c.b16 %v6120, %v6116
    %v6197 = vpack.c.b16 %v6121, %v6117
    %v6198 = vpack.c.b16 %v6122, %v6118
    %v6199 = vpack.c.b16 %v6127, %v6123
    %v6200 = vpack.c.b16 %v6128, %v6124
    %v6201 = vpack.c.b16 %v6129, %v6125
    %v6202 = vpack.c.b16 %v6130, %v6126
    %v6276 = vsel %vm2761, %v5907, 0
    %v6279 = vsel %vm2761, %v5910, 0
    %6281 = vmatprep.subr.bf16.mxu0 %v6160
    %6282 = vmatpush1.bf16.msra.mxu0 %v6159
    %6283 = vmatprep.subr.bf16.mxu0 %v6156
    %6284 = vmatpush1.bf16.msra.mxu0 %v6155
    %6285 = vmatprep.subr.bf16.mxu0 %v6152
    %6286 = vmatpush1.bf16.msra.mxu0 %v6151
    %6287 = vmatprep.subr.bf16.mxu0 %v6148
    %6288 = vmatpush1.bf16.msra.mxu0 %v6147
    %6289 = vmatprep.subr.bf16.mxu0 %v6144
    %6290 = vmatpush1.bf16.msra.mxu0 %v6143
    %6291 = vmatprep.subr.bf16.mxu0 %v6140
    %6292 = vmatpush1.bf16.msra.mxu0 %v6139
    %6293 = vmatprep.subr.bf16.mxu0 %v6136
    %6294 = vmatpush1.bf16.msra.mxu0 %v6135
    %6295 = vmatprep.subr.bf16.mxu0 %v6132
    %6296 = vmatpush1.bf16.msra.mxu0 %v6131
    %6297 = vmatprep.subr.bf16.mxu0 %v6192
    %6298 = vmatpush2.bf16.msra.mxu0 %v6191
    %6299 = vmatprep.subr.bf16.mxu0 %v6188
    %6300 = vmatpush2.bf16.msra.mxu0 %v6187
    %6301 = vmatprep.subr.bf16.mxu0 %v6184
    %6302 = vmatpush2.bf16.msra.mxu0 %v6183
    %6303 = vmatprep.subr.bf16.mxu0 %v6180
    %6304 = vmatpush2.bf16.msra.mxu0 %v6179
    %6305 = vmatprep.subr.bf16.mxu0 %v6176
    %6306 = vmatpush2.bf16.msra.mxu0 %v6175
    %6307 = vmatprep.subr.bf16.mxu0 %v6172
    %6308 = vmatpush2.bf16.msra.mxu0 %v6171
    %6309 = vmatprep.subr.bf16.mxu0 %v6168
    %6310 = vmatpush2.bf16.msra.mxu0 %v6167
    %6311 = vmatprep.subr.bf16.mxu0 %v6164
    %6312 = vmatpush2.bf16.msra.mxu0 %v6163
    %6313 = vmatprep.mubr.bf16.mxu0 %v5906
    %6314 = vmatmul.mubr.bf16.gmra.mxu0 %v5905
    %v6315 = vpop.f32.mrf.mxu0
    %v6316 = vadd.f32 0.0, %v6315
    %v6317 = vpop.f32.mrf.mxu0
    %v6318 = vadd.f32 0.0, %v6317
    %v6319 = vpop.f32.mrf.mxu0
    %v6320 = vadd.f32 0.0, %v6319
    %v6321 = vpop.f32.mrf.mxu0
    %v6322 = vadd.f32 0.0, %v6321
    %6323 = vmatprep.mubr.bf16.mxu0 %v5909
    %6324 = vmatmul.mubr.bf16.gmra.mxu0 %v5908
    %v6325 = vpop.f32.mrf.mxu0
    %v6326 = vadd.f32 0.0, %v6325
    %v6327 = vpop.f32.mrf.mxu0
    %v6328 = vadd.f32 0.0, %v6327
    %v6329 = vpop.f32.mrf.mxu0
    %v6330 = vadd.f32 0.0, %v6329
    %v6331 = vpop.f32.mrf.mxu0
    %v6332 = vadd.f32 0.0, %v6331
    %6333 = vdwg.mxu0
    %6334 = vmatprep.subr.bf16.mxu0 0
    %6335 = vmatpush1.bf16.msra.mxu0 0
    %6336 = vmatprep.subr.bf16.mxu0 0
    %6337 = vmatpush1.bf16.msra.mxu0 0
    %6338 = vmatprep.subr.bf16.mxu0 0
    %6339 = vmatpush1.bf16.msra.mxu0 0
    %6340 = vmatprep.subr.bf16.mxu0 0
    %6341 = vmatpush1.bf16.msra.mxu0 0
    %6342 = vmatprep.subr.bf16.mxu0 0
    %6343 = vmatpush1.bf16.msra.mxu0 0
    %6344 = vmatprep.subr.bf16.mxu0 0
    %6345 = vmatpush1.bf16.msra.mxu0 0
    %6346 = vmatprep.subr.bf16.mxu0 %v6200
    %6347 = vmatpush1.bf16.msra.mxu0 %v6199
    %6348 = vmatprep.subr.bf16.mxu0 %v6196
    %6349 = vmatpush1.bf16.msra.mxu0 %v6195
    %6350 = vmatprep.subr.bf16.mxu0 0
    %6351 = vmatpush2.bf16.msra.mxu0 0
    %6352 = vmatprep.subr.bf16.mxu0 0
    %6353 = vmatpush2.bf16.msra.mxu0 0
    %6354 = vmatprep.subr.bf16.mxu0 0
    %6355 = vmatpush2.bf16.msra.mxu0 0
    %6356 = vmatprep.subr.bf16.mxu0 0
    %6357 = vmatpush2.bf16.msra.mxu0 0
    %6358 = vmatprep.subr.bf16.mxu0 0
    %6359 = vmatpush2.bf16.msra.mxu0 0
    %6360 = vmatprep.subr.bf16.mxu0 0
    %6361 = vmatpush2.bf16.msra.mxu0 0
    %6362 = vmatprep.subr.bf16.mxu0 0
    %6363 = vmatpush2.bf16.msra.mxu0 0
    %6364 = vmatprep.subr.bf16.mxu0 0
    %6365 = vmatpush2.bf16.msra.mxu0 0
    %6366 = vmatprep.mubr.bf16.mxu0 0
    %6367 = vmatmul.mubr.bf16.gmra.mxu0 %v6276
    %v6368 = vpop.f32.mrf.mxu0
    %v6369 = vadd.f32 %v6316, %v6368
    %v6370 = vpop.f32.mrf.mxu0
    %v6371 = vadd.f32 %v6318, %v6370
    %v6372 = vpop.f32.mrf.mxu0
    %v6373 = vadd.f32 %v6320, %v6372
    %v6374 = vpop.f32.mrf.mxu0
    %v6375 = vadd.f32 %v6322, %v6374
    %6376 = vmatprep.mubr.bf16.mxu0 0
    %6377 = vmatmul.mubr.bf16.gmra.mxu0 %v6279
    %v6378 = vpop.f32.mrf.mxu0
    %v6379 = vadd.f32 %v6326, %v6378
    %v6380 = vpop.f32.mrf.mxu0
    %v6381 = vadd.f32 %v6328, %v6380
    %v6382 = vpop.f32.mrf.mxu0
    %v6383 = vadd.f32 %v6330, %v6382
    %v6384 = vpop.f32.mrf.mxu0
    %v6385 = vadd.f32 %v6332, %v6384
    %6386 = vdwg.mxu0
    %6387 = vmatprep.subr.bf16.mxu0 %v6162
    %6388 = vmatpush1.bf16.msra.mxu0 %v6161
    %6389 = vmatprep.subr.bf16.mxu0 %v6158
    %6390 = vmatpush1.bf16.msra.mxu0 %v6157
    %6391 = vmatprep.subr.bf16.mxu0 %v6154
    %6392 = vmatpush1.bf16.msra.mxu0 %v6153
    %6393 = vmatprep.subr.bf16.mxu0 %v6150
    %6394 = vmatpush1.bf16.msra.mxu0 %v6149
    %6395 = vmatprep.subr.bf16.mxu0 %v6146
    %6396 = vmatpush1.bf16.msra.mxu0 %v6145
    %6397 = vmatprep.subr.bf16.mxu0 %v6142
    %6398 = vmatpush1.bf16.msra.mxu0 %v6141
    %6399 = vmatprep.subr.bf16.mxu0 %v6138
    %6400 = vmatpush1.bf16.msra.mxu0 %v6137
    %6401 = vmatprep.subr.bf16.mxu0 %v6134
    %6402 = vmatpush1.bf16.msra.mxu0 %v6133
    %6403 = vmatprep.subr.bf16.mxu0 %v6194
    %6404 = vmatpush2.bf16.msra.mxu0 %v6193
    %6405 = vmatprep.subr.bf16.mxu0 %v6190
    %6406 = vmatpush2.bf16.msra.mxu0 %v6189
    %6407 = vmatprep.subr.bf16.mxu0 %v6186
    %6408 = vmatpush2.bf16.msra.mxu0 %v6185
    %6409 = vmatprep.subr.bf16.mxu0 %v6182
    %6410 = vmatpush2.bf16.msra.mxu0 %v6181
    %6411 = vmatprep.subr.bf16.mxu0 %v6178
    %6412 = vmatpush2.bf16.msra.mxu0 %v6177
    %6413 = vmatprep.subr.bf16.mxu0 %v6174
    %6414 = vmatpush2.bf16.msra.mxu0 %v6173
    %6415 = vmatprep.subr.bf16.mxu0 %v6170
    %6416 = vmatpush2.bf16.msra.mxu0 %v6169
    %6417 = vmatprep.subr.bf16.mxu0 %v6166
    %6418 = vmatpush2.bf16.msra.mxu0 %v6165
    %6419 = vmatprep.mubr.bf16.mxu0 %v5906
    %6420 = vmatmul.mubr.bf16.gmra.mxu0 %v5905
    %v6421 = vpop.f32.mrf.mxu0
    %v6422 = vadd.f32 0.0, %v6421
    %v6423 = vpop.f32.mrf.mxu0
    %v6424 = vadd.f32 0.0, %v6423
    %v6425 = vpop.f32.mrf.mxu0
    %v6426 = vadd.f32 0.0, %v6425
    %v6427 = vpop.f32.mrf.mxu0
    %v6428 = vadd.f32 0.0, %v6427
    %6429 = vmatprep.mubr.bf16.mxu0 %v5909
    %6430 = vmatmul.mubr.bf16.gmra.mxu0 %v5908
    %v6431 = vpop.f32.mrf.mxu0
    %v6432 = vadd.f32 0.0, %v6431
    %v6433 = vpop.f32.mrf.mxu0
    %v6434 = vadd.f32 0.0, %v6433
    %v6435 = vpop.f32.mrf.mxu0
    %v6436 = vadd.f32 0.0, %v6435
    %v6437 = vpop.f32.mrf.mxu0
    %v6438 = vadd.f32 0.0, %v6437
    %6439 = vdwg.mxu0
    %6440 = vmatprep.subr.bf16.mxu0 0
    %6441 = vmatpush1.bf16.msra.mxu0 0
    %6442 = vmatprep.subr.bf16.mxu0 0
    %6443 = vmatpush1.bf16.msra.mxu0 0
    %6444 = vmatprep.subr.bf16.mxu0 0
    %6445 = vmatpush1.bf16.msra.mxu0 0
    %6446 = vmatprep.subr.bf16.mxu0 0
    %6447 = vmatpush1.bf16.msra.mxu0 0
    %6448 = vmatprep.subr.bf16.mxu0 0
    %6449 = vmatpush1.bf16.msra.mxu0 0
    %6450 = vmatprep.subr.bf16.mxu0 0
    %6451 = vmatpush1.bf16.msra.mxu0 0
    %6452 = vmatprep.subr.bf16.mxu0 %v6202
    %6453 = vmatpush1.bf16.msra.mxu0 %v6201
    %6454 = vmatprep.subr.bf16.mxu0 %v6198
    %6455 = vmatpush1.bf16.msra.mxu0 %v6197
    %6456 = vmatprep.subr.bf16.mxu0 0
    %6457 = vmatpush2.bf16.msra.mxu0 0
    %6458 = vmatprep.subr.bf16.mxu0 0
    %6459 = vmatpush2.bf16.msra.mxu0 0
    %6460 = vmatprep.subr.bf16.mxu0 0
    %6461 = vmatpush2.bf16.msra.mxu0 0
    %6462 = vmatprep.subr.bf16.mxu0 0
    %6463 = vmatpush2.bf16.msra.mxu0 0
    %6464 = vmatprep.subr.bf16.mxu0 0
    %6465 = vmatpush2.bf16.msra.mxu0 0
    %6466 = vmatprep.subr.bf16.mxu0 0
    %6467 = vmatpush2.bf16.msra.mxu0 0
    %6468 = vmatprep.subr.bf16.mxu0 0
    %6469 = vmatpush2.bf16.msra.mxu0 0
    %6470 = vmatprep.subr.bf16.mxu0 0
    %6471 = vmatpush2.bf16.msra.mxu0 0
    %6472 = vmatprep.mubr.bf16.mxu0 0
    %6473 = vmatmul.mubr.bf16.gmra.mxu0 %v6276
    %v6474 = vpop.f32.mrf.mxu0
    %v6475 = vadd.f32 %v6422, %v6474
    %v6476 = vpop.f32.mrf.mxu0
    %v6477 = vadd.f32 %v6424, %v6476
    %v6478 = vpop.f32.mrf.mxu0
    %v6479 = vadd.f32 %v6426, %v6478
    %v6480 = vpop.f32.mrf.mxu0
    %v6481 = vadd.f32 %v6428, %v6480
    %6482 = vmatprep.mubr.bf16.mxu0 0
    %6483 = vmatmul.mubr.bf16.gmra.mxu0 %v6279
    %v6484 = vpop.f32.mrf.mxu0
    %v6485 = vadd.f32 %v6432, %v6484
    %v6486 = vpop.f32.mrf.mxu0
    %v6487 = vadd.f32 %v6434, %v6486
    %v6488 = vpop.f32.mrf.mxu0
    %v6489 = vadd.f32 %v6436, %v6488
    %v6490 = vpop.f32.mrf.mxu0
    %v6491 = vadd.f32 %v6438, %v6490
    %6492 = vdwg.mxu0
    %v6493 = vadd.f32 %v6369, %v6371
    %v6494 = vadd.f32 %v6493, %v6475
    %v6495 = vadd.f32 %v6494, %v6477
    %6496 = vadd.xlane.f32.xlu0 %v6495
    %v6497 = vpop.xlane.xlu0 %6496
    %v6498 = vadd.f32 %v6373, %v6375
    %v6499 = vadd.f32 %v6498, %v6479
    %v6500 = vadd.f32 %v6499, %v6481
    %6501 = vadd.xlane.f32.xlu0 %v6500
    %v6502 = vpop.xlane.xlu0 %6501
    %v6503 = vadd.f32 %v6379, %v6381
    %v6504 = vadd.f32 %v6503, %v6485
    %v6505 = vadd.f32 %v6504, %v6487
    %6506 = vadd.xlane.f32.xlu0 %v6505
    %v6507 = vpop.xlane.xlu0 %6506
    %v6508 = vadd.f32 %v6383, %v6385
    %v6509 = vadd.f32 %v6508, %v6489
    %v6510 = vadd.f32 %v6509, %v6491
    %6511 = vadd.xlane.f32.xlu0 %v6510
    %v6512 = vpop.xlane.xlu0 %6511
    %v6513 = vmul.f32 %v6497, 0.001953125
    %v6514 = vmul.f32 %v6502, 0.001953125
    %v6515 = vmul.f32 %v6507, 0.001953125
    %v6516 = vmul.f32 %v6512, 0.001953125
    %v6517 = vsub.f32 %v6369, %v6513
    %v6518 = vsub.f32 %v6371, %v6513
    %v6519 = vsub.f32 %v6475, %v6513
    %v6520 = vsub.f32 %v6477, %v6513
    %v6521 = vsub.f32 %v6373, %v6514
    %v6522 = vsub.f32 %v6375, %v6514
    %v6523 = vsub.f32 %v6479, %v6514
    %v6524 = vsub.f32 %v6481, %v6514
    %v6525 = vsub.f32 %v6379, %v6515
    %v6526 = vsub.f32 %v6381, %v6515
    %v6527 = vsub.f32 %v6485, %v6515
    %v6528 = vsub.f32 %v6487, %v6515
    %v6529 = vsub.f32 %v6383, %v6516
    %v6530 = vsub.f32 %v6385, %v6516
    %v6531 = vsub.f32 %v6489, %v6516
    %v6532 = vsub.f32 %v6491, %v6516
    %v6533 = vmul.f32 %v6517, %v6517
    %v6534 = vmul.f32 %v6518, %v6518
    %v6535 = vmul.f32 %v6519, %v6519
    %v6536 = vmul.f32 %v6520, %v6520
    %v6537 = vmul.f32 %v6521, %v6521
    %v6538 = vmul.f32 %v6522, %v6522
    %v6539 = vmul.f32 %v6523, %v6523
    %v6540 = vmul.f32 %v6524, %v6524
    %v6541 = vmul.f32 %v6525, %v6525
    %v6542 = vmul.f32 %v6526, %v6526
    %v6543 = vmul.f32 %v6527, %v6527
    %v6544 = vmul.f32 %v6528, %v6528
    %v6545 = vmul.f32 %v6529, %v6529
    %v6546 = vmul.f32 %v6530, %v6530
    %v6547 = vmul.f32 %v6531, %v6531
    %v6548 = vmul.f32 %v6532, %v6532
    %v6549 = vadd.f32 %v6533, %v6534
    %v6550 = vadd.f32 %v6549, %v6535
    %v6551 = vadd.f32 %v6550, %v6536
    %6552 = vadd.xlane.f32.xlu0 %v6551
    %v6553 = vpop.xlane.xlu0 %6552
    %v6554 = vadd.f32 %v6537, %v6538
    %v6555 = vadd.f32 %v6554, %v6539
    %v6556 = vadd.f32 %v6555, %v6540
    %6557 = vadd.xlane.f32.xlu0 %v6556
    %v6558 = vpop.xlane.xlu0 %6557
    %v6559 = vadd.f32 %v6541, %v6542
    %v6560 = vadd.f32 %v6559, %v6543
    %v6561 = vadd.f32 %v6560, %v6544
    %6562 = vadd.xlane.f32.xlu0 %v6561
    %v6563 = vpop.xlane.xlu0 %6562
    %v6564 = vadd.f32 %v6545, %v6546
    %v6565 = vadd.f32 %v6564, %v6547
    %v6566 = vadd.f32 %v6565, %v6548
    %6567 = vadd.xlane.f32.xlu0 %v6566
    %v6568 = vpop.xlane.xlu0 %6567
    %v6569 = vmul.f32 %v6553, 0.001953125
    %v6570 = vmul.f32 %v6558, 0.001953125
    %v6571 = vmul.f32 %v6563, 0.001953125
    %v6572 = vmul.f32 %v6568, 0.001953125
    %v6573 = vadd.f32 %v6569, 0.001
    %v6574 = vadd.f32 %v6570, 0.001
    %v6575 = vadd.f32 %v6571, 0.001
    %v6576 = vadd.f32 %v6572, 0.001
    %v6577 = vrsqrt.pop %v6573
    %v6578 = vrsqrt.pop %v6574
    %v6579 = vrsqrt.pop %v6575
    %v6580 = vrsqrt.pop %v6576
    %v6581 = vmul.f32 %v6577, %v196
    %v6582 = vmul.f32 %v6578, %v197
    %v6583 = vmul.f32 %v6579, %v198
    %v6584 = vmul.f32 %v6580, %v199
    %6586 = vset.pattern.permute.xlu0 10
    %6587 = vperm.xlu0 %6586, %v6581
    %v6588 = vpop.permute.xlu0 %6587
    %6591 = vset.pattern.permute.xlu0 10
    %6592 = vperm.xlu0 %6591, %v6582
    %v6593 = vpop.permute.xlu0 %6592
    %6596 = vset.pattern.permute.xlu0 10
    %6597 = vperm.xlu0 %6596, %v6583
    %v6598 = vpop.permute.xlu0 %6597
    %6601 = vset.pattern.permute.xlu0 10
    %6602 = vperm.xlu0 %6601, %v6584
    %v6603 = vpop.permute.xlu0 %6602
    %v6605 = vmul.f32 %v6517, %v6588
    %v6606 = vmul.f32 %v6518, %v6588
    %v6607 = vmul.f32 %v6519, %v6588
    %v6608 = vmul.f32 %v6520, %v6588
    %v6609 = vmul.f32 %v6521, %v6593
    %v6610 = vmul.f32 %v6522, %v6593
    %v6611 = vmul.f32 %v6523, %v6593
    %v6612 = vmul.f32 %v6524, %v6593
    %v6613 = vmul.f32 %v6525, %v6598
    %v6614 = vmul.f32 %v6526, %v6598
    %v6615 = vmul.f32 %v6527, %v6598
    %v6616 = vmul.f32 %v6528, %v6598
    %v6617 = vmul.f32 %v6529, %v6603
    %v6618 = vmul.f32 %v6530, %v6603
    %v6619 = vmul.f32 %v6531, %v6603
    %v6620 = vmul.f32 %v6532, %v6603
    %6621 = vset.pattern.permute.xlu0 11
    %6622 = vperm.xlu0 %6621, %v196
    %v6623 = vpop.permute.xlu0 %6622
    %6625 = vset.pattern.permute.xlu0 11
    %6626 = vperm.xlu0 %6625, %v197
    %v6627 = vpop.permute.xlu0 %6626
    %6629 = vset.pattern.permute.xlu0 11
    %6630 = vperm.xlu0 %6629, %v198
    %v6631 = vpop.permute.xlu0 %6630
    %6633 = vset.pattern.permute.xlu0 11
    %6634 = vperm.xlu0 %6633, %v199
    %v6635 = vpop.permute.xlu0 %6634
    %v6637 = vadd.f32 %v6605, %v6623
    %v6638 = vadd.f32 %v6606, %v6623
    %v6639 = vadd.f32 %v6607, %v6623
    %v6640 = vadd.f32 %v6608, %v6623
    %v6641 = vadd.f32 %v6609, %v6627
    %v6642 = vadd.f32 %v6610, %v6627
    %v6643 = vadd.f32 %v6611, %v6627
    %v6644 = vadd.f32 %v6612, %v6627
    %v6645 = vadd.f32 %v6613, %v6631
    %v6646 = vadd.f32 %v6614, %v6631
    %v6647 = vadd.f32 %v6615, %v6631
    %v6648 = vadd.f32 %v6616, %v6631
    %v6649 = vadd.f32 %v6617, %v6635
    %v6650 = vadd.f32 %v6618, %v6635
    %v6651 = vadd.f32 %v6619, %v6635
    %v6652 = vadd.f32 %v6620, %v6635
    %6653 = vset.pattern.permute.xlu0 6
    %6654 = vperm.xlu0 %6653, %v196
    %v6655 = vpop.permute.xlu0 %6654
    %6657 = vset.pattern.permute.xlu0 6
    %6658 = vperm.xlu0 %6657, %v197
    %v6659 = vpop.permute.xlu0 %6658
    %6661 = vset.pattern.permute.xlu0 6
    %6662 = vperm.xlu0 %6661, %v198
    %v6663 = vpop.permute.xlu0 %6662
    %6665 = vset.pattern.permute.xlu0 6
    %6666 = vperm.xlu0 %6665, %v199
    %v6667 = vpop.permute.xlu0 %6666
    %v6669 = vmul.f32 %v6655, %v4015
    %v6670 = vmul.f32 %v6655, %v4016
    %v6671 = vmul.f32 %v6655, %v4017
    %v6672 = vmul.f32 %v6655, %v4018
    %v6673 = vmul.f32 %v6659, %v4019
    %v6674 = vmul.f32 %v6659, %v4020
    %v6675 = vmul.f32 %v6659, %v4021
    %v6676 = vmul.f32 %v6659, %v4022
    %v6677 = vmul.f32 %v6663, %v4023
    %v6678 = vmul.f32 %v6663, %v4024
    %v6679 = vmul.f32 %v6663, %v4025
    %v6680 = vmul.f32 %v6663, %v4026
    %v6681 = vmul.f32 %v6667, %v4027
    %v6682 = vmul.f32 %v6667, %v4028
    %v6683 = vmul.f32 %v6667, %v4029
    %v6684 = vmul.f32 %v6667, %v4030
    %6685 = vset.pattern.permute.xlu0 7
    %6686 = vperm.xlu0 %6685, %v196
    %v6687 = vpop.permute.xlu0 %6686
    %6689 = vset.pattern.permute.xlu0 7
    %6690 = vperm.xlu0 %6689, %v197
    %v6691 = vpop.permute.xlu0 %6690
    %6693 = vset.pattern.permute.xlu0 7
    %6694 = vperm.xlu0 %6693, %v198
    %v6695 = vpop.permute.xlu0 %6694
    %6697 = vset.pattern.permute.xlu0 7
    %6698 = vperm.xlu0 %6697, %v199
    %v6699 = vpop.permute.xlu0 %6698
    %v6701 = vadd.f32 %v6669, %v6687
    %v6702 = vadd.f32 %v6670, %v6687
    %v6703 = vadd.f32 %v6671, %v6687
    %v6704 = vadd.f32 %v6672, %v6687
    %v6705 = vadd.f32 %v6673, %v6691
    %v6706 = vadd.f32 %v6674, %v6691
    %v6707 = vadd.f32 %v6675, %v6691
    %v6708 = vadd.f32 %v6676, %v6691
    %v6709 = vadd.f32 %v6677, %v6695
    %v6710 = vadd.f32 %v6678, %v6695
    %v6711 = vadd.f32 %v6679, %v6695
    %v6712 = vadd.f32 %v6680, %v6695
    %v6713 = vadd.f32 %v6681, %v6699
    %v6714 = vadd.f32 %v6682, %v6699
    %v6715 = vadd.f32 %v6683, %v6699
    %v6716 = vadd.f32 %v6684, %v6699
    %v6717 = vmul.f32 %v6637, %v6701
    %v6718 = vmul.f32 %v6638, %v6702
    %v6719 = vmul.f32 %v6639, %v6703
    %v6720 = vmul.f32 %v6640, %v6704
    %v6721 = vmul.f32 %v6641, %v6705
    %v6722 = vmul.f32 %v6642, %v6706
    %v6723 = vmul.f32 %v6643, %v6707
    %v6724 = vmul.f32 %v6644, %v6708
    %v6725 = vmul.f32 %v6645, %v6709
    %v6726 = vmul.f32 %v6646, %v6710
    %v6727 = vmul.f32 %v6647, %v6711
    %v6728 = vmul.f32 %v6648, %v6712
    %v6729 = vmul.f32 %v6649, %v6713
    %v6730 = vmul.f32 %v6650, %v6714
    %v6731 = vmul.f32 %v6651, %v6715
    %v6732 = vmul.f32 %v6652, %v6716
    %v6733 = vmin.f32 %v6717, 20.0
    %v6734 = vmin.f32 %v6718, 20.0
    %v6735 = vmin.f32 %v6719, 20.0
    %v6736 = vmin.f32 %v6720, 20.0
    %v6737 = vmin.f32 %v6721, 20.0
    %v6738 = vmin.f32 %v6722, 20.0
    %v6739 = vmin.f32 %v6723, 20.0
    %v6740 = vmin.f32 %v6724, 20.0
    %v6741 = vmin.f32 %v6725, 20.0
    %v6742 = vmin.f32 %v6726, 20.0
    %v6743 = vmin.f32 %v6727, 20.0
    %v6744 = vmin.f32 %v6728, 20.0
    %v6745 = vmin.f32 %v6729, 20.0
    %v6746 = vmin.f32 %v6730, 20.0
    %v6747 = vmin.f32 %v6731, 20.0
    %v6748 = vmin.f32 %v6732, 20.0
    %vm6749 = vcmp.gt.f32.partialorder %v6717, 20.0
    %vm6750 = vcmp.gt.f32.partialorder %v6718, 20.0
    %vm6751 = vcmp.gt.f32.partialorder %v6719, 20.0
    %vm6752 = vcmp.gt.f32.partialorder %v6720, 20.0
    %vm6753 = vcmp.gt.f32.partialorder %v6721, 20.0
    %vm6754 = vcmp.gt.f32.partialorder %v6722, 20.0
    %vm6755 = vcmp.gt.f32.partialorder %v6723, 20.0
    %vm6756 = vcmp.gt.f32.partialorder %v6724, 20.0
    %vm6757 = vcmp.gt.f32.partialorder %v6725, 20.0
    %vm6758 = vcmp.gt.f32.partialorder %v6726, 20.0
    %vm6759 = vcmp.gt.f32.partialorder %v6727, 20.0
    %vm6760 = vcmp.gt.f32.partialorder %v6728, 20.0
    %vm6761 = vcmp.gt.f32.partialorder %v6729, 20.0
    %vm6762 = vcmp.gt.f32.partialorder %v6730, 20.0
    %vm6763 = vcmp.gt.f32.partialorder %v6731, 20.0
    %vm6764 = vcmp.gt.f32.partialorder %v6732, 20.0
    %v6765 = vmul.f32 %v6733, 1.442695
    %v6766 = vpow.pop %v6765
    %v6767 = vmul.f32 %v6734, 1.442695
    %v6768 = vpow.pop %v6767
    %v6769 = vmul.f32 %v6735, 1.442695
    %v6770 = vpow.pop %v6769
    %v6771 = vmul.f32 %v6736, 1.442695
    %v6772 = vpow.pop %v6771
    %v6773 = vmul.f32 %v6737, 1.442695
    %v6774 = vpow.pop %v6773
    %v6775 = vmul.f32 %v6738, 1.442695
    %v6776 = vpow.pop %v6775
    %v6777 = vmul.f32 %v6739, 1.442695
    %v6778 = vpow.pop %v6777
    %v6779 = vmul.f32 %v6740, 1.442695
    %v6780 = vpow.pop %v6779
    %v6781 = vmul.f32 %v6741, 1.442695
    %v6782 = vpow.pop %v6781
    %v6783 = vmul.f32 %v6742, 1.442695
    %v6784 = vpow.pop %v6783
    %v6785 = vmul.f32 %v6743, 1.442695
    %v6786 = vpow.pop %v6785
    %v6787 = vmul.f32 %v6744, 1.442695
    %v6788 = vpow.pop %v6787
    %v6789 = vmul.f32 %v6745, 1.442695
    %v6790 = vpow.pop %v6789
    %v6791 = vmul.f32 %v6746, 1.442695
    %v6792 = vpow.pop %v6791
    %v6793 = vmul.f32 %v6747, 1.442695
    %v6794 = vpow.pop %v6793
    %v6795 = vmul.f32 %v6748, 1.442695
    %v6796 = vpow.pop %v6795
    %v6797 = vadd.f32 %v6766, 1.0
    %v6798 = vadd.f32 %v6768, 1.0
    %v6799 = vadd.f32 %v6770, 1.0
    %v6800 = vadd.f32 %v6772, 1.0
    %v6801 = vadd.f32 %v6774, 1.0
    %v6802 = vadd.f32 %v6776, 1.0
    %v6803 = vadd.f32 %v6778, 1.0
    %v6804 = vadd.f32 %v6780, 1.0
    %v6805 = vadd.f32 %v6782, 1.0
    %v6806 = vadd.f32 %v6784, 1.0
    %v6807 = vadd.f32 %v6786, 1.0
    %v6808 = vadd.f32 %v6788, 1.0
    %v6809 = vadd.f32 %v6790, 1.0
    %v6810 = vadd.f32 %v6792, 1.0
    %v6811 = vadd.f32 %v6794, 1.0
    %v6812 = vadd.f32 %v6796, 1.0
    %v6813 = vlog2.pop %v6797
    %v6814 = vmul.f32 %v6813, 0.6931472
    %v6815 = vlog2.pop %v6798
    %v6816 = vmul.f32 %v6815, 0.6931472
    %v6817 = vlog2.pop %v6799
    %v6818 = vmul.f32 %v6817, 0.6931472
    %v6819 = vlog2.pop %v6800
    %v6820 = vmul.f32 %v6819, 0.6931472
    %v6821 = vlog2.pop %v6801
    %v6822 = vmul.f32 %v6821, 0.6931472
    %v6823 = vlog2.pop %v6802
    %v6824 = vmul.f32 %v6823, 0.6931472
    %v6825 = vlog2.pop %v6803
    %v6826 = vmul.f32 %v6825, 0.6931472
    %v6827 = vlog2.pop %v6804
    %v6828 = vmul.f32 %v6827, 0.6931472
    %v6829 = vlog2.pop %v6805
    %v6830 = vmul.f32 %v6829, 0.6931472
    %v6831 = vlog2.pop %v6806
    %v6832 = vmul.f32 %v6831, 0.6931472
    %v6833 = vlog2.pop %v6807
    %v6834 = vmul.f32 %v6833, 0.6931472
    %v6835 = vlog2.pop %v6808
    %v6836 = vmul.f32 %v6835, 0.6931472
    %v6837 = vlog2.pop %v6809
    %v6838 = vmul.f32 %v6837, 0.6931472
    %v6839 = vlog2.pop %v6810
    %v6840 = vmul.f32 %v6839, 0.6931472
    %v6841 = vlog2.pop %v6811
    %v6842 = vmul.f32 %v6841, 0.6931472
    %v6843 = vlog2.pop %v6812
    %v6844 = vmul.f32 %v6843, 0.6931472
    %v6845 = vsel %vm6749, %v6717, %v6814
    %v6846 = vsel %vm6750, %v6718, %v6816
    %v6847 = vsel %vm6751, %v6719, %v6818
    %v6848 = vsel %vm6752, %v6720, %v6820
    %v6849 = vsel %vm6753, %v6721, %v6822
    %v6850 = vsel %vm6754, %v6722, %v6824
    %v6851 = vsel %vm6755, %v6723, %v6826
    %v6852 = vsel %vm6756, %v6724, %v6828
    %v6853 = vsel %vm6757, %v6725, %v6830
    %v6854 = vsel %vm6758, %v6726, %v6832
    %v6855 = vsel %vm6759, %v6727, %v6834
    %v6856 = vsel %vm6760, %v6728, %v6836
    %v6857 = vsel %vm6761, %v6729, %v6838
    %v6858 = vsel %vm6762, %v6730, %v6840
    %v6859 = vsel %vm6763, %v6731, %v6842
    %v6860 = vsel %vm6764, %v6732, %v6844
    %v6861 = vsub.f32 1.0, %v4111
    %v6862 = vsub.f32 1.0, %v4112
    %v6863 = vsub.f32 1.0, %v4113
    %v6864 = vsub.f32 1.0, %v4114
    %v6865 = vsub.f32 1.0, %v4115
    %v6866 = vsub.f32 1.0, %v4116
    %v6867 = vsub.f32 1.0, %v4117
    %v6868 = vsub.f32 1.0, %v4118
    %v6869 = vsub.f32 1.0, %v4119
    %v6870 = vsub.f32 1.0, %v4120
    %v6871 = vsub.f32 1.0, %v4121
    %v6872 = vsub.f32 1.0, %v4122
    %v6873 = vsub.f32 1.0, %v4123
    %v6874 = vsub.f32 1.0, %v4124
    %v6875 = vsub.f32 1.0, %v4125
    %v6876 = vsub.f32 1.0, %v4126
    %v6877 = vmul.f32 %v6861, %v160
    %v6878 = vmul.f32 %v6862, %v161
    %v6879 = vmul.f32 %v6863, %v162
    %v6880 = vmul.f32 %v6864, %v163
    %v6881 = vmul.f32 %v6865, %v164
    %v6882 = vmul.f32 %v6866, %v165
    %v6883 = vmul.f32 %v6867, %v166
    %v6884 = vmul.f32 %v6868, %v167
    %v6885 = vmul.f32 %v6869, %v168
    %v6886 = vmul.f32 %v6870, %v169
    %v6887 = vmul.f32 %v6871, %v170
    %v6888 = vmul.f32 %v6872, %v171
    %v6889 = vmul.f32 %v6873, %v172
    %v6890 = vmul.f32 %v6874, %v173
    %v6891 = vmul.f32 %v6875, %v174
    %v6892 = vmul.f32 %v6876, %v175
    %v6893 = vmul.f32 %v4111, %v6845
    %v6894 = vmul.f32 %v4112, %v6846
    %v6895 = vmul.f32 %v4113, %v6847
    %v6896 = vmul.f32 %v4114, %v6848
    %v6897 = vmul.f32 %v4115, %v6849
    %v6898 = vmul.f32 %v4116, %v6850
    %v6899 = vmul.f32 %v4117, %v6851
    %v6900 = vmul.f32 %v4118, %v6852
    %v6901 = vmul.f32 %v4119, %v6853
    %v6902 = vmul.f32 %v4120, %v6854
    %v6903 = vmul.f32 %v4121, %v6855
    %v6904 = vmul.f32 %v4122, %v6856
    %v6905 = vmul.f32 %v4123, %v6857
    %v6906 = vmul.f32 %v4124, %v6858
    %v6907 = vmul.f32 %v4125, %v6859
    %v6908 = vmul.f32 %v4126, %v6860
    %v6909 = vadd.f32 %v6877, %v6893
    %v6910 = vadd.f32 %v6878, %v6894
    %v6911 = vadd.f32 %v6879, %v6895
    %v6912 = vadd.f32 %v6880, %v6896
    %v6913 = vadd.f32 %v6881, %v6897
    %v6914 = vadd.f32 %v6882, %v6898
    %v6915 = vadd.f32 %v6883, %v6899
    %v6916 = vadd.f32 %v6884, %v6900
    %v6917 = vadd.f32 %v6885, %v6901
    %v6918 = vadd.f32 %v6886, %v6902
    %v6919 = vadd.f32 %v6887, %v6903
    %v6920 = vadd.f32 %v6888, %v6904
    %v6921 = vadd.f32 %v6889, %v6905
    %v6922 = vadd.f32 %v6890, %v6906
    %v6923 = vadd.f32 %v6891, %v6907
    %v6924 = vadd.f32 %v6892, %v6908
    %6925 = vst [vmem:[#allocation2] sm:$0xff] %v6909
    %6926 = vst [vmem:[#allocation2 + $0x8] sm:$0xff] %v6910
    %6927 = vst [vmem:[#allocation2 + $0x10] sm:$0xff] %v6911
    %6928 = vst [vmem:[#allocation2 + $0x18] sm:$0xff] %v6912
    %6929 = vst [vmem:[#allocation2 + $0x20] sm:$0xff] %v6913
    %6930 = vst [vmem:[#allocation2 + $0x28] sm:$0xff] %v6914
    %6931 = vst [vmem:[#allocation2 + $0x30] sm:$0xff] %v6915
    %6932 = vst [vmem:[#allocation2 + $0x38] sm:$0xff] %v6916
    %6933 = vst [vmem:[#allocation2 + $0x40] sm:$0xff] %v6917
    %6934 = vst [vmem:[#allocation2 + $0x48] sm:$0xff] %v6918
    %6935 = vst [vmem:[#allocation2 + $0x50] sm:$0xff] %v6919
    %6936 = vst [vmem:[#allocation2 + $0x58] sm:$0xff] %v6920
    %6937 = vst [vmem:[#allocation2 + $0x60] sm:$0xff] %v6921
    %6938 = vst [vmem:[#allocation2 + $0x68] sm:$0xff] %v6922
    %6939 = vst [vmem:[#allocation2 + $0x70] sm:$0xff] %v6923
    %6940 = vst [vmem:[#allocation2 + $0x78] sm:$0xff] %v6924
    %6941 = vst [vmem:[#allocation2 + $0x80] sm:$0xff] %v4015
    %6942 = vst [vmem:[#allocation2 + $0x88] sm:$0xff] %v4016
    %6943 = vst [vmem:[#allocation2 + $0x90] sm:$0xff] %v4017
    %6944 = vst [vmem:[#allocation2 + $0x98] sm:$0xff] %v4018
    %6945 = vst [vmem:[#allocation2 + $0xa0] sm:$0xff] %v4019
    %6946 = vst [vmem:[#allocation2 + $0xa8] sm:$0xff] %v4020
    %6947 = vst [vmem:[#allocation2 + $0xb0] sm:$0xff] %v4021
    %6948 = vst [vmem:[#allocation2 + $0xb8] sm:$0xff] %v4022
    %6949 = vst [vmem:[#allocation2 + $0xc0] sm:$0xff] %v4023
    %6950 = vst [vmem:[#allocation2 + $0xc8] sm:$0xff] %v4024
    %6951 = vst [vmem:[#allocation2 + $0xd0] sm:$0xff] %v4025
    %6952 = vst [vmem:[#allocation2 + $0xd8] sm:$0xff] %v4026
    %6953 = vst [vmem:[#allocation2 + $0xe0] sm:$0xff] %v4027
    %6954 = vst [vmem:[#allocation2 + $0xe8] sm:$0xff] %v4028
    %6955 = vst [vmem:[#allocation2 + $0xf0] sm:$0xff] %v4029
    %6956 = vst [vmem:[#allocation2 + $0xf8] sm:$0xff] %v4030
    %6957 = vst [vmem:[#allocation13] sm:$0xff] %v6909
    %6958 = vst [vmem:[#allocation13 + $0x8] sm:$0xff] %v6910
    %6959 = vst [vmem:[#allocation13 + $0x10] sm:$0xff] %v6911
    %6960 = vst [vmem:[#allocation13 + $0x18] sm:$0xff] %v6912
    %6961 = vst [vmem:[#allocation13 + $0x20] sm:$0xff] %v6913
    %6962 = vst [vmem:[#allocation13 + $0x28] sm:$0xff] %v6914
    %6963 = vst [vmem:[#allocation13 + $0x30] sm:$0xff] %v6915
    %6964 = vst [vmem:[#allocation13 + $0x38] sm:$0xff] %v6916
    %6965 = vst [vmem:[#allocation13 + $0x40] sm:$0xff] %v6917
    %6966 = vst [vmem:[#allocation13 + $0x48] sm:$0xff] %v6918
    %6967 = vst [vmem:[#allocation13 + $0x50] sm:$0xff] %v6919
    %6968 = vst [vmem:[#allocation13 + $0x58] sm:$0xff] %v6920
    %6969 = vst [vmem:[#allocation13 + $0x60] sm:$0xff] %v6921
    %6970 = vst [vmem:[#allocation13 + $0x68] sm:$0xff] %v6922
    %6971 = vst [vmem:[#allocation13 + $0x70] sm:$0xff] %v6923
    %6972 = vst [vmem:[#allocation13 + $0x78] sm:$0xff] %v6924
    %6973 = vst [vmem:[#allocation13 + $0x80] sm:$0xff] %v4015
    %6974 = vst [vmem:[#allocation13 + $0x88] sm:$0xff] %v4016
    %6975 = vst [vmem:[#allocation13 + $0x90] sm:$0xff] %v4017
    %6976 = vst [vmem:[#allocation13 + $0x98] sm:$0xff] %v4018
    %6977 = vst [vmem:[#allocation13 + $0xa0] sm:$0xff] %v4019
    %6978 = vst [vmem:[#allocation13 + $0xa8] sm:$0xff] %v4020
    %6979 = vst [vmem:[#allocation13 + $0xb0] sm:$0xff] %v4021
    %6980 = vst [vmem:[#allocation13 + $0xb8] sm:$0xff] %v4022
    %6981 = vst [vmem:[#allocation13 + $0xc0] sm:$0xff] %v4023
    %6982 = vst [vmem:[#allocation13 + $0xc8] sm:$0xff] %v4024
    %6983 = vst [vmem:[#allocation13 + $0xd0] sm:$0xff] %v4025
    %6984 = vst [vmem:[#allocation13 + $0xd8] sm:$0xff] %v4026
    %6985 = vst [vmem:[#allocation13 + $0xe0] sm:$0xff] %v4027
    %6986 = vst [vmem:[#allocation13 + $0xe8] sm:$0xff] %v4028
    %6987 = vst [vmem:[#allocation13 + $0xf0] sm:$0xff] %v4029
    %6988 = vst [vmem:[#allocation13 + $0xf8] sm:$0xff] %v4030
    // Predicated region
    $region54: #{tpu_custom_call.1} parent=1 // pred_check
      _
    $region55: #{tpu_custom_call.1} parent=1 // pred_check_branch
      %6990 = sbr.rel (0) target = $region57
    $region56: #{tpu_custom_call.1} parent=1 // pred_region
      %s6992 = ssub.s32 4096, 4096
      %6993 = vsyncadd [#allocation7], %s6992
      %s6994 = sshll.u32 [#allocation13], 4
      %s6995 = int_to_ptr.vmem [resolvable:$true] %s6994
      %7000 = dma.vmem_to_hbm [thread:$0]  %s6995, 4096, %s8, [#allocation7], 512, 512, 32
    $region57: #{tpu_custom_call.1} parent=1 // pred_fallthru
      _
    // Predicated region
    $region58: #{tpu_custom_call.1} parent=1 // pred_check
      _
    $region59: #{tpu_custom_call.1} parent=1 // pred_check_branch
      %7002 = sbr.rel (0) target = $region61
    $region60: #{tpu_custom_call.1} parent=1 // pred_region
      %7003 = dma.done [#allocation7], 4096
    $region61: #{tpu_custom_call.1} parent=1 // pred_fallthru
      _
    %7004 = vsyncpa [#allocation6], 1
    %7005 = vsyncpa [#allocation9], 1
    %7006 = vsyncpa [#allocation12], 1
    %7007 = vsyncpa [#allocation7], 1

</llo_original>
